<compile_context>
chip_gen: v5e
topology: v5e:2x2
jax: 0.10.0
libtpu: 0.0.40
codegen_flags: <defaults>
</compile_context>

<pallas_src>
import functools

import numpy as np
import jax
import jax.numpy as jnp
from jax.experimental import pallas as pl
from jax.experimental.pallas import tpu as pltpu


# ----------------------------------------------------------------------------
# Fused Pallas kernel: 4 conv layers x 2 critics for one image.
# ----------------------------------------------------------------------------
def _fused_critic_kernel(x_ref, w1_ref, b1_ref, w2_ref, b2_ref, w3_ref, b3_ref,
                         w4_ref, b4_ref, o_ref, pad_ref, *,
                         H, W, apply_softmax, crop, n_out):
    """One image: conv-relu, conv-relu, conv(+res)-relu, conv (+opt. softmax).

    x_ref   : (1, H+2, W+2, Cin)      halo-padded, normalised input image
    wN_ref  : (9, Cin_l, Cout_l)      3x3 taps in row-major (ky, kx) order,
                                      both critics stacked (block-diagonal)
    bN_ref  : (1, Cout_l)
    o_ref   : (1, H, W, 2*n_out)
    pad_ref : (H+2, Wp, C2) VMEM      halo scratch; interior lives at
                                      columns [8, 8+W) (sublane aligned).
    """
    f32 = jnp.float32
    Cin = x_ref.shape[-1]
    C2 = w2_ref.shape[-1]          # stacked hidden width (2 * hidden)
    C6 = w4_ref.shape[-1]          # stacked output width (2 * n_out)
    LEFT = 8                       # sublane-aligned column of the interior

    # ----- layer 1: 3x3 conv on the halo-padded input ------------------------
    x = x_ref[0]                                          # (H+2, W+2, Cin)
    acc = jnp.zeros((H * W, C2), f32)
    for ky in range(3):
        for kx in range(3):
            tap = x[ky:ky + H, kx:kx + W, :].reshape(H * W, Cin)
            acc = acc + jnp.dot(tap, w1_ref[ky * 3 + kx],
                                preferred_element_type=f32)
    h1 = jnp.maximum(acc + b1_ref[...], 0.0)              # (H*W, C2)

    # Zero the halo scratch once per image; only the interior window is
    # rewritten afterwards so the zero border survives across layers.
    pad_ref[...] = jnp.zeros_like(pad_ref)

    def stash(h):
        # aligned store: dim0 is untiled, dim1 offset 8 is sublane aligned.
        pad_ref[1:H + 1, LEFT:LEFT + W, :] = h.reshape(H, W, C2)

    def conv_from_pad(w_ref, cout_l):
        acc = jnp.zeros((H * W, cout_l), f32)
        for ky in range(3):
            chunk = pad_ref[ky:ky + H, :, :]              # aligned window load
            for kx in range(3):
                tap = chunk[:, LEFT - 1 + kx:LEFT - 1 + kx + W, :]
                acc = acc + jnp.dot(tap.reshape(H * W, C2),
                                    w_ref[ky * 3 + kx],
                                    preferred_element_type=f32)
        return acc

    stash(h1)
    h2 = jnp.maximum(conv_from_pad(w2_ref, C2) + b2_ref[...], 0.0)
    stash(h2)
    h3 = jnp.maximum(conv_from_pad(w3_ref, C2) + b3_ref[...] + h1, 0.0)  # residual
    stash(h3)
    out = conv_from_pad(w4_ref, C6) + b4_ref[...]          # (H*W, C6) raw logits

    if apply_softmax:
        # Softmax over the *cropped*, flattened logits of each critic, fused
        # in-kernel so the softmax_bool path costs no extra kernel launch.
        ph, pw, Ho, Wo = crop
        rows = jax.lax.broadcasted_iota(jnp.int32, (H * W, 1), 0)
        hh = rows // W
        ww = rows - hh * W
        in_crop = ((hh >= ph) & (hh < ph + Ho) &
                   (ww >= pw) & (ww < pw + Wo))            # (H*W, 1)
        ch = jax.lax.broadcasted_iota(jnp.int32, (1, C6), 1)
        is_c1 = ch < n_out                                 # (1, C6)

        def stats(valid):
            masked = jnp.where(valid, out, jnp.float32(-1e30))
            m = jnp.max(jnp.max(masked, axis=1, keepdims=True),
                        axis=0, keepdims=True)             # (1, 1)
            e = jnp.where(valid, jnp.exp(out - m), 0.0)
            s = jnp.sum(jnp.sum(e, axis=1, keepdims=True),
                        axis=0, keepdims=True)             # (1, 1)
            return m, s

        m1, s1 = stats(in_crop & is_c1)
        m2, s2 = stats(in_crop & jnp.logical_not(is_c1))
        m_sel = jnp.where(is_c1, m1, m2)                   # (1, C6)
        s_sel = jnp.where(is_c1, s1, s2)
        out = jnp.exp(out - m_sel) * pl.reciprocal(s_sel, approx=True)

    o_ref[0] = out.reshape(H, W, C6)


def _fused_critic_pair(xp, weights, *, H, W, apply_softmax, crop, n_out):
    """xp: (B, H+2, W+2, Cin) -> (B, H, W, 2*n_out) logits for both critics."""
    w1, b1, w2, b2, w3, b3, w4, b4 = weights
    B = xp.shape[0]
    Cin = xp.shape[-1]
    C2 = w2.shape[-1]
    C6 = w4.shape[-1]
    w_pad = ((8 + W + 1 + 7) // 8) * 8      # halo scratch width (aligned)

    kernel = functools.partial(_fused_critic_kernel, H=H, W=W,
                               apply_softmax=apply_softmax, crop=crop,
                               n_out=n_out)
    return pl.pallas_call(
        kernel,
        out_shape=jax.ShapeDtypeStruct((B, H, W, C6), jnp.float32),
        grid=(B,),
        in_specs=[
            pl.BlockSpec((1, H + 2, W + 2, Cin), lambda i: (i, 0, 0, 0)),
            pl.BlockSpec((9, Cin, C2), lambda i: (0, 0, 0)),
            pl.BlockSpec((1, C2), lambda i: (0, 0)),
            pl.BlockSpec((9, C2, C2), lambda i: (0, 0, 0)),
            pl.BlockSpec((1, C2), lambda i: (0, 0)),
            pl.BlockSpec((9, C2, C2), lambda i: (0, 0, 0)),
            pl.BlockSpec((1, C2), lambda i: (0, 0)),
            pl.BlockSpec((9, C2, C6), lambda i: (0, 0, 0)),
            pl.BlockSpec((1, C6), lambda i: (0, 0)),
        ],
        out_specs=pl.BlockSpec((1, H, W, C6), lambda i: (i, 0, 0, 0)),
        scratch_shapes=[pltpu.VMEM((H + 2, w_pad, C2), jnp.float32)],
        compiler_params=pltpu.CompilerParams(
            dimension_semantics=("parallel",)),
    )(xp, w1, b1, w2, b2, w3, b3, w4, b4)


# ----------------------------------------------------------------------------
# Parameters: two critics, stacked into one block-diagonal set of weights.
# ----------------------------------------------------------------------------
def _init_critic_params(key, cin, hidden, cout):
    ks = jax.random.split(key, 4)

    def w(k, ci, co):
        return jax.random.normal(k, (9, ci, co), jnp.float32) / np.sqrt(9.0 * ci)

    def b(co):
        return jnp.zeros((1, co), jnp.float32)

    return dict(w_in=w(ks[0], cin, hidden), b_in=b(hidden),
                w_a=w(ks[1], hidden, hidden), b_a=b(hidden),
                w_b=w(ks[2], hidden, hidden), b_b=b(hidden),
                w_out=w(ks[3], hidden, cout), b_out=b(cout))


def _block_stack(wa, wb):
    """Per-tap block-diagonal stack: [[wa, 0], [0, wb]]."""
    t, ca, coa = wa.shape
    _, cb, cob = wb.shape
    top = jnp.concatenate([wa, jnp.zeros((t, ca, cob), wa.dtype)], axis=2)
    bot = jnp.concatenate([jnp.zeros((t, cb, coa), wb.dtype), wb], axis=2)
    return jnp.concatenate([top, bot], axis=1)


def _stack_two_critics(p1, p2):
    w1 = jnp.concatenate([p1["w_in"], p2["w_in"]], axis=2)   # shared input
    b1 = jnp.concatenate([p1["b_in"], p2["b_in"]], axis=1)
    w2 = _block_stack(p1["w_a"], p2["w_a"])
    b2 = jnp.concatenate([p1["b_a"], p2["b_a"]], axis=1)
    w3 = _block_stack(p1["w_b"], p2["w_b"])
    b3 = jnp.concatenate([p1["b_b"], p2["b_b"]], axis=1)
    w4 = _block_stack(p1["w_out"], p2["w_out"])
    b4 = jnp.concatenate([p1["b_out"], p2["b_out"]], axis=1)
    return (w1, b1, w2, b2, w3, b3, w4, b4)


# ----------------------------------------------------------------------------
# Critic (JAX/Pallas port of the torch module's forward)
# ----------------------------------------------------------------------------
class CriticPallas:
    def __init__(self, input_shape, output_channels, key, hidden=32):
        self.in_shape = tuple(int(v) for v in input_shape)   # (H, W, C)
        self.output_channels = int(output_channels)
        max_dim = int(np.max(np.array(self.in_shape[:2])))
        self.padding = np.zeros((3, 2), dtype=int)
        pad = (max_dim - np.array(self.in_shape[:2])) / 2
        self.padding[:2] = pad.reshape(2, 1)

        # padded ("square") spatial size actually fed to the conv stack
        self.Hs = self.in_shape[0] + int(self.padding[0, 0]) + int(self.padding[0, 1])
        self.Ws = self.in_shape[1] + int(self.padding[1, 0]) + int(self.padding[1, 1])

        k1, k2 = jax.random.split(key)
        cin = self.in_shape[2]
        self.params_1 = _init_critic_params(k1, cin, hidden, self.output_channels)
        self.params_2 = _init_critic_params(k2, cin, hidden, self.output_channels)
        self.stacked = _stack_two_critics(self.params_1, self.params_2)

        self._fwd = {False: self._build_forward(False),
                     True: self._build_forward(True)}

    # -- equivalent of resize_input_img / process_img / normalize -------------
    def preprocess(self, input_img):
        x = jnp.asarray(input_img, jnp.float32)
        if x.ndim == 3:
            x = x[None]
        p = self.padding
        x = jnp.pad(x, ((0, 0),
                        (int(p[0, 0]), int(p[0, 1])),
                        (int(p[1, 0]), int(p[1, 1])),
                        (int(p[2, 0]), int(p[2, 1]))))
        return x / 255.0

    def _build_forward(self, apply_softmax):
        Hs, Ws = self.Hs, self.Ws
        Ho, Wo, _ = self.in_shape
        ph, pw = int(self.padding[0, 0]), int(self.padding[1, 0])
        n_out = self.output_channels
        crop = (ph, pw, Ho, Wo)

        def fwd(img, weights):
            x = self.preprocess(img)                            # (B, Hs, Ws, Cin)
            xp = jnp.pad(x, ((0, 0), (1, 1), (1, 1), (0, 0)))   # conv halo
            logits = _fused_critic_pair(xp, weights, H=Hs, W=Ws,
                                        apply_softmax=apply_softmax,
                                        crop=crop, n_out=n_out)
            cropped = logits[:, ph:ph + Ho, pw:pw + Wo, :]
            out1 = cropped[..., :n_out]
            out2 = cropped[..., n_out:]
            if apply_softmax:
                # Kernel epilogue already applied softmax over the flattened
                # cropped logits of each critic.
                # TODO(synk): torch reference reshapes to logits.shape[1:]
                # (drops the batch dim, only valid for B==1 / no crop); we
                # return a per-image (B, Ho, Wo, C) layout instead.
                return out1, out2
            return (out1.reshape(out1.shape[0], -1),   # 'b h w c -> b (h w c)'
                    out2.reshape(out2.shape[0], -1))

        return jax.jit(fwd)

    def forward(self, input_img, softmax_bool):
        return self._fwd[bool(softmax_bool)](jnp.asarray(input_img), self.stacked)

    __call__ = forward


# ----------------------------------------------------------------------------
# Pure-jnp reference of one (un-stacked) critic, for a numerical self-check.
# ----------------------------------------------------------------------------
def _reference_single_critic(x_sq, params, H, W):
    def conv(ap, w, b):                                   # ap: (B, H+2, W+2, C)
        acc = None
        for ky in range(3):
            for kx in range(3):
                tap = ap[:, ky:ky + H, kx:kx + W, :]
                t = jnp.einsum("bhwc,co->bhwo", tap, w[ky * 3 + kx],
                               precision=jax.lax.Precision.HIGHEST)
                acc = t if acc is None else acc + t
        return acc + b.reshape(1, 1, 1, -1)

    def halo(h):
        return jnp.pad(h, ((0, 0), (1, 1), (1, 1), (0, 0)))

    h1 = jax.nn.relu(conv(halo(x_sq), params["w_in"], params["b_in"]))
    h2 = jax.nn.relu(conv(halo(h1), params["w_a"], params["b_a"]))
    h3 = jax.nn.relu(conv(halo(h2), params["w_b"], params["b_b"]) + h1)
    return conv(halo(h3), params["w_out"], params["b_out"])   # (B, H, W, cout)


# ----------------------------------------------------------------------------
if __name__ == "__main__":
    key = jax.random.PRNGKey(0)
    in_shape = (16, 12, 4)          # (H, W, C) -> padded to 16x16 inside forward
    output_channels = 3
    batch = 2

    critic = CriticPallas(in_shape, output_channels, key)

    img_key, _ = jax.random.split(key)
    input_img = jax.random.uniform(img_key, (batch,) + in_shape,
                                   jnp.float32, 0.0, 255.0)

    # ---- raw-logits path -----------------------------------------------------
    out_1, out_2 = critic.forward(input_img, softmax_bool=False)
    jax.block_until_ready((out_1, out_2))

    expected = (batch, in_shape[0] * in_shape[1] * output_channels)
    assert out_1.shape == expected and out_2.shape == expected, (out_1.shape, expected)
    assert bool(jnp.all(jnp.isfinite(out_1))) and bool(jnp.all(jnp.isfinite(out_2)))

    # numerical self-check against a pure-jnp reference of the same network
    x_sq = critic.preprocess(input_img)
    ph, pw = int(critic.padding[0, 0]), int(critic.padding[1, 0])
    Ho, Wo, _ = critic.in_shape
    for ref_params, got in ((critic.params_1, out_1), (critic.params_2, out_2)):
        ref = _reference_single_critic(x_sq, ref_params, critic.Hs, critic.Ws)
        ref = ref[:, ph:ph + Ho, pw:pw + Wo, :].reshape(batch, -1)
        err = float(jnp.max(jnp.abs(ref - got)))
        assert err < 5e-2, f"mismatch vs reference: {err}"

    # ---- softmax path ----------------------------------------------------------
    sm_1, sm_2 = critic.forward(input_img, softmax_bool=True)
    jax.block_until_ready((sm_1, sm_2))
    assert sm_1.shape == (batch, Ho, Wo, output_channels), sm_1.shape
    assert bool(jnp.all(jnp.isfinite(sm_1))) and bool(jnp.all(jnp.isfinite(sm_2)))
    sums = jnp.sum(sm_1.reshape(batch, -1), axis=1)
    assert bool(jnp.all(jnp.abs(sums - 1.0) < 5e-2)), sums

    print("KERNEL_OK")
</pallas_src>

<mosaic_0001>
module attributes {stable_mosaic.version = 11 : i64} {
  func.func @_fused_critic_kernel(%arg0: i32, %arg1: memref<1x18x18x4xf32, #tpu.memory_space<vmem>>, %arg2: memref<9x4x64xf32, #tpu.memory_space<vmem>>, %arg3: memref<1x64xf32, #tpu.memory_space<vmem>>, %arg4: memref<9x64x64xf32, #tpu.memory_space<vmem>>, %arg5: memref<1x64xf32, #tpu.memory_space<vmem>>, %arg6: memref<9x64x64xf32, #tpu.memory_space<vmem>>, %arg7: memref<1x64xf32, #tpu.memory_space<vmem>>, %arg8: memref<9x64x6xf32, #tpu.memory_space<vmem>>, %arg9: memref<1x6xf32, #tpu.memory_space<vmem>>, %arg10: memref<1x16x16x6xf32, #tpu.memory_space<vmem>>, %arg11: memref<18x32x64xf32, #tpu.memory_space<vmem>>) attributes {dimension_semantics = [#tpu.dimension_semantics<parallel>], iteration_bounds = array<i64: 2>, scalar_prefetch = 0 : i64, scratch_operands = 1 : i64, tpu.core_type = #tpu.core_type<tc>, window_params = [{transform_indices = @transform_0, window_bounds = array<i64: 1, 18, 18, 4>}, {pipeline_mode = #tpu.pipeline_mode<synchronous>, transform_indices = @transform_1, window_bounds = array<i64: 9, 4, 64>}, {pipeline_mode = #tpu.pipeline_mode<synchronous>, transform_indices = @transform_2, window_bounds = array<i64: 1, 64>}, {pipeline_mode = #tpu.pipeline_mode<synchronous>, transform_indices = @transform_3, window_bounds = array<i64: 9, 64, 64>}, {pipeline_mode = #tpu.pipeline_mode<synchronous>, transform_indices = @transform_4, window_bounds = array<i64: 1, 64>}, {pipeline_mode = #tpu.pipeline_mode<synchronous>, transform_indices = @transform_5, window_bounds = array<i64: 9, 64, 64>}, {pipeline_mode = #tpu.pipeline_mode<synchronous>, transform_indices = @transform_6, window_bounds = array<i64: 1, 64>}, {pipeline_mode = #tpu.pipeline_mode<synchronous>, transform_indices = @transform_7, window_bounds = array<i64: 9, 64, 6>}, {pipeline_mode = #tpu.pipeline_mode<synchronous>, transform_indices = @transform_8, window_bounds = array<i64: 1, 6>}, {transform_indices = @transform_9, window_bounds = array<i64: 1, 16, 16, 6>}]} {
    %c0 = arith.constant 0 : index
    %c0_0 = arith.constant 0 : index
    %c0_1 = arith.constant 0 : index
    %c0_2 = arith.constant 0 : index
    %0 = vector.load %arg1[%c0, %c0_0, %c0_1, %c0_2] : memref<1x18x18x4xf32, #tpu.memory_space<vmem>>, vector<1x18x18x4xf32>
    %1 = vector.shape_cast %0 : vector<1x18x18x4xf32> to vector<18x18x4xf32>
    %cst = arith.constant 0.000000e+00 : f32
    %2 = vector.broadcast %cst : f32 to vector<256x64xf32>
    %3 = vector.extract_strided_slice %1 {offsets = [0, 0, 0], sizes = [16, 16, 4], strides = [1, 1, 1]} : vector<18x18x4xf32> to vector<16x16x4xf32>
    %4 = vector.shape_cast %3 : vector<16x16x4xf32> to vector<256x4xf32>
    %c0_3 = arith.constant 0 : index
    %c0_4 = arith.constant 0 : index
    %c0_5 = arith.constant 0 : index
    %5 = vector.load %arg2[%c0_3, %c0_4, %c0_5] : memref<9x4x64xf32, #tpu.memory_space<vmem>>, vector<1x4x64xf32>
    %6 = vector.shape_cast %5 : vector<1x4x64xf32> to vector<4x64xf32>
    %cst_6 = arith.constant dense<0.000000e+00> : vector<256x64xf32>
    %7 = tpu.matmul %4, %6, %cst_6 {dimension_numbers = #tpu.dot_dimension_numbers<[1], [0], [0], [1], [0, 0, 1, 1], [], []>} : vector<256x4xf32>, vector<4x64xf32>, vector<256x64xf32> -> vector<256x64xf32>
    %8 = arith.addf %2, %7 : vector<256x64xf32>
    %9 = vector.extract_strided_slice %1 {offsets = [0, 1, 0], sizes = [16, 16, 4], strides = [1, 1, 1]} : vector<18x18x4xf32> to vector<16x16x4xf32>
    %10 = vector.shape_cast %9 : vector<16x16x4xf32> to vector<256x4xf32>
    %c1 = arith.constant 1 : index
    %c0_7 = arith.constant 0 : index
    %c0_8 = arith.constant 0 : index
    %11 = vector.load %arg2[%c1, %c0_7, %c0_8] : memref<9x4x64xf32, #tpu.memory_space<vmem>>, vector<1x4x64xf32>
    %12 = vector.shape_cast %11 : vector<1x4x64xf32> to vector<4x64xf32>
    %cst_9 = arith.constant dense<0.000000e+00> : vector<256x64xf32>
    %13 = tpu.matmul %10, %12, %cst_9 {dimension_numbers = #tpu.dot_dimension_numbers<[1], [0], [0], [1], [0, 0, 1, 1], [], []>} : vector<256x4xf32>, vector<4x64xf32>, vector<256x64xf32> -> vector<256x64xf32>
    %14 = arith.addf %8, %13 : vector<256x64xf32>
    %15 = vector.extract_strided_slice %1 {offsets = [0, 2, 0], sizes = [16, 16, 4], strides = [1, 1, 1]} : vector<18x18x4xf32> to vector<16x16x4xf32>
    %16 = vector.shape_cast %15 : vector<16x16x4xf32> to vector<256x4xf32>
    %c2 = arith.constant 2 : index
    %c0_10 = arith.constant 0 : index
    %c0_11 = arith.constant 0 : index
    %17 = vector.load %arg2[%c2, %c0_10, %c0_11] : memref<9x4x64xf32, #tpu.memory_space<vmem>>, vector<1x4x64xf32>
    %18 = vector.shape_cast %17 : vector<1x4x64xf32> to vector<4x64xf32>
    %cst_12 = arith.constant dense<0.000000e+00> : vector<256x64xf32>
    %19 = tpu.matmul %16, %18, %cst_12 {dimension_numbers = #tpu.dot_dimension_numbers<[1], [0], [0], [1], [0, 0, 1, 1], [], []>} : vector<256x4xf32>, vector<4x64xf32>, vector<256x64xf32> -> vector<256x64xf32>
    %20 = arith.addf %14, %19 : vector<256x64xf32>
    %21 = vector.extract_strided_slice %1 {offsets = [1, 0, 0], sizes = [16, 16, 4], strides = [1, 1, 1]} : vector<18x18x4xf32> to vector<16x16x4xf32>
    %22 = vector.shape_cast %21 : vector<16x16x4xf32> to vector<256x4xf32>
    %c3 = arith.constant 3 : index
    %c0_13 = arith.constant 0 : index
    %c0_14 = arith.constant 0 : index
    %23 = vector.load %arg2[%c3, %c0_13, %c0_14] : memref<9x4x64xf32, #tpu.memory_space<vmem>>, vector<1x4x64xf32>
    %24 = vector.shape_cast %23 : vector<1x4x64xf32> to vector<4x64xf32>
    %cst_15 = arith.constant dense<0.000000e+00> : vector<256x64xf32>
    %25 = tpu.matmul %22, %24, %cst_15 {dimension_numbers = #tpu.dot_dimension_numbers<[1], [0], [0], [1], [0, 0, 1, 1], [], []>} : vector<256x4xf32>, vector<4x64xf32>, vector<256x64xf32> -> vector<256x64xf32>
    %26 = arith.addf %20, %25 : vector<256x64xf32>
    %27 = vector.extract_strided_slice %1 {offsets = [1, 1, 0], sizes = [16, 16, 4], strides = [1, 1, 1]} : vector<18x18x4xf32> to vector<16x16x4xf32>
    %28 = vector.shape_cast %27 : vector<16x16x4xf32> to vector<256x4xf32>
    %c4 = arith.constant 4 : index
    %c0_16 = arith.constant 0 : index
    %c0_17 = arith.constant 0 : index
    %29 = vector.load %arg2[%c4, %c0_16, %c0_17] : memref<9x4x64xf32, #tpu.memory_space<vmem>>, vector<1x4x64xf32>
    %30 = vector.shape_cast %29 : vector<1x4x64xf32> to vector<4x64xf32>
    %cst_18 = arith.constant dense<0.000000e+00> : vector<256x64xf32>
    %31 = tpu.matmul %28, %30, %cst_18 {dimension_numbers = #tpu.dot_dimension_numbers<[1], [0], [0], [1], [0, 0, 1, 1], [], []>} : vector<256x4xf32>, vector<4x64xf32>, vector<256x64xf32> -> vector<256x64xf32>
    %32 = arith.addf %26, %31 : vector<256x64xf32>
    %33 = vector.extract_strided_slice %1 {offsets = [1, 2, 0], sizes = [16, 16, 4], strides = [1, 1, 1]} : vector<18x18x4xf32> to vector<16x16x4xf32>
    %34 = vector.shape_cast %33 : vector<16x16x4xf32> to vector<256x4xf32>
    %c5 = arith.constant 5 : index
    %c0_19 = arith.constant 0 : index
    %c0_20 = arith.constant 0 : index
    %35 = vector.load %arg2[%c5, %c0_19, %c0_20] : memref<9x4x64xf32, #tpu.memory_space<vmem>>, vector<1x4x64xf32>
    %36 = vector.shape_cast %35 : vector<1x4x64xf32> to vector<4x64xf32>
    %cst_21 = arith.constant dense<0.000000e+00> : vector<256x64xf32>
    %37 = tpu.matmul %34, %36, %cst_21 {dimension_numbers = #tpu.dot_dimension_numbers<[1], [0], [0], [1], [0, 0, 1, 1], [], []>} : vector<256x4xf32>, vector<4x64xf32>, vector<256x64xf32> -> vector<256x64xf32>
    %38 = arith.addf %32, %37 : vector<256x64xf32>
    %39 = vector.extract_strided_slice %1 {offsets = [2, 0, 0], sizes = [16, 16, 4], strides = [1, 1, 1]} : vector<18x18x4xf32> to vector<16x16x4xf32>
    %40 = vector.shape_cast %39 : vector<16x16x4xf32> to vector<256x4xf32>
    %c6 = arith.constant 6 : index
    %c0_22 = arith.constant 0 : index
    %c0_23 = arith.constant 0 : index
    %41 = vector.load %arg2[%c6, %c0_22, %c0_23] : memref<9x4x64xf32, #tpu.memory_space<vmem>>, vector<1x4x64xf32>
    %42 = vector.shape_cast %41 : vector<1x4x64xf32> to vector<4x64xf32>
    %cst_24 = arith.constant dense<0.000000e+00> : vector<256x64xf32>
    %43 = tpu.matmul %40, %42, %cst_24 {dimension_numbers = #tpu.dot_dimension_numbers<[1], [0], [0], [1], [0, 0, 1, 1], [], []>} : vector<256x4xf32>, vector<4x64xf32>, vector<256x64xf32> -> vector<256x64xf32>
    %44 = arith.addf %38, %43 : vector<256x64xf32>
    %45 = vector.extract_strided_slice %1 {offsets = [2, 1, 0], sizes = [16, 16, 4], strides = [1, 1, 1]} : vector<18x18x4xf32> to vector<16x16x4xf32>
    %46 = vector.shape_cast %45 : vector<16x16x4xf32> to vector<256x4xf32>
    %c7 = arith.constant 7 : index
    %c0_25 = arith.constant 0 : index
    %c0_26 = arith.constant 0 : index
    %47 = vector.load %arg2[%c7, %c0_25, %c0_26] : memref<9x4x64xf32, #tpu.memory_space<vmem>>, vector<1x4x64xf32>
    %48 = vector.shape_cast %47 : vector<1x4x64xf32> to vector<4x64xf32>
    %cst_27 = arith.constant dense<0.000000e+00> : vector<256x64xf32>
    %49 = tpu.matmul %46, %48, %cst_27 {dimension_numbers = #tpu.dot_dimension_numbers<[1], [0], [0], [1], [0, 0, 1, 1], [], []>} : vector<256x4xf32>, vector<4x64xf32>, vector<256x64xf32> -> vector<256x64xf32>
    %50 = arith.addf %44, %49 : vector<256x64xf32>
    %51 = vector.extract_strided_slice %1 {offsets = [2, 2, 0], sizes = [16, 16, 4], strides = [1, 1, 1]} : vector<18x18x4xf32> to vector<16x16x4xf32>
    %52 = vector.shape_cast %51 : vector<16x16x4xf32> to vector<256x4xf32>
    %c8 = arith.constant 8 : index
    %c0_28 = arith.constant 0 : index
    %c0_29 = arith.constant 0 : index
    %53 = vector.load %arg2[%c8, %c0_28, %c0_29] : memref<9x4x64xf32, #tpu.memory_space<vmem>>, vector<1x4x64xf32>
    %54 = vector.shape_cast %53 : vector<1x4x64xf32> to vector<4x64xf32>
    %cst_30 = arith.constant dense<0.000000e+00> : vector<256x64xf32>
    %55 = tpu.matmul %52, %54, %cst_30 {dimension_numbers = #tpu.dot_dimension_numbers<[1], [0], [0], [1], [0, 0, 1, 1], [], []>} : vector<256x4xf32>, vector<4x64xf32>, vector<256x64xf32> -> vector<256x64xf32>
    %56 = arith.addf %50, %55 : vector<256x64xf32>
    %c0_31 = arith.constant 0 : index
    %c0_32 = arith.constant 0 : index
    %57 = vector.load %arg3[%c0_31, %c0_32] : memref<1x64xf32, #tpu.memory_space<vmem>>, vector<1x64xf32>
    %58 = vector.broadcast %57 : vector<1x64xf32> to vector<256x64xf32>
    %59 = arith.addf %56, %58 : vector<256x64xf32>
    %cst_33 = arith.constant 0.000000e+00 : f32
    %60 = vector.broadcast %cst_33 : f32 to vector<256x64xf32>
    %61 = arith.maximumf %59, %60 : vector<256x64xf32>
    %cst_34 = arith.constant 0.000000e+00 : f32
    %62 = vector.broadcast %cst_34 : f32 to vector<18x32x64xf32>
    %c0_35 = arith.constant 0 : index
    %c0_36 = arith.constant 0 : index
    %c0_37 = arith.constant 0 : index
    %63 = vector.load %arg11[%c0_35, %c0_36, %c0_37] : memref<18x32x64xf32, #tpu.memory_space<vmem>>, vector<18x32x64xf32>
    tpu.vector_store %arg11[%c0_35, %c0_36, %c0_37], %62 {strides = array<i32>} : memref<18x32x64xf32, #tpu.memory_space<vmem>>, vector<18x32x64xf32>,
    %64 = vector.shape_cast %61 : vector<256x64xf32> to vector<16x16x64xf32>
    %c1_38 = arith.constant 1 : index
    %c8_39 = arith.constant 8 : index
    %c0_40 = arith.constant 0 : index
    %65 = vector.load %arg11[%c1_38, %c8_39, %c0_40] : memref<18x32x64xf32, #tpu.memory_space<vmem>>, vector<16x16x64xf32>
    tpu.vector_store %arg11[%c1_38, %c8_39, %c0_40], %64 {strides = array<i32>} : memref<18x32x64xf32, #tpu.memory_space<vmem>>, vector<16x16x64xf32>,
    %cst_41 = arith.constant 0.000000e+00 : f32
    %66 = vector.broadcast %cst_41 : f32 to vector<256x64xf32>
    %c0_42 = arith.constant 0 : index
    %c0_43 = arith.constant 0 : index
    %c0_44 = arith.constant 0 : index
    %67 = vector.load %arg11[%c0_42, %c0_43, %c0_44] : memref<18x32x64xf32, #tpu.memory_space<vmem>>, vector<16x32x64xf32>
    %68 = vector.extract_strided_slice %67 {offsets = [0, 7, 0], sizes = [16, 16, 64], strides = [1, 1, 1]} : vector<16x32x64xf32> to vector<16x16x64xf32>
    %69 = vector.shape_cast %68 : vector<16x16x64xf32> to vector<256x64xf32>
    %c0_45 = arith.constant 0 : index
    %c0_46 = arith.constant 0 : index
    %c0_47 = arith.constant 0 : index
    %70 = vector.load %arg4[%c0_45, %c0_46, %c0_47] : memref<9x64x64xf32, #tpu.memory_space<vmem>>, vector<1x64x64xf32>
    %71 = vector.shape_cast %70 : vector<1x64x64xf32> to vector<64x64xf32>
    %cst_48 = arith.constant dense<0.000000e+00> : vector<256x64xf32>
    %72 = tpu.matmul %69, %71, %cst_48 {dimension_numbers = #tpu.dot_dimension_numbers<[1], [0], [0], [1], [0, 0, 1, 1], [], []>} : vector<256x64xf32>, vector<64x64xf32>, vector<256x64xf32> -> vector<256x64xf32>
    %73 = arith.addf %66, %72 : vector<256x64xf32>
    %74 = vector.extract_strided_slice %67 {offsets = [0, 8, 0], sizes = [16, 16, 64], strides = [1, 1, 1]} : vector<16x32x64xf32> to vector<16x16x64xf32>
    %75 = vector.shape_cast %74 : vector<16x16x64xf32> to vector<256x64xf32>
    %c1_49 = arith.constant 1 : index
    %c0_50 = arith.constant 0 : index
    %c0_51 = arith.constant 0 : index
    %76 = vector.load %arg4[%c1_49, %c0_50, %c0_51] : memref<9x64x64xf32, #tpu.memory_space<vmem>>, vector<1x64x64xf32>
    %77 = vector.shape_cast %76 : vector<1x64x64xf32> to vector<64x64xf32>
    %cst_52 = arith.constant dense<0.000000e+00> : vector<256x64xf32>
    %78 = tpu.matmul %75, %77, %cst_52 {dimension_numbers = #tpu.dot_dimension_numbers<[1], [0], [0], [1], [0, 0, 1, 1], [], []>} : vector<256x64xf32>, vector<64x64xf32>, vector<256x64xf32> -> vector<256x64xf32>
    %79 = arith.addf %73, %78 : vector<256x64xf32>
    %80 = vector.extract_strided_slice %67 {offsets = [0, 9, 0], sizes = [16, 16, 64], strides = [1, 1, 1]} : vector<16x32x64xf32> to vector<16x16x64xf32>
    %81 = vector.shape_cast %80 : vector<16x16x64xf32> to vector<256x64xf32>
    %c2_53 = arith.constant 2 : index
    %c0_54 = arith.constant 0 : index
    %c0_55 = arith.constant 0 : index
    %82 = vector.load %arg4[%c2_53, %c0_54, %c0_55] : memref<9x64x64xf32, #tpu.memory_space<vmem>>, vector<1x64x64xf32>
    %83 = vector.shape_cast %82 : vector<1x64x64xf32> to vector<64x64xf32>
    %cst_56 = arith.constant dense<0.000000e+00> : vector<256x64xf32>
    %84 = tpu.matmul %81, %83, %cst_56 {dimension_numbers = #tpu.dot_dimension_numbers<[1], [0], [0], [1], [0, 0, 1, 1], [], []>} : vector<256x64xf32>, vector<64x64xf32>, vector<256x64xf32> -> vector<256x64xf32>
    %85 = arith.addf %79, %84 : vector<256x64xf32>
    %c1_57 = arith.constant 1 : index
    %c0_58 = arith.constant 0 : index
    %c0_59 = arith.constant 0 : index
    %86 = vector.load %arg11[%c1_57, %c0_58, %c0_59] : memref<18x32x64xf32, #tpu.memory_space<vmem>>, vector<16x32x64xf32>
    %87 = vector.extract_strided_slice %86 {offsets = [0, 7, 0], sizes = [16, 16, 64], strides = [1, 1, 1]} : vector<16x32x64xf32> to vector<16x16x64xf32>
    %88 = vector.shape_cast %87 : vector<16x16x64xf32> to vector<256x64xf32>
    %c3_60 = arith.constant 3 : index
    %c0_61 = arith.constant 0 : index
    %c0_62 = arith.constant 0 : index
    %89 = vector.load %arg4[%c3_60, %c0_61, %c0_62] : memref<9x64x64xf32, #tpu.memory_space<vmem>>, vector<1x64x64xf32>
    %90 = vector.shape_cast %89 : vector<1x64x64xf32> to vector<64x64xf32>
    %cst_63 = arith.constant dense<0.000000e+00> : vector<256x64xf32>
    %91 = tpu.matmul %88, %90, %cst_63 {dimension_numbers = #tpu.dot_dimension_numbers<[1], [0], [0], [1], [0, 0, 1, 1], [], []>} : vector<256x64xf32>, vector<64x64xf32>, vector<256x64xf32> -> vector<256x64xf32>
    %92 = arith.addf %85, %91 : vector<256x64xf32>
    %93 = vector.extract_strided_slice %86 {offsets = [0, 8, 0], sizes = [16, 16, 64], strides = [1, 1, 1]} : vector<16x32x64xf32> to vector<16x16x64xf32>
    %94 = vector.shape_cast %93 : vector<16x16x64xf32> to vector<256x64xf32>
    %c4_64 = arith.constant 4 : index
    %c0_65 = arith.constant 0 : index
    %c0_66 = arith.constant 0 : index
    %95 = vector.load %arg4[%c4_64, %c0_65, %c0_66] : memref<9x64x64xf32, #tpu.memory_space<vmem>>, vector<1x64x64xf32>
    %96 = vector.shape_cast %95 : vector<1x64x64xf32> to vector<64x64xf32>
    %cst_67 = arith.constant dense<0.000000e+00> : vector<256x64xf32>
    %97 = tpu.matmul %94, %96, %cst_67 {dimension_numbers = #tpu.dot_dimension_numbers<[1], [0], [0], [1], [0, 0, 1, 1], [], []>} : vector<256x64xf32>, vector<64x64xf32>, vector<256x64xf32> -> vector<256x64xf32>
    %98 = arith.addf %92, %97 : vector<256x64xf32>
    %99 = vector.extract_strided_slice %86 {offsets = [0, 9, 0], sizes = [16, 16, 64], strides = [1, 1, 1]} : vector<16x32x64xf32> to vector<16x16x64xf32>
    %100 = vector.shape_cast %99 : vector<16x16x64xf32> to vector<256x64xf32>
    %c5_68 = arith.constant 5 : index
    %c0_69 = arith.constant 0 : index
    %c0_70 = arith.constant 0 : index
    %101 = vector.load %arg4[%c5_68, %c0_69, %c0_70] : memref<9x64x64xf32, #tpu.memory_space<vmem>>, vector<1x64x64xf32>
    %102 = vector.shape_cast %101 : vector<1x64x64xf32> to vector<64x64xf32>
    %cst_71 = arith.constant dense<0.000000e+00> : vector<256x64xf32>
    %103 = tpu.matmul %100, %102, %cst_71 {dimension_numbers = #tpu.dot_dimension_numbers<[1], [0], [0], [1], [0, 0, 1, 1], [], []>} : vector<256x64xf32>, vector<64x64xf32>, vector<256x64xf32> -> vector<256x64xf32>
    %104 = arith.addf %98, %103 : vector<256x64xf32>
    %c2_72 = arith.constant 2 : index
    %c0_73 = arith.constant 0 : index
    %c0_74 = arith.constant 0 : index
    %105 = vector.load %arg11[%c2_72, %c0_73, %c0_74] : memref<18x32x64xf32, #tpu.memory_space<vmem>>, vector<16x32x64xf32>
    %106 = vector.extract_strided_slice %105 {offsets = [0, 7, 0], sizes = [16, 16, 64], strides = [1, 1, 1]} : vector<16x32x64xf32> to vector<16x16x64xf32>
    %107 = vector.shape_cast %106 : vector<16x16x64xf32> to vector<256x64xf32>
    %c6_75 = arith.constant 6 : index
    %c0_76 = arith.constant 0 : index
    %c0_77 = arith.constant 0 : index
    %108 = vector.load %arg4[%c6_75, %c0_76, %c0_77] : memref<9x64x64xf32, #tpu.memory_space<vmem>>, vector<1x64x64xf32>
    %109 = vector.shape_cast %108 : vector<1x64x64xf32> to vector<64x64xf32>
    %cst_78 = arith.constant dense<0.000000e+00> : vector<256x64xf32>
    %110 = tpu.matmul %107, %109, %cst_78 {dimension_numbers = #tpu.dot_dimension_numbers<[1], [0], [0], [1], [0, 0, 1, 1], [], []>} : vector<256x64xf32>, vector<64x64xf32>, vector<256x64xf32> -> vector<256x64xf32>
    %111 = arith.addf %104, %110 : vector<256x64xf32>
    %112 = vector.extract_strided_slice %105 {offsets = [0, 8, 0], sizes = [16, 16, 64], strides = [1, 1, 1]} : vector<16x32x64xf32> to vector<16x16x64xf32>
    %113 = vector.shape_cast %112 : vector<16x16x64xf32> to vector<256x64xf32>
    %c7_79 = arith.constant 7 : index
    %c0_80 = arith.constant 0 : index
    %c0_81 = arith.constant 0 : index
    %114 = vector.load %arg4[%c7_79, %c0_80, %c0_81] : memref<9x64x64xf32, #tpu.memory_space<vmem>>, vector<1x64x64xf32>
    %115 = vector.shape_cast %114 : vector<1x64x64xf32> to vector<64x64xf32>
    %cst_82 = arith.constant dense<0.000000e+00> : vector<256x64xf32>
    %116 = tpu.matmul %113, %115, %cst_82 {dimension_numbers = #tpu.dot_dimension_numbers<[1], [0], [0], [1], [0, 0, 1, 1], [], []>} : vector<256x64xf32>, vector<64x64xf32>, vector<256x64xf32> -> vector<256x64xf32>
    %117 = arith.addf %111, %116 : vector<256x64xf32>
    %118 = vector.extract_strided_slice %105 {offsets = [0, 9, 0], sizes = [16, 16, 64], strides = [1, 1, 1]} : vector<16x32x64xf32> to vector<16x16x64xf32>
    %119 = vector.shape_cast %118 : vector<16x16x64xf32> to vector<256x64xf32>
    %c8_83 = arith.constant 8 : index
    %c0_84 = arith.constant 0 : index
    %c0_85 = arith.constant 0 : index
    %120 = vector.load %arg4[%c8_83, %c0_84, %c0_85] : memref<9x64x64xf32, #tpu.memory_space<vmem>>, vector<1x64x64xf32>
    %121 = vector.shape_cast %120 : vector<1x64x64xf32> to vector<64x64xf32>
    %cst_86 = arith.constant dense<0.000000e+00> : vector<256x64xf32>
    %122 = tpu.matmul %119, %121, %cst_86 {dimension_numbers = #tpu.dot_dimension_numbers<[1], [0], [0], [1], [0, 0, 1, 1], [], []>} : vector<256x64xf32>, vector<64x64xf32>, vector<256x64xf32> -> vector<256x64xf32>
    %123 = arith.addf %117, %122 : vector<256x64xf32>
    %c0_87 = arith.constant 0 : index
    %c0_88 = arith.constant 0 : index
    %124 = vector.load %arg5[%c0_87, %c0_88] : memref<1x64xf32, #tpu.memory_space<vmem>>, vector<1x64xf32>
    %125 = vector.broadcast %124 : vector<1x64xf32> to vector<256x64xf32>
    %126 = arith.addf %123, %125 : vector<256x64xf32>
    %cst_89 = arith.constant 0.000000e+00 : f32
    %127 = vector.broadcast %cst_89 : f32 to vector<256x64xf32>
    %128 = arith.maximumf %126, %127 : vector<256x64xf32>
    %129 = vector.shape_cast %128 : vector<256x64xf32> to vector<16x16x64xf32>
    %c1_90 = arith.constant 1 : index
    %c8_91 = arith.constant 8 : index
    %c0_92 = arith.constant 0 : index
    %130 = vector.load %arg11[%c1_90, %c8_91, %c0_92] : memref<18x32x64xf32, #tpu.memory_space<vmem>>, vector<16x16x64xf32>
    tpu.vector_store %arg11[%c1_90, %c8_91, %c0_92], %129 {strides = array<i32>} : memref<18x32x64xf32, #tpu.memory_space<vmem>>, vector<16x16x64xf32>,
    %cst_93 = arith.constant 0.000000e+00 : f32
    %131 = vector.broadcast %cst_93 : f32 to vector<256x64xf32>
    %c0_94 = arith.constant 0 : index
    %c0_95 = arith.constant 0 : index
    %c0_96 = arith.constant 0 : index
    %132 = vector.load %arg11[%c0_94, %c0_95, %c0_96] : memref<18x32x64xf32, #tpu.memory_space<vmem>>, vector<16x32x64xf32>
    %133 = vector.extract_strided_slice %132 {offsets = [0, 7, 0], sizes = [16, 16, 64], strides = [1, 1, 1]} : vector<16x32x64xf32> to vector<16x16x64xf32>
    %134 = vector.shape_cast %133 : vector<16x16x64xf32> to vector<256x64xf32>
    %c0_97 = arith.constant 0 : index
    %c0_98 = arith.constant 0 : index
    %c0_99 = arith.constant 0 : index
    %135 = vector.load %arg6[%c0_97, %c0_98, %c0_99] : memref<9x64x64xf32, #tpu.memory_space<vmem>>, vector<1x64x64xf32>
    %136 = vector.shape_cast %135 : vector<1x64x64xf32> to vector<64x64xf32>
    %cst_100 = arith.constant dense<0.000000e+00> : vector<256x64xf32>
    %137 = tpu.matmul %134, %136, %cst_100 {dimension_numbers = #tpu.dot_dimension_numbers<[1], [0], [0], [1], [0, 0, 1, 1], [], []>} : vector<256x64xf32>, vector<64x64xf32>, vector<256x64xf32> -> vector<256x64xf32>
    %138 = arith.addf %131, %137 : vector<256x64xf32>
    %139 = vector.extract_strided_slice %132 {offsets = [0, 8, 0], sizes = [16, 16, 64], strides = [1, 1, 1]} : vector<16x32x64xf32> to vector<16x16x64xf32>
    %140 = vector.shape_cast %139 : vector<16x16x64xf32> to vector<256x64xf32>
    %c1_101 = arith.constant 1 : index
    %c0_102 = arith.constant 0 : index
    %c0_103 = arith.constant 0 : index
    %141 = vector.load %arg6[%c1_101, %c0_102, %c0_103] : memref<9x64x64xf32, #tpu.memory_space<vmem>>, vector<1x64x64xf32>
    %142 = vector.shape_cast %141 : vector<1x64x64xf32> to vector<64x64xf32>
    %cst_104 = arith.constant dense<0.000000e+00> : vector<256x64xf32>
    %143 = tpu.matmul %140, %142, %cst_104 {dimension_numbers = #tpu.dot_dimension_numbers<[1], [0], [0], [1], [0, 0, 1, 1], [], []>} : vector<256x64xf32>, vector<64x64xf32>, vector<256x64xf32> -> vector<256x64xf32>
    %144 = arith.addf %138, %143 : vector<256x64xf32>
    %145 = vector.extract_strided_slice %132 {offsets = [0, 9, 0], sizes = [16, 16, 64], strides = [1, 1, 1]} : vector<16x32x64xf32> to vector<16x16x64xf32>
    %146 = vector.shape_cast %145 : vector<16x16x64xf32> to vector<256x64xf32>
    %c2_105 = arith.constant 2 : index
    %c0_106 = arith.constant 0 : index
    %c0_107 = arith.constant 0 : index
    %147 = vector.load %arg6[%c2_105, %c0_106, %c0_107] : memref<9x64x64xf32, #tpu.memory_space<vmem>>, vector<1x64x64xf32>
    %148 = vector.shape_cast %147 : vector<1x64x64xf32> to vector<64x64xf32>
    %cst_108 = arith.constant dense<0.000000e+00> : vector<256x64xf32>
    %149 = tpu.matmul %146, %148, %cst_108 {dimension_numbers = #tpu.dot_dimension_numbers<[1], [0], [0], [1], [0, 0, 1, 1], [], []>} : vector<256x64xf32>, vector<64x64xf32>, vector<256x64xf32> -> vector<256x64xf32>
    %150 = arith.addf %144, %149 : vector<256x64xf32>
    %c1_109 = arith.constant 1 : index
    %c0_110 = arith.constant 0 : index
    %c0_111 = arith.constant 0 : index
    %151 = vector.load %arg11[%c1_109, %c0_110, %c0_111] : memref<18x32x64xf32, #tpu.memory_space<vmem>>, vector<16x32x64xf32>
    %152 = vector.extract_strided_slice %151 {offsets = [0, 7, 0], sizes = [16, 16, 64], strides = [1, 1, 1]} : vector<16x32x64xf32> to vector<16x16x64xf32>
    %153 = vector.shape_cast %152 : vector<16x16x64xf32> to vector<256x64xf32>
    %c3_112 = arith.constant 3 : index
    %c0_113 = arith.constant 0 : index
    %c0_114 = arith.constant 0 : index
    %154 = vector.load %arg6[%c3_112, %c0_113, %c0_114] : memref<9x64x64xf32, #tpu.memory_space<vmem>>, vector<1x64x64xf32>
    %155 = vector.shape_cast %154 : vector<1x64x64xf32> to vector<64x64xf32>
    %cst_115 = arith.constant dense<0.000000e+00> : vector<256x64xf32>
    %156 = tpu.matmul %153, %155, %cst_115 {dimension_numbers = #tpu.dot_dimension_numbers<[1], [0], [0], [1], [0, 0, 1, 1], [], []>} : vector<256x64xf32>, vector<64x64xf32>, vector<256x64xf32> -> vector<256x64xf32>
    %157 = arith.addf %150, %156 : vector<256x64xf32>
    %158 = vector.extract_strided_slice %151 {offsets = [0, 8, 0], sizes = [16, 16, 64], strides = [1, 1, 1]} : vector<16x32x64xf32> to vector<16x16x64xf32>
    %159 = vector.shape_cast %158 : vector<16x16x64xf32> to vector<256x64xf32>
    %c4_116 = arith.constant 4 : index
    %c0_117 = arith.constant 0 : index
    %c0_118 = arith.constant 0 : index
    %160 = vector.load %arg6[%c4_116, %c0_117, %c0_118] : memref<9x64x64xf32, #tpu.memory_space<vmem>>, vector<1x64x64xf32>
    %161 = vector.shape_cast %160 : vector<1x64x64xf32> to vector<64x64xf32>
    %cst_119 = arith.constant dense<0.000000e+00> : vector<256x64xf32>
    %162 = tpu.matmul %159, %161, %cst_119 {dimension_numbers = #tpu.dot_dimension_numbers<[1], [0], [0], [1], [0, 0, 1, 1], [], []>} : vector<256x64xf32>, vector<64x64xf32>, vector<256x64xf32> -> vector<256x64xf32>
    %163 = arith.addf %157, %162 : vector<256x64xf32>
    %164 = vector.extract_strided_slice %151 {offsets = [0, 9, 0], sizes = [16, 16, 64], strides = [1, 1, 1]} : vector<16x32x64xf32> to vector<16x16x64xf32>
    %165 = vector.shape_cast %164 : vector<16x16x64xf32> to vector<256x64xf32>
    %c5_120 = arith.constant 5 : index
    %c0_121 = arith.constant 0 : index
    %c0_122 = arith.constant 0 : index
    %166 = vector.load %arg6[%c5_120, %c0_121, %c0_122] : memref<9x64x64xf32, #tpu.memory_space<vmem>>, vector<1x64x64xf32>
    %167 = vector.shape_cast %166 : vector<1x64x64xf32> to vector<64x64xf32>
    %cst_123 = arith.constant dense<0.000000e+00> : vector<256x64xf32>
    %168 = tpu.matmul %165, %167, %cst_123 {dimension_numbers = #tpu.dot_dimension_numbers<[1], [0], [0], [1], [0, 0, 1, 1], [], []>} : vector<256x64xf32>, vector<64x64xf32>, vector<256x64xf32> -> vector<256x64xf32>
    %169 = arith.addf %163, %168 : vector<256x64xf32>
    %c2_124 = arith.constant 2 : index
    %c0_125 = arith.constant 0 : index
    %c0_126 = arith.constant 0 : index
    %170 = vector.load %arg11[%c2_124, %c0_125, %c0_126] : memref<18x32x64xf32, #tpu.memory_space<vmem>>, vector<16x32x64xf32>
    %171 = vector.extract_strided_slice %170 {offsets = [0, 7, 0], sizes = [16, 16, 64], strides = [1, 1, 1]} : vector<16x32x64xf32> to vector<16x16x64xf32>
    %172 = vector.shape_cast %171 : vector<16x16x64xf32> to vector<256x64xf32>
    %c6_127 = arith.constant 6 : index
    %c0_128 = arith.constant 0 : index
    %c0_129 = arith.constant 0 : index
    %173 = vector.load %arg6[%c6_127, %c0_128, %c0_129] : memref<9x64x64xf32, #tpu.memory_space<vmem>>, vector<1x64x64xf32>
    %174 = vector.shape_cast %173 : vector<1x64x64xf32> to vector<64x64xf32>
    %cst_130 = arith.constant dense<0.000000e+00> : vector<256x64xf32>
    %175 = tpu.matmul %172, %174, %cst_130 {dimension_numbers = #tpu.dot_dimension_numbers<[1], [0], [0], [1], [0, 0, 1, 1], [], []>} : vector<256x64xf32>, vector<64x64xf32>, vector<256x64xf32> -> vector<256x64xf32>
    %176 = arith.addf %169, %175 : vector<256x64xf32>
    %177 = vector.extract_strided_slice %170 {offsets = [0, 8, 0], sizes = [16, 16, 64], strides = [1, 1, 1]} : vector<16x32x64xf32> to vector<16x16x64xf32>
    %178 = vector.shape_cast %177 : vector<16x16x64xf32> to vector<256x64xf32>
    %c7_131 = arith.constant 7 : index
    %c0_132 = arith.constant 0 : index
    %c0_133 = arith.constant 0 : index
    %179 = vector.load %arg6[%c7_131, %c0_132, %c0_133] : memref<9x64x64xf32, #tpu.memory_space<vmem>>, vector<1x64x64xf32>
    %180 = vector.shape_cast %179 : vector<1x64x64xf32> to vector<64x64xf32>
    %cst_134 = arith.constant dense<0.000000e+00> : vector<256x64xf32>
    %181 = tpu.matmul %178, %180, %cst_134 {dimension_numbers = #tpu.dot_dimension_numbers<[1], [0], [0], [1], [0, 0, 1, 1], [], []>} : vector<256x64xf32>, vector<64x64xf32>, vector<256x64xf32> -> vector<256x64xf32>
    %182 = arith.addf %176, %181 : vector<256x64xf32>
    %183 = vector.extract_strided_slice %170 {offsets = [0, 9, 0], sizes = [16, 16, 64], strides = [1, 1, 1]} : vector<16x32x64xf32> to vector<16x16x64xf32>
    %184 = vector.shape_cast %183 : vector<16x16x64xf32> to vector<256x64xf32>
    %c8_135 = arith.constant 8 : index
    %c0_136 = arith.constant 0 : index
    %c0_137 = arith.constant 0 : index
    %185 = vector.load %arg6[%c8_135, %c0_136, %c0_137] : memref<9x64x64xf32, #tpu.memory_space<vmem>>, vector<1x64x64xf32>
    %186 = vector.shape_cast %185 : vector<1x64x64xf32> to vector<64x64xf32>
    %cst_138 = arith.constant dense<0.000000e+00> : vector<256x64xf32>
    %187 = tpu.matmul %184, %186, %cst_138 {dimension_numbers = #tpu.dot_dimension_numbers<[1], [0], [0], [1], [0, 0, 1, 1], [], []>} : vector<256x64xf32>, vector<64x64xf32>, vector<256x64xf32> -> vector<256x64xf32>
    %188 = arith.addf %182, %187 : vector<256x64xf32>
    %c0_139 = arith.constant 0 : index
    %c0_140 = arith.constant 0 : index
    %189 = vector.load %arg7[%c0_139, %c0_140] : memref<1x64xf32, #tpu.memory_space<vmem>>, vector<1x64xf32>
    %190 = vector.broadcast %189 : vector<1x64xf32> to vector<256x64xf32>
    %191 = arith.addf %188, %190 : vector<256x64xf32>
    %192 = arith.addf %191, %61 : vector<256x64xf32>
    %cst_141 = arith.constant 0.000000e+00 : f32
    %193 = vector.broadcast %cst_141 : f32 to vector<256x64xf32>
    %194 = arith.maximumf %192, %193 : vector<256x64xf32>
    %195 = vector.shape_cast %194 : vector<256x64xf32> to vector<16x16x64xf32>
    %c1_142 = arith.constant 1 : index
    %c8_143 = arith.constant 8 : index
    %c0_144 = arith.constant 0 : index
    %196 = vector.load %arg11[%c1_142, %c8_143, %c0_144] : memref<18x32x64xf32, #tpu.memory_space<vmem>>, vector<16x16x64xf32>
    tpu.vector_store %arg11[%c1_142, %c8_143, %c0_144], %195 {strides = array<i32>} : memref<18x32x64xf32, #tpu.memory_space<vmem>>, vector<16x16x64xf32>,
    %cst_145 = arith.constant 0.000000e+00 : f32
    %197 = vector.broadcast %cst_145 : f32 to vector<256x6xf32>
    %c0_146 = arith.constant 0 : index
    %c0_147 = arith.constant 0 : index
    %c0_148 = arith.constant 0 : index
    %198 = vector.load %arg11[%c0_146, %c0_147, %c0_148] : memref<18x32x64xf32, #tpu.memory_space<vmem>>, vector<16x32x64xf32>
    %199 = vector.extract_strided_slice %198 {offsets = [0, 7, 0], sizes = [16, 16, 64], strides = [1, 1, 1]} : vector<16x32x64xf32> to vector<16x16x64xf32>
    %200 = vector.shape_cast %199 : vector<16x16x64xf32> to vector<256x64xf32>
    %c0_149 = arith.constant 0 : index
    %c0_150 = arith.constant 0 : index
    %c0_151 = arith.constant 0 : index
    %201 = vector.load %arg8[%c0_149, %c0_150, %c0_151] : memref<9x64x6xf32, #tpu.memory_space<vmem>>, vector<1x64x6xf32>
    %202 = vector.shape_cast %201 : vector<1x64x6xf32> to vector<64x6xf32>
    %cst_152 = arith.constant dense<0.000000e+00> : vector<256x6xf32>
    %203 = tpu.matmul %200, %202, %cst_152 {dimension_numbers = #tpu.dot_dimension_numbers<[1], [0], [0], [1], [0, 0, 1, 1], [], []>} : vector<256x64xf32>, vector<64x6xf32>, vector<256x6xf32> -> vector<256x6xf32>
    %204 = arith.addf %197, %203 : vector<256x6xf32>
    %205 = vector.extract_strided_slice %198 {offsets = [0, 8, 0], sizes = [16, 16, 64], strides = [1, 1, 1]} : vector<16x32x64xf32> to vector<16x16x64xf32>
    %206 = vector.shape_cast %205 : vector<16x16x64xf32> to vector<256x64xf32>
    %c1_153 = arith.constant 1 : index
    %c0_154 = arith.constant 0 : index
    %c0_155 = arith.constant 0 : index
    %207 = vector.load %arg8[%c1_153, %c0_154, %c0_155] : memref<9x64x6xf32, #tpu.memory_space<vmem>>, vector<1x64x6xf32>
    %208 = vector.shape_cast %207 : vector<1x64x6xf32> to vector<64x6xf32>
    %cst_156 = arith.constant dense<0.000000e+00> : vector<256x6xf32>
    %209 = tpu.matmul %206, %208, %cst_156 {dimension_numbers = #tpu.dot_dimension_numbers<[1], [0], [0], [1], [0, 0, 1, 1], [], []>} : vector<256x64xf32>, vector<64x6xf32>, vector<256x6xf32> -> vector<256x6xf32>
    %210 = arith.addf %204, %209 : vector<256x6xf32>
    %211 = vector.extract_strided_slice %198 {offsets = [0, 9, 0], sizes = [16, 16, 64], strides = [1, 1, 1]} : vector<16x32x64xf32> to vector<16x16x64xf32>
    %212 = vector.shape_cast %211 : vector<16x16x64xf32> to vector<256x64xf32>
    %c2_157 = arith.constant 2 : index
    %c0_158 = arith.constant 0 : index
    %c0_159 = arith.constant 0 : index
    %213 = vector.load %arg8[%c2_157, %c0_158, %c0_159] : memref<9x64x6xf32, #tpu.memory_space<vmem>>, vector<1x64x6xf32>
    %214 = vector.shape_cast %213 : vector<1x64x6xf32> to vector<64x6xf32>
    %cst_160 = arith.constant dense<0.000000e+00> : vector<256x6xf32>
    %215 = tpu.matmul %212, %214, %cst_160 {dimension_numbers = #tpu.dot_dimension_numbers<[1], [0], [0], [1], [0, 0, 1, 1], [], []>} : vector<256x64xf32>, vector<64x6xf32>, vector<256x6xf32> -> vector<256x6xf32>
    %216 = arith.addf %210, %215 : vector<256x6xf32>
    %c1_161 = arith.constant 1 : index
    %c0_162 = arith.constant 0 : index
    %c0_163 = arith.constant 0 : index
    %217 = vector.load %arg11[%c1_161, %c0_162, %c0_163] : memref<18x32x64xf32, #tpu.memory_space<vmem>>, vector<16x32x64xf32>
    %218 = vector.extract_strided_slice %217 {offsets = [0, 7, 0], sizes = [16, 16, 64], strides = [1, 1, 1]} : vector<16x32x64xf32> to vector<16x16x64xf32>
    %219 = vector.shape_cast %218 : vector<16x16x64xf32> to vector<256x64xf32>
    %c3_164 = arith.constant 3 : index
    %c0_165 = arith.constant 0 : index
    %c0_166 = arith.constant 0 : index
    %220 = vector.load %arg8[%c3_164, %c0_165, %c0_166] : memref<9x64x6xf32, #tpu.memory_space<vmem>>, vector<1x64x6xf32>
    %221 = vector.shape_cast %220 : vector<1x64x6xf32> to vector<64x6xf32>
    %cst_167 = arith.constant dense<0.000000e+00> : vector<256x6xf32>
    %222 = tpu.matmul %219, %221, %cst_167 {dimension_numbers = #tpu.dot_dimension_numbers<[1], [0], [0], [1], [0, 0, 1, 1], [], []>} : vector<256x64xf32>, vector<64x6xf32>, vector<256x6xf32> -> vector<256x6xf32>
    %223 = arith.addf %216, %222 : vector<256x6xf32>
    %224 = vector.extract_strided_slice %217 {offsets = [0, 8, 0], sizes = [16, 16, 64], strides = [1, 1, 1]} : vector<16x32x64xf32> to vector<16x16x64xf32>
    %225 = vector.shape_cast %224 : vector<16x16x64xf32> to vector<256x64xf32>
    %c4_168 = arith.constant 4 : index
    %c0_169 = arith.constant 0 : index
    %c0_170 = arith.constant 0 : index
    %226 = vector.load %arg8[%c4_168, %c0_169, %c0_170] : memref<9x64x6xf32, #tpu.memory_space<vmem>>, vector<1x64x6xf32>
    %227 = vector.shape_cast %226 : vector<1x64x6xf32> to vector<64x6xf32>
    %cst_171 = arith.constant dense<0.000000e+00> : vector<256x6xf32>
    %228 = tpu.matmul %225, %227, %cst_171 {dimension_numbers = #tpu.dot_dimension_numbers<[1], [0], [0], [1], [0, 0, 1, 1], [], []>} : vector<256x64xf32>, vector<64x6xf32>, vector<256x6xf32> -> vector<256x6xf32>
    %229 = arith.addf %223, %228 : vector<256x6xf32>
    %230 = vector.extract_strided_slice %217 {offsets = [0, 9, 0], sizes = [16, 16, 64], strides = [1, 1, 1]} : vector<16x32x64xf32> to vector<16x16x64xf32>
    %231 = vector.shape_cast %230 : vector<16x16x64xf32> to vector<256x64xf32>
    %c5_172 = arith.constant 5 : index
    %c0_173 = arith.constant 0 : index
    %c0_174 = arith.constant 0 : index
    %232 = vector.load %arg8[%c5_172, %c0_173, %c0_174] : memref<9x64x6xf32, #tpu.memory_space<vmem>>, vector<1x64x6xf32>
    %233 = vector.shape_cast %232 : vector<1x64x6xf32> to vector<64x6xf32>
    %cst_175 = arith.constant dense<0.000000e+00> : vector<256x6xf32>
    %234 = tpu.matmul %231, %233, %cst_175 {dimension_numbers = #tpu.dot_dimension_numbers<[1], [0], [0], [1], [0, 0, 1, 1], [], []>} : vector<256x64xf32>, vector<64x6xf32>, vector<256x6xf32> -> vector<256x6xf32>
    %235 = arith.addf %229, %234 : vector<256x6xf32>
    %c2_176 = arith.constant 2 : index
    %c0_177 = arith.constant 0 : index
    %c0_178 = arith.constant 0 : index
    %236 = vector.load %arg11[%c2_176, %c0_177, %c0_178] : memref<18x32x64xf32, #tpu.memory_space<vmem>>, vector<16x32x64xf32>
    %237 = vector.extract_strided_slice %236 {offsets = [0, 7, 0], sizes = [16, 16, 64], strides = [1, 1, 1]} : vector<16x32x64xf32> to vector<16x16x64xf32>
    %238 = vector.shape_cast %237 : vector<16x16x64xf32> to vector<256x64xf32>
    %c6_179 = arith.constant 6 : index
    %c0_180 = arith.constant 0 : index
    %c0_181 = arith.constant 0 : index
    %239 = vector.load %arg8[%c6_179, %c0_180, %c0_181] : memref<9x64x6xf32, #tpu.memory_space<vmem>>, vector<1x64x6xf32>
    %240 = vector.shape_cast %239 : vector<1x64x6xf32> to vector<64x6xf32>
    %cst_182 = arith.constant dense<0.000000e+00> : vector<256x6xf32>
    %241 = tpu.matmul %238, %240, %cst_182 {dimension_numbers = #tpu.dot_dimension_numbers<[1], [0], [0], [1], [0, 0, 1, 1], [], []>} : vector<256x64xf32>, vector<64x6xf32>, vector<256x6xf32> -> vector<256x6xf32>
    %242 = arith.addf %235, %241 : vector<256x6xf32>
    %243 = vector.extract_strided_slice %236 {offsets = [0, 8, 0], sizes = [16, 16, 64], strides = [1, 1, 1]} : vector<16x32x64xf32> to vector<16x16x64xf32>
    %244 = vector.shape_cast %243 : vector<16x16x64xf32> to vector<256x64xf32>
    %c7_183 = arith.constant 7 : index
    %c0_184 = arith.constant 0 : index
    %c0_185 = arith.constant 0 : index
    %245 = vector.load %arg8[%c7_183, %c0_184, %c0_185] : memref<9x64x6xf32, #tpu.memory_space<vmem>>, vector<1x64x6xf32>
    %246 = vector.shape_cast %245 : vector<1x64x6xf32> to vector<64x6xf32>
    %cst_186 = arith.constant dense<0.000000e+00> : vector<256x6xf32>
    %247 = tpu.matmul %244, %246, %cst_186 {dimension_numbers = #tpu.dot_dimension_numbers<[1], [0], [0], [1], [0, 0, 1, 1], [], []>} : vector<256x64xf32>, vector<64x6xf32>, vector<256x6xf32> -> vector<256x6xf32>
    %248 = arith.addf %242, %247 : vector<256x6xf32>
    %249 = vector.extract_strided_slice %236 {offsets = [0, 9, 0], sizes = [16, 16, 64], strides = [1, 1, 1]} : vector<16x32x64xf32> to vector<16x16x64xf32>
    %250 = vector.shape_cast %249 : vector<16x16x64xf32> to vector<256x64xf32>
    %c8_187 = arith.constant 8 : index
    %c0_188 = arith.constant 0 : index
    %c0_189 = arith.constant 0 : index
    %251 = vector.load %arg8[%c8_187, %c0_188, %c0_189] : memref<9x64x6xf32, #tpu.memory_space<vmem>>, vector<1x64x6xf32>
    %252 = vector.shape_cast %251 : vector<1x64x6xf32> to vector<64x6xf32>
    %cst_190 = arith.constant dense<0.000000e+00> : vector<256x6xf32>
    %253 = tpu.matmul %250, %252, %cst_190 {dimension_numbers = #tpu.dot_dimension_numbers<[1], [0], [0], [1], [0, 0, 1, 1], [], []>} : vector<256x64xf32>, vector<64x6xf32>, vector<256x6xf32> -> vector<256x6xf32>
    %254 = arith.addf %248, %253 : vector<256x6xf32>
    %c0_191 = arith.constant 0 : index
    %c0_192 = arith.constant 0 : index
    %255 = vector.load %arg9[%c0_191, %c0_192] : memref<1x6xf32, #tpu.memory_space<vmem>>, vector<1x6xf32>
    %256 = vector.broadcast %255 : vector<1x6xf32> to vector<256x6xf32>
    %257 = arith.addf %254, %256 : vector<256x6xf32>
    %258 = vector.shape_cast %257 : vector<256x6xf32> to vector<16x16x6xf32>
    %c0_193 = arith.constant 0 : index
    %c0_194 = arith.constant 0 : index
    %c0_195 = arith.constant 0 : index
    %c0_196 = arith.constant 0 : index
    %259 = vector.load %arg10[%c0_193, %c0_194, %c0_195, %c0_196] : memref<1x16x16x6xf32, #tpu.memory_space<vmem>>, vector<1x16x16x6xf32>
    %260 = vector.shape_cast %259 : vector<1x16x16x6xf32> to vector<16x16x6xf32>
    %261 = vector.shape_cast %258 : vector<16x16x6xf32> to vector<1x16x16x6xf32>
    tpu.vector_store %arg10[%c0_193, %c0_194, %c0_195, %c0_196], %261 {strides = array<i32>} : memref<1x16x16x6xf32, #tpu.memory_space<vmem>>, vector<1x16x16x6xf32>,
    return
  }
  func.func @transform_0(%arg0: i32) -> (i32, i32, i32, i32) {
    %c0_i32 = arith.constant 0 : i32
    %c0_i32_0 = arith.constant 0 : i32
    %c0_i32_1 = arith.constant 0 : i32
    %c0_i32_2 = arith.constant 0 : i32
    return %arg0, %c0_i32, %c0_i32_0, %c0_i32_1 : i32, i32, i32, i32
  }
  func.func @transform_1(%arg0: i32) -> (i32, i32, i32) {
    %c0_i32 = arith.constant 0 : i32
    %c0_i32_0 = arith.constant 0 : i32
    %c0_i32_1 = arith.constant 0 : i32
    %c0_i32_2 = arith.constant 0 : i32
    return %c0_i32, %c0_i32_0, %c0_i32_1 : i32, i32, i32
  }
  func.func @transform_2(%arg0: i32) -> (i32, i32) {
    %c0_i32 = arith.constant 0 : i32
    %c0_i32_0 = arith.constant 0 : i32
    %c0_i32_1 = arith.constant 0 : i32
    return %c0_i32, %c0_i32_0 : i32, i32
  }
  func.func @transform_3(%arg0: i32) -> (i32, i32, i32) {
    %c0_i32 = arith.constant 0 : i32
    %c0_i32_0 = arith.constant 0 : i32
    %c0_i32_1 = arith.constant 0 : i32
    %c0_i32_2 = arith.constant 0 : i32
    return %c0_i32, %c0_i32_0, %c0_i32_1 : i32, i32, i32
  }
  func.func @transform_4(%arg0: i32) -> (i32, i32) {
    %c0_i32 = arith.constant 0 : i32
    %c0_i32_0 = arith.constant 0 : i32
    %c0_i32_1 = arith.constant 0 : i32
    return %c0_i32, %c0_i32_0 : i32, i32
  }
  func.func @transform_5(%arg0: i32) -> (i32, i32, i32) {
    %c0_i32 = arith.constant 0 : i32
    %c0_i32_0 = arith.constant 0 : i32
    %c0_i32_1 = arith.constant 0 : i32
    %c0_i32_2 = arith.constant 0 : i32
    return %c0_i32, %c0_i32_0, %c0_i32_1 : i32, i32, i32
  }
  func.func @transform_6(%arg0: i32) -> (i32, i32) {
    %c0_i32 = arith.constant 0 : i32
    %c0_i32_0 = arith.constant 0 : i32
    %c0_i32_1 = arith.constant 0 : i32
    return %c0_i32, %c0_i32_0 : i32, i32
  }
  func.func @transform_7(%arg0: i32) -> (i32, i32, i32) {
    %c0_i32 = arith.constant 0 : i32
    %c0_i32_0 = arith.constant 0 : i32
    %c0_i32_1 = arith.constant 0 : i32
    %c0_i32_2 = arith.constant 0 : i32
    return %c0_i32, %c0_i32_0, %c0_i32_1 : i32, i32, i32
  }
  func.func @transform_8(%arg0: i32) -> (i32, i32) {
    %c0_i32 = arith.constant 0 : i32
    %c0_i32_0 = arith.constant 0 : i32
    %c0_i32_1 = arith.constant 0 : i32
    return %c0_i32, %c0_i32_0 : i32, i32
  }
  func.func @transform_9(%arg0: i32) -> (i32, i32, i32, i32) {
    %c0_i32 = arith.constant 0 : i32
    %c0_i32_0 = arith.constant 0 : i32
    %c0_i32_1 = arith.constant 0 : i32
    %c0_i32_2 = arith.constant 0 : i32
    return %arg0, %c0_i32, %c0_i32_0, %c0_i32_1 : i32, i32, i32, i32
  }
}

</mosaic_0001>

<llo_original>
// kernel: fwd.1
$region0: #{fwd.1}
  #allocation0 [shape = 'u32[]', space=smem, size = 0x4, offset = 0x4, fixed_abs, tag = 'smem constant byte address 0x4 - core index']
  #allocation1 [shape = 'u32[72,128]{1,0:T(1,128)}', space=vmem, size = 0x9000, scoped, tag = 'internal scratch']
  #allocation2 [shape = 'f32[18,32,64]{2,1,0:T(8,128)}', space=vmem, size = 0x48000, scoped, tag = 'scratch operand']
  %s0 = inlined_call_operand.vmem [shape: f32[2,18,18,4], index: 0, kind: input, shape index: {}]
  %s1 = inlined_call_operand.vmem [shape: f32[9,4,64], index: 1, kind: input, shape index: {}]
  %s2 = inlined_call_operand.vmem [shape: f32[1,64], index: 2, kind: input, shape index: {}]
  %s3 = inlined_call_operand.vmem [shape: f32[9,64,64], index: 3, kind: input, shape index: {}]
  %s4 = inlined_call_operand.vmem [shape: f32[1,64], index: 4, kind: input, shape index: {}]
  %s5 = inlined_call_operand.vmem [shape: f32[9,64,64], index: 5, kind: input, shape index: {}]
  %s6 = inlined_call_operand.vmem [shape: f32[1,64], index: 6, kind: input, shape index: {}]
  %s7 = inlined_call_operand.vmem [shape: f32[9,64,6], index: 7, kind: input, shape index: {}]
  %s8 = inlined_call_operand.vmem [shape: f32[1,6], index: 8, kind: input, shape index: {}]
  %s9 = inlined_call_operand.vmem [shape: f32[2,16,16,6], index: 9, kind: output, shape index: {}]
  %s10 = sld [smem:[#allocation0]]
  $region69: #{fwd.1} parent=0
    _
  %s12 = ssub.s32 1, %s10
  %s13 = scalar_select 0, %s12, %s10
  loop: start=0, step=1, limit=4
  $region2: #{fwd.1} parent=0 // loop_pre_header
    _
  $region3: #{fwd.1} parent=0 // loop_header
    %s15 = sphi 0, %s19
    %p16 = scmp.ge.s32.totalorder %s15, 4
    %s25 = sphi 0, %s27
    %s28 = sphi 0, %s25
    %s29 = sphi 0, %s28
    %s45 = sphi 0, %s29
    %s49 = sphi 0, %s49
    %s51 = sphi 0, %s49
    %s52 = sphi 0, %s51
    %s66 = sphi 0, %s52
    %s70 = sphi 0, %s70
    %s72 = sphi 0, %s70
    %s73 = sphi 0, %s72
    %s87 = sphi 0, %s73
    %s91 = sphi 0, %s91
    %s93 = sphi 0, %s91
    %s94 = sphi 0, %s93
    %s108 = sphi 0, %s94
    %s112 = sphi 0, %s112
    %s114 = sphi 0, %s112
    %s115 = sphi 0, %s114
    %s129 = sphi 0, %s115
    %s133 = sphi 0, %s133
    %s135 = sphi 0, %s133
    %s136 = sphi 0, %s135
    %s150 = sphi 0, %s136
    %s154 = sphi 0, %s154
    %s156 = sphi 0, %s154
    %s157 = sphi 0, %s156
    %s171 = sphi 0, %s157
    %s175 = sphi 0, %s175
    %s177 = sphi 0, %s175
    %s178 = sphi 0, %s177
    %s192 = sphi 0, %s178
    %s196 = sphi 0, %s196
    %s198 = sphi 0, %s196
    %s199 = sphi 0, %s198
    %s213 = sphi 0, %s199
    %s219 = sphi 0, %s221
    %s222 = sphi 0, %s219
    %s223 = sphi 0, %s222
    %s239 = sphi 0, %s223
  $region4: #{fwd.1} parent=0 // loop_header_branch
    %18 = sbr.rel (%p16) target = $region8
  $region5: #{fwd.1} parent=0 // loop_body
    %s20 = ssub.s32 %s15, 1
    %s21 = ssub.s32 %s15, 2
    %s22 = sadd.s32 %s15, 1
    %s23 = ssub.s32 %s15, %s22
    %p24 = scmp.eq.s32.totalorder %s23, 0
    %s26 = sadd.s32 %s25, 1
    %s27 = scalar_select %p24, %s25, %s26
    %p30 = pneg %p24
    %p31 = scmp.eq.s32.totalorder %s15, 1
    %p32 = por %p30, %p31
    %p33 = scmp.ne.s32.totalorder %s25, %s28
    %p34 = scmp.eq.s32.totalorder %s15, 0
    %p35 = por %p33, %p34
    %p36 = scmp.ne.s32.totalorder %s25, %s28
    %p37 = scmp.eq.s32.totalorder %s20, 1
    %p38 = por %p36, %p37
    %p39 = scmp.ne.s32.totalorder %s28, %s29
    %p40 = scmp.eq.s32.totalorder %s20, 0
    %p41 = por %p39, %p40
    %p42 = scmp.ne.s32.totalorder %s28, %s29
    %p43 = scmp.eq.s32.totalorder %s21, 1
    %p44 = por %p42, %p43
    %p46 = scmp.ne.s32.totalorder %s29, %s45
    %p47 = scmp.eq.s32.totalorder %s21, 0
    %p48 = por %p46, %p47
    %s50 = sadd.s32 %s49, 1
    %p53 = scmp.eq.s32.totalorder %s15, 1
    %p54 = scmp.ne.s32.totalorder %s49, %s51
    %p55 = scmp.eq.s32.totalorder %s15, 0
    %p56 = por %p54, %p55
    %p57 = scmp.ne.s32.totalorder %s49, %s51
    %p58 = scmp.eq.s32.totalorder %s20, 1
    %p59 = por %p57, %p58
    %p60 = scmp.ne.s32.totalorder %s51, %s52
    %p61 = scmp.eq.s32.totalorder %s20, 0
    %p62 = por %p60, %p61
    %p63 = scmp.ne.s32.totalorder %s51, %s52
    %p64 = scmp.eq.s32.totalorder %s21, 1
    %p65 = por %p63, %p64
    %p67 = scmp.ne.s32.totalorder %s52, %s66
    %p68 = scmp.eq.s32.totalorder %s21, 0
    %p69 = por %p67, %p68
    %s71 = sadd.s32 %s70, 1
    %p74 = scmp.eq.s32.totalorder %s15, 1
    %p75 = scmp.ne.s32.totalorder %s70, %s72
    %p76 = scmp.eq.s32.totalorder %s15, 0
    %p77 = por %p75, %p76
    %p78 = scmp.ne.s32.totalorder %s70, %s72
    %p79 = scmp.eq.s32.totalorder %s20, 1
    %p80 = por %p78, %p79
    %p81 = scmp.ne.s32.totalorder %s72, %s73
    %p82 = scmp.eq.s32.totalorder %s20, 0
    %p83 = por %p81, %p82
    %p84 = scmp.ne.s32.totalorder %s72, %s73
    %p85 = scmp.eq.s32.totalorder %s21, 1
    %p86 = por %p84, %p85
    %p88 = scmp.ne.s32.totalorder %s73, %s87
    %p89 = scmp.eq.s32.totalorder %s21, 0
    %p90 = por %p88, %p89
    %s92 = sadd.s32 %s91, 1
    %p95 = scmp.eq.s32.totalorder %s15, 1
    %p96 = scmp.ne.s32.totalorder %s91, %s93
    %p97 = scmp.eq.s32.totalorder %s15, 0
    %p98 = por %p96, %p97
    %p99 = scmp.ne.s32.totalorder %s91, %s93
    %p100 = scmp.eq.s32.totalorder %s20, 1
    %p101 = por %p99, %p100
    %p102 = scmp.ne.s32.totalorder %s93, %s94
    %p103 = scmp.eq.s32.totalorder %s20, 0
    %p104 = por %p102, %p103
    %p105 = scmp.ne.s32.totalorder %s93, %s94
    %p106 = scmp.eq.s32.totalorder %s21, 1
    %p107 = por %p105, %p106
    %p109 = scmp.ne.s32.totalorder %s94, %s108
    %p110 = scmp.eq.s32.totalorder %s21, 0
    %p111 = por %p109, %p110
    %s113 = sadd.s32 %s112, 1
    %p116 = scmp.eq.s32.totalorder %s15, 1
    %p117 = scmp.ne.s32.totalorder %s112, %s114
    %p118 = scmp.eq.s32.totalorder %s15, 0
    %p119 = por %p117, %p118
    %p120 = scmp.ne.s32.totalorder %s112, %s114
    %p121 = scmp.eq.s32.totalorder %s20, 1
    %p122 = por %p120, %p121
    %p123 = scmp.ne.s32.totalorder %s114, %s115
    %p124 = scmp.eq.s32.totalorder %s20, 0
    %p125 = por %p123, %p124
    %p126 = scmp.ne.s32.totalorder %s114, %s115
    %p127 = scmp.eq.s32.totalorder %s21, 1
    %p128 = por %p126, %p127
    %p130 = scmp.ne.s32.totalorder %s115, %s129
    %p131 = scmp.eq.s32.totalorder %s21, 0
    %p132 = por %p130, %p131
    %s134 = sadd.s32 %s133, 1
    %p137 = scmp.eq.s32.totalorder %s15, 1
    %p138 = scmp.ne.s32.totalorder %s133, %s135
    %p139 = scmp.eq.s32.totalorder %s15, 0
    %p140 = por %p138, %p139
    %p141 = scmp.ne.s32.totalorder %s133, %s135
    %p142 = scmp.eq.s32.totalorder %s20, 1
    %p143 = por %p141, %p142
    %p144 = scmp.ne.s32.totalorder %s135, %s136
    %p145 = scmp.eq.s32.totalorder %s20, 0
    %p146 = por %p144, %p145
    %p147 = scmp.ne.s32.totalorder %s135, %s136
    %p148 = scmp.eq.s32.totalorder %s21, 1
    %p149 = por %p147, %p148
    %p151 = scmp.ne.s32.totalorder %s136, %s150
    %p152 = scmp.eq.s32.totalorder %s21, 0
    %p153 = por %p151, %p152
    %s155 = sadd.s32 %s154, 1
    %p158 = scmp.eq.s32.totalorder %s15, 1
    %p159 = scmp.ne.s32.totalorder %s154, %s156
    %p160 = scmp.eq.s32.totalorder %s15, 0
    %p161 = por %p159, %p160
    %p162 = scmp.ne.s32.totalorder %s154, %s156
    %p163 = scmp.eq.s32.totalorder %s20, 1
    %p164 = por %p162, %p163
    %p165 = scmp.ne.s32.totalorder %s156, %s157
    %p166 = scmp.eq.s32.totalorder %s20, 0
    %p167 = por %p165, %p166
    %p168 = scmp.ne.s32.totalorder %s156, %s157
    %p169 = scmp.eq.s32.totalorder %s21, 1
    %p170 = por %p168, %p169
    %p172 = scmp.ne.s32.totalorder %s157, %s171
    %p173 = scmp.eq.s32.totalorder %s21, 0
    %p174 = por %p172, %p173
    %s176 = sadd.s32 %s175, 1
    %p179 = scmp.eq.s32.totalorder %s15, 1
    %p180 = scmp.ne.s32.totalorder %s175, %s177
    %p181 = scmp.eq.s32.totalorder %s15, 0
    %p182 = por %p180, %p181
    %p183 = scmp.ne.s32.totalorder %s175, %s177
    %p184 = scmp.eq.s32.totalorder %s20, 1
    %p185 = por %p183, %p184
    %p186 = scmp.ne.s32.totalorder %s177, %s178
    %p187 = scmp.eq.s32.totalorder %s20, 0
    %p188 = por %p186, %p187
    %p189 = scmp.ne.s32.totalorder %s177, %s178
    %p190 = scmp.eq.s32.totalorder %s21, 1
    %p191 = por %p189, %p190
    %p193 = scmp.ne.s32.totalorder %s178, %s192
    %p194 = scmp.eq.s32.totalorder %s21, 0
    %p195 = por %p193, %p194
    %s197 = sadd.s32 %s196, 1
    %p200 = scmp.eq.s32.totalorder %s15, 1
    %p201 = scmp.ne.s32.totalorder %s196, %s198
    %p202 = scmp.eq.s32.totalorder %s15, 0
    %p203 = por %p201, %p202
    %p204 = scmp.ne.s32.totalorder %s196, %s198
    %p205 = scmp.eq.s32.totalorder %s20, 1
    %p206 = por %p204, %p205
    %p207 = scmp.ne.s32.totalorder %s198, %s199
    %p208 = scmp.eq.s32.totalorder %s20, 0
    %p209 = por %p207, %p208
    %p210 = scmp.ne.s32.totalorder %s198, %s199
    %p211 = scmp.eq.s32.totalorder %s21, 1
    %p212 = por %p210, %p211
    %p214 = scmp.ne.s32.totalorder %s199, %s213
    %p215 = scmp.eq.s32.totalorder %s21, 0
    %p216 = por %p214, %p215
    %s217 = ssub.s32 %s15, %s22
    %p218 = scmp.eq.s32.totalorder %s217, 0
    %s220 = sadd.s32 %s219, 1
    %s221 = scalar_select %p218, %s219, %s220
    %p224 = pneg %p218
    %p225 = scmp.eq.s32.totalorder %s15, 1
    %p226 = por %p224, %p225
    %p227 = scmp.ne.s32.totalorder %s219, %s222
    %p228 = scmp.eq.s32.totalorder %s15, 0
    %p229 = por %p227, %p228
    %p230 = scmp.ne.s32.totalorder %s219, %s222
    %p231 = scmp.eq.s32.totalorder %s20, 1
    %p232 = por %p230, %p231
    %p233 = scmp.ne.s32.totalorder %s222, %s223
    %p234 = scmp.eq.s32.totalorder %s20, 0
    %p235 = por %p233, %p234
    %p236 = scmp.ne.s32.totalorder %s222, %s223
    %p237 = scmp.eq.s32.totalorder %s21, 1
    %p238 = por %p236, %p237
    %p240 = scmp.ne.s32.totalorder %s223, %s239
    %p241 = scmp.eq.s32.totalorder %s21, 0
    %p242 = por %p240, %p241
    %p243 = scmp.le.s32.totalorder 1, %s15
    %p244 = scmp.lt.s32.totalorder %s15, 3
    %p245 = pnand %p243, %p244
    %p246 = pneg %p245
    // Predicated region
    $region9: #{fwd.1} parent=5 // pred_check
      _
    $region10: #{fwd.1} parent=5 // pred_check_branch
      %248 = sbr.rel (%p245) target = $region12
    $region11: #{fwd.1} parent=5 // pred_region
      %s249 = ssub.s32 %s15, 1
      // Predicated region
      $region13: #{fwd.1} parent=11 // pred_check
        %p250 = pneg %p62
      $region14: #{fwd.1} parent=11 // pred_check_branch
        %252 = sbr.rel (%p250) target = $region16
      $region15: #{fwd.1} parent=11 // pred_region
        _
      $region16: #{fwd.1} parent=11 // pred_fallthru
        _
      // Predicated region
      $region17: #{fwd.1} parent=11 // pred_check
        %p253 = pneg %p83
      $region18: #{fwd.1} parent=11 // pred_check_branch
        %255 = sbr.rel (%p253) target = $region20
      $region19: #{fwd.1} parent=11 // pred_region
        _
      $region20: #{fwd.1} parent=11 // pred_fallthru
        _
      // Predicated region
      $region21: #{fwd.1} parent=11 // pred_check
        %p256 = pneg %p104
      $region22: #{fwd.1} parent=11 // pred_check_branch
        %258 = sbr.rel (%p256) target = $region24
      $region23: #{fwd.1} parent=11 // pred_region
        _
      $region24: #{fwd.1} parent=11 // pred_fallthru
        _
      // Predicated region
      $region25: #{fwd.1} parent=11 // pred_check
        %p259 = pneg %p125
      $region26: #{fwd.1} parent=11 // pred_check_branch
        %261 = sbr.rel (%p259) target = $region28
      $region27: #{fwd.1} parent=11 // pred_region
        _
      $region28: #{fwd.1} parent=11 // pred_fallthru
        _
      // Predicated region
      $region29: #{fwd.1} parent=11 // pred_check
        %p262 = pneg %p146
      $region30: #{fwd.1} parent=11 // pred_check_branch
        %264 = sbr.rel (%p262) target = $region32
      $region31: #{fwd.1} parent=11 // pred_region
        _
      $region32: #{fwd.1} parent=11 // pred_fallthru
        _
      // Predicated region
      $region33: #{fwd.1} parent=11 // pred_check
        %p265 = pneg %p167
      $region34: #{fwd.1} parent=11 // pred_check_branch
        %267 = sbr.rel (%p265) target = $region36
      $region35: #{fwd.1} parent=11 // pred_region
        _
      $region36: #{fwd.1} parent=11 // pred_fallthru
        _
      // Predicated region
      $region37: #{fwd.1} parent=11 // pred_check
        %p268 = pneg %p188
      $region38: #{fwd.1} parent=11 // pred_check_branch
        %270 = sbr.rel (%p268) target = $region40
      $region39: #{fwd.1} parent=11 // pred_region
        _
      $region40: #{fwd.1} parent=11 // pred_fallthru
        _
      // Predicated region
      $region41: #{fwd.1} parent=11 // pred_check
        %p271 = pneg %p209
      $region42: #{fwd.1} parent=11 // pred_check_branch
        %273 = sbr.rel (%p271) target = $region44
      $region43: #{fwd.1} parent=11 // pred_region
        _
      $region44: #{fwd.1} parent=11 // pred_fallthru
        _
    $region12: #{fwd.1} parent=5 // pred_fallthru
      _
    %p274 = scmp.lt.s32.totalorder %s15, 2
    // Predicated region
    $region45: #{fwd.1} parent=5 // pred_check
      %p275 = pneg %p274
    $region46: #{fwd.1} parent=5 // pred_check_branch
      %277 = sbr.rel (%p275) target = $region48
    $region47: #{fwd.1} parent=5 // pred_region
      // Predicated region
      $region49: #{fwd.1} parent=47 // pred_check
        %p278 = pneg %p35
      $region50: #{fwd.1} parent=47 // pred_check_branch
        %280 = sbr.rel (%p278) target = $region52
      $region51: #{fwd.1} parent=47 // pred_region
        %p281 = scmp.lt.s32.totalorder %s15, 1
        %s282 = scalar_select %p281, %s15, 1
        %s283 = smul.addr %s282, 54
        %s284 = smul.addr %s283, 8
        %s285 = scalar_lea.vmem %s0, %s284
      $region52: #{fwd.1} parent=47 // pred_fallthru
        _
    $region48: #{fwd.1} parent=5 // pred_fallthru
      _
    %p286 = scmp.le.s32.totalorder 1, %s15
    %p287 = scmp.lt.s32.totalorder %s15, 3
    %p288 = pnand %p286, %p287
    %p289 = pneg %p288
    // Predicated region
    $region53: #{fwd.1} parent=5 // pred_check
      _
    $region54: #{fwd.1} parent=5 // pred_check_branch
      %291 = sbr.rel (%p288) target = $region56
    $region55: #{fwd.1} parent=5 // pred_region
      %s292 = ssub.s32 %s15, 1
      %p293 = scmp.lt.s32.totalorder %s20, 1
      %s294 = scalar_select %p293, %s20, 1
      %s295 = smul.addr %s294, 54
      %s296 = smul.addr %s295, 8
      %s297 = scalar_lea.vmem %s0, %s296
      %p298 = pneg %p41
      %p299 = pneg %p38
      %p300 = pneg %p62
      %p301 = pneg %p59
      %p302 = pneg %p83
      %p303 = pneg %p80
      %p304 = pneg %p104
      %p305 = pneg %p101
      %p306 = pneg %p125
      %p307 = pneg %p122
      %p308 = pneg %p146
      %p309 = pneg %p143
      %p310 = pneg %p167
      %p311 = pneg %p164
      %p312 = pneg %p188
      %p313 = pneg %p185
      %p314 = pneg %p209
      %p315 = pneg %p206
      %p316 = pneg %p235
      %p317 = pneg %p232
      %p318 = scmp.lt.s32.totalorder %s20, 1
      %s319 = scalar_select %p318, %s20, 1
      %s320 = smul.addr %s319, 32
      %s321 = smul.addr %s320, 8
      %s322 = scalar_lea.vmem %s9, %s321
      %p323 = scmp.lt.s32.totalorder %s20, 1
      %s324 = scalar_select %p323, %s20, 1
      %s325 = smul.addr %s324, 54
      %s326 = smul.addr %s325, 8
      %s327 = scalar_lea.vmem %s0, %s326
      %p328 = scmp.lt.s32.totalorder %s20, 1
      %s329 = scalar_select %p328, %s20, 1
      %s330 = smul.addr %s329, 32
      %s331 = smul.addr %s330, 8
      %s332 = scalar_lea.vmem %s9, %s331
      %v333 = vld [vmem:[%s327] sm:$0xff]
      %v334 = vld [vmem:[%s327 + $0x8] sm:$0xff]
      %v335 = vld [vmem:[%s327 + $0x10] sm:$0x3]
      %v336 = vld [vmem:[%s327 + $0x18] sm:$0xff]
      %v337 = vld [vmem:[%s327 + $0x20] sm:$0xff]
      %v338 = vld [vmem:[%s327 + $0x28] sm:$0x3]
      %v339 = vld [vmem:[%s327 + $0x30] sm:$0xff]
      %v340 = vld [vmem:[%s327 + $0x38] sm:$0xff]
      %v341 = vld [vmem:[%s327 + $0x40] sm:$0x3]
      %v342 = vld [vmem:[%s327 + $0x48] sm:$0xff]
      %v343 = vld [vmem:[%s327 + $0x50] sm:$0xff]
      %v344 = vld [vmem:[%s327 + $0x58] sm:$0x3]
      %v345 = vld [vmem:[%s327 + $0x60] sm:$0xff]
      %v346 = vld [vmem:[%s327 + $0x68] sm:$0xff]
      %v347 = vld [vmem:[%s327 + $0x70] sm:$0x3]
      %v348 = vld [vmem:[%s327 + $0x78] sm:$0xff]
      %v349 = vld [vmem:[%s327 + $0x80] sm:$0xff]
      %v350 = vld [vmem:[%s327 + $0x88] sm:$0x3]
      %v351 = vld [vmem:[%s327 + $0x90] sm:$0xff]
      %v352 = vld [vmem:[%s327 + $0x98] sm:$0xff]
      %v353 = vld [vmem:[%s327 + $0xa0] sm:$0x3]
      %v354 = vld [vmem:[%s327 + $0xa8] sm:$0xff]
      %v355 = vld [vmem:[%s327 + $0xb0] sm:$0xff]
      %v356 = vld [vmem:[%s327 + $0xb8] sm:$0x3]
      %v357 = vld [vmem:[%s327 + $0xc0] sm:$0xff]
      %v358 = vld [vmem:[%s327 + $0xc8] sm:$0xff]
      %v359 = vld [vmem:[%s327 + $0xd0] sm:$0x3]
      %v360 = vld [vmem:[%s327 + $0xd8] sm:$0xff]
      %v361 = vld [vmem:[%s327 + $0xe0] sm:$0xff]
      %v362 = vld [vmem:[%s327 + $0xe8] sm:$0x3]
      %v363 = vld [vmem:[%s327 + $0xf0] sm:$0xff]
      %v364 = vld [vmem:[%s327 + $0xf8] sm:$0xff]
      %v365 = vld [vmem:[%s327 + $0x100] sm:$0x3]
      %v366 = vld [vmem:[%s327 + $0x108] sm:$0xff]
      %v367 = vld [vmem:[%s327 + $0x110] sm:$0xff]
      %v368 = vld [vmem:[%s327 + $0x118] sm:$0x3]
      %v369 = vld [vmem:[%s327 + $0x120] sm:$0xff]
      %v370 = vld [vmem:[%s327 + $0x128] sm:$0xff]
      %v371 = vld [vmem:[%s327 + $0x130] sm:$0x3]
      %v372 = vld [vmem:[%s327 + $0x138] sm:$0xff]
      %v373 = vld [vmem:[%s327 + $0x140] sm:$0xff]
      %v374 = vld [vmem:[%s327 + $0x148] sm:$0x3]
      %v375 = vld [vmem:[%s327 + $0x150] sm:$0xff]
      %v376 = vld [vmem:[%s327 + $0x158] sm:$0xff]
      %v377 = vld [vmem:[%s327 + $0x160] sm:$0x3]
      %v378 = vld [vmem:[%s327 + $0x168] sm:$0xff]
      %v379 = vld [vmem:[%s327 + $0x170] sm:$0xff]
      %v380 = vld [vmem:[%s327 + $0x178] sm:$0x3]
      %v381 = vld [vmem:[%s327 + $0x180] sm:$0xff]
      %v382 = vld [vmem:[%s327 + $0x188] sm:$0xff]
      %v383 = vld [vmem:[%s327 + $0x190] sm:$0x3]
      %v384 = vld [vmem:[%s327 + $0x198] sm:$0xff]
      %v385 = vld [vmem:[%s327 + $0x1a0] sm:$0xff]
      %v386 = vld [vmem:[%s327 + $0x1a8] sm:$0x3]
      %v387 = vld [vmem:[%s1] sm:$0xf]
      %vm436 = vcmask 1046528
      %v437 = vrot.slane %v333, 1
      %v438 = vrot.slane %v334, 1
      %v439 = vsel %vm436, %v437, %v438
      %v440 = vrot.slane %v335, 1
      %v441 = vsel %vm436, %v438, %v440
      %v442 = vrot.slane %v336, 1
      %v443 = vrot.slane %v337, 1
      %v444 = vsel %vm436, %v442, %v443
      %v445 = vrot.slane %v338, 1
      %v446 = vsel %vm436, %v443, %v445
      %v447 = vrot.slane %v339, 1
      %v448 = vrot.slane %v340, 1
      %v449 = vsel %vm436, %v447, %v448
      %v450 = vrot.slane %v341, 1
      %v451 = vsel %vm436, %v448, %v450
      %v452 = vrot.slane %v342, 1
      %v453 = vrot.slane %v343, 1
      %v454 = vsel %vm436, %v452, %v453
      %v455 = vrot.slane %v344, 1
      %v456 = vsel %vm436, %v453, %v455
      %v457 = vrot.slane %v345, 1
      %v458 = vrot.slane %v346, 1
      %v459 = vsel %vm436, %v457, %v458
      %v460 = vrot.slane %v347, 1
      %v461 = vsel %vm436, %v458, %v460
      %v462 = vrot.slane %v348, 1
      %v463 = vrot.slane %v349, 1
      %v464 = vsel %vm436, %v462, %v463
      %v465 = vrot.slane %v350, 1
      %v466 = vsel %vm436, %v463, %v465
      %v467 = vrot.slane %v351, 1
      %v468 = vrot.slane %v352, 1
      %v469 = vsel %vm436, %v467, %v468
      %v470 = vrot.slane %v353, 1
      %v471 = vsel %vm436, %v468, %v470
      %v472 = vrot.slane %v354, 1
      %v473 = vrot.slane %v355, 1
      %v474 = vsel %vm436, %v472, %v473
      %v475 = vrot.slane %v356, 1
      %v476 = vsel %vm436, %v473, %v475
      %v477 = vrot.slane %v357, 1
      %v478 = vrot.slane %v358, 1
      %v479 = vsel %vm436, %v477, %v478
      %v480 = vrot.slane %v359, 1
      %v481 = vsel %vm436, %v478, %v480
      %v482 = vrot.slane %v360, 1
      %v483 = vrot.slane %v361, 1
      %v484 = vsel %vm436, %v482, %v483
      %v485 = vrot.slane %v362, 1
      %v486 = vsel %vm436, %v483, %v485
      %v487 = vrot.slane %v363, 1
      %v488 = vrot.slane %v364, 1
      %v489 = vsel %vm436, %v487, %v488
      %v490 = vrot.slane %v365, 1
      %v491 = vsel %vm436, %v488, %v490
      %v492 = vrot.slane %v366, 1
      %v493 = vrot.slane %v367, 1
      %v494 = vsel %vm436, %v492, %v493
      %v495 = vrot.slane %v368, 1
      %v496 = vsel %vm436, %v493, %v495
      %v497 = vrot.slane %v369, 1
      %v498 = vrot.slane %v370, 1
      %v499 = vsel %vm436, %v497, %v498
      %v500 = vrot.slane %v371, 1
      %v501 = vsel %vm436, %v498, %v500
      %v502 = vrot.slane %v372, 1
      %v503 = vrot.slane %v373, 1
      %v504 = vsel %vm436, %v502, %v503
      %v505 = vrot.slane %v374, 1
      %v506 = vsel %vm436, %v503, %v505
      %v507 = vrot.slane %v375, 1
      %v508 = vrot.slane %v376, 1
      %v509 = vsel %vm436, %v507, %v508
      %v510 = vrot.slane %v377, 1
      %v511 = vsel %vm436, %v508, %v510
      %v512 = vrot.slane %v378, 1
      %v513 = vrot.slane %v379, 1
      %v514 = vsel %vm436, %v512, %v513
      %v515 = vrot.slane %v380, 1
      %v516 = vsel %vm436, %v513, %v515
      %s517 = scalar_lea.vmem %s1, 4
      %v518 = vld [vmem:[%s517] sm:$0xf]
      %vm519 = vcmask 31744
      %v520 = vsel %vm519, %v439, 0
      %v522 = vsel %vm519, %v441, 0
      %v524 = vsel %vm519, %v444, 0
      %v526 = vsel %vm519, %v446, 0
      %v528 = vsel %vm519, %v449, 0
      %v530 = vsel %vm519, %v451, 0
      %v532 = vsel %vm519, %v454, 0
      %v534 = vsel %vm519, %v456, 0
      %v536 = vsel %vm519, %v459, 0
      %v538 = vsel %vm519, %v461, 0
      %v540 = vsel %vm519, %v464, 0
      %v542 = vsel %vm519, %v466, 0
      %v544 = vsel %vm519, %v469, 0
      %v546 = vsel %vm519, %v471, 0
      %v548 = vsel %vm519, %v474, 0
      %v550 = vsel %vm519, %v476, 0
      %v552 = vsel %vm519, %v479, 0
      %v554 = vsel %vm519, %v481, 0
      %v556 = vsel %vm519, %v484, 0
      %v558 = vsel %vm519, %v486, 0
      %v560 = vsel %vm519, %v489, 0
      %v562 = vsel %vm519, %v491, 0
      %v564 = vsel %vm519, %v494, 0
      %v566 = vsel %vm519, %v496, 0
      %v568 = vsel %vm519, %v499, 0
      %v570 = vsel %vm519, %v501, 0
      %v572 = vsel %vm519, %v504, 0
      %v574 = vsel %vm519, %v506, 0
      %v576 = vsel %vm519, %v509, 0
      %v578 = vsel %vm519, %v511, 0
      %v580 = vsel %vm519, %v514, 0
      %v582 = vsel %vm519, %v516, 0
      %vm584 = vcmask 1043456
      %v586 = vsel %vm584, %v518, 0
      %588 = vmatpush.msra.mxu0 0.0
      %589 = vmatpush.msra.mxu0 0.0
      %590 = vmatpush.msra.mxu0 0.0
      %591 = vmatpush.msra.mxu0 0.0
      %592 = vmatpush.msra.mxu0 0.0
      %593 = vmatpush.msra.mxu0 0.0
      %594 = vmatpush.msra.mxu0 0.0
      %595 = vmatpush.msra.mxu0 0.0
      %596 = vmatpush.msra.mxu0 0.0
      %597 = vmatpush.msra.mxu0 0.0
      %598 = vmatpush.msra.mxu0 0.0
      %599 = vmatpush.msra.mxu0 0.0
      %600 = vmatpush.msra.mxu0 0.0
      %601 = vmatpush.msra.mxu0 0.0
      %602 = vmatpush.msra.mxu0 0.0
      %603 = vmatpush.msra.mxu0 %v586
      %604 = vmatmul.f32.gmra.mxu0 %v520
      %v605 = vpop.f32.mrf.mxu0
      %v606 = vadd.f32 0.0, %v605
      %607 = vmatmul.f32.gmra.mxu0 %v522
      %v608 = vpop.f32.mrf.mxu0
      %v609 = vadd.f32 0.0, %v608
      %610 = vmatmul.f32.gmra.mxu0 %v524
      %v611 = vpop.f32.mrf.mxu0
      %v612 = vadd.f32 0.0, %v611
      %613 = vmatmul.f32.gmra.mxu0 %v526
      %v614 = vpop.f32.mrf.mxu0
      %v615 = vadd.f32 0.0, %v614
      %616 = vmatmul.f32.gmra.mxu0 %v528
      %v617 = vpop.f32.mrf.mxu0
      %v618 = vadd.f32 0.0, %v617
      %619 = vmatmul.f32.gmra.mxu0 %v530
      %v620 = vpop.f32.mrf.mxu0
      %v621 = vadd.f32 0.0, %v620
      %622 = vmatmul.f32.gmra.mxu0 %v532
      %v623 = vpop.f32.mrf.mxu0
      %v624 = vadd.f32 0.0, %v623
      %625 = vmatmul.f32.gmra.mxu0 %v534
      %v626 = vpop.f32.mrf.mxu0
      %v627 = vadd.f32 0.0, %v626
      %628 = vmatmul.f32.gmra.mxu0 %v536
      %v629 = vpop.f32.mrf.mxu0
      %v630 = vadd.f32 0.0, %v629
      %631 = vmatmul.f32.gmra.mxu0 %v538
      %v632 = vpop.f32.mrf.mxu0
      %v633 = vadd.f32 0.0, %v632
      %634 = vmatmul.f32.gmra.mxu0 %v540
      %v635 = vpop.f32.mrf.mxu0
      %v636 = vadd.f32 0.0, %v635
      %637 = vmatmul.f32.gmra.mxu0 %v542
      %v638 = vpop.f32.mrf.mxu0
      %v639 = vadd.f32 0.0, %v638
      %640 = vmatmul.f32.gmra.mxu0 %v544
      %v641 = vpop.f32.mrf.mxu0
      %v642 = vadd.f32 0.0, %v641
      %643 = vmatmul.f32.gmra.mxu0 %v546
      %v644 = vpop.f32.mrf.mxu0
      %v645 = vadd.f32 0.0, %v644
      %646 = vmatmul.f32.gmra.mxu0 %v548
      %v647 = vpop.f32.mrf.mxu0
      %v648 = vadd.f32 0.0, %v647
      %649 = vmatmul.f32.gmra.mxu0 %v550
      %v650 = vpop.f32.mrf.mxu0
      %v651 = vadd.f32 0.0, %v650
      %652 = vmatmul.f32.gmra.mxu0 %v552
      %v653 = vpop.f32.mrf.mxu0
      %v654 = vadd.f32 0.0, %v653
      %655 = vmatmul.f32.gmra.mxu0 %v554
      %v656 = vpop.f32.mrf.mxu0
      %v657 = vadd.f32 0.0, %v656
      %658 = vmatmul.f32.gmra.mxu0 %v556
      %v659 = vpop.f32.mrf.mxu0
      %v660 = vadd.f32 0.0, %v659
      %661 = vmatmul.f32.gmra.mxu0 %v558
      %v662 = vpop.f32.mrf.mxu0
      %v663 = vadd.f32 0.0, %v662
      %664 = vmatmul.f32.gmra.mxu0 %v560
      %v665 = vpop.f32.mrf.mxu0
      %v666 = vadd.f32 0.0, %v665
      %667 = vmatmul.f32.gmra.mxu0 %v562
      %v668 = vpop.f32.mrf.mxu0
      %v669 = vadd.f32 0.0, %v668
      %670 = vmatmul.f32.gmra.mxu0 %v564
      %v671 = vpop.f32.mrf.mxu0
      %v672 = vadd.f32 0.0, %v671
      %673 = vmatmul.f32.gmra.mxu0 %v566
      %v674 = vpop.f32.mrf.mxu0
      %v675 = vadd.f32 0.0, %v674
      %676 = vmatmul.f32.gmra.mxu0 %v568
      %v677 = vpop.f32.mrf.mxu0
      %v678 = vadd.f32 0.0, %v677
      %679 = vmatmul.f32.gmra.mxu0 %v570
      %v680 = vpop.f32.mrf.mxu0
      %v681 = vadd.f32 0.0, %v680
      %682 = vmatmul.f32.gmra.mxu0 %v572
      %v683 = vpop.f32.mrf.mxu0
      %v684 = vadd.f32 0.0, %v683
      %685 = vmatmul.f32.gmra.mxu0 %v574
      %v686 = vpop.f32.mrf.mxu0
      %v687 = vadd.f32 0.0, %v686
      %688 = vmatmul.f32.gmra.mxu0 %v576
      %v689 = vpop.f32.mrf.mxu0
      %v690 = vadd.f32 0.0, %v689
      %691 = vmatmul.f32.gmra.mxu0 %v578
      %v692 = vpop.f32.mrf.mxu0
      %v693 = vadd.f32 0.0, %v692
      %694 = vmatmul.f32.gmra.mxu0 %v580
      %v695 = vpop.f32.mrf.mxu0
      %v696 = vadd.f32 0.0, %v695
      %697 = vmatmul.f32.gmra.mxu0 %v582
      %v698 = vpop.f32.mrf.mxu0
      %v699 = vadd.f32 0.0, %v698
      %700 = vdwg.mxu0
      %v701 = vsel %vm519, %v333, 0
      %v703 = vsel %vm519, %v334, 0
      %v705 = vsel %vm519, %v336, 0
      %v707 = vsel %vm519, %v337, 0
      %v709 = vsel %vm519, %v339, 0
      %v711 = vsel %vm519, %v340, 0
      %v713 = vsel %vm519, %v342, 0
      %v715 = vsel %vm519, %v343, 0
      %v717 = vsel %vm519, %v345, 0
      %v719 = vsel %vm519, %v346, 0
      %v721 = vsel %vm519, %v348, 0
      %v723 = vsel %vm519, %v349, 0
      %v725 = vsel %vm519, %v351, 0
      %v727 = vsel %vm519, %v352, 0
      %v729 = vsel %vm519, %v354, 0
      %v731 = vsel %vm519, %v355, 0
      %v733 = vsel %vm519, %v357, 0
      %v735 = vsel %vm519, %v358, 0
      %v737 = vsel %vm519, %v360, 0
      %v739 = vsel %vm519, %v361, 0
      %v741 = vsel %vm519, %v363, 0
      %v743 = vsel %vm519, %v364, 0
      %v745 = vsel %vm519, %v366, 0
      %v747 = vsel %vm519, %v367, 0
      %v749 = vsel %vm519, %v369, 0
      %v751 = vsel %vm519, %v370, 0
      %v753 = vsel %vm519, %v372, 0
      %v755 = vsel %vm519, %v373, 0
      %v757 = vsel %vm519, %v375, 0
      %v759 = vsel %vm519, %v376, 0
      %v761 = vsel %vm519, %v378, 0
      %v763 = vsel %vm519, %v379, 0
      %v766 = vsel %vm584, %v387, 0
      %768 = vmatpush.msra.mxu0 0.0
      %769 = vmatpush.msra.mxu0 0.0
      %770 = vmatpush.msra.mxu0 0.0
      %771 = vmatpush.msra.mxu0 0.0
      %772 = vmatpush.msra.mxu0 0.0
      %773 = vmatpush.msra.mxu0 0.0
      %774 = vmatpush.msra.mxu0 0.0
      %775 = vmatpush.msra.mxu0 0.0
      %776 = vmatpush.msra.mxu0 0.0
      %777 = vmatpush.msra.mxu0 0.0
      %778 = vmatpush.msra.mxu0 0.0
      %779 = vmatpush.msra.mxu0 0.0
      %780 = vmatpush.msra.mxu0 0.0
      %781 = vmatpush.msra.mxu0 0.0
      %782 = vmatpush.msra.mxu0 0.0
      %783 = vmatpush.msra.mxu0 %v766
      %784 = vmatmul.f32.gmra.mxu0 %v701
      %v785 = vpop.f32.mrf.mxu0
      %v786 = vadd.f32 %v606, %v785
      %787 = vmatmul.f32.gmra.mxu0 %v703
      %v788 = vpop.f32.mrf.mxu0
      %v789 = vadd.f32 %v609, %v788
      %790 = vmatmul.f32.gmra.mxu0 %v705
      %v791 = vpop.f32.mrf.mxu0
      %v792 = vadd.f32 %v612, %v791
      %793 = vmatmul.f32.gmra.mxu0 %v707
      %v794 = vpop.f32.mrf.mxu0
      %v795 = vadd.f32 %v615, %v794
      %796 = vmatmul.f32.gmra.mxu0 %v709
      %v797 = vpop.f32.mrf.mxu0
      %v798 = vadd.f32 %v618, %v797
      %799 = vmatmul.f32.gmra.mxu0 %v711
      %v800 = vpop.f32.mrf.mxu0
      %v801 = vadd.f32 %v621, %v800
      %802 = vmatmul.f32.gmra.mxu0 %v713
      %v803 = vpop.f32.mrf.mxu0
      %v804 = vadd.f32 %v624, %v803
      %805 = vmatmul.f32.gmra.mxu0 %v715
      %v806 = vpop.f32.mrf.mxu0
      %v807 = vadd.f32 %v627, %v806
      %808 = vmatmul.f32.gmra.mxu0 %v717
      %v809 = vpop.f32.mrf.mxu0
      %v810 = vadd.f32 %v630, %v809
      %811 = vmatmul.f32.gmra.mxu0 %v719
      %v812 = vpop.f32.mrf.mxu0
      %v813 = vadd.f32 %v633, %v812
      %814 = vmatmul.f32.gmra.mxu0 %v721
      %v815 = vpop.f32.mrf.mxu0
      %v816 = vadd.f32 %v636, %v815
      %817 = vmatmul.f32.gmra.mxu0 %v723
      %v818 = vpop.f32.mrf.mxu0
      %v819 = vadd.f32 %v639, %v818
      %820 = vmatmul.f32.gmra.mxu0 %v725
      %v821 = vpop.f32.mrf.mxu0
      %v822 = vadd.f32 %v642, %v821
      %823 = vmatmul.f32.gmra.mxu0 %v727
      %v824 = vpop.f32.mrf.mxu0
      %v825 = vadd.f32 %v645, %v824
      %826 = vmatmul.f32.gmra.mxu0 %v729
      %v827 = vpop.f32.mrf.mxu0
      %v828 = vadd.f32 %v648, %v827
      %829 = vmatmul.f32.gmra.mxu0 %v731
      %v830 = vpop.f32.mrf.mxu0
      %v831 = vadd.f32 %v651, %v830
      %832 = vmatmul.f32.gmra.mxu0 %v733
      %v833 = vpop.f32.mrf.mxu0
      %v834 = vadd.f32 %v654, %v833
      %835 = vmatmul.f32.gmra.mxu0 %v735
      %v836 = vpop.f32.mrf.mxu0
      %v837 = vadd.f32 %v657, %v836
      %838 = vmatmul.f32.gmra.mxu0 %v737
      %v839 = vpop.f32.mrf.mxu0
      %v840 = vadd.f32 %v660, %v839
      %841 = vmatmul.f32.gmra.mxu0 %v739
      %v842 = vpop.f32.mrf.mxu0
      %v843 = vadd.f32 %v663, %v842
      %844 = vmatmul.f32.gmra.mxu0 %v741
      %v845 = vpop.f32.mrf.mxu0
      %v846 = vadd.f32 %v666, %v845
      %847 = vmatmul.f32.gmra.mxu0 %v743
      %v848 = vpop.f32.mrf.mxu0
      %v849 = vadd.f32 %v669, %v848
      %850 = vmatmul.f32.gmra.mxu0 %v745
      %v851 = vpop.f32.mrf.mxu0
      %v852 = vadd.f32 %v672, %v851
      %853 = vmatmul.f32.gmra.mxu0 %v747
      %v854 = vpop.f32.mrf.mxu0
      %v855 = vadd.f32 %v675, %v854
      %856 = vmatmul.f32.gmra.mxu0 %v749
      %v857 = vpop.f32.mrf.mxu0
      %v858 = vadd.f32 %v678, %v857
      %859 = vmatmul.f32.gmra.mxu0 %v751
      %v860 = vpop.f32.mrf.mxu0
      %v861 = vadd.f32 %v681, %v860
      %862 = vmatmul.f32.gmra.mxu0 %v753
      %v863 = vpop.f32.mrf.mxu0
      %v864 = vadd.f32 %v684, %v863
      %865 = vmatmul.f32.gmra.mxu0 %v755
      %v866 = vpop.f32.mrf.mxu0
      %v867 = vadd.f32 %v687, %v866
      %868 = vmatmul.f32.gmra.mxu0 %v757
      %v869 = vpop.f32.mrf.mxu0
      %v870 = vadd.f32 %v690, %v869
      %871 = vmatmul.f32.gmra.mxu0 %v759
      %v872 = vpop.f32.mrf.mxu0
      %v873 = vadd.f32 %v693, %v872
      %874 = vmatmul.f32.gmra.mxu0 %v761
      %v875 = vpop.f32.mrf.mxu0
      %v876 = vadd.f32 %v696, %v875
      %877 = vmatmul.f32.gmra.mxu0 %v763
      %v878 = vpop.f32.mrf.mxu0
      %v879 = vadd.f32 %v699, %v878
      %880 = vdwg.mxu0
      %vm881 = vcmask 1045504
      %v882 = vrot.slane %v333, 2
      %v883 = vrot.slane %v334, 2
      %v884 = vsel %vm881, %v882, %v883
      %v885 = vrot.slane %v335, 2
      %v886 = vsel %vm881, %v883, %v885
      %v887 = vrot.slane %v336, 2
      %v888 = vrot.slane %v337, 2
      %v889 = vsel %vm881, %v887, %v888
      %v890 = vrot.slane %v338, 2
      %v891 = vsel %vm881, %v888, %v890
      %v892 = vrot.slane %v339, 2
      %v893 = vrot.slane %v340, 2
      %v894 = vsel %vm881, %v892, %v893
      %v895 = vrot.slane %v341, 2
      %v896 = vsel %vm881, %v893, %v895
      %v897 = vrot.slane %v342, 2
      %v898 = vrot.slane %v343, 2
      %v899 = vsel %vm881, %v897, %v898
      %v900 = vrot.slane %v344, 2
      %v901 = vsel %vm881, %v898, %v900
      %v902 = vrot.slane %v345, 2
      %v903 = vrot.slane %v346, 2
      %v904 = vsel %vm881, %v902, %v903
      %v905 = vrot.slane %v347, 2
      %v906 = vsel %vm881, %v903, %v905
      %v907 = vrot.slane %v348, 2
      %v908 = vrot.slane %v349, 2
      %v909 = vsel %vm881, %v907, %v908
      %v910 = vrot.slane %v350, 2
      %v911 = vsel %vm881, %v908, %v910
      %v912 = vrot.slane %v351, 2
      %v913 = vrot.slane %v352, 2
      %v914 = vsel %vm881, %v912, %v913
      %v915 = vrot.slane %v353, 2
      %v916 = vsel %vm881, %v913, %v915
      %v917 = vrot.slane %v354, 2
      %v918 = vrot.slane %v355, 2
      %v919 = vsel %vm881, %v917, %v918
      %v920 = vrot.slane %v356, 2
      %v921 = vsel %vm881, %v918, %v920
      %v922 = vrot.slane %v357, 2
      %v923 = vrot.slane %v358, 2
      %v924 = vsel %vm881, %v922, %v923
      %v925 = vrot.slane %v359, 2
      %v926 = vsel %vm881, %v923, %v925
      %v927 = vrot.slane %v360, 2
      %v928 = vrot.slane %v361, 2
      %v929 = vsel %vm881, %v927, %v928
      %v930 = vrot.slane %v362, 2
      %v931 = vsel %vm881, %v928, %v930
      %v932 = vrot.slane %v363, 2
      %v933 = vrot.slane %v364, 2
      %v934 = vsel %vm881, %v932, %v933
      %v935 = vrot.slane %v365, 2
      %v936 = vsel %vm881, %v933, %v935
      %v937 = vrot.slane %v366, 2
      %v938 = vrot.slane %v367, 2
      %v939 = vsel %vm881, %v937, %v938
      %v940 = vrot.slane %v368, 2
      %v941 = vsel %vm881, %v938, %v940
      %v942 = vrot.slane %v369, 2
      %v943 = vrot.slane %v370, 2
      %v944 = vsel %vm881, %v942, %v943
      %v945 = vrot.slane %v371, 2
      %v946 = vsel %vm881, %v943, %v945
      %v947 = vrot.slane %v372, 2
      %v948 = vrot.slane %v373, 2
      %v949 = vsel %vm881, %v947, %v948
      %v950 = vrot.slane %v374, 2
      %v951 = vsel %vm881, %v948, %v950
      %v952 = vrot.slane %v375, 2
      %v953 = vrot.slane %v376, 2
      %v954 = vsel %vm881, %v952, %v953
      %v955 = vrot.slane %v377, 2
      %v956 = vsel %vm881, %v953, %v955
      %v957 = vrot.slane %v378, 2
      %v958 = vrot.slane %v379, 2
      %v959 = vsel %vm881, %v957, %v958
      %v960 = vrot.slane %v380, 2
      %v961 = vsel %vm881, %v958, %v960
      %s962 = scalar_lea.vmem %s1, 8
      %v963 = vld [vmem:[%s962] sm:$0xf]
      %v964 = vsel %vm519, %v884, 0
      %v966 = vsel %vm519, %v886, 0
      %v968 = vsel %vm519, %v889, 0
      %v970 = vsel %vm519, %v891, 0
      %v972 = vsel %vm519, %v894, 0
      %v974 = vsel %vm519, %v896, 0
      %v976 = vsel %vm519, %v899, 0
      %v978 = vsel %vm519, %v901, 0
      %v980 = vsel %vm519, %v904, 0
      %v982 = vsel %vm519, %v906, 0
      %v984 = vsel %vm519, %v909, 0
      %v986 = vsel %vm519, %v911, 0
      %v988 = vsel %vm519, %v914, 0
      %v990 = vsel %vm519, %v916, 0
      %v992 = vsel %vm519, %v919, 0
      %v994 = vsel %vm519, %v921, 0
      %v996 = vsel %vm519, %v924, 0
      %v998 = vsel %vm519, %v926, 0
      %v1000 = vsel %vm519, %v929, 0
      %v1002 = vsel %vm519, %v931, 0
      %v1004 = vsel %vm519, %v934, 0
      %v1006 = vsel %vm519, %v936, 0
      %v1008 = vsel %vm519, %v939, 0
      %v1010 = vsel %vm519, %v941, 0
      %v1012 = vsel %vm519, %v944, 0
      %v1014 = vsel %vm519, %v946, 0
      %v1016 = vsel %vm519, %v949, 0
      %v1018 = vsel %vm519, %v951, 0
      %v1020 = vsel %vm519, %v954, 0
      %v1022 = vsel %vm519, %v956, 0
      %v1024 = vsel %vm519, %v959, 0
      %v1026 = vsel %vm519, %v961, 0
      %v1029 = vsel %vm584, %v963, 0
      %1031 = vmatpush.msra.mxu0 0.0
      %1032 = vmatpush.msra.mxu0 0.0
      %1033 = vmatpush.msra.mxu0 0.0
      %1034 = vmatpush.msra.mxu0 0.0
      %1035 = vmatpush.msra.mxu0 0.0
      %1036 = vmatpush.msra.mxu0 0.0
      %1037 = vmatpush.msra.mxu0 0.0
      %1038 = vmatpush.msra.mxu0 0.0
      %1039 = vmatpush.msra.mxu0 0.0
      %1040 = vmatpush.msra.mxu0 0.0
      %1041 = vmatpush.msra.mxu0 0.0
      %1042 = vmatpush.msra.mxu0 0.0
      %1043 = vmatpush.msra.mxu0 0.0
      %1044 = vmatpush.msra.mxu0 0.0
      %1045 = vmatpush.msra.mxu0 0.0
      %1046 = vmatpush.msra.mxu0 %v1029
      %1047 = vmatmul.f32.gmra.mxu0 %v964
      %v1048 = vpop.f32.mrf.mxu0
      %v1049 = vadd.f32 0.0, %v1048
      %1050 = vmatmul.f32.gmra.mxu0 %v966
      %v1051 = vpop.f32.mrf.mxu0
      %v1052 = vadd.f32 0.0, %v1051
      %1053 = vmatmul.f32.gmra.mxu0 %v968
      %v1054 = vpop.f32.mrf.mxu0
      %v1055 = vadd.f32 0.0, %v1054
      %1056 = vmatmul.f32.gmra.mxu0 %v970
      %v1057 = vpop.f32.mrf.mxu0
      %v1058 = vadd.f32 0.0, %v1057
      %1059 = vmatmul.f32.gmra.mxu0 %v972
      %v1060 = vpop.f32.mrf.mxu0
      %v1061 = vadd.f32 0.0, %v1060
      %1062 = vmatmul.f32.gmra.mxu0 %v974
      %v1063 = vpop.f32.mrf.mxu0
      %v1064 = vadd.f32 0.0, %v1063
      %1065 = vmatmul.f32.gmra.mxu0 %v976
      %v1066 = vpop.f32.mrf.mxu0
      %v1067 = vadd.f32 0.0, %v1066
      %1068 = vmatmul.f32.gmra.mxu0 %v978
      %v1069 = vpop.f32.mrf.mxu0
      %v1070 = vadd.f32 0.0, %v1069
      %1071 = vmatmul.f32.gmra.mxu0 %v980
      %v1072 = vpop.f32.mrf.mxu0
      %v1073 = vadd.f32 0.0, %v1072
      %1074 = vmatmul.f32.gmra.mxu0 %v982
      %v1075 = vpop.f32.mrf.mxu0
      %v1076 = vadd.f32 0.0, %v1075
      %1077 = vmatmul.f32.gmra.mxu0 %v984
      %v1078 = vpop.f32.mrf.mxu0
      %v1079 = vadd.f32 0.0, %v1078
      %1080 = vmatmul.f32.gmra.mxu0 %v986
      %v1081 = vpop.f32.mrf.mxu0
      %v1082 = vadd.f32 0.0, %v1081
      %1083 = vmatmul.f32.gmra.mxu0 %v988
      %v1084 = vpop.f32.mrf.mxu0
      %v1085 = vadd.f32 0.0, %v1084
      %1086 = vmatmul.f32.gmra.mxu0 %v990
      %v1087 = vpop.f32.mrf.mxu0
      %v1088 = vadd.f32 0.0, %v1087
      %1089 = vmatmul.f32.gmra.mxu0 %v992
      %v1090 = vpop.f32.mrf.mxu0
      %v1091 = vadd.f32 0.0, %v1090
      %1092 = vmatmul.f32.gmra.mxu0 %v994
      %v1093 = vpop.f32.mrf.mxu0
      %v1094 = vadd.f32 0.0, %v1093
      %1095 = vmatmul.f32.gmra.mxu0 %v996
      %v1096 = vpop.f32.mrf.mxu0
      %v1097 = vadd.f32 0.0, %v1096
      %1098 = vmatmul.f32.gmra.mxu0 %v998
      %v1099 = vpop.f32.mrf.mxu0
      %v1100 = vadd.f32 0.0, %v1099
      %1101 = vmatmul.f32.gmra.mxu0 %v1000
      %v1102 = vpop.f32.mrf.mxu0
      %v1103 = vadd.f32 0.0, %v1102
      %1104 = vmatmul.f32.gmra.mxu0 %v1002
      %v1105 = vpop.f32.mrf.mxu0
      %v1106 = vadd.f32 0.0, %v1105
      %1107 = vmatmul.f32.gmra.mxu0 %v1004
      %v1108 = vpop.f32.mrf.mxu0
      %v1109 = vadd.f32 0.0, %v1108
      %1110 = vmatmul.f32.gmra.mxu0 %v1006
      %v1111 = vpop.f32.mrf.mxu0
      %v1112 = vadd.f32 0.0, %v1111
      %1113 = vmatmul.f32.gmra.mxu0 %v1008
      %v1114 = vpop.f32.mrf.mxu0
      %v1115 = vadd.f32 0.0, %v1114
      %1116 = vmatmul.f32.gmra.mxu0 %v1010
      %v1117 = vpop.f32.mrf.mxu0
      %v1118 = vadd.f32 0.0, %v1117
      %1119 = vmatmul.f32.gmra.mxu0 %v1012
      %v1120 = vpop.f32.mrf.mxu0
      %v1121 = vadd.f32 0.0, %v1120
      %1122 = vmatmul.f32.gmra.mxu0 %v1014
      %v1123 = vpop.f32.mrf.mxu0
      %v1124 = vadd.f32 0.0, %v1123
      %1125 = vmatmul.f32.gmra.mxu0 %v1016
      %v1126 = vpop.f32.mrf.mxu0
      %v1127 = vadd.f32 0.0, %v1126
      %1128 = vmatmul.f32.gmra.mxu0 %v1018
      %v1129 = vpop.f32.mrf.mxu0
      %v1130 = vadd.f32 0.0, %v1129
      %1131 = vmatmul.f32.gmra.mxu0 %v1020
      %v1132 = vpop.f32.mrf.mxu0
      %v1133 = vadd.f32 0.0, %v1132
      %1134 = vmatmul.f32.gmra.mxu0 %v1022
      %v1135 = vpop.f32.mrf.mxu0
      %v1136 = vadd.f32 0.0, %v1135
      %1137 = vmatmul.f32.gmra.mxu0 %v1024
      %v1138 = vpop.f32.mrf.mxu0
      %v1139 = vadd.f32 0.0, %v1138
      %1140 = vmatmul.f32.gmra.mxu0 %v1026
      %v1141 = vpop.f32.mrf.mxu0
      %v1142 = vadd.f32 0.0, %v1141
      %1143 = vdwg.mxu0
      %v1144 = vadd.f32 %v786, %v1049
      %v1145 = vadd.f32 %v789, %v1052
      %v1146 = vadd.f32 %v792, %v1055
      %v1147 = vadd.f32 %v795, %v1058
      %v1148 = vadd.f32 %v798, %v1061
      %v1149 = vadd.f32 %v801, %v1064
      %v1150 = vadd.f32 %v804, %v1067
      %v1151 = vadd.f32 %v807, %v1070
      %v1152 = vadd.f32 %v810, %v1073
      %v1153 = vadd.f32 %v813, %v1076
      %v1154 = vadd.f32 %v816, %v1079
      %v1155 = vadd.f32 %v819, %v1082
      %v1156 = vadd.f32 %v822, %v1085
      %v1157 = vadd.f32 %v825, %v1088
      %v1158 = vadd.f32 %v828, %v1091
      %v1159 = vadd.f32 %v831, %v1094
      %v1160 = vadd.f32 %v834, %v1097
      %v1161 = vadd.f32 %v837, %v1100
      %v1162 = vadd.f32 %v840, %v1103
      %v1163 = vadd.f32 %v843, %v1106
      %v1164 = vadd.f32 %v846, %v1109
      %v1165 = vadd.f32 %v849, %v1112
      %v1166 = vadd.f32 %v852, %v1115
      %v1167 = vadd.f32 %v855, %v1118
      %v1168 = vadd.f32 %v858, %v1121
      %v1169 = vadd.f32 %v861, %v1124
      %v1170 = vadd.f32 %v864, %v1127
      %v1171 = vadd.f32 %v867, %v1130
      %v1172 = vadd.f32 %v870, %v1133
      %v1173 = vadd.f32 %v873, %v1136
      %v1174 = vadd.f32 %v876, %v1139
      %v1175 = vadd.f32 %v879, %v1142
      %s1176 = scalar_lea.vmem %s1, 12
      %v1177 = vld [vmem:[%s1176] sm:$0xf]
      %v1179 = vsel %vm519, %v381, 0
      %v1182 = vsel %vm519, %v382, 0
      %v1185 = vsel %vm584, %v1177, 0
      %1187 = vmatpush.msra.mxu0 0.0
      %1188 = vmatpush.msra.mxu0 0.0
      %1189 = vmatpush.msra.mxu0 0.0
      %1190 = vmatpush.msra.mxu0 0.0
      %1191 = vmatpush.msra.mxu0 0.0
      %1192 = vmatpush.msra.mxu0 0.0
      %1193 = vmatpush.msra.mxu0 0.0
      %1194 = vmatpush.msra.mxu0 0.0
      %1195 = vmatpush.msra.mxu0 0.0
      %1196 = vmatpush.msra.mxu0 0.0
      %1197 = vmatpush.msra.mxu0 0.0
      %1198 = vmatpush.msra.mxu0 0.0
      %1199 = vmatpush.msra.mxu0 0.0
      %1200 = vmatpush.msra.mxu0 0.0
      %1201 = vmatpush.msra.mxu0 0.0
      %1202 = vmatpush.msra.mxu0 %v1185
      %1203 = vmatmul.f32.gmra.mxu0 %v705
      %v1204 = vpop.f32.mrf.mxu0
      %v1205 = vadd.f32 0.0, %v1204
      %1206 = vmatmul.f32.gmra.mxu0 %v707
      %v1207 = vpop.f32.mrf.mxu0
      %v1208 = vadd.f32 0.0, %v1207
      %1209 = vmatmul.f32.gmra.mxu0 %v709
      %v1210 = vpop.f32.mrf.mxu0
      %v1211 = vadd.f32 0.0, %v1210
      %1212 = vmatmul.f32.gmra.mxu0 %v711
      %v1213 = vpop.f32.mrf.mxu0
      %v1214 = vadd.f32 0.0, %v1213
      %1215 = vmatmul.f32.gmra.mxu0 %v713
      %v1216 = vpop.f32.mrf.mxu0
      %v1217 = vadd.f32 0.0, %v1216
      %1218 = vmatmul.f32.gmra.mxu0 %v715
      %v1219 = vpop.f32.mrf.mxu0
      %v1220 = vadd.f32 0.0, %v1219
      %1221 = vmatmul.f32.gmra.mxu0 %v717
      %v1222 = vpop.f32.mrf.mxu0
      %v1223 = vadd.f32 0.0, %v1222
      %1224 = vmatmul.f32.gmra.mxu0 %v719
      %v1225 = vpop.f32.mrf.mxu0
      %v1226 = vadd.f32 0.0, %v1225
      %1227 = vmatmul.f32.gmra.mxu0 %v721
      %v1228 = vpop.f32.mrf.mxu0
      %v1229 = vadd.f32 0.0, %v1228
      %1230 = vmatmul.f32.gmra.mxu0 %v723
      %v1231 = vpop.f32.mrf.mxu0
      %v1232 = vadd.f32 0.0, %v1231
      %1233 = vmatmul.f32.gmra.mxu0 %v725
      %v1234 = vpop.f32.mrf.mxu0
      %v1235 = vadd.f32 0.0, %v1234
      %1236 = vmatmul.f32.gmra.mxu0 %v727
      %v1237 = vpop.f32.mrf.mxu0
      %v1238 = vadd.f32 0.0, %v1237
      %1239 = vmatmul.f32.gmra.mxu0 %v729
      %v1240 = vpop.f32.mrf.mxu0
      %v1241 = vadd.f32 0.0, %v1240
      %1242 = vmatmul.f32.gmra.mxu0 %v731
      %v1243 = vpop.f32.mrf.mxu0
      %v1244 = vadd.f32 0.0, %v1243
      %1245 = vmatmul.f32.gmra.mxu0 %v733
      %v1246 = vpop.f32.mrf.mxu0
      %v1247 = vadd.f32 0.0, %v1246
      %1248 = vmatmul.f32.gmra.mxu0 %v735
      %v1249 = vpop.f32.mrf.mxu0
      %v1250 = vadd.f32 0.0, %v1249
      %1251 = vmatmul.f32.gmra.mxu0 %v737
      %v1252 = vpop.f32.mrf.mxu0
      %v1253 = vadd.f32 0.0, %v1252
      %1254 = vmatmul.f32.gmra.mxu0 %v739
      %v1255 = vpop.f32.mrf.mxu0
      %v1256 = vadd.f32 0.0, %v1255
      %1257 = vmatmul.f32.gmra.mxu0 %v741
      %v1258 = vpop.f32.mrf.mxu0
      %v1259 = vadd.f32 0.0, %v1258
      %1260 = vmatmul.f32.gmra.mxu0 %v743
      %v1261 = vpop.f32.mrf.mxu0
      %v1262 = vadd.f32 0.0, %v1261
      %1263 = vmatmul.f32.gmra.mxu0 %v745
      %v1264 = vpop.f32.mrf.mxu0
      %v1265 = vadd.f32 0.0, %v1264
      %1266 = vmatmul.f32.gmra.mxu0 %v747
      %v1267 = vpop.f32.mrf.mxu0
      %v1268 = vadd.f32 0.0, %v1267
      %1269 = vmatmul.f32.gmra.mxu0 %v749
      %v1270 = vpop.f32.mrf.mxu0
      %v1271 = vadd.f32 0.0, %v1270
      %1272 = vmatmul.f32.gmra.mxu0 %v751
      %v1273 = vpop.f32.mrf.mxu0
      %v1274 = vadd.f32 0.0, %v1273
      %1275 = vmatmul.f32.gmra.mxu0 %v753
      %v1276 = vpop.f32.mrf.mxu0
      %v1277 = vadd.f32 0.0, %v1276
      %1278 = vmatmul.f32.gmra.mxu0 %v755
      %v1279 = vpop.f32.mrf.mxu0
      %v1280 = vadd.f32 0.0, %v1279
      %1281 = vmatmul.f32.gmra.mxu0 %v757
      %v1282 = vpop.f32.mrf.mxu0
      %v1283 = vadd.f32 0.0, %v1282
      %1284 = vmatmul.f32.gmra.mxu0 %v759
      %v1285 = vpop.f32.mrf.mxu0
      %v1286 = vadd.f32 0.0, %v1285
      %1287 = vmatmul.f32.gmra.mxu0 %v761
      %v1288 = vpop.f32.mrf.mxu0
      %v1289 = vadd.f32 0.0, %v1288
      %1290 = vmatmul.f32.gmra.mxu0 %v763
      %v1291 = vpop.f32.mrf.mxu0
      %v1292 = vadd.f32 0.0, %v1291
      %1293 = vmatmul.f32.gmra.mxu0 %v1179
      %v1294 = vpop.f32.mrf.mxu0
      %v1295 = vadd.f32 0.0, %v1294
      %1296 = vmatmul.f32.gmra.mxu0 %v1182
      %v1297 = vpop.f32.mrf.mxu0
      %v1298 = vadd.f32 0.0, %v1297
      %1299 = vdwg.mxu0
      %v1300 = vadd.f32 %v1144, %v1205
      %v1301 = vadd.f32 %v1145, %v1208
      %v1302 = vadd.f32 %v1146, %v1211
      %v1303 = vadd.f32 %v1147, %v1214
      %v1304 = vadd.f32 %v1148, %v1217
      %v1305 = vadd.f32 %v1149, %v1220
      %v1306 = vadd.f32 %v1150, %v1223
      %v1307 = vadd.f32 %v1151, %v1226
      %v1308 = vadd.f32 %v1152, %v1229
      %v1309 = vadd.f32 %v1153, %v1232
      %v1310 = vadd.f32 %v1154, %v1235
      %v1311 = vadd.f32 %v1155, %v1238
      %v1312 = vadd.f32 %v1156, %v1241
      %v1313 = vadd.f32 %v1157, %v1244
      %v1314 = vadd.f32 %v1158, %v1247
      %v1315 = vadd.f32 %v1159, %v1250
      %v1316 = vadd.f32 %v1160, %v1253
      %v1317 = vadd.f32 %v1161, %v1256
      %v1318 = vadd.f32 %v1162, %v1259
      %v1319 = vadd.f32 %v1163, %v1262
      %v1320 = vadd.f32 %v1164, %v1265
      %v1321 = vadd.f32 %v1165, %v1268
      %v1322 = vadd.f32 %v1166, %v1271
      %v1323 = vadd.f32 %v1167, %v1274
      %v1324 = vadd.f32 %v1168, %v1277
      %v1325 = vadd.f32 %v1169, %v1280
      %v1326 = vadd.f32 %v1170, %v1283
      %v1327 = vadd.f32 %v1171, %v1286
      %v1328 = vadd.f32 %v1172, %v1289
      %v1329 = vadd.f32 %v1173, %v1292
      %v1330 = vadd.f32 %v1174, %v1295
      %v1331 = vadd.f32 %v1175, %v1298
      %v1333 = vrot.slane %v381, 1
      %v1334 = vrot.slane %v382, 1
      %v1335 = vsel %vm436, %v1333, %v1334
      %v1336 = vrot.slane %v383, 1
      %v1337 = vsel %vm436, %v1334, %v1336
      %s1338 = scalar_lea.vmem %s1, 16
      %v1339 = vld [vmem:[%s1338] sm:$0xf]
      %v1340 = vsel %vm519, %v1335, 0
      %v1342 = vsel %vm519, %v1337, 0
      %v1345 = vsel %vm584, %v1339, 0
      %1347 = vmatpush.msra.mxu0 0.0
      %1348 = vmatpush.msra.mxu0 0.0
      %1349 = vmatpush.msra.mxu0 0.0
      %1350 = vmatpush.msra.mxu0 0.0
      %1351 = vmatpush.msra.mxu0 0.0
      %1352 = vmatpush.msra.mxu0 0.0
      %1353 = vmatpush.msra.mxu0 0.0
      %1354 = vmatpush.msra.mxu0 0.0
      %1355 = vmatpush.msra.mxu0 0.0
      %1356 = vmatpush.msra.mxu0 0.0
      %1357 = vmatpush.msra.mxu0 0.0
      %1358 = vmatpush.msra.mxu0 0.0
      %1359 = vmatpush.msra.mxu0 0.0
      %1360 = vmatpush.msra.mxu0 0.0
      %1361 = vmatpush.msra.mxu0 0.0
      %1362 = vmatpush.msra.mxu0 %v1345
      %1363 = vmatmul.f32.gmra.mxu0 %v524
      %v1364 = vpop.f32.mrf.mxu0
      %v1365 = vadd.f32 0.0, %v1364
      %1366 = vmatmul.f32.gmra.mxu0 %v526
      %v1367 = vpop.f32.mrf.mxu0
      %v1368 = vadd.f32 0.0, %v1367
      %1369 = vmatmul.f32.gmra.mxu0 %v528
      %v1370 = vpop.f32.mrf.mxu0
      %v1371 = vadd.f32 0.0, %v1370
      %1372 = vmatmul.f32.gmra.mxu0 %v530
      %v1373 = vpop.f32.mrf.mxu0
      %v1374 = vadd.f32 0.0, %v1373
      %1375 = vmatmul.f32.gmra.mxu0 %v532
      %v1376 = vpop.f32.mrf.mxu0
      %v1377 = vadd.f32 0.0, %v1376
      %1378 = vmatmul.f32.gmra.mxu0 %v534
      %v1379 = vpop.f32.mrf.mxu0
      %v1380 = vadd.f32 0.0, %v1379
      %1381 = vmatmul.f32.gmra.mxu0 %v536
      %v1382 = vpop.f32.mrf.mxu0
      %v1383 = vadd.f32 0.0, %v1382
      %1384 = vmatmul.f32.gmra.mxu0 %v538
      %v1385 = vpop.f32.mrf.mxu0
      %v1386 = vadd.f32 0.0, %v1385
      %1387 = vmatmul.f32.gmra.mxu0 %v540
      %v1388 = vpop.f32.mrf.mxu0
      %v1389 = vadd.f32 0.0, %v1388
      %1390 = vmatmul.f32.gmra.mxu0 %v542
      %v1391 = vpop.f32.mrf.mxu0
      %v1392 = vadd.f32 0.0, %v1391
      %1393 = vmatmul.f32.gmra.mxu0 %v544
      %v1394 = vpop.f32.mrf.mxu0
      %v1395 = vadd.f32 0.0, %v1394
      %1396 = vmatmul.f32.gmra.mxu0 %v546
      %v1397 = vpop.f32.mrf.mxu0
      %v1398 = vadd.f32 0.0, %v1397
      %1399 = vmatmul.f32.gmra.mxu0 %v548
      %v1400 = vpop.f32.mrf.mxu0
      %v1401 = vadd.f32 0.0, %v1400
      %1402 = vmatmul.f32.gmra.mxu0 %v550
      %v1403 = vpop.f32.mrf.mxu0
      %v1404 = vadd.f32 0.0, %v1403
      %1405 = vmatmul.f32.gmra.mxu0 %v552
      %v1406 = vpop.f32.mrf.mxu0
      %v1407 = vadd.f32 0.0, %v1406
      %1408 = vmatmul.f32.gmra.mxu0 %v554
      %v1409 = vpop.f32.mrf.mxu0
      %v1410 = vadd.f32 0.0, %v1409
      %1411 = vmatmul.f32.gmra.mxu0 %v556
      %v1412 = vpop.f32.mrf.mxu0
      %v1413 = vadd.f32 0.0, %v1412
      %1414 = vmatmul.f32.gmra.mxu0 %v558
      %v1415 = vpop.f32.mrf.mxu0
      %v1416 = vadd.f32 0.0, %v1415
      %1417 = vmatmul.f32.gmra.mxu0 %v560
      %v1418 = vpop.f32.mrf.mxu0
      %v1419 = vadd.f32 0.0, %v1418
      %1420 = vmatmul.f32.gmra.mxu0 %v562
      %v1421 = vpop.f32.mrf.mxu0
      %v1422 = vadd.f32 0.0, %v1421
      %1423 = vmatmul.f32.gmra.mxu0 %v564
      %v1424 = vpop.f32.mrf.mxu0
      %v1425 = vadd.f32 0.0, %v1424
      %1426 = vmatmul.f32.gmra.mxu0 %v566
      %v1427 = vpop.f32.mrf.mxu0
      %v1428 = vadd.f32 0.0, %v1427
      %1429 = vmatmul.f32.gmra.mxu0 %v568
      %v1430 = vpop.f32.mrf.mxu0
      %v1431 = vadd.f32 0.0, %v1430
      %1432 = vmatmul.f32.gmra.mxu0 %v570
      %v1433 = vpop.f32.mrf.mxu0
      %v1434 = vadd.f32 0.0, %v1433
      %1435 = vmatmul.f32.gmra.mxu0 %v572
      %v1436 = vpop.f32.mrf.mxu0
      %v1437 = vadd.f32 0.0, %v1436
      %1438 = vmatmul.f32.gmra.mxu0 %v574
      %v1439 = vpop.f32.mrf.mxu0
      %v1440 = vadd.f32 0.0, %v1439
      %1441 = vmatmul.f32.gmra.mxu0 %v576
      %v1442 = vpop.f32.mrf.mxu0
      %v1443 = vadd.f32 0.0, %v1442
      %1444 = vmatmul.f32.gmra.mxu0 %v578
      %v1445 = vpop.f32.mrf.mxu0
      %v1446 = vadd.f32 0.0, %v1445
      %1447 = vmatmul.f32.gmra.mxu0 %v580
      %v1448 = vpop.f32.mrf.mxu0
      %v1449 = vadd.f32 0.0, %v1448
      %1450 = vmatmul.f32.gmra.mxu0 %v582
      %v1451 = vpop.f32.mrf.mxu0
      %v1452 = vadd.f32 0.0, %v1451
      %1453 = vmatmul.f32.gmra.mxu0 %v1340
      %v1454 = vpop.f32.mrf.mxu0
      %v1455 = vadd.f32 0.0, %v1454
      %1456 = vmatmul.f32.gmra.mxu0 %v1342
      %v1457 = vpop.f32.mrf.mxu0
      %v1458 = vadd.f32 0.0, %v1457
      %1459 = vdwg.mxu0
      %v1460 = vadd.f32 %v1300, %v1365
      %v1461 = vadd.f32 %v1301, %v1368
      %v1462 = vadd.f32 %v1302, %v1371
      %v1463 = vadd.f32 %v1303, %v1374
      %v1464 = vadd.f32 %v1304, %v1377
      %v1465 = vadd.f32 %v1305, %v1380
      %v1466 = vadd.f32 %v1306, %v1383
      %v1467 = vadd.f32 %v1307, %v1386
      %v1468 = vadd.f32 %v1308, %v1389
      %v1469 = vadd.f32 %v1309, %v1392
      %v1470 = vadd.f32 %v1310, %v1395
      %v1471 = vadd.f32 %v1311, %v1398
      %v1472 = vadd.f32 %v1312, %v1401
      %v1473 = vadd.f32 %v1313, %v1404
      %v1474 = vadd.f32 %v1314, %v1407
      %v1475 = vadd.f32 %v1315, %v1410
      %v1476 = vadd.f32 %v1316, %v1413
      %v1477 = vadd.f32 %v1317, %v1416
      %v1478 = vadd.f32 %v1318, %v1419
      %v1479 = vadd.f32 %v1319, %v1422
      %v1480 = vadd.f32 %v1320, %v1425
      %v1481 = vadd.f32 %v1321, %v1428
      %v1482 = vadd.f32 %v1322, %v1431
      %v1483 = vadd.f32 %v1323, %v1434
      %v1484 = vadd.f32 %v1324, %v1437
      %v1485 = vadd.f32 %v1325, %v1440
      %v1486 = vadd.f32 %v1326, %v1443
      %v1487 = vadd.f32 %v1327, %v1446
      %v1488 = vadd.f32 %v1328, %v1449
      %v1489 = vadd.f32 %v1329, %v1452
      %v1490 = vadd.f32 %v1330, %v1455
      %v1491 = vadd.f32 %v1331, %v1458
      %v1492 = vrot.slane %v381, 2
      %v1493 = vrot.slane %v382, 2
      %v1494 = vsel %vm881, %v1492, %v1493
      %v1495 = vrot.slane %v383, 2
      %v1496 = vsel %vm881, %v1493, %v1495
      %s1497 = scalar_lea.vmem %s1, 20
      %v1498 = vld [vmem:[%s1497] sm:$0xf]
      %v1499 = vsel %vm519, %v1494, 0
      %v1501 = vsel %vm519, %v1496, 0
      %v1504 = vsel %vm584, %v1498, 0
      %1506 = vmatpush.msra.mxu0 0.0
      %1507 = vmatpush.msra.mxu0 0.0
      %1508 = vmatpush.msra.mxu0 0.0
      %1509 = vmatpush.msra.mxu0 0.0
      %1510 = vmatpush.msra.mxu0 0.0
      %1511 = vmatpush.msra.mxu0 0.0
      %1512 = vmatpush.msra.mxu0 0.0
      %1513 = vmatpush.msra.mxu0 0.0
      %1514 = vmatpush.msra.mxu0 0.0
      %1515 = vmatpush.msra.mxu0 0.0
      %1516 = vmatpush.msra.mxu0 0.0
      %1517 = vmatpush.msra.mxu0 0.0
      %1518 = vmatpush.msra.mxu0 0.0
      %1519 = vmatpush.msra.mxu0 0.0
      %1520 = vmatpush.msra.mxu0 0.0
      %1521 = vmatpush.msra.mxu0 %v1504
      %1522 = vmatmul.f32.gmra.mxu0 %v968
      %v1523 = vpop.f32.mrf.mxu0
      %v1524 = vadd.f32 0.0, %v1523
      %1525 = vmatmul.f32.gmra.mxu0 %v970
      %v1526 = vpop.f32.mrf.mxu0
      %v1527 = vadd.f32 0.0, %v1526
      %1528 = vmatmul.f32.gmra.mxu0 %v972
      %v1529 = vpop.f32.mrf.mxu0
      %v1530 = vadd.f32 0.0, %v1529
      %1531 = vmatmul.f32.gmra.mxu0 %v974
      %v1532 = vpop.f32.mrf.mxu0
      %v1533 = vadd.f32 0.0, %v1532
      %1534 = vmatmul.f32.gmra.mxu0 %v976
      %v1535 = vpop.f32.mrf.mxu0
      %v1536 = vadd.f32 0.0, %v1535
      %1537 = vmatmul.f32.gmra.mxu0 %v978
      %v1538 = vpop.f32.mrf.mxu0
      %v1539 = vadd.f32 0.0, %v1538
      %1540 = vmatmul.f32.gmra.mxu0 %v980
      %v1541 = vpop.f32.mrf.mxu0
      %v1542 = vadd.f32 0.0, %v1541
      %1543 = vmatmul.f32.gmra.mxu0 %v982
      %v1544 = vpop.f32.mrf.mxu0
      %v1545 = vadd.f32 0.0, %v1544
      %1546 = vmatmul.f32.gmra.mxu0 %v984
      %v1547 = vpop.f32.mrf.mxu0
      %v1548 = vadd.f32 0.0, %v1547
      %1549 = vmatmul.f32.gmra.mxu0 %v986
      %v1550 = vpop.f32.mrf.mxu0
      %v1551 = vadd.f32 0.0, %v1550
      %1552 = vmatmul.f32.gmra.mxu0 %v988
      %v1553 = vpop.f32.mrf.mxu0
      %v1554 = vadd.f32 0.0, %v1553
      %1555 = vmatmul.f32.gmra.mxu0 %v990
      %v1556 = vpop.f32.mrf.mxu0
      %v1557 = vadd.f32 0.0, %v1556
      %1558 = vmatmul.f32.gmra.mxu0 %v992
      %v1559 = vpop.f32.mrf.mxu0
      %v1560 = vadd.f32 0.0, %v1559
      %1561 = vmatmul.f32.gmra.mxu0 %v994
      %v1562 = vpop.f32.mrf.mxu0
      %v1563 = vadd.f32 0.0, %v1562
      %1564 = vmatmul.f32.gmra.mxu0 %v996
      %v1565 = vpop.f32.mrf.mxu0
      %v1566 = vadd.f32 0.0, %v1565
      %1567 = vmatmul.f32.gmra.mxu0 %v998
      %v1568 = vpop.f32.mrf.mxu0
      %v1569 = vadd.f32 0.0, %v1568
      %1570 = vmatmul.f32.gmra.mxu0 %v1000
      %v1571 = vpop.f32.mrf.mxu0
      %v1572 = vadd.f32 0.0, %v1571
      %1573 = vmatmul.f32.gmra.mxu0 %v1002
      %v1574 = vpop.f32.mrf.mxu0
      %v1575 = vadd.f32 0.0, %v1574
      %1576 = vmatmul.f32.gmra.mxu0 %v1004
      %v1577 = vpop.f32.mrf.mxu0
      %v1578 = vadd.f32 0.0, %v1577
      %1579 = vmatmul.f32.gmra.mxu0 %v1006
      %v1580 = vpop.f32.mrf.mxu0
      %v1581 = vadd.f32 0.0, %v1580
      %1582 = vmatmul.f32.gmra.mxu0 %v1008
      %v1583 = vpop.f32.mrf.mxu0
      %v1584 = vadd.f32 0.0, %v1583
      %1585 = vmatmul.f32.gmra.mxu0 %v1010
      %v1586 = vpop.f32.mrf.mxu0
      %v1587 = vadd.f32 0.0, %v1586
      %1588 = vmatmul.f32.gmra.mxu0 %v1012
      %v1589 = vpop.f32.mrf.mxu0
      %v1590 = vadd.f32 0.0, %v1589
      %1591 = vmatmul.f32.gmra.mxu0 %v1014
      %v1592 = vpop.f32.mrf.mxu0
      %v1593 = vadd.f32 0.0, %v1592
      %1594 = vmatmul.f32.gmra.mxu0 %v1016
      %v1595 = vpop.f32.mrf.mxu0
      %v1596 = vadd.f32 0.0, %v1595
      %1597 = vmatmul.f32.gmra.mxu0 %v1018
      %v1598 = vpop.f32.mrf.mxu0
      %v1599 = vadd.f32 0.0, %v1598
      %1600 = vmatmul.f32.gmra.mxu0 %v1020
      %v1601 = vpop.f32.mrf.mxu0
      %v1602 = vadd.f32 0.0, %v1601
      %1603 = vmatmul.f32.gmra.mxu0 %v1022
      %v1604 = vpop.f32.mrf.mxu0
      %v1605 = vadd.f32 0.0, %v1604
      %1606 = vmatmul.f32.gmra.mxu0 %v1024
      %v1607 = vpop.f32.mrf.mxu0
      %v1608 = vadd.f32 0.0, %v1607
      %1609 = vmatmul.f32.gmra.mxu0 %v1026
      %v1610 = vpop.f32.mrf.mxu0
      %v1611 = vadd.f32 0.0, %v1610
      %1612 = vmatmul.f32.gmra.mxu0 %v1499
      %v1613 = vpop.f32.mrf.mxu0
      %v1614 = vadd.f32 0.0, %v1613
      %1615 = vmatmul.f32.gmra.mxu0 %v1501
      %v1616 = vpop.f32.mrf.mxu0
      %v1617 = vadd.f32 0.0, %v1616
      %1618 = vdwg.mxu0
      %v1619 = vadd.f32 %v1460, %v1524
      %v1620 = vadd.f32 %v1461, %v1527
      %v1621 = vadd.f32 %v1462, %v1530
      %v1622 = vadd.f32 %v1463, %v1533
      %v1623 = vadd.f32 %v1464, %v1536
      %v1624 = vadd.f32 %v1465, %v1539
      %v1625 = vadd.f32 %v1466, %v1542
      %v1626 = vadd.f32 %v1467, %v1545
      %v1627 = vadd.f32 %v1468, %v1548
      %v1628 = vadd.f32 %v1469, %v1551
      %v1629 = vadd.f32 %v1470, %v1554
      %v1630 = vadd.f32 %v1471, %v1557
      %v1631 = vadd.f32 %v1472, %v1560
      %v1632 = vadd.f32 %v1473, %v1563
      %v1633 = vadd.f32 %v1474, %v1566
      %v1634 = vadd.f32 %v1475, %v1569
      %v1635 = vadd.f32 %v1476, %v1572
      %v1636 = vadd.f32 %v1477, %v1575
      %v1637 = vadd.f32 %v1478, %v1578
      %v1638 = vadd.f32 %v1479, %v1581
      %v1639 = vadd.f32 %v1480, %v1584
      %v1640 = vadd.f32 %v1481, %v1587
      %v1641 = vadd.f32 %v1482, %v1590
      %v1642 = vadd.f32 %v1483, %v1593
      %v1643 = vadd.f32 %v1484, %v1596
      %v1644 = vadd.f32 %v1485, %v1599
      %v1645 = vadd.f32 %v1486, %v1602
      %v1646 = vadd.f32 %v1487, %v1605
      %v1647 = vadd.f32 %v1488, %v1608
      %v1648 = vadd.f32 %v1489, %v1611
      %v1649 = vadd.f32 %v1490, %v1614
      %v1650 = vadd.f32 %v1491, %v1617
      %s1651 = scalar_lea.vmem %s1, 24
      %v1652 = vld [vmem:[%s1651] sm:$0xf]
      %v1654 = vsel %vm519, %v384, 0
      %v1657 = vsel %vm519, %v385, 0
      %v1660 = vsel %vm584, %v1652, 0
      %1662 = vmatpush.msra.mxu0 0.0
      %1663 = vmatpush.msra.mxu0 0.0
      %1664 = vmatpush.msra.mxu0 0.0
      %1665 = vmatpush.msra.mxu0 0.0
      %1666 = vmatpush.msra.mxu0 0.0
      %1667 = vmatpush.msra.mxu0 0.0
      %1668 = vmatpush.msra.mxu0 0.0
      %1669 = vmatpush.msra.mxu0 0.0
      %1670 = vmatpush.msra.mxu0 0.0
      %1671 = vmatpush.msra.mxu0 0.0
      %1672 = vmatpush.msra.mxu0 0.0
      %1673 = vmatpush.msra.mxu0 0.0
      %1674 = vmatpush.msra.mxu0 0.0
      %1675 = vmatpush.msra.mxu0 0.0
      %1676 = vmatpush.msra.mxu0 0.0
      %1677 = vmatpush.msra.mxu0 %v1660
      %1678 = vmatmul.f32.gmra.mxu0 %v709
      %v1679 = vpop.f32.mrf.mxu0
      %v1680 = vadd.f32 0.0, %v1679
      %1681 = vmatmul.f32.gmra.mxu0 %v711
      %v1682 = vpop.f32.mrf.mxu0
      %v1683 = vadd.f32 0.0, %v1682
      %1684 = vmatmul.f32.gmra.mxu0 %v713
      %v1685 = vpop.f32.mrf.mxu0
      %v1686 = vadd.f32 0.0, %v1685
      %1687 = vmatmul.f32.gmra.mxu0 %v715
      %v1688 = vpop.f32.mrf.mxu0
      %v1689 = vadd.f32 0.0, %v1688
      %1690 = vmatmul.f32.gmra.mxu0 %v717
      %v1691 = vpop.f32.mrf.mxu0
      %v1692 = vadd.f32 0.0, %v1691
      %1693 = vmatmul.f32.gmra.mxu0 %v719
      %v1694 = vpop.f32.mrf.mxu0
      %v1695 = vadd.f32 0.0, %v1694
      %1696 = vmatmul.f32.gmra.mxu0 %v721
      %v1697 = vpop.f32.mrf.mxu0
      %v1698 = vadd.f32 0.0, %v1697
      %1699 = vmatmul.f32.gmra.mxu0 %v723
      %v1700 = vpop.f32.mrf.mxu0
      %v1701 = vadd.f32 0.0, %v1700
      %1702 = vmatmul.f32.gmra.mxu0 %v725
      %v1703 = vpop.f32.mrf.mxu0
      %v1704 = vadd.f32 0.0, %v1703
      %1705 = vmatmul.f32.gmra.mxu0 %v727
      %v1706 = vpop.f32.mrf.mxu0
      %v1707 = vadd.f32 0.0, %v1706
      %1708 = vmatmul.f32.gmra.mxu0 %v729
      %v1709 = vpop.f32.mrf.mxu0
      %v1710 = vadd.f32 0.0, %v1709
      %1711 = vmatmul.f32.gmra.mxu0 %v731
      %v1712 = vpop.f32.mrf.mxu0
      %v1713 = vadd.f32 0.0, %v1712
      %1714 = vmatmul.f32.gmra.mxu0 %v733
      %v1715 = vpop.f32.mrf.mxu0
      %v1716 = vadd.f32 0.0, %v1715
      %1717 = vmatmul.f32.gmra.mxu0 %v735
      %v1718 = vpop.f32.mrf.mxu0
      %v1719 = vadd.f32 0.0, %v1718
      %1720 = vmatmul.f32.gmra.mxu0 %v737
      %v1721 = vpop.f32.mrf.mxu0
      %v1722 = vadd.f32 0.0, %v1721
      %1723 = vmatmul.f32.gmra.mxu0 %v739
      %v1724 = vpop.f32.mrf.mxu0
      %v1725 = vadd.f32 0.0, %v1724
      %1726 = vmatmul.f32.gmra.mxu0 %v741
      %v1727 = vpop.f32.mrf.mxu0
      %v1728 = vadd.f32 0.0, %v1727
      %1729 = vmatmul.f32.gmra.mxu0 %v743
      %v1730 = vpop.f32.mrf.mxu0
      %v1731 = vadd.f32 0.0, %v1730
      %1732 = vmatmul.f32.gmra.mxu0 %v745
      %v1733 = vpop.f32.mrf.mxu0
      %v1734 = vadd.f32 0.0, %v1733
      %1735 = vmatmul.f32.gmra.mxu0 %v747
      %v1736 = vpop.f32.mrf.mxu0
      %v1737 = vadd.f32 0.0, %v1736
      %1738 = vmatmul.f32.gmra.mxu0 %v749
      %v1739 = vpop.f32.mrf.mxu0
      %v1740 = vadd.f32 0.0, %v1739
      %1741 = vmatmul.f32.gmra.mxu0 %v751
      %v1742 = vpop.f32.mrf.mxu0
      %v1743 = vadd.f32 0.0, %v1742
      %1744 = vmatmul.f32.gmra.mxu0 %v753
      %v1745 = vpop.f32.mrf.mxu0
      %v1746 = vadd.f32 0.0, %v1745
      %1747 = vmatmul.f32.gmra.mxu0 %v755
      %v1748 = vpop.f32.mrf.mxu0
      %v1749 = vadd.f32 0.0, %v1748
      %1750 = vmatmul.f32.gmra.mxu0 %v757
      %v1751 = vpop.f32.mrf.mxu0
      %v1752 = vadd.f32 0.0, %v1751
      %1753 = vmatmul.f32.gmra.mxu0 %v759
      %v1754 = vpop.f32.mrf.mxu0
      %v1755 = vadd.f32 0.0, %v1754
      %1756 = vmatmul.f32.gmra.mxu0 %v761
      %v1757 = vpop.f32.mrf.mxu0
      %v1758 = vadd.f32 0.0, %v1757
      %1759 = vmatmul.f32.gmra.mxu0 %v763
      %v1760 = vpop.f32.mrf.mxu0
      %v1761 = vadd.f32 0.0, %v1760
      %1762 = vmatmul.f32.gmra.mxu0 %v1179
      %v1763 = vpop.f32.mrf.mxu0
      %v1764 = vadd.f32 0.0, %v1763
      %1765 = vmatmul.f32.gmra.mxu0 %v1182
      %v1766 = vpop.f32.mrf.mxu0
      %v1767 = vadd.f32 0.0, %v1766
      %1768 = vmatmul.f32.gmra.mxu0 %v1654
      %v1769 = vpop.f32.mrf.mxu0
      %v1770 = vadd.f32 0.0, %v1769
      %1771 = vmatmul.f32.gmra.mxu0 %v1657
      %v1772 = vpop.f32.mrf.mxu0
      %v1773 = vadd.f32 0.0, %v1772
      %1774 = vdwg.mxu0
      %v1775 = vadd.f32 %v1619, %v1680
      %v1776 = vadd.f32 %v1620, %v1683
      %v1777 = vadd.f32 %v1621, %v1686
      %v1778 = vadd.f32 %v1622, %v1689
      %v1779 = vadd.f32 %v1623, %v1692
      %v1780 = vadd.f32 %v1624, %v1695
      %v1781 = vadd.f32 %v1625, %v1698
      %v1782 = vadd.f32 %v1626, %v1701
      %v1783 = vadd.f32 %v1627, %v1704
      %v1784 = vadd.f32 %v1628, %v1707
      %v1785 = vadd.f32 %v1629, %v1710
      %v1786 = vadd.f32 %v1630, %v1713
      %v1787 = vadd.f32 %v1631, %v1716
      %v1788 = vadd.f32 %v1632, %v1719
      %v1789 = vadd.f32 %v1633, %v1722
      %v1790 = vadd.f32 %v1634, %v1725
      %v1791 = vadd.f32 %v1635, %v1728
      %v1792 = vadd.f32 %v1636, %v1731
      %v1793 = vadd.f32 %v1637, %v1734
      %v1794 = vadd.f32 %v1638, %v1737
      %v1795 = vadd.f32 %v1639, %v1740
      %v1796 = vadd.f32 %v1640, %v1743
      %v1797 = vadd.f32 %v1641, %v1746
      %v1798 = vadd.f32 %v1642, %v1749
      %v1799 = vadd.f32 %v1643, %v1752
      %v1800 = vadd.f32 %v1644, %v1755
      %v1801 = vadd.f32 %v1645, %v1758
      %v1802 = vadd.f32 %v1646, %v1761
      %v1803 = vadd.f32 %v1647, %v1764
      %v1804 = vadd.f32 %v1648, %v1767
      %v1805 = vadd.f32 %v1649, %v1770
      %v1806 = vadd.f32 %v1650, %v1773
      %v1808 = vrot.slane %v384, 1
      %v1809 = vrot.slane %v385, 1
      %v1810 = vsel %vm436, %v1808, %v1809
      %v1811 = vrot.slane %v386, 1
      %v1812 = vsel %vm436, %v1809, %v1811
      %s1813 = scalar_lea.vmem %s1, 28
      %v1814 = vld [vmem:[%s1813] sm:$0xf]
      %v1815 = vsel %vm519, %v1810, 0
      %v1817 = vsel %vm519, %v1812, 0
      %v1820 = vsel %vm584, %v1814, 0
      %1822 = vmatpush.msra.mxu0 0.0
      %1823 = vmatpush.msra.mxu0 0.0
      %1824 = vmatpush.msra.mxu0 0.0
      %1825 = vmatpush.msra.mxu0 0.0
      %1826 = vmatpush.msra.mxu0 0.0
      %1827 = vmatpush.msra.mxu0 0.0
      %1828 = vmatpush.msra.mxu0 0.0
      %1829 = vmatpush.msra.mxu0 0.0
      %1830 = vmatpush.msra.mxu0 0.0
      %1831 = vmatpush.msra.mxu0 0.0
      %1832 = vmatpush.msra.mxu0 0.0
      %1833 = vmatpush.msra.mxu0 0.0
      %1834 = vmatpush.msra.mxu0 0.0
      %1835 = vmatpush.msra.mxu0 0.0
      %1836 = vmatpush.msra.mxu0 0.0
      %1837 = vmatpush.msra.mxu0 %v1820
      %1838 = vmatmul.f32.gmra.mxu0 %v528
      %v1839 = vpop.f32.mrf.mxu0
      %v1840 = vadd.f32 0.0, %v1839
      %1841 = vmatmul.f32.gmra.mxu0 %v530
      %v1842 = vpop.f32.mrf.mxu0
      %v1843 = vadd.f32 0.0, %v1842
      %1844 = vmatmul.f32.gmra.mxu0 %v532
      %v1845 = vpop.f32.mrf.mxu0
      %v1846 = vadd.f32 0.0, %v1845
      %1847 = vmatmul.f32.gmra.mxu0 %v534
      %v1848 = vpop.f32.mrf.mxu0
      %v1849 = vadd.f32 0.0, %v1848
      %1850 = vmatmul.f32.gmra.mxu0 %v536
      %v1851 = vpop.f32.mrf.mxu0
      %v1852 = vadd.f32 0.0, %v1851
      %1853 = vmatmul.f32.gmra.mxu0 %v538
      %v1854 = vpop.f32.mrf.mxu0
      %v1855 = vadd.f32 0.0, %v1854
      %1856 = vmatmul.f32.gmra.mxu0 %v540
      %v1857 = vpop.f32.mrf.mxu0
      %v1858 = vadd.f32 0.0, %v1857
      %1859 = vmatmul.f32.gmra.mxu0 %v542
      %v1860 = vpop.f32.mrf.mxu0
      %v1861 = vadd.f32 0.0, %v1860
      %1862 = vmatmul.f32.gmra.mxu0 %v544
      %v1863 = vpop.f32.mrf.mxu0
      %v1864 = vadd.f32 0.0, %v1863
      %1865 = vmatmul.f32.gmra.mxu0 %v546
      %v1866 = vpop.f32.mrf.mxu0
      %v1867 = vadd.f32 0.0, %v1866
      %1868 = vmatmul.f32.gmra.mxu0 %v548
      %v1869 = vpop.f32.mrf.mxu0
      %v1870 = vadd.f32 0.0, %v1869
      %1871 = vmatmul.f32.gmra.mxu0 %v550
      %v1872 = vpop.f32.mrf.mxu0
      %v1873 = vadd.f32 0.0, %v1872
      %1874 = vmatmul.f32.gmra.mxu0 %v552
      %v1875 = vpop.f32.mrf.mxu0
      %v1876 = vadd.f32 0.0, %v1875
      %1877 = vmatmul.f32.gmra.mxu0 %v554
      %v1878 = vpop.f32.mrf.mxu0
      %v1879 = vadd.f32 0.0, %v1878
      %1880 = vmatmul.f32.gmra.mxu0 %v556
      %v1881 = vpop.f32.mrf.mxu0
      %v1882 = vadd.f32 0.0, %v1881
      %1883 = vmatmul.f32.gmra.mxu0 %v558
      %v1884 = vpop.f32.mrf.mxu0
      %v1885 = vadd.f32 0.0, %v1884
      %1886 = vmatmul.f32.gmra.mxu0 %v560
      %v1887 = vpop.f32.mrf.mxu0
      %v1888 = vadd.f32 0.0, %v1887
      %1889 = vmatmul.f32.gmra.mxu0 %v562
      %v1890 = vpop.f32.mrf.mxu0
      %v1891 = vadd.f32 0.0, %v1890
      %1892 = vmatmul.f32.gmra.mxu0 %v564
      %v1893 = vpop.f32.mrf.mxu0
      %v1894 = vadd.f32 0.0, %v1893
      %1895 = vmatmul.f32.gmra.mxu0 %v566
      %v1896 = vpop.f32.mrf.mxu0
      %v1897 = vadd.f32 0.0, %v1896
      %1898 = vmatmul.f32.gmra.mxu0 %v568
      %v1899 = vpop.f32.mrf.mxu0
      %v1900 = vadd.f32 0.0, %v1899
      %1901 = vmatmul.f32.gmra.mxu0 %v570
      %v1902 = vpop.f32.mrf.mxu0
      %v1903 = vadd.f32 0.0, %v1902
      %1904 = vmatmul.f32.gmra.mxu0 %v572
      %v1905 = vpop.f32.mrf.mxu0
      %v1906 = vadd.f32 0.0, %v1905
      %1907 = vmatmul.f32.gmra.mxu0 %v574
      %v1908 = vpop.f32.mrf.mxu0
      %v1909 = vadd.f32 0.0, %v1908
      %1910 = vmatmul.f32.gmra.mxu0 %v576
      %v1911 = vpop.f32.mrf.mxu0
      %v1912 = vadd.f32 0.0, %v1911
      %1913 = vmatmul.f32.gmra.mxu0 %v578
      %v1914 = vpop.f32.mrf.mxu0
      %v1915 = vadd.f32 0.0, %v1914
      %1916 = vmatmul.f32.gmra.mxu0 %v580
      %v1917 = vpop.f32.mrf.mxu0
      %v1918 = vadd.f32 0.0, %v1917
      %1919 = vmatmul.f32.gmra.mxu0 %v582
      %v1920 = vpop.f32.mrf.mxu0
      %v1921 = vadd.f32 0.0, %v1920
      %1922 = vmatmul.f32.gmra.mxu0 %v1340
      %v1923 = vpop.f32.mrf.mxu0
      %v1924 = vadd.f32 0.0, %v1923
      %1925 = vmatmul.f32.gmra.mxu0 %v1342
      %v1926 = vpop.f32.mrf.mxu0
      %v1927 = vadd.f32 0.0, %v1926
      %1928 = vmatmul.f32.gmra.mxu0 %v1815
      %v1929 = vpop.f32.mrf.mxu0
      %v1930 = vadd.f32 0.0, %v1929
      %1931 = vmatmul.f32.gmra.mxu0 %v1817
      %v1932 = vpop.f32.mrf.mxu0
      %v1933 = vadd.f32 0.0, %v1932
      %1934 = vdwg.mxu0
      %v1935 = vadd.f32 %v1775, %v1840
      %v1936 = vadd.f32 %v1776, %v1843
      %v1937 = vadd.f32 %v1777, %v1846
      %v1938 = vadd.f32 %v1778, %v1849
      %v1939 = vadd.f32 %v1779, %v1852
      %v1940 = vadd.f32 %v1780, %v1855
      %v1941 = vadd.f32 %v1781, %v1858
      %v1942 = vadd.f32 %v1782, %v1861
      %v1943 = vadd.f32 %v1783, %v1864
      %v1944 = vadd.f32 %v1784, %v1867
      %v1945 = vadd.f32 %v1785, %v1870
      %v1946 = vadd.f32 %v1786, %v1873
      %v1947 = vadd.f32 %v1787, %v1876
      %v1948 = vadd.f32 %v1788, %v1879
      %v1949 = vadd.f32 %v1789, %v1882
      %v1950 = vadd.f32 %v1790, %v1885
      %v1951 = vadd.f32 %v1791, %v1888
      %v1952 = vadd.f32 %v1792, %v1891
      %v1953 = vadd.f32 %v1793, %v1894
      %v1954 = vadd.f32 %v1794, %v1897
      %v1955 = vadd.f32 %v1795, %v1900
      %v1956 = vadd.f32 %v1796, %v1903
      %v1957 = vadd.f32 %v1797, %v1906
      %v1958 = vadd.f32 %v1798, %v1909
      %v1959 = vadd.f32 %v1799, %v1912
      %v1960 = vadd.f32 %v1800, %v1915
      %v1961 = vadd.f32 %v1801, %v1918
      %v1962 = vadd.f32 %v1802, %v1921
      %v1963 = vadd.f32 %v1803, %v1924
      %v1964 = vadd.f32 %v1804, %v1927
      %v1965 = vadd.f32 %v1805, %v1930
      %v1966 = vadd.f32 %v1806, %v1933
      %v1967 = vrot.slane %v384, 2
      %v1968 = vrot.slane %v385, 2
      %v1969 = vsel %vm881, %v1967, %v1968
      %v1970 = vrot.slane %v386, 2
      %v1971 = vsel %vm881, %v1968, %v1970
      %s1972 = scalar_lea.vmem %s1, 32
      %v1973 = vld [vmem:[%s1972] sm:$0xf]
      %v1974 = vsel %vm519, %v1969, 0
      %v1976 = vsel %vm519, %v1971, 0
      %v1979 = vsel %vm584, %v1973, 0
      %1981 = vmatpush.msra.mxu0 0.0
      %1982 = vmatpush.msra.mxu0 0.0
      %1983 = vmatpush.msra.mxu0 0.0
      %1984 = vmatpush.msra.mxu0 0.0
      %1985 = vmatpush.msra.mxu0 0.0
      %1986 = vmatpush.msra.mxu0 0.0
      %1987 = vmatpush.msra.mxu0 0.0
      %1988 = vmatpush.msra.mxu0 0.0
      %1989 = vmatpush.msra.mxu0 0.0
      %1990 = vmatpush.msra.mxu0 0.0
      %1991 = vmatpush.msra.mxu0 0.0
      %1992 = vmatpush.msra.mxu0 0.0
      %1993 = vmatpush.msra.mxu0 0.0
      %1994 = vmatpush.msra.mxu0 0.0
      %1995 = vmatpush.msra.mxu0 0.0
      %1996 = vmatpush.msra.mxu0 %v1979
      %1997 = vmatmul.f32.gmra.mxu0 %v972
      %v1998 = vpop.f32.mrf.mxu0
      %v1999 = vadd.f32 0.0, %v1998
      %2000 = vmatmul.f32.gmra.mxu0 %v974
      %v2001 = vpop.f32.mrf.mxu0
      %v2002 = vadd.f32 0.0, %v2001
      %2003 = vmatmul.f32.gmra.mxu0 %v976
      %v2004 = vpop.f32.mrf.mxu0
      %v2005 = vadd.f32 0.0, %v2004
      %2006 = vmatmul.f32.gmra.mxu0 %v978
      %v2007 = vpop.f32.mrf.mxu0
      %v2008 = vadd.f32 0.0, %v2007
      %2009 = vmatmul.f32.gmra.mxu0 %v980
      %v2010 = vpop.f32.mrf.mxu0
      %v2011 = vadd.f32 0.0, %v2010
      %2012 = vmatmul.f32.gmra.mxu0 %v982
      %v2013 = vpop.f32.mrf.mxu0
      %v2014 = vadd.f32 0.0, %v2013
      %2015 = vmatmul.f32.gmra.mxu0 %v984
      %v2016 = vpop.f32.mrf.mxu0
      %v2017 = vadd.f32 0.0, %v2016
      %2018 = vmatmul.f32.gmra.mxu0 %v986
      %v2019 = vpop.f32.mrf.mxu0
      %v2020 = vadd.f32 0.0, %v2019
      %2021 = vmatmul.f32.gmra.mxu0 %v988
      %v2022 = vpop.f32.mrf.mxu0
      %v2023 = vadd.f32 0.0, %v2022
      %2024 = vmatmul.f32.gmra.mxu0 %v990
      %v2025 = vpop.f32.mrf.mxu0
      %v2026 = vadd.f32 0.0, %v2025
      %2027 = vmatmul.f32.gmra.mxu0 %v992
      %v2028 = vpop.f32.mrf.mxu0
      %v2029 = vadd.f32 0.0, %v2028
      %2030 = vmatmul.f32.gmra.mxu0 %v994
      %v2031 = vpop.f32.mrf.mxu0
      %v2032 = vadd.f32 0.0, %v2031
      %2033 = vmatmul.f32.gmra.mxu0 %v996
      %v2034 = vpop.f32.mrf.mxu0
      %v2035 = vadd.f32 0.0, %v2034
      %2036 = vmatmul.f32.gmra.mxu0 %v998
      %v2037 = vpop.f32.mrf.mxu0
      %v2038 = vadd.f32 0.0, %v2037
      %2039 = vmatmul.f32.gmra.mxu0 %v1000
      %v2040 = vpop.f32.mrf.mxu0
      %v2041 = vadd.f32 0.0, %v2040
      %2042 = vmatmul.f32.gmra.mxu0 %v1002
      %v2043 = vpop.f32.mrf.mxu0
      %v2044 = vadd.f32 0.0, %v2043
      %2045 = vmatmul.f32.gmra.mxu0 %v1004
      %v2046 = vpop.f32.mrf.mxu0
      %v2047 = vadd.f32 0.0, %v2046
      %2048 = vmatmul.f32.gmra.mxu0 %v1006
      %v2049 = vpop.f32.mrf.mxu0
      %v2050 = vadd.f32 0.0, %v2049
      %2051 = vmatmul.f32.gmra.mxu0 %v1008
      %v2052 = vpop.f32.mrf.mxu0
      %v2053 = vadd.f32 0.0, %v2052
      %2054 = vmatmul.f32.gmra.mxu0 %v1010
      %v2055 = vpop.f32.mrf.mxu0
      %v2056 = vadd.f32 0.0, %v2055
      %2057 = vmatmul.f32.gmra.mxu0 %v1012
      %v2058 = vpop.f32.mrf.mxu0
      %v2059 = vadd.f32 0.0, %v2058
      %2060 = vmatmul.f32.gmra.mxu0 %v1014
      %v2061 = vpop.f32.mrf.mxu0
      %v2062 = vadd.f32 0.0, %v2061
      %2063 = vmatmul.f32.gmra.mxu0 %v1016
      %v2064 = vpop.f32.mrf.mxu0
      %v2065 = vadd.f32 0.0, %v2064
      %2066 = vmatmul.f32.gmra.mxu0 %v1018
      %v2067 = vpop.f32.mrf.mxu0
      %v2068 = vadd.f32 0.0, %v2067
      %2069 = vmatmul.f32.gmra.mxu0 %v1020
      %v2070 = vpop.f32.mrf.mxu0
      %v2071 = vadd.f32 0.0, %v2070
      %2072 = vmatmul.f32.gmra.mxu0 %v1022
      %v2073 = vpop.f32.mrf.mxu0
      %v2074 = vadd.f32 0.0, %v2073
      %2075 = vmatmul.f32.gmra.mxu0 %v1024
      %v2076 = vpop.f32.mrf.mxu0
      %v2077 = vadd.f32 0.0, %v2076
      %2078 = vmatmul.f32.gmra.mxu0 %v1026
      %v2079 = vpop.f32.mrf.mxu0
      %v2080 = vadd.f32 0.0, %v2079
      %2081 = vmatmul.f32.gmra.mxu0 %v1499
      %v2082 = vpop.f32.mrf.mxu0
      %v2083 = vadd.f32 0.0, %v2082
      %2084 = vmatmul.f32.gmra.mxu0 %v1501
      %v2085 = vpop.f32.mrf.mxu0
      %v2086 = vadd.f32 0.0, %v2085
      %2087 = vmatmul.f32.gmra.mxu0 %v1974
      %v2088 = vpop.f32.mrf.mxu0
      %v2089 = vadd.f32 0.0, %v2088
      %2090 = vmatmul.f32.gmra.mxu0 %v1976
      %v2091 = vpop.f32.mrf.mxu0
      %v2092 = vadd.f32 0.0, %v2091
      %2093 = vdwg.mxu0
      %v2094 = vadd.f32 %v1935, %v1999
      %v2095 = vadd.f32 %v1936, %v2002
      %v2096 = vadd.f32 %v1937, %v2005
      %v2097 = vadd.f32 %v1938, %v2008
      %v2098 = vadd.f32 %v1939, %v2011
      %v2099 = vadd.f32 %v1940, %v2014
      %v2100 = vadd.f32 %v1941, %v2017
      %v2101 = vadd.f32 %v1942, %v2020
      %v2102 = vadd.f32 %v1943, %v2023
      %v2103 = vadd.f32 %v1944, %v2026
      %v2104 = vadd.f32 %v1945, %v2029
      %v2105 = vadd.f32 %v1946, %v2032
      %v2106 = vadd.f32 %v1947, %v2035
      %v2107 = vadd.f32 %v1948, %v2038
      %v2108 = vadd.f32 %v1949, %v2041
      %v2109 = vadd.f32 %v1950, %v2044
      %v2110 = vadd.f32 %v1951, %v2047
      %v2111 = vadd.f32 %v1952, %v2050
      %v2112 = vadd.f32 %v1953, %v2053
      %v2113 = vadd.f32 %v1954, %v2056
      %v2114 = vadd.f32 %v1955, %v2059
      %v2115 = vadd.f32 %v1956, %v2062
      %v2116 = vadd.f32 %v1957, %v2065
      %v2117 = vadd.f32 %v1958, %v2068
      %v2118 = vadd.f32 %v1959, %v2071
      %v2119 = vadd.f32 %v1960, %v2074
      %v2120 = vadd.f32 %v1961, %v2077
      %v2121 = vadd.f32 %v1962, %v2080
      %v2122 = vadd.f32 %v1963, %v2083
      %v2123 = vadd.f32 %v1964, %v2086
      %v2124 = vadd.f32 %v1965, %v2089
      %v2125 = vadd.f32 %v1966, %v2092
      %v2126 = vld [vmem:[%s2] sm:$0x1]
      %v2128 = vperm.slane %v2126, 0
      %v2130 = vadd.f32 %v2094, %v2128
      %v2131 = vadd.f32 %v2095, %v2128
      %v2132 = vadd.f32 %v2096, %v2128
      %v2133 = vadd.f32 %v2097, %v2128
      %v2134 = vadd.f32 %v2098, %v2128
      %v2135 = vadd.f32 %v2099, %v2128
      %v2136 = vadd.f32 %v2100, %v2128
      %v2137 = vadd.f32 %v2101, %v2128
      %v2138 = vadd.f32 %v2102, %v2128
      %v2139 = vadd.f32 %v2103, %v2128
      %v2140 = vadd.f32 %v2104, %v2128
      %v2141 = vadd.f32 %v2105, %v2128
      %v2142 = vadd.f32 %v2106, %v2128
      %v2143 = vadd.f32 %v2107, %v2128
      %v2144 = vadd.f32 %v2108, %v2128
      %v2145 = vadd.f32 %v2109, %v2128
      %v2146 = vadd.f32 %v2110, %v2128
      %v2147 = vadd.f32 %v2111, %v2128
      %v2148 = vadd.f32 %v2112, %v2128
      %v2149 = vadd.f32 %v2113, %v2128
      %v2150 = vadd.f32 %v2114, %v2128
      %v2151 = vadd.f32 %v2115, %v2128
      %v2152 = vadd.f32 %v2116, %v2128
      %v2153 = vadd.f32 %v2117, %v2128
      %v2154 = vadd.f32 %v2118, %v2128
      %v2155 = vadd.f32 %v2119, %v2128
      %v2156 = vadd.f32 %v2120, %v2128
      %v2157 = vadd.f32 %v2121, %v2128
      %v2158 = vadd.f32 %v2122, %v2128
      %v2159 = vadd.f32 %v2123, %v2128
      %v2160 = vadd.f32 %v2124, %v2128
      %v2161 = vadd.f32 %v2125, %v2128
      %v2162 = vmax.f32 %v2130, 0.0
      %v2163 = vmax.f32 %v2131, 0.0
      %v2164 = vmax.f32 %v2132, 0.0
      %v2165 = vmax.f32 %v2133, 0.0
      %v2166 = vmax.f32 %v2134, 0.0
      %v2167 = vmax.f32 %v2135, 0.0
      %v2168 = vmax.f32 %v2136, 0.0
      %v2169 = vmax.f32 %v2137, 0.0
      %v2170 = vmax.f32 %v2138, 0.0
      %v2171 = vmax.f32 %v2139, 0.0
      %v2172 = vmax.f32 %v2140, 0.0
      %v2173 = vmax.f32 %v2141, 0.0
      %v2174 = vmax.f32 %v2142, 0.0
      %v2175 = vmax.f32 %v2143, 0.0
      %v2176 = vmax.f32 %v2144, 0.0
      %v2177 = vmax.f32 %v2145, 0.0
      %v2178 = vmax.f32 %v2146, 0.0
      %v2179 = vmax.f32 %v2147, 0.0
      %v2180 = vmax.f32 %v2148, 0.0
      %v2181 = vmax.f32 %v2149, 0.0
      %v2182 = vmax.f32 %v2150, 0.0
      %v2183 = vmax.f32 %v2151, 0.0
      %v2184 = vmax.f32 %v2152, 0.0
      %v2185 = vmax.f32 %v2153, 0.0
      %v2186 = vmax.f32 %v2154, 0.0
      %v2187 = vmax.f32 %v2155, 0.0
      %v2188 = vmax.f32 %v2156, 0.0
      %v2189 = vmax.f32 %v2157, 0.0
      %v2190 = vmax.f32 %v2158, 0.0
      %v2191 = vmax.f32 %v2159, 0.0
      %v2192 = vmax.f32 %v2160, 0.0
      %v2193 = vmax.f32 %v2161, 0.0
      %vm2194 = vcmask 523264
      %2195 = vst.msk [vmem:[#allocation2] sm:$0xff] %vm2194, 0.0
      %2196 = vst.msk [vmem:[#allocation2 + $0x8] sm:$0xff] %vm2194, 0.0
      %2197 = vst.msk [vmem:[#allocation2 + $0x10] sm:$0xff] %vm2194, 0.0
      %2198 = vst.msk [vmem:[#allocation2 + $0x18] sm:$0xff] %vm2194, 0.0
      %2199 = vst.msk [vmem:[#allocation2 + $0x20] sm:$0xff] %vm2194, 0.0
      %2200 = vst.msk [vmem:[#allocation2 + $0x28] sm:$0xff] %vm2194, 0.0
      %2201 = vst.msk [vmem:[#allocation2 + $0x30] sm:$0xff] %vm2194, 0.0
      %2202 = vst.msk [vmem:[#allocation2 + $0x38] sm:$0xff] %vm2194, 0.0
      %2203 = vst.msk [vmem:[#allocation2 + $0x40] sm:$0xff] %vm2194, 0.0
      %2204 = vst.msk [vmem:[#allocation2 + $0x48] sm:$0xff] %vm2194, 0.0
      %2205 = vst.msk [vmem:[#allocation2 + $0x50] sm:$0xff] %vm2194, 0.0
      %2206 = vst.msk [vmem:[#allocation2 + $0x58] sm:$0xff] %vm2194, 0.0
      %2207 = vst.msk [vmem:[#allocation2 + $0x60] sm:$0xff] %vm2194, 0.0
      %2208 = vst.msk [vmem:[#allocation2 + $0x68] sm:$0xff] %vm2194, 0.0
      %2209 = vst.msk [vmem:[#allocation2 + $0x70] sm:$0xff] %vm2194, 0.0
      %2210 = vst.msk [vmem:[#allocation2 + $0x78] sm:$0xff] %vm2194, 0.0
      %2211 = vst.msk [vmem:[#allocation2 + $0x80] sm:$0xff] %vm2194, 0.0
      %2212 = vst.msk [vmem:[#allocation2 + $0x88] sm:$0xff] %vm2194, 0.0
      %2213 = vst.msk [vmem:[#allocation2 + $0x90] sm:$0xff] %vm2194, 0.0
      %2214 = vst.msk [vmem:[#allocation2 + $0x98] sm:$0xff] %vm2194, 0.0
      %2215 = vst.msk [vmem:[#allocation2 + $0xa0] sm:$0xff] %vm2194, 0.0
      %2216 = vst.msk [vmem:[#allocation2 + $0xa8] sm:$0xff] %vm2194, 0.0
      %2217 = vst.msk [vmem:[#allocation2 + $0xb0] sm:$0xff] %vm2194, 0.0
      %2218 = vst.msk [vmem:[#allocation2 + $0xb8] sm:$0xff] %vm2194, 0.0
      %2219 = vst.msk [vmem:[#allocation2 + $0xc0] sm:$0xff] %vm2194, 0.0
      %2220 = vst.msk [vmem:[#allocation2 + $0xc8] sm:$0xff] %vm2194, 0.0
      %2221 = vst.msk [vmem:[#allocation2 + $0xd0] sm:$0xff] %vm2194, 0.0
      %2222 = vst.msk [vmem:[#allocation2 + $0xd8] sm:$0xff] %vm2194, 0.0
      %2223 = vst.msk [vmem:[#allocation2 + $0xe0] sm:$0xff] %vm2194, 0.0
      %2224 = vst.msk [vmem:[#allocation2 + $0xe8] sm:$0xff] %vm2194, 0.0
      %2225 = vst.msk [vmem:[#allocation2 + $0xf0] sm:$0xff] %vm2194, 0.0
      %2226 = vst.msk [vmem:[#allocation2 + $0xf8] sm:$0xff] %vm2194, 0.0
      %2227 = vst.msk [vmem:[#allocation2 + $0x100] sm:$0xff] %vm2194, 0.0
      %2228 = vst.msk [vmem:[#allocation2 + $0x108] sm:$0xff] %vm2194, 0.0
      %2229 = vst.msk [vmem:[#allocation2 + $0x110] sm:$0xff] %vm2194, 0.0
      %2230 = vst.msk [vmem:[#allocation2 + $0x118] sm:$0xff] %vm2194, 0.0
      %2231 = vst.msk [vmem:[#allocation2 + $0x120] sm:$0xff] %vm2194, 0.0
      %2232 = vst.msk [vmem:[#allocation2 + $0x128] sm:$0xff] %vm2194, 0.0
      %2233 = vst.msk [vmem:[#allocation2 + $0x130] sm:$0xff] %vm2194, 0.0
      %2234 = vst.msk [vmem:[#allocation2 + $0x138] sm:$0xff] %vm2194, 0.0
      %2235 = vst.msk [vmem:[#allocation2 + $0x140] sm:$0xff] %vm2194, 0.0
      %2236 = vst.msk [vmem:[#allocation2 + $0x148] sm:$0xff] %vm2194, 0.0
      %2237 = vst.msk [vmem:[#allocation2 + $0x150] sm:$0xff] %vm2194, 0.0
      %2238 = vst.msk [vmem:[#allocation2 + $0x158] sm:$0xff] %vm2194, 0.0
      %2239 = vst.msk [vmem:[#allocation2 + $0x160] sm:$0xff] %vm2194, 0.0
      %2240 = vst.msk [vmem:[#allocation2 + $0x168] sm:$0xff] %vm2194, 0.0
      %2241 = vst.msk [vmem:[#allocation2 + $0x170] sm:$0xff] %vm2194, 0.0
      %2242 = vst.msk [vmem:[#allocation2 + $0x178] sm:$0xff] %vm2194, 0.0
      %2243 = vst.msk [vmem:[#allocation2 + $0x180] sm:$0xff] %vm2194, 0.0
      %2244 = vst.msk [vmem:[#allocation2 + $0x188] sm:$0xff] %vm2194, 0.0
      %2245 = vst.msk [vmem:[#allocation2 + $0x190] sm:$0xff] %vm2194, 0.0
      %2246 = vst.msk [vmem:[#allocation2 + $0x198] sm:$0xff] %vm2194, 0.0
      %2247 = vst.msk [vmem:[#allocation2 + $0x1a0] sm:$0xff] %vm2194, 0.0
      %2248 = vst.msk [vmem:[#allocation2 + $0x1a8] sm:$0xff] %vm2194, 0.0
      %2249 = vst.msk [vmem:[#allocation2 + $0x1b0] sm:$0xff] %vm2194, 0.0
      %2250 = vst.msk [vmem:[#allocation2 + $0x1b8] sm:$0xff] %vm2194, 0.0
      %2251 = vst.msk [vmem:[#allocation2 + $0x1c0] sm:$0xff] %vm2194, 0.0
      %2252 = vst.msk [vmem:[#allocation2 + $0x1c8] sm:$0xff] %vm2194, 0.0
      %2253 = vst.msk [vmem:[#allocation2 + $0x1d0] sm:$0xff] %vm2194, 0.0
      %2254 = vst.msk [vmem:[#allocation2 + $0x1d8] sm:$0xff] %vm2194, 0.0
      %2255 = vst.msk [vmem:[#allocation2 + $0x1e0] sm:$0xff] %vm2194, 0.0
      %2256 = vst.msk [vmem:[#allocation2 + $0x1e8] sm:$0xff] %vm2194, 0.0
      %2257 = vst.msk [vmem:[#allocation2 + $0x1f0] sm:$0xff] %vm2194, 0.0
      %2258 = vst.msk [vmem:[#allocation2 + $0x1f8] sm:$0xff] %vm2194, 0.0
      %2259 = vst.msk [vmem:[#allocation2 + $0x200] sm:$0xff] %vm2194, 0.0
      %2260 = vst.msk [vmem:[#allocation2 + $0x208] sm:$0xff] %vm2194, 0.0
      %2261 = vst.msk [vmem:[#allocation2 + $0x210] sm:$0xff] %vm2194, 0.0
      %2262 = vst.msk [vmem:[#allocation2 + $0x218] sm:$0xff] %vm2194, 0.0
      %2263 = vst.msk [vmem:[#allocation2 + $0x220] sm:$0xff] %vm2194, 0.0
      %2264 = vst.msk [vmem:[#allocation2 + $0x228] sm:$0xff] %vm2194, 0.0
      %2265 = vst.msk [vmem:[#allocation2 + $0x230] sm:$0xff] %vm2194, 0.0
      %2266 = vst.msk [vmem:[#allocation2 + $0x238] sm:$0xff] %vm2194, 0.0
      %s2267 = scalar_lea.vmem [#allocation2], 32
      %2268 = vst.msk [vmem:[%s2267 + $0x8] sm:$0xff] %vm2194, %v2162
      %2269 = vst.msk [vmem:[%s2267 + $0x10] sm:$0xff] %vm2194, %v2163
      %2270 = vst.msk [vmem:[%s2267 + $0x28] sm:$0xff] %vm2194, %v2164
      %2271 = vst.msk [vmem:[%s2267 + $0x30] sm:$0xff] %vm2194, %v2165
      %2272 = vst.msk [vmem:[%s2267 + $0x48] sm:$0xff] %vm2194, %v2166
      %2273 = vst.msk [vmem:[%s2267 + $0x50] sm:$0xff] %vm2194, %v2167
      %2274 = vst.msk [vmem:[%s2267 + $0x68] sm:$0xff] %vm2194, %v2168
      %2275 = vst.msk [vmem:[%s2267 + $0x70] sm:$0xff] %vm2194, %v2169
      %2276 = vst.msk [vmem:[%s2267 + $0x88] sm:$0xff] %vm2194, %v2170
      %2277 = vst.msk [vmem:[%s2267 + $0x90] sm:$0xff] %vm2194, %v2171
      %2278 = vst.msk [vmem:[%s2267 + $0xa8] sm:$0xff] %vm2194, %v2172
      %2279 = vst.msk [vmem:[%s2267 + $0xb0] sm:$0xff] %vm2194, %v2173
      %2280 = vst.msk [vmem:[%s2267 + $0xc8] sm:$0xff] %vm2194, %v2174
      %2281 = vst.msk [vmem:[%s2267 + $0xd0] sm:$0xff] %vm2194, %v2175
      %2282 = vst.msk [vmem:[%s2267 + $0xe8] sm:$0xff] %vm2194, %v2176
      %2283 = vst.msk [vmem:[%s2267 + $0xf0] sm:$0xff] %vm2194, %v2177
      %2284 = vst.msk [vmem:[%s2267 + $0x108] sm:$0xff] %vm2194, %v2178
      %2285 = vst.msk [vmem:[%s2267 + $0x110] sm:$0xff] %vm2194, %v2179
      %2286 = vst.msk [vmem:[%s2267 + $0x128] sm:$0xff] %vm2194, %v2180
      %2287 = vst.msk [vmem:[%s2267 + $0x130] sm:$0xff] %vm2194, %v2181
      %2288 = vst.msk [vmem:[%s2267 + $0x148] sm:$0xff] %vm2194, %v2182
      %2289 = vst.msk [vmem:[%s2267 + $0x150] sm:$0xff] %vm2194, %v2183
      %2290 = vst.msk [vmem:[%s2267 + $0x168] sm:$0xff] %vm2194, %v2184
      %2291 = vst.msk [vmem:[%s2267 + $0x170] sm:$0xff] %vm2194, %v2185
      %2292 = vst.msk [vmem:[%s2267 + $0x188] sm:$0xff] %vm2194, %v2186
      %2293 = vst.msk [vmem:[%s2267 + $0x190] sm:$0xff] %vm2194, %v2187
      %2294 = vst.msk [vmem:[%s2267 + $0x1a8] sm:$0xff] %vm2194, %v2188
      %2295 = vst.msk [vmem:[%s2267 + $0x1b0] sm:$0xff] %vm2194, %v2189
      %2296 = vst.msk [vmem:[%s2267 + $0x1c8] sm:$0xff] %vm2194, %v2190
      %2297 = vst.msk [vmem:[%s2267 + $0x1d0] sm:$0xff] %vm2194, %v2191
      %2298 = vst.msk [vmem:[%s2267 + $0x1e8] sm:$0xff] %vm2194, %v2192
      %2299 = vst.msk [vmem:[%s2267 + $0x1f0] sm:$0xff] %vm2194, %v2193
      %v2300 = vld [vmem:[#allocation2] sm:$0xff]
      %v2301 = vld [vmem:[#allocation2 + $0x8] sm:$0xff]
      %v2302 = vld [vmem:[#allocation2 + $0x10] sm:$0xff]
      %v2303 = vld [vmem:[#allocation2 + $0x18] sm:$0xff]
      %v2304 = vld [vmem:[#allocation2 + $0x20] sm:$0xff]
      %v2305 = vld [vmem:[#allocation2 + $0x28] sm:$0xff]
      %v2306 = vld [vmem:[#allocation2 + $0x30] sm:$0xff]
      %v2307 = vld [vmem:[#allocation2 + $0x38] sm:$0xff]
      %v2308 = vld [vmem:[#allocation2 + $0x40] sm:$0xff]
      %v2309 = vld [vmem:[#allocation2 + $0x48] sm:$0xff]
      %v2310 = vld [vmem:[#allocation2 + $0x50] sm:$0xff]
      %v2311 = vld [vmem:[#allocation2 + $0x58] sm:$0xff]
      %v2312 = vld [vmem:[#allocation2 + $0x60] sm:$0xff]
      %v2313 = vld [vmem:[#allocation2 + $0x68] sm:$0xff]
      %v2314 = vld [vmem:[#allocation2 + $0x70] sm:$0xff]
      %v2315 = vld [vmem:[#allocation2 + $0x78] sm:$0xff]
      %v2316 = vld [vmem:[#allocation2 + $0x80] sm:$0xff]
      %v2317 = vld [vmem:[#allocation2 + $0x88] sm:$0xff]
      %v2318 = vld [vmem:[#allocation2 + $0x90] sm:$0xff]
      %v2319 = vld [vmem:[#allocation2 + $0x98] sm:$0xff]
      %v2320 = vld [vmem:[#allocation2 + $0xa0] sm:$0xff]
      %v2321 = vld [vmem:[#allocation2 + $0xa8] sm:$0xff]
      %v2322 = vld [vmem:[#allocation2 + $0xb0] sm:$0xff]
      %v2323 = vld [vmem:[#allocation2 + $0xb8] sm:$0xff]
      %v2324 = vld [vmem:[#allocation2 + $0xc0] sm:$0xff]
      %v2325 = vld [vmem:[#allocation2 + $0xc8] sm:$0xff]
      %v2326 = vld [vmem:[#allocation2 + $0xd0] sm:$0xff]
      %v2327 = vld [vmem:[#allocation2 + $0xd8] sm:$0xff]
      %v2328 = vld [vmem:[#allocation2 + $0xe0] sm:$0xff]
      %v2329 = vld [vmem:[#allocation2 + $0xe8] sm:$0xff]
      %v2330 = vld [vmem:[#allocation2 + $0xf0] sm:$0xff]
      %v2331 = vld [vmem:[#allocation2 + $0xf8] sm:$0xff]
      %v2332 = vld [vmem:[#allocation2 + $0x100] sm:$0xff]
      %v2333 = vld [vmem:[#allocation2 + $0x108] sm:$0xff]
      %v2334 = vld [vmem:[#allocation2 + $0x110] sm:$0xff]
      %v2335 = vld [vmem:[#allocation2 + $0x118] sm:$0xff]
      %v2336 = vld [vmem:[#allocation2 + $0x120] sm:$0xff]
      %v2337 = vld [vmem:[#allocation2 + $0x128] sm:$0xff]
      %v2338 = vld [vmem:[#allocation2 + $0x130] sm:$0xff]
      %v2339 = vld [vmem:[#allocation2 + $0x138] sm:$0xff]
      %v2340 = vld [vmem:[#allocation2 + $0x140] sm:$0xff]
      %v2341 = vld [vmem:[#allocation2 + $0x148] sm:$0xff]
      %v2342 = vld [vmem:[#allocation2 + $0x150] sm:$0xff]
      %v2343 = vld [vmem:[#allocation2 + $0x158] sm:$0xff]
      %v2344 = vld [vmem:[#allocation2 + $0x160] sm:$0xff]
      %v2345 = vld [vmem:[#allocation2 + $0x168] sm:$0xff]
      %v2346 = vld [vmem:[#allocation2 + $0x170] sm:$0xff]
      %v2347 = vld [vmem:[#allocation2 + $0x178] sm:$0xff]
      %v2348 = vld [vmem:[#allocation2 + $0x180] sm:$0xff]
      %v2349 = vld [vmem:[#allocation2 + $0x188] sm:$0xff]
      %v2350 = vld [vmem:[#allocation2 + $0x190] sm:$0xff]
      %v2351 = vld [vmem:[#allocation2 + $0x198] sm:$0xff]
      %v2352 = vld [vmem:[#allocation2 + $0x1a0] sm:$0xff]
      %v2353 = vld [vmem:[#allocation2 + $0x1a8] sm:$0xff]
      %v2354 = vld [vmem:[#allocation2 + $0x1b0] sm:$0xff]
      %v2355 = vld [vmem:[#allocation2 + $0x1b8] sm:$0xff]
      %v2356 = vld [vmem:[#allocation2 + $0x1c0] sm:$0xff]
      %v2357 = vld [vmem:[#allocation2 + $0x1c8] sm:$0xff]
      %v2358 = vld [vmem:[#allocation2 + $0x1d0] sm:$0xff]
      %v2359 = vld [vmem:[#allocation2 + $0x1d8] sm:$0xff]
      %v2360 = vld [vmem:[#allocation2 + $0x1e0] sm:$0xff]
      %v2361 = vld [vmem:[#allocation2 + $0x1e8] sm:$0xff]
      %v2362 = vld [vmem:[#allocation2 + $0x1f0] sm:$0xff]
      %v2363 = vld [vmem:[#allocation2 + $0x1f8] sm:$0xff]
      %vm2412 = vcmask 1040384
      %v2413 = vrot.slane %v2300, 7
      %v2414 = vrot.slane %v2301, 7
      %v2415 = vsel %vm2412, %v2413, %v2414
      %v2416 = vrot.slane %v2302, 7
      %v2417 = vsel %vm2412, %v2414, %v2416
      %v2418 = vrot.slane %v2304, 7
      %v2419 = vrot.slane %v2305, 7
      %v2420 = vsel %vm2412, %v2418, %v2419
      %v2421 = vrot.slane %v2306, 7
      %v2422 = vsel %vm2412, %v2419, %v2421
      %v2423 = vrot.slane %v2308, 7
      %v2424 = vrot.slane %v2309, 7
      %v2425 = vsel %vm2412, %v2423, %v2424
      %v2426 = vrot.slane %v2310, 7
      %v2427 = vsel %vm2412, %v2424, %v2426
      %v2428 = vrot.slane %v2312, 7
      %v2429 = vrot.slane %v2313, 7
      %v2430 = vsel %vm2412, %v2428, %v2429
      %v2431 = vrot.slane %v2314, 7
      %v2432 = vsel %vm2412, %v2429, %v2431
      %v2433 = vrot.slane %v2316, 7
      %v2434 = vrot.slane %v2317, 7
      %v2435 = vsel %vm2412, %v2433, %v2434
      %v2436 = vrot.slane %v2318, 7
      %v2437 = vsel %vm2412, %v2434, %v2436
      %v2438 = vrot.slane %v2320, 7
      %v2439 = vrot.slane %v2321, 7
      %v2440 = vsel %vm2412, %v2438, %v2439
      %v2441 = vrot.slane %v2322, 7
      %v2442 = vsel %vm2412, %v2439, %v2441
      %v2443 = vrot.slane %v2324, 7
      %v2444 = vrot.slane %v2325, 7
      %v2445 = vsel %vm2412, %v2443, %v2444
      %v2446 = vrot.slane %v2326, 7
      %v2447 = vsel %vm2412, %v2444, %v2446
      %v2448 = vrot.slane %v2328, 7
      %v2449 = vrot.slane %v2329, 7
      %v2450 = vsel %vm2412, %v2448, %v2449
      %v2451 = vrot.slane %v2330, 7
      %v2452 = vsel %vm2412, %v2449, %v2451
      %v2453 = vrot.slane %v2332, 7
      %v2454 = vrot.slane %v2333, 7
      %v2455 = vsel %vm2412, %v2453, %v2454
      %v2456 = vrot.slane %v2334, 7
      %v2457 = vsel %vm2412, %v2454, %v2456
      %v2458 = vrot.slane %v2336, 7
      %v2459 = vrot.slane %v2337, 7
      %v2460 = vsel %vm2412, %v2458, %v2459
      %v2461 = vrot.slane %v2338, 7
      %v2462 = vsel %vm2412, %v2459, %v2461
      %v2463 = vrot.slane %v2340, 7
      %v2464 = vrot.slane %v2341, 7
      %v2465 = vsel %vm2412, %v2463, %v2464
      %v2466 = vrot.slane %v2342, 7
      %v2467 = vsel %vm2412, %v2464, %v2466
      %v2468 = vrot.slane %v2344, 7
      %v2469 = vrot.slane %v2345, 7
      %v2470 = vsel %vm2412, %v2468, %v2469
      %v2471 = vrot.slane %v2346, 7
      %v2472 = vsel %vm2412, %v2469, %v2471
      %v2473 = vrot.slane %v2348, 7
      %v2474 = vrot.slane %v2349, 7
      %v2475 = vsel %vm2412, %v2473, %v2474
      %v2476 = vrot.slane %v2350, 7
      %v2477 = vsel %vm2412, %v2474, %v2476
      %v2478 = vrot.slane %v2352, 7
      %v2479 = vrot.slane %v2353, 7
      %v2480 = vsel %vm2412, %v2478, %v2479
      %v2481 = vrot.slane %v2354, 7
      %v2482 = vsel %vm2412, %v2479, %v2481
      %v2483 = vrot.slane %v2356, 7
      %v2484 = vrot.slane %v2357, 7
      %v2485 = vsel %vm2412, %v2483, %v2484
      %v2486 = vrot.slane %v2358, 7
      %v2487 = vsel %vm2412, %v2484, %v2486
      %v2488 = vrot.slane %v2360, 7
      %v2489 = vrot.slane %v2361, 7
      %v2490 = vsel %vm2412, %v2488, %v2489
      %v2491 = vrot.slane %v2362, 7
      %v2492 = vsel %vm2412, %v2489, %v2491
      %v2493 = vld [vmem:[%s3] sm:$0xff]
      %v2494 = vld [vmem:[%s3 + $0x8] sm:$0xff]
      %v2495 = vld [vmem:[%s3 + $0x10] sm:$0xff]
      %v2496 = vld [vmem:[%s3 + $0x18] sm:$0xff]
      %v2497 = vld [vmem:[%s3 + $0x20] sm:$0xff]
      %v2498 = vld [vmem:[%s3 + $0x28] sm:$0xff]
      %v2499 = vld [vmem:[%s3 + $0x30] sm:$0xff]
      %v2500 = vld [vmem:[%s3 + $0x38] sm:$0xff]
      %s2501 = scalar_lea.vmem %s3, 64
      %v2502 = vld [vmem:[%s2501] sm:$0xff]
      %v2503 = vld [vmem:[%s2501 + $0x8] sm:$0xff]
      %v2504 = vld [vmem:[%s2501 + $0x10] sm:$0xff]
      %v2505 = vld [vmem:[%s2501 + $0x18] sm:$0xff]
      %v2506 = vld [vmem:[%s2501 + $0x20] sm:$0xff]
      %v2507 = vld [vmem:[%s2501 + $0x28] sm:$0xff]
      %v2508 = vld [vmem:[%s2501 + $0x30] sm:$0xff]
      %v2509 = vld [vmem:[%s2501 + $0x38] sm:$0xff]
      %v2510 = vsel %vm2194, %v2301, 0
      %v2512 = vsel %vm2194, %v2302, 0
      %v2514 = vsel %vm2194, %v2305, 0
      %v2516 = vsel %vm2194, %v2306, 0
      %v2518 = vsel %vm2194, %v2309, 0
      %v2520 = vsel %vm2194, %v2310, 0
      %v2522 = vsel %vm2194, %v2313, 0
      %v2524 = vsel %vm2194, %v2314, 0
      %v2526 = vsel %vm2194, %v2317, 0
      %v2528 = vsel %vm2194, %v2318, 0
      %v2530 = vsel %vm2194, %v2321, 0
      %v2532 = vsel %vm2194, %v2322, 0
      %v2534 = vsel %vm2194, %v2325, 0
      %v2536 = vsel %vm2194, %v2326, 0
      %v2538 = vsel %vm2194, %v2329, 0
      %v2540 = vsel %vm2194, %v2330, 0
      %v2542 = vsel %vm2194, %v2333, 0
      %v2544 = vsel %vm2194, %v2334, 0
      %v2546 = vsel %vm2194, %v2337, 0
      %v2548 = vsel %vm2194, %v2338, 0
      %v2550 = vsel %vm2194, %v2341, 0
      %v2552 = vsel %vm2194, %v2342, 0
      %v2554 = vsel %vm2194, %v2345, 0
      %v2556 = vsel %vm2194, %v2346, 0
      %v2558 = vsel %vm2194, %v2349, 0
      %v2560 = vsel %vm2194, %v2350, 0
      %v2562 = vsel %vm2194, %v2353, 0
      %v2564 = vsel %vm2194, %v2354, 0
      %v2566 = vsel %vm2194, %v2357, 0
      %v2568 = vsel %vm2194, %v2358, 0
      %v2570 = vsel %vm2194, %v2361, 0
      %v2572 = vsel %vm2194, %v2362, 0
      %2574 = vmatpush.msra.mxu0 0.0
      %2575 = vmatpush.msra.mxu0 0.0
      %2576 = vmatpush.msra.mxu0 0.0
      %2577 = vmatpush.msra.mxu0 0.0
      %2578 = vmatpush.msra.mxu0 0.0
      %2579 = vmatpush.msra.mxu0 0.0
      %2580 = vmatpush.msra.mxu0 0.0
      %2581 = vmatpush.msra.mxu0 0.0
      %2582 = vmatpush.msra.mxu0 %v2509
      %2583 = vmatpush.msra.mxu0 %v2508
      %2584 = vmatpush.msra.mxu0 %v2507
      %2585 = vmatpush.msra.mxu0 %v2506
      %2586 = vmatpush.msra.mxu0 %v2505
      %2587 = vmatpush.msra.mxu0 %v2504
      %2588 = vmatpush.msra.mxu0 %v2503
      %2589 = vmatpush.msra.mxu0 %v2502
      %2590 = vmatmul.f32.gmra.mxu0 %v2510
      %v2591 = vpop.f32.mrf.mxu0
      %v2592 = vadd.f32 0.0, %v2591
      %2593 = vmatmul.f32.gmra.mxu0 %v2512
      %v2594 = vpop.f32.mrf.mxu0
      %v2595 = vadd.f32 0.0, %v2594
      %2596 = vmatmul.f32.gmra.mxu0 %v2514
      %v2597 = vpop.f32.mrf.mxu0
      %v2598 = vadd.f32 0.0, %v2597
      %2599 = vmatmul.f32.gmra.mxu0 %v2516
      %v2600 = vpop.f32.mrf.mxu0
      %v2601 = vadd.f32 0.0, %v2600
      %2602 = vmatmul.f32.gmra.mxu0 %v2518
      %v2603 = vpop.f32.mrf.mxu0
      %v2604 = vadd.f32 0.0, %v2603
      %2605 = vmatmul.f32.gmra.mxu0 %v2520
      %v2606 = vpop.f32.mrf.mxu0
      %v2607 = vadd.f32 0.0, %v2606
      %2608 = vmatmul.f32.gmra.mxu0 %v2522
      %v2609 = vpop.f32.mrf.mxu0
      %v2610 = vadd.f32 0.0, %v2609
      %2611 = vmatmul.f32.gmra.mxu0 %v2524
      %v2612 = vpop.f32.mrf.mxu0
      %v2613 = vadd.f32 0.0, %v2612
      %2614 = vmatmul.f32.gmra.mxu0 %v2526
      %v2615 = vpop.f32.mrf.mxu0
      %v2616 = vadd.f32 0.0, %v2615
      %2617 = vmatmul.f32.gmra.mxu0 %v2528
      %v2618 = vpop.f32.mrf.mxu0
      %v2619 = vadd.f32 0.0, %v2618
      %2620 = vmatmul.f32.gmra.mxu0 %v2530
      %v2621 = vpop.f32.mrf.mxu0
      %v2622 = vadd.f32 0.0, %v2621
      %2623 = vmatmul.f32.gmra.mxu0 %v2532
      %v2624 = vpop.f32.mrf.mxu0
      %v2625 = vadd.f32 0.0, %v2624
      %2626 = vmatmul.f32.gmra.mxu0 %v2534
      %v2627 = vpop.f32.mrf.mxu0
      %v2628 = vadd.f32 0.0, %v2627
      %2629 = vmatmul.f32.gmra.mxu0 %v2536
      %v2630 = vpop.f32.mrf.mxu0
      %v2631 = vadd.f32 0.0, %v2630
      %2632 = vmatmul.f32.gmra.mxu0 %v2538
      %v2633 = vpop.f32.mrf.mxu0
      %v2634 = vadd.f32 0.0, %v2633
      %2635 = vmatmul.f32.gmra.mxu0 %v2540
      %v2636 = vpop.f32.mrf.mxu0
      %v2637 = vadd.f32 0.0, %v2636
      %2638 = vmatmul.f32.gmra.mxu0 %v2542
      %v2639 = vpop.f32.mrf.mxu0
      %v2640 = vadd.f32 0.0, %v2639
      %2641 = vmatmul.f32.gmra.mxu0 %v2544
      %v2642 = vpop.f32.mrf.mxu0
      %v2643 = vadd.f32 0.0, %v2642
      %2644 = vmatmul.f32.gmra.mxu0 %v2546
      %v2645 = vpop.f32.mrf.mxu0
      %v2646 = vadd.f32 0.0, %v2645
      %2647 = vmatmul.f32.gmra.mxu0 %v2548
      %v2648 = vpop.f32.mrf.mxu0
      %v2649 = vadd.f32 0.0, %v2648
      %2650 = vmatmul.f32.gmra.mxu0 %v2550
      %v2651 = vpop.f32.mrf.mxu0
      %v2652 = vadd.f32 0.0, %v2651
      %2653 = vmatmul.f32.gmra.mxu0 %v2552
      %v2654 = vpop.f32.mrf.mxu0
      %v2655 = vadd.f32 0.0, %v2654
      %2656 = vmatmul.f32.gmra.mxu0 %v2554
      %v2657 = vpop.f32.mrf.mxu0
      %v2658 = vadd.f32 0.0, %v2657
      %2659 = vmatmul.f32.gmra.mxu0 %v2556
      %v2660 = vpop.f32.mrf.mxu0
      %v2661 = vadd.f32 0.0, %v2660
      %2662 = vmatmul.f32.gmra.mxu0 %v2558
      %v2663 = vpop.f32.mrf.mxu0
      %v2664 = vadd.f32 0.0, %v2663
      %2665 = vmatmul.f32.gmra.mxu0 %v2560
      %v2666 = vpop.f32.mrf.mxu0
      %v2667 = vadd.f32 0.0, %v2666
      %2668 = vmatmul.f32.gmra.mxu0 %v2562
      %v2669 = vpop.f32.mrf.mxu0
      %v2670 = vadd.f32 0.0, %v2669
      %2671 = vmatmul.f32.gmra.mxu0 %v2564
      %v2672 = vpop.f32.mrf.mxu0
      %v2673 = vadd.f32 0.0, %v2672
      %2674 = vmatmul.f32.gmra.mxu0 %v2566
      %v2675 = vpop.f32.mrf.mxu0
      %v2676 = vadd.f32 0.0, %v2675
      %2677 = vmatmul.f32.gmra.mxu0 %v2568
      %v2678 = vpop.f32.mrf.mxu0
      %v2679 = vadd.f32 0.0, %v2678
      %2680 = vmatmul.f32.gmra.mxu0 %v2570
      %v2681 = vpop.f32.mrf.mxu0
      %v2682 = vadd.f32 0.0, %v2681
      %2683 = vmatmul.f32.gmra.mxu0 %v2572
      %v2684 = vpop.f32.mrf.mxu0
      %v2685 = vadd.f32 0.0, %v2684
      %2686 = vdwg.mxu0
      %v2687 = vsel %vm2194, %v2415, 0
      %v2689 = vsel %vm2194, %v2417, 0
      %v2691 = vsel %vm2194, %v2420, 0
      %v2693 = vsel %vm2194, %v2422, 0
      %v2695 = vsel %vm2194, %v2425, 0
      %v2697 = vsel %vm2194, %v2427, 0
      %v2699 = vsel %vm2194, %v2430, 0
      %v2701 = vsel %vm2194, %v2432, 0
      %v2703 = vsel %vm2194, %v2435, 0
      %v2705 = vsel %vm2194, %v2437, 0
      %v2707 = vsel %vm2194, %v2440, 0
      %v2709 = vsel %vm2194, %v2442, 0
      %v2711 = vsel %vm2194, %v2445, 0
      %v2713 = vsel %vm2194, %v2447, 0
      %v2715 = vsel %vm2194, %v2450, 0
      %v2717 = vsel %vm2194, %v2452, 0
      %v2719 = vsel %vm2194, %v2455, 0
      %v2721 = vsel %vm2194, %v2457, 0
      %v2723 = vsel %vm2194, %v2460, 0
      %v2725 = vsel %vm2194, %v2462, 0
      %v2727 = vsel %vm2194, %v2465, 0
      %v2729 = vsel %vm2194, %v2467, 0
      %v2731 = vsel %vm2194, %v2470, 0
      %v2733 = vsel %vm2194, %v2472, 0
      %v2735 = vsel %vm2194, %v2475, 0
      %v2737 = vsel %vm2194, %v2477, 0
      %v2739 = vsel %vm2194, %v2480, 0
      %v2741 = vsel %vm2194, %v2482, 0
      %v2743 = vsel %vm2194, %v2485, 0
      %v2745 = vsel %vm2194, %v2487, 0
      %v2747 = vsel %vm2194, %v2490, 0
      %v2749 = vsel %vm2194, %v2492, 0
      %2751 = vmatpush.msra.mxu0 0.0
      %2752 = vmatpush.msra.mxu0 0.0
      %2753 = vmatpush.msra.mxu0 0.0
      %2754 = vmatpush.msra.mxu0 0.0
      %2755 = vmatpush.msra.mxu0 0.0
      %2756 = vmatpush.msra.mxu0 0.0
      %2757 = vmatpush.msra.mxu0 0.0
      %2758 = vmatpush.msra.mxu0 0.0
      %2759 = vmatpush.msra.mxu0 %v2500
      %2760 = vmatpush.msra.mxu0 %v2499
      %2761 = vmatpush.msra.mxu0 %v2498
      %2762 = vmatpush.msra.mxu0 %v2497
      %2763 = vmatpush.msra.mxu0 %v2496
      %2764 = vmatpush.msra.mxu0 %v2495
      %2765 = vmatpush.msra.mxu0 %v2494
      %2766 = vmatpush.msra.mxu0 %v2493
      %2767 = vmatmul.f32.gmra.mxu0 %v2687
      %v2768 = vpop.f32.mrf.mxu0
      %v2769 = vadd.f32 %v2592, %v2768
      %2770 = vmatmul.f32.gmra.mxu0 %v2689
      %v2771 = vpop.f32.mrf.mxu0
      %v2772 = vadd.f32 %v2595, %v2771
      %2773 = vmatmul.f32.gmra.mxu0 %v2691
      %v2774 = vpop.f32.mrf.mxu0
      %v2775 = vadd.f32 %v2598, %v2774
      %2776 = vmatmul.f32.gmra.mxu0 %v2693
      %v2777 = vpop.f32.mrf.mxu0
      %v2778 = vadd.f32 %v2601, %v2777
      %2779 = vmatmul.f32.gmra.mxu0 %v2695
      %v2780 = vpop.f32.mrf.mxu0
      %v2781 = vadd.f32 %v2604, %v2780
      %2782 = vmatmul.f32.gmra.mxu0 %v2697
      %v2783 = vpop.f32.mrf.mxu0
      %v2784 = vadd.f32 %v2607, %v2783
      %2785 = vmatmul.f32.gmra.mxu0 %v2699
      %v2786 = vpop.f32.mrf.mxu0
      %v2787 = vadd.f32 %v2610, %v2786
      %2788 = vmatmul.f32.gmra.mxu0 %v2701
      %v2789 = vpop.f32.mrf.mxu0
      %v2790 = vadd.f32 %v2613, %v2789
      %2791 = vmatmul.f32.gmra.mxu0 %v2703
      %v2792 = vpop.f32.mrf.mxu0
      %v2793 = vadd.f32 %v2616, %v2792
      %2794 = vmatmul.f32.gmra.mxu0 %v2705
      %v2795 = vpop.f32.mrf.mxu0
      %v2796 = vadd.f32 %v2619, %v2795
      %2797 = vmatmul.f32.gmra.mxu0 %v2707
      %v2798 = vpop.f32.mrf.mxu0
      %v2799 = vadd.f32 %v2622, %v2798
      %2800 = vmatmul.f32.gmra.mxu0 %v2709
      %v2801 = vpop.f32.mrf.mxu0
      %v2802 = vadd.f32 %v2625, %v2801
      %2803 = vmatmul.f32.gmra.mxu0 %v2711
      %v2804 = vpop.f32.mrf.mxu0
      %v2805 = vadd.f32 %v2628, %v2804
      %2806 = vmatmul.f32.gmra.mxu0 %v2713
      %v2807 = vpop.f32.mrf.mxu0
      %v2808 = vadd.f32 %v2631, %v2807
      %2809 = vmatmul.f32.gmra.mxu0 %v2715
      %v2810 = vpop.f32.mrf.mxu0
      %v2811 = vadd.f32 %v2634, %v2810
      %2812 = vmatmul.f32.gmra.mxu0 %v2717
      %v2813 = vpop.f32.mrf.mxu0
      %v2814 = vadd.f32 %v2637, %v2813
      %2815 = vmatmul.f32.gmra.mxu0 %v2719
      %v2816 = vpop.f32.mrf.mxu0
      %v2817 = vadd.f32 %v2640, %v2816
      %2818 = vmatmul.f32.gmra.mxu0 %v2721
      %v2819 = vpop.f32.mrf.mxu0
      %v2820 = vadd.f32 %v2643, %v2819
      %2821 = vmatmul.f32.gmra.mxu0 %v2723
      %v2822 = vpop.f32.mrf.mxu0
      %v2823 = vadd.f32 %v2646, %v2822
      %2824 = vmatmul.f32.gmra.mxu0 %v2725
      %v2825 = vpop.f32.mrf.mxu0
      %v2826 = vadd.f32 %v2649, %v2825
      %2827 = vmatmul.f32.gmra.mxu0 %v2727
      %v2828 = vpop.f32.mrf.mxu0
      %v2829 = vadd.f32 %v2652, %v2828
      %2830 = vmatmul.f32.gmra.mxu0 %v2729
      %v2831 = vpop.f32.mrf.mxu0
      %v2832 = vadd.f32 %v2655, %v2831
      %2833 = vmatmul.f32.gmra.mxu0 %v2731
      %v2834 = vpop.f32.mrf.mxu0
      %v2835 = vadd.f32 %v2658, %v2834
      %2836 = vmatmul.f32.gmra.mxu0 %v2733
      %v2837 = vpop.f32.mrf.mxu0
      %v2838 = vadd.f32 %v2661, %v2837
      %2839 = vmatmul.f32.gmra.mxu0 %v2735
      %v2840 = vpop.f32.mrf.mxu0
      %v2841 = vadd.f32 %v2664, %v2840
      %2842 = vmatmul.f32.gmra.mxu0 %v2737
      %v2843 = vpop.f32.mrf.mxu0
      %v2844 = vadd.f32 %v2667, %v2843
      %2845 = vmatmul.f32.gmra.mxu0 %v2739
      %v2846 = vpop.f32.mrf.mxu0
      %v2847 = vadd.f32 %v2670, %v2846
      %2848 = vmatmul.f32.gmra.mxu0 %v2741
      %v2849 = vpop.f32.mrf.mxu0
      %v2850 = vadd.f32 %v2673, %v2849
      %2851 = vmatmul.f32.gmra.mxu0 %v2743
      %v2852 = vpop.f32.mrf.mxu0
      %v2853 = vadd.f32 %v2676, %v2852
      %2854 = vmatmul.f32.gmra.mxu0 %v2745
      %v2855 = vpop.f32.mrf.mxu0
      %v2856 = vadd.f32 %v2679, %v2855
      %2857 = vmatmul.f32.gmra.mxu0 %v2747
      %v2858 = vpop.f32.mrf.mxu0
      %v2859 = vadd.f32 %v2682, %v2858
      %2860 = vmatmul.f32.gmra.mxu0 %v2749
      %v2861 = vpop.f32.mrf.mxu0
      %v2862 = vadd.f32 %v2685, %v2861
      %2863 = vdwg.mxu0
      %v2880 = vrot.slane %v2301, 1
      %v2881 = vrot.slane %v2302, 1
      %v2882 = vsel %vm436, %v2880, %v2881
      %v2883 = vrot.slane %v2303, 1
      %v2884 = vsel %vm436, %v2881, %v2883
      %v2885 = vrot.slane %v2305, 1
      %v2886 = vrot.slane %v2306, 1
      %v2887 = vsel %vm436, %v2885, %v2886
      %v2888 = vrot.slane %v2307, 1
      %v2889 = vsel %vm436, %v2886, %v2888
      %v2890 = vrot.slane %v2309, 1
      %v2891 = vrot.slane %v2310, 1
      %v2892 = vsel %vm436, %v2890, %v2891
      %v2893 = vrot.slane %v2311, 1
      %v2894 = vsel %vm436, %v2891, %v2893
      %v2895 = vrot.slane %v2313, 1
      %v2896 = vrot.slane %v2314, 1
      %v2897 = vsel %vm436, %v2895, %v2896
      %v2898 = vrot.slane %v2315, 1
      %v2899 = vsel %vm436, %v2896, %v2898
      %v2900 = vrot.slane %v2317, 1
      %v2901 = vrot.slane %v2318, 1
      %v2902 = vsel %vm436, %v2900, %v2901
      %v2903 = vrot.slane %v2319, 1
      %v2904 = vsel %vm436, %v2901, %v2903
      %v2905 = vrot.slane %v2321, 1
      %v2906 = vrot.slane %v2322, 1
      %v2907 = vsel %vm436, %v2905, %v2906
      %v2908 = vrot.slane %v2323, 1
      %v2909 = vsel %vm436, %v2906, %v2908
      %v2910 = vrot.slane %v2325, 1
      %v2911 = vrot.slane %v2326, 1
      %v2912 = vsel %vm436, %v2910, %v2911
      %v2913 = vrot.slane %v2327, 1
      %v2914 = vsel %vm436, %v2911, %v2913
      %v2915 = vrot.slane %v2329, 1
      %v2916 = vrot.slane %v2330, 1
      %v2917 = vsel %vm436, %v2915, %v2916
      %v2918 = vrot.slane %v2331, 1
      %v2919 = vsel %vm436, %v2916, %v2918
      %v2920 = vrot.slane %v2333, 1
      %v2921 = vrot.slane %v2334, 1
      %v2922 = vsel %vm436, %v2920, %v2921
      %v2923 = vrot.slane %v2335, 1
      %v2924 = vsel %vm436, %v2921, %v2923
      %v2925 = vrot.slane %v2337, 1
      %v2926 = vrot.slane %v2338, 1
      %v2927 = vsel %vm436, %v2925, %v2926
      %v2928 = vrot.slane %v2339, 1
      %v2929 = vsel %vm436, %v2926, %v2928
      %v2930 = vrot.slane %v2341, 1
      %v2931 = vrot.slane %v2342, 1
      %v2932 = vsel %vm436, %v2930, %v2931
      %v2933 = vrot.slane %v2343, 1
      %v2934 = vsel %vm436, %v2931, %v2933
      %v2935 = vrot.slane %v2345, 1
      %v2936 = vrot.slane %v2346, 1
      %v2937 = vsel %vm436, %v2935, %v2936
      %v2938 = vrot.slane %v2347, 1
      %v2939 = vsel %vm436, %v2936, %v2938
      %v2940 = vrot.slane %v2349, 1
      %v2941 = vrot.slane %v2350, 1
      %v2942 = vsel %vm436, %v2940, %v2941
      %v2943 = vrot.slane %v2351, 1
      %v2944 = vsel %vm436, %v2941, %v2943
      %v2945 = vrot.slane %v2353, 1
      %v2946 = vrot.slane %v2354, 1
      %v2947 = vsel %vm436, %v2945, %v2946
      %v2948 = vrot.slane %v2355, 1
      %v2949 = vsel %vm436, %v2946, %v2948
      %v2950 = vrot.slane %v2357, 1
      %v2951 = vrot.slane %v2358, 1
      %v2952 = vsel %vm436, %v2950, %v2951
      %v2953 = vrot.slane %v2359, 1
      %v2954 = vsel %vm436, %v2951, %v2953
      %v2955 = vrot.slane %v2361, 1
      %v2956 = vrot.slane %v2362, 1
      %v2957 = vsel %vm436, %v2955, %v2956
      %v2958 = vrot.slane %v2363, 1
      %v2959 = vsel %vm436, %v2956, %v2958
      %s2960 = scalar_lea.vmem %s3, 128
      %v2961 = vld [vmem:[%s2960] sm:$0xff]
      %v2962 = vld [vmem:[%s2960 + $0x8] sm:$0xff]
      %v2963 = vld [vmem:[%s2960 + $0x10] sm:$0xff]
      %v2964 = vld [vmem:[%s2960 + $0x18] sm:$0xff]
      %v2965 = vld [vmem:[%s2960 + $0x20] sm:$0xff]
      %v2966 = vld [vmem:[%s2960 + $0x28] sm:$0xff]
      %v2967 = vld [vmem:[%s2960 + $0x30] sm:$0xff]
      %v2968 = vld [vmem:[%s2960 + $0x38] sm:$0xff]
      %v2969 = vsel %vm2194, %v2882, 0
      %v2971 = vsel %vm2194, %v2884, 0
      %v2973 = vsel %vm2194, %v2887, 0
      %v2975 = vsel %vm2194, %v2889, 0
      %v2977 = vsel %vm2194, %v2892, 0
      %v2979 = vsel %vm2194, %v2894, 0
      %v2981 = vsel %vm2194, %v2897, 0
      %v2983 = vsel %vm2194, %v2899, 0
      %v2985 = vsel %vm2194, %v2902, 0
      %v2987 = vsel %vm2194, %v2904, 0
      %v2989 = vsel %vm2194, %v2907, 0
      %v2991 = vsel %vm2194, %v2909, 0
      %v2993 = vsel %vm2194, %v2912, 0
      %v2995 = vsel %vm2194, %v2914, 0
      %v2997 = vsel %vm2194, %v2917, 0
      %v2999 = vsel %vm2194, %v2919, 0
      %v3001 = vsel %vm2194, %v2922, 0
      %v3003 = vsel %vm2194, %v2924, 0
      %v3005 = vsel %vm2194, %v2927, 0
      %v3007 = vsel %vm2194, %v2929, 0
      %v3009 = vsel %vm2194, %v2932, 0
      %v3011 = vsel %vm2194, %v2934, 0
      %v3013 = vsel %vm2194, %v2937, 0
      %v3015 = vsel %vm2194, %v2939, 0
      %v3017 = vsel %vm2194, %v2942, 0
      %v3019 = vsel %vm2194, %v2944, 0
      %v3021 = vsel %vm2194, %v2947, 0
      %v3023 = vsel %vm2194, %v2949, 0
      %v3025 = vsel %vm2194, %v2952, 0
      %v3027 = vsel %vm2194, %v2954, 0
      %v3029 = vsel %vm2194, %v2957, 0
      %v3031 = vsel %vm2194, %v2959, 0
      %3033 = vmatpush.msra.mxu0 0.0
      %3034 = vmatpush.msra.mxu0 0.0
      %3035 = vmatpush.msra.mxu0 0.0
      %3036 = vmatpush.msra.mxu0 0.0
      %3037 = vmatpush.msra.mxu0 0.0
      %3038 = vmatpush.msra.mxu0 0.0
      %3039 = vmatpush.msra.mxu0 0.0
      %3040 = vmatpush.msra.mxu0 0.0
      %3041 = vmatpush.msra.mxu0 %v2968
      %3042 = vmatpush.msra.mxu0 %v2967
      %3043 = vmatpush.msra.mxu0 %v2966
      %3044 = vmatpush.msra.mxu0 %v2965
      %3045 = vmatpush.msra.mxu0 %v2964
      %3046 = vmatpush.msra.mxu0 %v2963
      %3047 = vmatpush.msra.mxu0 %v2962
      %3048 = vmatpush.msra.mxu0 %v2961
      %3049 = vmatmul.f32.gmra.mxu0 %v2969
      %v3050 = vpop.f32.mrf.mxu0
      %v3051 = vadd.f32 0.0, %v3050
      %3052 = vmatmul.f32.gmra.mxu0 %v2971
      %v3053 = vpop.f32.mrf.mxu0
      %v3054 = vadd.f32 0.0, %v3053
      %3055 = vmatmul.f32.gmra.mxu0 %v2973
      %v3056 = vpop.f32.mrf.mxu0
      %v3057 = vadd.f32 0.0, %v3056
      %3058 = vmatmul.f32.gmra.mxu0 %v2975
      %v3059 = vpop.f32.mrf.mxu0
      %v3060 = vadd.f32 0.0, %v3059
      %3061 = vmatmul.f32.gmra.mxu0 %v2977
      %v3062 = vpop.f32.mrf.mxu0
      %v3063 = vadd.f32 0.0, %v3062
      %3064 = vmatmul.f32.gmra.mxu0 %v2979
      %v3065 = vpop.f32.mrf.mxu0
      %v3066 = vadd.f32 0.0, %v3065
      %3067 = vmatmul.f32.gmra.mxu0 %v2981
      %v3068 = vpop.f32.mrf.mxu0
      %v3069 = vadd.f32 0.0, %v3068
      %3070 = vmatmul.f32.gmra.mxu0 %v2983
      %v3071 = vpop.f32.mrf.mxu0
      %v3072 = vadd.f32 0.0, %v3071
      %3073 = vmatmul.f32.gmra.mxu0 %v2985
      %v3074 = vpop.f32.mrf.mxu0
      %v3075 = vadd.f32 0.0, %v3074
      %3076 = vmatmul.f32.gmra.mxu0 %v2987
      %v3077 = vpop.f32.mrf.mxu0
      %v3078 = vadd.f32 0.0, %v3077
      %3079 = vmatmul.f32.gmra.mxu0 %v2989
      %v3080 = vpop.f32.mrf.mxu0
      %v3081 = vadd.f32 0.0, %v3080
      %3082 = vmatmul.f32.gmra.mxu0 %v2991
      %v3083 = vpop.f32.mrf.mxu0
      %v3084 = vadd.f32 0.0, %v3083
      %3085 = vmatmul.f32.gmra.mxu0 %v2993
      %v3086 = vpop.f32.mrf.mxu0
      %v3087 = vadd.f32 0.0, %v3086
      %3088 = vmatmul.f32.gmra.mxu0 %v2995
      %v3089 = vpop.f32.mrf.mxu0
      %v3090 = vadd.f32 0.0, %v3089
      %3091 = vmatmul.f32.gmra.mxu0 %v2997
      %v3092 = vpop.f32.mrf.mxu0
      %v3093 = vadd.f32 0.0, %v3092
      %3094 = vmatmul.f32.gmra.mxu0 %v2999
      %v3095 = vpop.f32.mrf.mxu0
      %v3096 = vadd.f32 0.0, %v3095
      %3097 = vmatmul.f32.gmra.mxu0 %v3001
      %v3098 = vpop.f32.mrf.mxu0
      %v3099 = vadd.f32 0.0, %v3098
      %3100 = vmatmul.f32.gmra.mxu0 %v3003
      %v3101 = vpop.f32.mrf.mxu0
      %v3102 = vadd.f32 0.0, %v3101
      %3103 = vmatmul.f32.gmra.mxu0 %v3005
      %v3104 = vpop.f32.mrf.mxu0
      %v3105 = vadd.f32 0.0, %v3104
      %3106 = vmatmul.f32.gmra.mxu0 %v3007
      %v3107 = vpop.f32.mrf.mxu0
      %v3108 = vadd.f32 0.0, %v3107
      %3109 = vmatmul.f32.gmra.mxu0 %v3009
      %v3110 = vpop.f32.mrf.mxu0
      %v3111 = vadd.f32 0.0, %v3110
      %3112 = vmatmul.f32.gmra.mxu0 %v3011
      %v3113 = vpop.f32.mrf.mxu0
      %v3114 = vadd.f32 0.0, %v3113
      %3115 = vmatmul.f32.gmra.mxu0 %v3013
      %v3116 = vpop.f32.mrf.mxu0
      %v3117 = vadd.f32 0.0, %v3116
      %3118 = vmatmul.f32.gmra.mxu0 %v3015
      %v3119 = vpop.f32.mrf.mxu0
      %v3120 = vadd.f32 0.0, %v3119
      %3121 = vmatmul.f32.gmra.mxu0 %v3017
      %v3122 = vpop.f32.mrf.mxu0
      %v3123 = vadd.f32 0.0, %v3122
      %3124 = vmatmul.f32.gmra.mxu0 %v3019
      %v3125 = vpop.f32.mrf.mxu0
      %v3126 = vadd.f32 0.0, %v3125
      %3127 = vmatmul.f32.gmra.mxu0 %v3021
      %v3128 = vpop.f32.mrf.mxu0
      %v3129 = vadd.f32 0.0, %v3128
      %3130 = vmatmul.f32.gmra.mxu0 %v3023
      %v3131 = vpop.f32.mrf.mxu0
      %v3132 = vadd.f32 0.0, %v3131
      %3133 = vmatmul.f32.gmra.mxu0 %v3025
      %v3134 = vpop.f32.mrf.mxu0
      %v3135 = vadd.f32 0.0, %v3134
      %3136 = vmatmul.f32.gmra.mxu0 %v3027
      %v3137 = vpop.f32.mrf.mxu0
      %v3138 = vadd.f32 0.0, %v3137
      %3139 = vmatmul.f32.gmra.mxu0 %v3029
      %v3140 = vpop.f32.mrf.mxu0
      %v3141 = vadd.f32 0.0, %v3140
      %3142 = vmatmul.f32.gmra.mxu0 %v3031
      %v3143 = vpop.f32.mrf.mxu0
      %v3144 = vadd.f32 0.0, %v3143
      %3145 = vdwg.mxu0
      %v3146 = vadd.f32 %v2769, %v3051
      %v3147 = vadd.f32 %v2772, %v3054
      %v3148 = vadd.f32 %v2775, %v3057
      %v3149 = vadd.f32 %v2778, %v3060
      %v3150 = vadd.f32 %v2781, %v3063
      %v3151 = vadd.f32 %v2784, %v3066
      %v3152 = vadd.f32 %v2787, %v3069
      %v3153 = vadd.f32 %v2790, %v3072
      %v3154 = vadd.f32 %v2793, %v3075
      %v3155 = vadd.f32 %v2796, %v3078
      %v3156 = vadd.f32 %v2799, %v3081
      %v3157 = vadd.f32 %v2802, %v3084
      %v3158 = vadd.f32 %v2805, %v3087
      %v3159 = vadd.f32 %v2808, %v3090
      %v3160 = vadd.f32 %v2811, %v3093
      %v3161 = vadd.f32 %v2814, %v3096
      %v3162 = vadd.f32 %v2817, %v3099
      %v3163 = vadd.f32 %v2820, %v3102
      %v3164 = vadd.f32 %v2823, %v3105
      %v3165 = vadd.f32 %v2826, %v3108
      %v3166 = vadd.f32 %v2829, %v3111
      %v3167 = vadd.f32 %v2832, %v3114
      %v3168 = vadd.f32 %v2835, %v3117
      %v3169 = vadd.f32 %v2838, %v3120
      %v3170 = vadd.f32 %v2841, %v3123
      %v3171 = vadd.f32 %v2844, %v3126
      %v3172 = vadd.f32 %v2847, %v3129
      %v3173 = vadd.f32 %v2850, %v3132
      %v3174 = vadd.f32 %v2853, %v3135
      %v3175 = vadd.f32 %v2856, %v3138
      %v3176 = vadd.f32 %v2859, %v3141
      %v3177 = vadd.f32 %v2862, %v3144
      %v3178 = vld [vmem:[%s2267] sm:$0xff]
      %v3179 = vld [vmem:[%s2267 + $0x8] sm:$0xff]
      %v3180 = vld [vmem:[%s2267 + $0x10] sm:$0xff]
      %v3181 = vld [vmem:[%s2267 + $0x18] sm:$0xff]
      %v3182 = vld [vmem:[%s2267 + $0x20] sm:$0xff]
      %v3183 = vld [vmem:[%s2267 + $0x28] sm:$0xff]
      %v3184 = vld [vmem:[%s2267 + $0x30] sm:$0xff]
      %v3185 = vld [vmem:[%s2267 + $0x38] sm:$0xff]
      %v3186 = vld [vmem:[%s2267 + $0x40] sm:$0xff]
      %v3187 = vld [vmem:[%s2267 + $0x48] sm:$0xff]
      %v3188 = vld [vmem:[%s2267 + $0x50] sm:$0xff]
      %v3189 = vld [vmem:[%s2267 + $0x58] sm:$0xff]
      %v3190 = vld [vmem:[%s2267 + $0x60] sm:$0xff]
      %v3191 = vld [vmem:[%s2267 + $0x68] sm:$0xff]
      %v3192 = vld [vmem:[%s2267 + $0x70] sm:$0xff]
      %v3193 = vld [vmem:[%s2267 + $0x78] sm:$0xff]
      %v3194 = vld [vmem:[%s2267 + $0x80] sm:$0xff]
      %v3195 = vld [vmem:[%s2267 + $0x88] sm:$0xff]
      %v3196 = vld [vmem:[%s2267 + $0x90] sm:$0xff]
      %v3197 = vld [vmem:[%s2267 + $0x98] sm:$0xff]
      %v3198 = vld [vmem:[%s2267 + $0xa0] sm:$0xff]
      %v3199 = vld [vmem:[%s2267 + $0xa8] sm:$0xff]
      %v3200 = vld [vmem:[%s2267 + $0xb0] sm:$0xff]
      %v3201 = vld [vmem:[%s2267 + $0xb8] sm:$0xff]
      %v3202 = vld [vmem:[%s2267 + $0xc0] sm:$0xff]
      %v3203 = vld [vmem:[%s2267 + $0xc8] sm:$0xff]
      %v3204 = vld [vmem:[%s2267 + $0xd0] sm:$0xff]
      %v3205 = vld [vmem:[%s2267 + $0xd8] sm:$0xff]
      %v3206 = vld [vmem:[%s2267 + $0xe0] sm:$0xff]
      %v3207 = vld [vmem:[%s2267 + $0xe8] sm:$0xff]
      %v3208 = vld [vmem:[%s2267 + $0xf0] sm:$0xff]
      %v3209 = vld [vmem:[%s2267 + $0xf8] sm:$0xff]
      %v3210 = vld [vmem:[%s2267 + $0x100] sm:$0xff]
      %v3211 = vld [vmem:[%s2267 + $0x108] sm:$0xff]
      %v3212 = vld [vmem:[%s2267 + $0x110] sm:$0xff]
      %v3213 = vld [vmem:[%s2267 + $0x118] sm:$0xff]
      %v3214 = vld [vmem:[%s2267 + $0x120] sm:$0xff]
      %v3215 = vld [vmem:[%s2267 + $0x128] sm:$0xff]
      %v3216 = vld [vmem:[%s2267 + $0x130] sm:$0xff]
      %v3217 = vld [vmem:[%s2267 + $0x138] sm:$0xff]
      %v3218 = vld [vmem:[%s2267 + $0x140] sm:$0xff]
      %v3219 = vld [vmem:[%s2267 + $0x148] sm:$0xff]
      %v3220 = vld [vmem:[%s2267 + $0x150] sm:$0xff]
      %v3221 = vld [vmem:[%s2267 + $0x158] sm:$0xff]
      %v3222 = vld [vmem:[%s2267 + $0x160] sm:$0xff]
      %v3223 = vld [vmem:[%s2267 + $0x168] sm:$0xff]
      %v3224 = vld [vmem:[%s2267 + $0x170] sm:$0xff]
      %v3225 = vld [vmem:[%s2267 + $0x178] sm:$0xff]
      %v3226 = vld [vmem:[%s2267 + $0x180] sm:$0xff]
      %v3227 = vld [vmem:[%s2267 + $0x188] sm:$0xff]
      %v3228 = vld [vmem:[%s2267 + $0x190] sm:$0xff]
      %v3229 = vld [vmem:[%s2267 + $0x198] sm:$0xff]
      %v3230 = vld [vmem:[%s2267 + $0x1a0] sm:$0xff]
      %v3231 = vld [vmem:[%s2267 + $0x1a8] sm:$0xff]
      %v3232 = vld [vmem:[%s2267 + $0x1b0] sm:$0xff]
      %v3233 = vld [vmem:[%s2267 + $0x1b8] sm:$0xff]
      %v3234 = vld [vmem:[%s2267 + $0x1c0] sm:$0xff]
      %v3235 = vld [vmem:[%s2267 + $0x1c8] sm:$0xff]
      %v3236 = vld [vmem:[%s2267 + $0x1d0] sm:$0xff]
      %v3237 = vld [vmem:[%s2267 + $0x1d8] sm:$0xff]
      %v3238 = vld [vmem:[%s2267 + $0x1e0] sm:$0xff]
      %v3239 = vld [vmem:[%s2267 + $0x1e8] sm:$0xff]
      %v3240 = vld [vmem:[%s2267 + $0x1f0] sm:$0xff]
      %v3241 = vld [vmem:[%s2267 + $0x1f8] sm:$0xff]
      %v3290 = vrot.slane %v3178, 7
      %v3291 = vrot.slane %v3179, 7
      %v3292 = vsel %vm2412, %v3290, %v3291
      %v3293 = vrot.slane %v3180, 7
      %v3294 = vsel %vm2412, %v3291, %v3293
      %v3295 = vrot.slane %v3182, 7
      %v3296 = vrot.slane %v3183, 7
      %v3297 = vsel %vm2412, %v3295, %v3296
      %v3298 = vrot.slane %v3184, 7
      %v3299 = vsel %vm2412, %v3296, %v3298
      %v3300 = vrot.slane %v3186, 7
      %v3301 = vrot.slane %v3187, 7
      %v3302 = vsel %vm2412, %v3300, %v3301
      %v3303 = vrot.slane %v3188, 7
      %v3304 = vsel %vm2412, %v3301, %v3303
      %v3305 = vrot.slane %v3190, 7
      %v3306 = vrot.slane %v3191, 7
      %v3307 = vsel %vm2412, %v3305, %v3306
      %v3308 = vrot.slane %v3192, 7
      %v3309 = vsel %vm2412, %v3306, %v3308
      %v3310 = vrot.slane %v3194, 7
      %v3311 = vrot.slane %v3195, 7
      %v3312 = vsel %vm2412, %v3310, %v3311
      %v3313 = vrot.slane %v3196, 7
      %v3314 = vsel %vm2412, %v3311, %v3313
      %v3315 = vrot.slane %v3198, 7
      %v3316 = vrot.slane %v3199, 7
      %v3317 = vsel %vm2412, %v3315, %v3316
      %v3318 = vrot.slane %v3200, 7
      %v3319 = vsel %vm2412, %v3316, %v3318
      %v3320 = vrot.slane %v3202, 7
      %v3321 = vrot.slane %v3203, 7
      %v3322 = vsel %vm2412, %v3320, %v3321
      %v3323 = vrot.slane %v3204, 7
      %v3324 = vsel %vm2412, %v3321, %v3323
      %v3325 = vrot.slane %v3206, 7
      %v3326 = vrot.slane %v3207, 7
      %v3327 = vsel %vm2412, %v3325, %v3326
      %v3328 = vrot.slane %v3208, 7
      %v3329 = vsel %vm2412, %v3326, %v3328
      %v3330 = vrot.slane %v3210, 7
      %v3331 = vrot.slane %v3211, 7
      %v3332 = vsel %vm2412, %v3330, %v3331
      %v3333 = vrot.slane %v3212, 7
      %v3334 = vsel %vm2412, %v3331, %v3333
      %v3335 = vrot.slane %v3214, 7
      %v3336 = vrot.slane %v3215, 7
      %v3337 = vsel %vm2412, %v3335, %v3336
      %v3338 = vrot.slane %v3216, 7
      %v3339 = vsel %vm2412, %v3336, %v3338
      %v3340 = vrot.slane %v3218, 7
      %v3341 = vrot.slane %v3219, 7
      %v3342 = vsel %vm2412, %v3340, %v3341
      %v3343 = vrot.slane %v3220, 7
      %v3344 = vsel %vm2412, %v3341, %v3343
      %v3345 = vrot.slane %v3222, 7
      %v3346 = vrot.slane %v3223, 7
      %v3347 = vsel %vm2412, %v3345, %v3346
      %v3348 = vrot.slane %v3224, 7
      %v3349 = vsel %vm2412, %v3346, %v3348
      %v3350 = vrot.slane %v3226, 7
      %v3351 = vrot.slane %v3227, 7
      %v3352 = vsel %vm2412, %v3350, %v3351
      %v3353 = vrot.slane %v3228, 7
      %v3354 = vsel %vm2412, %v3351, %v3353
      %v3355 = vrot.slane %v3230, 7
      %v3356 = vrot.slane %v3231, 7
      %v3357 = vsel %vm2412, %v3355, %v3356
      %v3358 = vrot.slane %v3232, 7
      %v3359 = vsel %vm2412, %v3356, %v3358
      %v3360 = vrot.slane %v3234, 7
      %v3361 = vrot.slane %v3235, 7
      %v3362 = vsel %vm2412, %v3360, %v3361
      %v3363 = vrot.slane %v3236, 7
      %v3364 = vsel %vm2412, %v3361, %v3363
      %v3365 = vrot.slane %v3238, 7
      %v3366 = vrot.slane %v3239, 7
      %v3367 = vsel %vm2412, %v3365, %v3366
      %v3368 = vrot.slane %v3240, 7
      %v3369 = vsel %vm2412, %v3366, %v3368
      %s3370 = scalar_lea.vmem %s3, 192
      %v3371 = vld [vmem:[%s3370] sm:$0xff]
      %v3372 = vld [vmem:[%s3370 + $0x8] sm:$0xff]
      %v3373 = vld [vmem:[%s3370 + $0x10] sm:$0xff]
      %v3374 = vld [vmem:[%s3370 + $0x18] sm:$0xff]
      %v3375 = vld [vmem:[%s3370 + $0x20] sm:$0xff]
      %v3376 = vld [vmem:[%s3370 + $0x28] sm:$0xff]
      %v3377 = vld [vmem:[%s3370 + $0x30] sm:$0xff]
      %v3378 = vld [vmem:[%s3370 + $0x38] sm:$0xff]
      %v3379 = vsel %vm2194, %v3292, 0
      %v3381 = vsel %vm2194, %v3294, 0
      %v3383 = vsel %vm2194, %v3297, 0
      %v3385 = vsel %vm2194, %v3299, 0
      %v3387 = vsel %vm2194, %v3302, 0
      %v3389 = vsel %vm2194, %v3304, 0
      %v3391 = vsel %vm2194, %v3307, 0
      %v3393 = vsel %vm2194, %v3309, 0
      %v3395 = vsel %vm2194, %v3312, 0
      %v3397 = vsel %vm2194, %v3314, 0
      %v3399 = vsel %vm2194, %v3317, 0
      %v3401 = vsel %vm2194, %v3319, 0
      %v3403 = vsel %vm2194, %v3322, 0
      %v3405 = vsel %vm2194, %v3324, 0
      %v3407 = vsel %vm2194, %v3327, 0
      %v3409 = vsel %vm2194, %v3329, 0
      %v3411 = vsel %vm2194, %v3332, 0
      %v3413 = vsel %vm2194, %v3334, 0
      %v3415 = vsel %vm2194, %v3337, 0
      %v3417 = vsel %vm2194, %v3339, 0
      %v3419 = vsel %vm2194, %v3342, 0
      %v3421 = vsel %vm2194, %v3344, 0
      %v3423 = vsel %vm2194, %v3347, 0
      %v3425 = vsel %vm2194, %v3349, 0
      %v3427 = vsel %vm2194, %v3352, 0
      %v3429 = vsel %vm2194, %v3354, 0
      %v3431 = vsel %vm2194, %v3357, 0
      %v3433 = vsel %vm2194, %v3359, 0
      %v3435 = vsel %vm2194, %v3362, 0
      %v3437 = vsel %vm2194, %v3364, 0
      %v3439 = vsel %vm2194, %v3367, 0
      %v3441 = vsel %vm2194, %v3369, 0
      %3443 = vmatpush.msra.mxu0 0.0
      %3444 = vmatpush.msra.mxu0 0.0
      %3445 = vmatpush.msra.mxu0 0.0
      %3446 = vmatpush.msra.mxu0 0.0
      %3447 = vmatpush.msra.mxu0 0.0
      %3448 = vmatpush.msra.mxu0 0.0
      %3449 = vmatpush.msra.mxu0 0.0
      %3450 = vmatpush.msra.mxu0 0.0
      %3451 = vmatpush.msra.mxu0 %v3378
      %3452 = vmatpush.msra.mxu0 %v3377
      %3453 = vmatpush.msra.mxu0 %v3376
      %3454 = vmatpush.msra.mxu0 %v3375
      %3455 = vmatpush.msra.mxu0 %v3374
      %3456 = vmatpush.msra.mxu0 %v3373
      %3457 = vmatpush.msra.mxu0 %v3372
      %3458 = vmatpush.msra.mxu0 %v3371
      %3459 = vmatmul.f32.gmra.mxu0 %v3379
      %v3460 = vpop.f32.mrf.mxu0
      %v3461 = vadd.f32 0.0, %v3460
      %3462 = vmatmul.f32.gmra.mxu0 %v3381
      %v3463 = vpop.f32.mrf.mxu0
      %v3464 = vadd.f32 0.0, %v3463
      %3465 = vmatmul.f32.gmra.mxu0 %v3383
      %v3466 = vpop.f32.mrf.mxu0
      %v3467 = vadd.f32 0.0, %v3466
      %3468 = vmatmul.f32.gmra.mxu0 %v3385
      %v3469 = vpop.f32.mrf.mxu0
      %v3470 = vadd.f32 0.0, %v3469
      %3471 = vmatmul.f32.gmra.mxu0 %v3387
      %v3472 = vpop.f32.mrf.mxu0
      %v3473 = vadd.f32 0.0, %v3472
      %3474 = vmatmul.f32.gmra.mxu0 %v3389
      %v3475 = vpop.f32.mrf.mxu0
      %v3476 = vadd.f32 0.0, %v3475
      %3477 = vmatmul.f32.gmra.mxu0 %v3391
      %v3478 = vpop.f32.mrf.mxu0
      %v3479 = vadd.f32 0.0, %v3478
      %3480 = vmatmul.f32.gmra.mxu0 %v3393
      %v3481 = vpop.f32.mrf.mxu0
      %v3482 = vadd.f32 0.0, %v3481
      %3483 = vmatmul.f32.gmra.mxu0 %v3395
      %v3484 = vpop.f32.mrf.mxu0
      %v3485 = vadd.f32 0.0, %v3484
      %3486 = vmatmul.f32.gmra.mxu0 %v3397
      %v3487 = vpop.f32.mrf.mxu0
      %v3488 = vadd.f32 0.0, %v3487
      %3489 = vmatmul.f32.gmra.mxu0 %v3399
      %v3490 = vpop.f32.mrf.mxu0
      %v3491 = vadd.f32 0.0, %v3490
      %3492 = vmatmul.f32.gmra.mxu0 %v3401
      %v3493 = vpop.f32.mrf.mxu0
      %v3494 = vadd.f32 0.0, %v3493
      %3495 = vmatmul.f32.gmra.mxu0 %v3403
      %v3496 = vpop.f32.mrf.mxu0
      %v3497 = vadd.f32 0.0, %v3496
      %3498 = vmatmul.f32.gmra.mxu0 %v3405
      %v3499 = vpop.f32.mrf.mxu0
      %v3500 = vadd.f32 0.0, %v3499
      %3501 = vmatmul.f32.gmra.mxu0 %v3407
      %v3502 = vpop.f32.mrf.mxu0
      %v3503 = vadd.f32 0.0, %v3502
      %3504 = vmatmul.f32.gmra.mxu0 %v3409
      %v3505 = vpop.f32.mrf.mxu0
      %v3506 = vadd.f32 0.0, %v3505
      %3507 = vmatmul.f32.gmra.mxu0 %v3411
      %v3508 = vpop.f32.mrf.mxu0
      %v3509 = vadd.f32 0.0, %v3508
      %3510 = vmatmul.f32.gmra.mxu0 %v3413
      %v3511 = vpop.f32.mrf.mxu0
      %v3512 = vadd.f32 0.0, %v3511
      %3513 = vmatmul.f32.gmra.mxu0 %v3415
      %v3514 = vpop.f32.mrf.mxu0
      %v3515 = vadd.f32 0.0, %v3514
      %3516 = vmatmul.f32.gmra.mxu0 %v3417
      %v3517 = vpop.f32.mrf.mxu0
      %v3518 = vadd.f32 0.0, %v3517
      %3519 = vmatmul.f32.gmra.mxu0 %v3419
      %v3520 = vpop.f32.mrf.mxu0
      %v3521 = vadd.f32 0.0, %v3520
      %3522 = vmatmul.f32.gmra.mxu0 %v3421
      %v3523 = vpop.f32.mrf.mxu0
      %v3524 = vadd.f32 0.0, %v3523
      %3525 = vmatmul.f32.gmra.mxu0 %v3423
      %v3526 = vpop.f32.mrf.mxu0
      %v3527 = vadd.f32 0.0, %v3526
      %3528 = vmatmul.f32.gmra.mxu0 %v3425
      %v3529 = vpop.f32.mrf.mxu0
      %v3530 = vadd.f32 0.0, %v3529
      %3531 = vmatmul.f32.gmra.mxu0 %v3427
      %v3532 = vpop.f32.mrf.mxu0
      %v3533 = vadd.f32 0.0, %v3532
      %3534 = vmatmul.f32.gmra.mxu0 %v3429
      %v3535 = vpop.f32.mrf.mxu0
      %v3536 = vadd.f32 0.0, %v3535
      %3537 = vmatmul.f32.gmra.mxu0 %v3431
      %v3538 = vpop.f32.mrf.mxu0
      %v3539 = vadd.f32 0.0, %v3538
      %3540 = vmatmul.f32.gmra.mxu0 %v3433
      %v3541 = vpop.f32.mrf.mxu0
      %v3542 = vadd.f32 0.0, %v3541
      %3543 = vmatmul.f32.gmra.mxu0 %v3435
      %v3544 = vpop.f32.mrf.mxu0
      %v3545 = vadd.f32 0.0, %v3544
      %3546 = vmatmul.f32.gmra.mxu0 %v3437
      %v3547 = vpop.f32.mrf.mxu0
      %v3548 = vadd.f32 0.0, %v3547
      %3549 = vmatmul.f32.gmra.mxu0 %v3439
      %v3550 = vpop.f32.mrf.mxu0
      %v3551 = vadd.f32 0.0, %v3550
      %3552 = vmatmul.f32.gmra.mxu0 %v3441
      %v3553 = vpop.f32.mrf.mxu0
      %v3554 = vadd.f32 0.0, %v3553
      %3555 = vdwg.mxu0
      %v3556 = vadd.f32 %v3146, %v3461
      %v3557 = vadd.f32 %v3147, %v3464
      %v3558 = vadd.f32 %v3148, %v3467
      %v3559 = vadd.f32 %v3149, %v3470
      %v3560 = vadd.f32 %v3150, %v3473
      %v3561 = vadd.f32 %v3151, %v3476
      %v3562 = vadd.f32 %v3152, %v3479
      %v3563 = vadd.f32 %v3153, %v3482
      %v3564 = vadd.f32 %v3154, %v3485
      %v3565 = vadd.f32 %v3155, %v3488
      %v3566 = vadd.f32 %v3156, %v3491
      %v3567 = vadd.f32 %v3157, %v3494
      %v3568 = vadd.f32 %v3158, %v3497
      %v3569 = vadd.f32 %v3159, %v3500
      %v3570 = vadd.f32 %v3160, %v3503
      %v3571 = vadd.f32 %v3161, %v3506
      %v3572 = vadd.f32 %v3162, %v3509
      %v3573 = vadd.f32 %v3163, %v3512
      %v3574 = vadd.f32 %v3164, %v3515
      %v3575 = vadd.f32 %v3165, %v3518
      %v3576 = vadd.f32 %v3166, %v3521
      %v3577 = vadd.f32 %v3167, %v3524
      %v3578 = vadd.f32 %v3168, %v3527
      %v3579 = vadd.f32 %v3169, %v3530
      %v3580 = vadd.f32 %v3170, %v3533
      %v3581 = vadd.f32 %v3171, %v3536
      %v3582 = vadd.f32 %v3172, %v3539
      %v3583 = vadd.f32 %v3173, %v3542
      %v3584 = vadd.f32 %v3174, %v3545
      %v3585 = vadd.f32 %v3175, %v3548
      %v3586 = vadd.f32 %v3176, %v3551
      %v3587 = vadd.f32 %v3177, %v3554
      %s3588 = scalar_lea.vmem %s3, 256
      %v3589 = vld [vmem:[%s3588] sm:$0xff]
      %v3590 = vld [vmem:[%s3588 + $0x8] sm:$0xff]
      %v3591 = vld [vmem:[%s3588 + $0x10] sm:$0xff]
      %v3592 = vld [vmem:[%s3588 + $0x18] sm:$0xff]
      %v3593 = vld [vmem:[%s3588 + $0x20] sm:$0xff]
      %v3594 = vld [vmem:[%s3588 + $0x28] sm:$0xff]
      %v3595 = vld [vmem:[%s3588 + $0x30] sm:$0xff]
      %v3596 = vld [vmem:[%s3588 + $0x38] sm:$0xff]
      %v3597 = vsel %vm2194, %v3179, 0
      %v3599 = vsel %vm2194, %v3180, 0
      %v3601 = vsel %vm2194, %v3183, 0
      %v3603 = vsel %vm2194, %v3184, 0
      %v3605 = vsel %vm2194, %v3187, 0
      %v3607 = vsel %vm2194, %v3188, 0
      %v3609 = vsel %vm2194, %v3191, 0
      %v3611 = vsel %vm2194, %v3192, 0
      %v3613 = vsel %vm2194, %v3195, 0
      %v3615 = vsel %vm2194, %v3196, 0
      %v3617 = vsel %vm2194, %v3199, 0
      %v3619 = vsel %vm2194, %v3200, 0
      %v3621 = vsel %vm2194, %v3203, 0
      %v3623 = vsel %vm2194, %v3204, 0
      %v3625 = vsel %vm2194, %v3207, 0
      %v3627 = vsel %vm2194, %v3208, 0
      %v3629 = vsel %vm2194, %v3211, 0
      %v3631 = vsel %vm2194, %v3212, 0
      %v3633 = vsel %vm2194, %v3215, 0
      %v3635 = vsel %vm2194, %v3216, 0
      %v3637 = vsel %vm2194, %v3219, 0
      %v3639 = vsel %vm2194, %v3220, 0
      %v3641 = vsel %vm2194, %v3223, 0
      %v3643 = vsel %vm2194, %v3224, 0
      %v3645 = vsel %vm2194, %v3227, 0
      %v3647 = vsel %vm2194, %v3228, 0
      %v3649 = vsel %vm2194, %v3231, 0
      %v3651 = vsel %vm2194, %v3232, 0
      %v3653 = vsel %vm2194, %v3235, 0
      %v3655 = vsel %vm2194, %v3236, 0
      %v3657 = vsel %vm2194, %v3239, 0
      %v3659 = vsel %vm2194, %v3240, 0
      %3661 = vmatpush.msra.mxu0 0.0
      %3662 = vmatpush.msra.mxu0 0.0
      %3663 = vmatpush.msra.mxu0 0.0
      %3664 = vmatpush.msra.mxu0 0.0
      %3665 = vmatpush.msra.mxu0 0.0
      %3666 = vmatpush.msra.mxu0 0.0
      %3667 = vmatpush.msra.mxu0 0.0
      %3668 = vmatpush.msra.mxu0 0.0
      %3669 = vmatpush.msra.mxu0 %v3596
      %3670 = vmatpush.msra.mxu0 %v3595
      %3671 = vmatpush.msra.mxu0 %v3594
      %3672 = vmatpush.msra.mxu0 %v3593
      %3673 = vmatpush.msra.mxu0 %v3592
      %3674 = vmatpush.msra.mxu0 %v3591
      %3675 = vmatpush.msra.mxu0 %v3590
      %3676 = vmatpush.msra.mxu0 %v3589
      %3677 = vmatmul.f32.gmra.mxu0 %v3597
      %v3678 = vpop.f32.mrf.mxu0
      %v3679 = vadd.f32 0.0, %v3678
      %3680 = vmatmul.f32.gmra.mxu0 %v3599
      %v3681 = vpop.f32.mrf.mxu0
      %v3682 = vadd.f32 0.0, %v3681
      %3683 = vmatmul.f32.gmra.mxu0 %v3601
      %v3684 = vpop.f32.mrf.mxu0
      %v3685 = vadd.f32 0.0, %v3684
      %3686 = vmatmul.f32.gmra.mxu0 %v3603
      %v3687 = vpop.f32.mrf.mxu0
      %v3688 = vadd.f32 0.0, %v3687
      %3689 = vmatmul.f32.gmra.mxu0 %v3605
      %v3690 = vpop.f32.mrf.mxu0
      %v3691 = vadd.f32 0.0, %v3690
      %3692 = vmatmul.f32.gmra.mxu0 %v3607
      %v3693 = vpop.f32.mrf.mxu0
      %v3694 = vadd.f32 0.0, %v3693
      %3695 = vmatmul.f32.gmra.mxu0 %v3609
      %v3696 = vpop.f32.mrf.mxu0
      %v3697 = vadd.f32 0.0, %v3696
      %3698 = vmatmul.f32.gmra.mxu0 %v3611
      %v3699 = vpop.f32.mrf.mxu0
      %v3700 = vadd.f32 0.0, %v3699
      %3701 = vmatmul.f32.gmra.mxu0 %v3613
      %v3702 = vpop.f32.mrf.mxu0
      %v3703 = vadd.f32 0.0, %v3702
      %3704 = vmatmul.f32.gmra.mxu0 %v3615
      %v3705 = vpop.f32.mrf.mxu0
      %v3706 = vadd.f32 0.0, %v3705
      %3707 = vmatmul.f32.gmra.mxu0 %v3617
      %v3708 = vpop.f32.mrf.mxu0
      %v3709 = vadd.f32 0.0, %v3708
      %3710 = vmatmul.f32.gmra.mxu0 %v3619
      %v3711 = vpop.f32.mrf.mxu0
      %v3712 = vadd.f32 0.0, %v3711
      %3713 = vmatmul.f32.gmra.mxu0 %v3621
      %v3714 = vpop.f32.mrf.mxu0
      %v3715 = vadd.f32 0.0, %v3714
      %3716 = vmatmul.f32.gmra.mxu0 %v3623
      %v3717 = vpop.f32.mrf.mxu0
      %v3718 = vadd.f32 0.0, %v3717
      %3719 = vmatmul.f32.gmra.mxu0 %v3625
      %v3720 = vpop.f32.mrf.mxu0
      %v3721 = vadd.f32 0.0, %v3720
      %3722 = vmatmul.f32.gmra.mxu0 %v3627
      %v3723 = vpop.f32.mrf.mxu0
      %v3724 = vadd.f32 0.0, %v3723
      %3725 = vmatmul.f32.gmra.mxu0 %v3629
      %v3726 = vpop.f32.mrf.mxu0
      %v3727 = vadd.f32 0.0, %v3726
      %3728 = vmatmul.f32.gmra.mxu0 %v3631
      %v3729 = vpop.f32.mrf.mxu0
      %v3730 = vadd.f32 0.0, %v3729
      %3731 = vmatmul.f32.gmra.mxu0 %v3633
      %v3732 = vpop.f32.mrf.mxu0
      %v3733 = vadd.f32 0.0, %v3732
      %3734 = vmatmul.f32.gmra.mxu0 %v3635
      %v3735 = vpop.f32.mrf.mxu0
      %v3736 = vadd.f32 0.0, %v3735
      %3737 = vmatmul.f32.gmra.mxu0 %v3637
      %v3738 = vpop.f32.mrf.mxu0
      %v3739 = vadd.f32 0.0, %v3738
      %3740 = vmatmul.f32.gmra.mxu0 %v3639
      %v3741 = vpop.f32.mrf.mxu0
      %v3742 = vadd.f32 0.0, %v3741
      %3743 = vmatmul.f32.gmra.mxu0 %v3641
      %v3744 = vpop.f32.mrf.mxu0
      %v3745 = vadd.f32 0.0, %v3744
      %3746 = vmatmul.f32.gmra.mxu0 %v3643
      %v3747 = vpop.f32.mrf.mxu0
      %v3748 = vadd.f32 0.0, %v3747
      %3749 = vmatmul.f32.gmra.mxu0 %v3645
      %v3750 = vpop.f32.mrf.mxu0
      %v3751 = vadd.f32 0.0, %v3750
      %3752 = vmatmul.f32.gmra.mxu0 %v3647
      %v3753 = vpop.f32.mrf.mxu0
      %v3754 = vadd.f32 0.0, %v3753
      %3755 = vmatmul.f32.gmra.mxu0 %v3649
      %v3756 = vpop.f32.mrf.mxu0
      %v3757 = vadd.f32 0.0, %v3756
      %3758 = vmatmul.f32.gmra.mxu0 %v3651
      %v3759 = vpop.f32.mrf.mxu0
      %v3760 = vadd.f32 0.0, %v3759
      %3761 = vmatmul.f32.gmra.mxu0 %v3653
      %v3762 = vpop.f32.mrf.mxu0
      %v3763 = vadd.f32 0.0, %v3762
      %3764 = vmatmul.f32.gmra.mxu0 %v3655
      %v3765 = vpop.f32.mrf.mxu0
      %v3766 = vadd.f32 0.0, %v3765
      %3767 = vmatmul.f32.gmra.mxu0 %v3657
      %v3768 = vpop.f32.mrf.mxu0
      %v3769 = vadd.f32 0.0, %v3768
      %3770 = vmatmul.f32.gmra.mxu0 %v3659
      %v3771 = vpop.f32.mrf.mxu0
      %v3772 = vadd.f32 0.0, %v3771
      %3773 = vdwg.mxu0
      %v3774 = vadd.f32 %v3556, %v3679
      %v3775 = vadd.f32 %v3557, %v3682
      %v3776 = vadd.f32 %v3558, %v3685
      %v3777 = vadd.f32 %v3559, %v3688
      %v3778 = vadd.f32 %v3560, %v3691
      %v3779 = vadd.f32 %v3561, %v3694
      %v3780 = vadd.f32 %v3562, %v3697
      %v3781 = vadd.f32 %v3563, %v3700
      %v3782 = vadd.f32 %v3564, %v3703
      %v3783 = vadd.f32 %v3565, %v3706
      %v3784 = vadd.f32 %v3566, %v3709
      %v3785 = vadd.f32 %v3567, %v3712
      %v3786 = vadd.f32 %v3568, %v3715
      %v3787 = vadd.f32 %v3569, %v3718
      %v3788 = vadd.f32 %v3570, %v3721
      %v3789 = vadd.f32 %v3571, %v3724
      %v3790 = vadd.f32 %v3572, %v3727
      %v3791 = vadd.f32 %v3573, %v3730
      %v3792 = vadd.f32 %v3574, %v3733
      %v3793 = vadd.f32 %v3575, %v3736
      %v3794 = vadd.f32 %v3576, %v3739
      %v3795 = vadd.f32 %v3577, %v3742
      %v3796 = vadd.f32 %v3578, %v3745
      %v3797 = vadd.f32 %v3579, %v3748
      %v3798 = vadd.f32 %v3580, %v3751
      %v3799 = vadd.f32 %v3581, %v3754
      %v3800 = vadd.f32 %v3582, %v3757
      %v3801 = vadd.f32 %v3583, %v3760
      %v3802 = vadd.f32 %v3584, %v3763
      %v3803 = vadd.f32 %v3585, %v3766
      %v3804 = vadd.f32 %v3586, %v3769
      %v3805 = vadd.f32 %v3587, %v3772
      %v3822 = vrot.slane %v3179, 1
      %v3823 = vrot.slane %v3180, 1
      %v3824 = vsel %vm436, %v3822, %v3823
      %v3825 = vrot.slane %v3181, 1
      %v3826 = vsel %vm436, %v3823, %v3825
      %v3827 = vrot.slane %v3183, 1
      %v3828 = vrot.slane %v3184, 1
      %v3829 = vsel %vm436, %v3827, %v3828
      %v3830 = vrot.slane %v3185, 1
      %v3831 = vsel %vm436, %v3828, %v3830
      %v3832 = vrot.slane %v3187, 1
      %v3833 = vrot.slane %v3188, 1
      %v3834 = vsel %vm436, %v3832, %v3833
      %v3835 = vrot.slane %v3189, 1
      %v3836 = vsel %vm436, %v3833, %v3835
      %v3837 = vrot.slane %v3191, 1
      %v3838 = vrot.slane %v3192, 1
      %v3839 = vsel %vm436, %v3837, %v3838
      %v3840 = vrot.slane %v3193, 1
      %v3841 = vsel %vm436, %v3838, %v3840
      %v3842 = vrot.slane %v3195, 1
      %v3843 = vrot.slane %v3196, 1
      %v3844 = vsel %vm436, %v3842, %v3843
      %v3845 = vrot.slane %v3197, 1
      %v3846 = vsel %vm436, %v3843, %v3845
      %v3847 = vrot.slane %v3199, 1
      %v3848 = vrot.slane %v3200, 1
      %v3849 = vsel %vm436, %v3847, %v3848
      %v3850 = vrot.slane %v3201, 1
      %v3851 = vsel %vm436, %v3848, %v3850
      %v3852 = vrot.slane %v3203, 1
      %v3853 = vrot.slane %v3204, 1
      %v3854 = vsel %vm436, %v3852, %v3853
      %v3855 = vrot.slane %v3205, 1
      %v3856 = vsel %vm436, %v3853, %v3855
      %v3857 = vrot.slane %v3207, 1
      %v3858 = vrot.slane %v3208, 1
      %v3859 = vsel %vm436, %v3857, %v3858
      %v3860 = vrot.slane %v3209, 1
      %v3861 = vsel %vm436, %v3858, %v3860
      %v3862 = vrot.slane %v3211, 1
      %v3863 = vrot.slane %v3212, 1
      %v3864 = vsel %vm436, %v3862, %v3863
      %v3865 = vrot.slane %v3213, 1
      %v3866 = vsel %vm436, %v3863, %v3865
      %v3867 = vrot.slane %v3215, 1
      %v3868 = vrot.slane %v3216, 1
      %v3869 = vsel %vm436, %v3867, %v3868
      %v3870 = vrot.slane %v3217, 1
      %v3871 = vsel %vm436, %v3868, %v3870
      %v3872 = vrot.slane %v3219, 1
      %v3873 = vrot.slane %v3220, 1
      %v3874 = vsel %vm436, %v3872, %v3873
      %v3875 = vrot.slane %v3221, 1
      %v3876 = vsel %vm436, %v3873, %v3875
      %v3877 = vrot.slane %v3223, 1
      %v3878 = vrot.slane %v3224, 1
      %v3879 = vsel %vm436, %v3877, %v3878
      %v3880 = vrot.slane %v3225, 1
      %v3881 = vsel %vm436, %v3878, %v3880
      %v3882 = vrot.slane %v3227, 1
      %v3883 = vrot.slane %v3228, 1
      %v3884 = vsel %vm436, %v3882, %v3883
      %v3885 = vrot.slane %v3229, 1
      %v3886 = vsel %vm436, %v3883, %v3885
      %v3887 = vrot.slane %v3231, 1
      %v3888 = vrot.slane %v3232, 1
      %v3889 = vsel %vm436, %v3887, %v3888
      %v3890 = vrot.slane %v3233, 1
      %v3891 = vsel %vm436, %v3888, %v3890
      %v3892 = vrot.slane %v3235, 1
      %v3893 = vrot.slane %v3236, 1
      %v3894 = vsel %vm436, %v3892, %v3893
      %v3895 = vrot.slane %v3237, 1
      %v3896 = vsel %vm436, %v3893, %v3895
      %v3897 = vrot.slane %v3239, 1
      %v3898 = vrot.slane %v3240, 1
      %v3899 = vsel %vm436, %v3897, %v3898
      %v3900 = vrot.slane %v3241, 1
      %v3901 = vsel %vm436, %v3898, %v3900
      %s3902 = scalar_lea.vmem %s3, 320
      %v3903 = vld [vmem:[%s3902] sm:$0xff]
      %v3904 = vld [vmem:[%s3902 + $0x8] sm:$0xff]
      %v3905 = vld [vmem:[%s3902 + $0x10] sm:$0xff]
      %v3906 = vld [vmem:[%s3902 + $0x18] sm:$0xff]
      %v3907 = vld [vmem:[%s3902 + $0x20] sm:$0xff]
      %v3908 = vld [vmem:[%s3902 + $0x28] sm:$0xff]
      %v3909 = vld [vmem:[%s3902 + $0x30] sm:$0xff]
      %v3910 = vld [vmem:[%s3902 + $0x38] sm:$0xff]
      %v3911 = vsel %vm2194, %v3824, 0
      %v3913 = vsel %vm2194, %v3826, 0
      %v3915 = vsel %vm2194, %v3829, 0
      %v3917 = vsel %vm2194, %v3831, 0
      %v3919 = vsel %vm2194, %v3834, 0
      %v3921 = vsel %vm2194, %v3836, 0
      %v3923 = vsel %vm2194, %v3839, 0
      %v3925 = vsel %vm2194, %v3841, 0
      %v3927 = vsel %vm2194, %v3844, 0
      %v3929 = vsel %vm2194, %v3846, 0
      %v3931 = vsel %vm2194, %v3849, 0
      %v3933 = vsel %vm2194, %v3851, 0
      %v3935 = vsel %vm2194, %v3854, 0
      %v3937 = vsel %vm2194, %v3856, 0
      %v3939 = vsel %vm2194, %v3859, 0
      %v3941 = vsel %vm2194, %v3861, 0
      %v3943 = vsel %vm2194, %v3864, 0
      %v3945 = vsel %vm2194, %v3866, 0
      %v3947 = vsel %vm2194, %v3869, 0
      %v3949 = vsel %vm2194, %v3871, 0
      %v3951 = vsel %vm2194, %v3874, 0
      %v3953 = vsel %vm2194, %v3876, 0
      %v3955 = vsel %vm2194, %v3879, 0
      %v3957 = vsel %vm2194, %v3881, 0
      %v3959 = vsel %vm2194, %v3884, 0
      %v3961 = vsel %vm2194, %v3886, 0
      %v3963 = vsel %vm2194, %v3889, 0
      %v3965 = vsel %vm2194, %v3891, 0
      %v3967 = vsel %vm2194, %v3894, 0
      %v3969 = vsel %vm2194, %v3896, 0
      %v3971 = vsel %vm2194, %v3899, 0
      %v3973 = vsel %vm2194, %v3901, 0
      %3975 = vmatpush.msra.mxu0 0.0
      %3976 = vmatpush.msra.mxu0 0.0
      %3977 = vmatpush.msra.mxu0 0.0
      %3978 = vmatpush.msra.mxu0 0.0
      %3979 = vmatpush.msra.mxu0 0.0
      %3980 = vmatpush.msra.mxu0 0.0
      %3981 = vmatpush.msra.mxu0 0.0
      %3982 = vmatpush.msra.mxu0 0.0
      %3983 = vmatpush.msra.mxu0 %v3910
      %3984 = vmatpush.msra.mxu0 %v3909
      %3985 = vmatpush.msra.mxu0 %v3908
      %3986 = vmatpush.msra.mxu0 %v3907
      %3987 = vmatpush.msra.mxu0 %v3906
      %3988 = vmatpush.msra.mxu0 %v3905
      %3989 = vmatpush.msra.mxu0 %v3904
      %3990 = vmatpush.msra.mxu0 %v3903
      %3991 = vmatmul.f32.gmra.mxu0 %v3911
      %v3992 = vpop.f32.mrf.mxu0
      %v3993 = vadd.f32 0.0, %v3992
      %3994 = vmatmul.f32.gmra.mxu0 %v3913
      %v3995 = vpop.f32.mrf.mxu0
      %v3996 = vadd.f32 0.0, %v3995
      %3997 = vmatmul.f32.gmra.mxu0 %v3915
      %v3998 = vpop.f32.mrf.mxu0
      %v3999 = vadd.f32 0.0, %v3998
      %4000 = vmatmul.f32.gmra.mxu0 %v3917
      %v4001 = vpop.f32.mrf.mxu0
      %v4002 = vadd.f32 0.0, %v4001
      %4003 = vmatmul.f32.gmra.mxu0 %v3919
      %v4004 = vpop.f32.mrf.mxu0
      %v4005 = vadd.f32 0.0, %v4004
      %4006 = vmatmul.f32.gmra.mxu0 %v3921
      %v4007 = vpop.f32.mrf.mxu0
      %v4008 = vadd.f32 0.0, %v4007
      %4009 = vmatmul.f32.gmra.mxu0 %v3923
      %v4010 = vpop.f32.mrf.mxu0
      %v4011 = vadd.f32 0.0, %v4010
      %4012 = vmatmul.f32.gmra.mxu0 %v3925
      %v4013 = vpop.f32.mrf.mxu0
      %v4014 = vadd.f32 0.0, %v4013
      %4015 = vmatmul.f32.gmra.mxu0 %v3927
      %v4016 = vpop.f32.mrf.mxu0
      %v4017 = vadd.f32 0.0, %v4016
      %4018 = vmatmul.f32.gmra.mxu0 %v3929
      %v4019 = vpop.f32.mrf.mxu0
      %v4020 = vadd.f32 0.0, %v4019
      %4021 = vmatmul.f32.gmra.mxu0 %v3931
      %v4022 = vpop.f32.mrf.mxu0
      %v4023 = vadd.f32 0.0, %v4022
      %4024 = vmatmul.f32.gmra.mxu0 %v3933
      %v4025 = vpop.f32.mrf.mxu0
      %v4026 = vadd.f32 0.0, %v4025
      %4027 = vmatmul.f32.gmra.mxu0 %v3935
      %v4028 = vpop.f32.mrf.mxu0
      %v4029 = vadd.f32 0.0, %v4028
      %4030 = vmatmul.f32.gmra.mxu0 %v3937
      %v4031 = vpop.f32.mrf.mxu0
      %v4032 = vadd.f32 0.0, %v4031
      %4033 = vmatmul.f32.gmra.mxu0 %v3939
      %v4034 = vpop.f32.mrf.mxu0
      %v4035 = vadd.f32 0.0, %v4034
      %4036 = vmatmul.f32.gmra.mxu0 %v3941
      %v4037 = vpop.f32.mrf.mxu0
      %v4038 = vadd.f32 0.0, %v4037
      %4039 = vmatmul.f32.gmra.mxu0 %v3943
      %v4040 = vpop.f32.mrf.mxu0
      %v4041 = vadd.f32 0.0, %v4040
      %4042 = vmatmul.f32.gmra.mxu0 %v3945
      %v4043 = vpop.f32.mrf.mxu0
      %v4044 = vadd.f32 0.0, %v4043
      %4045 = vmatmul.f32.gmra.mxu0 %v3947
      %v4046 = vpop.f32.mrf.mxu0
      %v4047 = vadd.f32 0.0, %v4046
      %4048 = vmatmul.f32.gmra.mxu0 %v3949
      %v4049 = vpop.f32.mrf.mxu0
      %v4050 = vadd.f32 0.0, %v4049
      %4051 = vmatmul.f32.gmra.mxu0 %v3951
      %v4052 = vpop.f32.mrf.mxu0
      %v4053 = vadd.f32 0.0, %v4052
      %4054 = vmatmul.f32.gmra.mxu0 %v3953
      %v4055 = vpop.f32.mrf.mxu0
      %v4056 = vadd.f32 0.0, %v4055
      %4057 = vmatmul.f32.gmra.mxu0 %v3955
      %v4058 = vpop.f32.mrf.mxu0
      %v4059 = vadd.f32 0.0, %v4058
      %4060 = vmatmul.f32.gmra.mxu0 %v3957
      %v4061 = vpop.f32.mrf.mxu0
      %v4062 = vadd.f32 0.0, %v4061
      %4063 = vmatmul.f32.gmra.mxu0 %v3959
      %v4064 = vpop.f32.mrf.mxu0
      %v4065 = vadd.f32 0.0, %v4064
      %4066 = vmatmul.f32.gmra.mxu0 %v3961
      %v4067 = vpop.f32.mrf.mxu0
      %v4068 = vadd.f32 0.0, %v4067
      %4069 = vmatmul.f32.gmra.mxu0 %v3963
      %v4070 = vpop.f32.mrf.mxu0
      %v4071 = vadd.f32 0.0, %v4070
      %4072 = vmatmul.f32.gmra.mxu0 %v3965
      %v4073 = vpop.f32.mrf.mxu0
      %v4074 = vadd.f32 0.0, %v4073
      %4075 = vmatmul.f32.gmra.mxu0 %v3967
      %v4076 = vpop.f32.mrf.mxu0
      %v4077 = vadd.f32 0.0, %v4076
      %4078 = vmatmul.f32.gmra.mxu0 %v3969
      %v4079 = vpop.f32.mrf.mxu0
      %v4080 = vadd.f32 0.0, %v4079
      %4081 = vmatmul.f32.gmra.mxu0 %v3971
      %v4082 = vpop.f32.mrf.mxu0
      %v4083 = vadd.f32 0.0, %v4082
      %4084 = vmatmul.f32.gmra.mxu0 %v3973
      %v4085 = vpop.f32.mrf.mxu0
      %v4086 = vadd.f32 0.0, %v4085
      %4087 = vdwg.mxu0
      %v4088 = vadd.f32 %v3774, %v3993
      %v4089 = vadd.f32 %v3775, %v3996
      %v4090 = vadd.f32 %v3776, %v3999
      %v4091 = vadd.f32 %v3777, %v4002
      %v4092 = vadd.f32 %v3778, %v4005
      %v4093 = vadd.f32 %v3779, %v4008
      %v4094 = vadd.f32 %v3780, %v4011
      %v4095 = vadd.f32 %v3781, %v4014
      %v4096 = vadd.f32 %v3782, %v4017
      %v4097 = vadd.f32 %v3783, %v4020
      %v4098 = vadd.f32 %v3784, %v4023
      %v4099 = vadd.f32 %v3785, %v4026
      %v4100 = vadd.f32 %v3786, %v4029
      %v4101 = vadd.f32 %v3787, %v4032
      %v4102 = vadd.f32 %v3788, %v4035
      %v4103 = vadd.f32 %v3789, %v4038
      %v4104 = vadd.f32 %v3790, %v4041
      %v4105 = vadd.f32 %v3791, %v4044
      %v4106 = vadd.f32 %v3792, %v4047
      %v4107 = vadd.f32 %v3793, %v4050
      %v4108 = vadd.f32 %v3794, %v4053
      %v4109 = vadd.f32 %v3795, %v4056
      %v4110 = vadd.f32 %v3796, %v4059
      %v4111 = vadd.f32 %v3797, %v4062
      %v4112 = vadd.f32 %v3798, %v4065
      %v4113 = vadd.f32 %v3799, %v4068
      %v4114 = vadd.f32 %v3800, %v4071
      %v4115 = vadd.f32 %v3801, %v4074
      %v4116 = vadd.f32 %v3802, %v4077
      %v4117 = vadd.f32 %v3803, %v4080
      %v4118 = vadd.f32 %v3804, %v4083
      %v4119 = vadd.f32 %v3805, %v4086
      %s4120 = scalar_lea.vmem [#allocation2], 64
      %v4121 = vld [vmem:[%s4120] sm:$0xff]
      %v4122 = vld [vmem:[%s4120 + $0x8] sm:$0xff]
      %v4123 = vld [vmem:[%s4120 + $0x10] sm:$0xff]
      %v4124 = vld [vmem:[%s4120 + $0x18] sm:$0xff]
      %v4125 = vld [vmem:[%s4120 + $0x20] sm:$0xff]
      %v4126 = vld [vmem:[%s4120 + $0x28] sm:$0xff]
      %v4127 = vld [vmem:[%s4120 + $0x30] sm:$0xff]
      %v4128 = vld [vmem:[%s4120 + $0x38] sm:$0xff]
      %v4129 = vld [vmem:[%s4120 + $0x40] sm:$0xff]
      %v4130 = vld [vmem:[%s4120 + $0x48] sm:$0xff]
      %v4131 = vld [vmem:[%s4120 + $0x50] sm:$0xff]
      %v4132 = vld [vmem:[%s4120 + $0x58] sm:$0xff]
      %v4133 = vld [vmem:[%s4120 + $0x60] sm:$0xff]
      %v4134 = vld [vmem:[%s4120 + $0x68] sm:$0xff]
      %v4135 = vld [vmem:[%s4120 + $0x70] sm:$0xff]
      %v4136 = vld [vmem:[%s4120 + $0x78] sm:$0xff]
      %v4137 = vld [vmem:[%s4120 + $0x80] sm:$0xff]
      %v4138 = vld [vmem:[%s4120 + $0x88] sm:$0xff]
      %v4139 = vld [vmem:[%s4120 + $0x90] sm:$0xff]
      %v4140 = vld [vmem:[%s4120 + $0x98] sm:$0xff]
      %v4141 = vld [vmem:[%s4120 + $0xa0] sm:$0xff]
      %v4142 = vld [vmem:[%s4120 + $0xa8] sm:$0xff]
      %v4143 = vld [vmem:[%s4120 + $0xb0] sm:$0xff]
      %v4144 = vld [vmem:[%s4120 + $0xb8] sm:$0xff]
      %v4145 = vld [vmem:[%s4120 + $0xc0] sm:$0xff]
      %v4146 = vld [vmem:[%s4120 + $0xc8] sm:$0xff]
      %v4147 = vld [vmem:[%s4120 + $0xd0] sm:$0xff]
      %v4148 = vld [vmem:[%s4120 + $0xd8] sm:$0xff]
      %v4149 = vld [vmem:[%s4120 + $0xe0] sm:$0xff]
      %v4150 = vld [vmem:[%s4120 + $0xe8] sm:$0xff]
      %v4151 = vld [vmem:[%s4120 + $0xf0] sm:$0xff]
      %v4152 = vld [vmem:[%s4120 + $0xf8] sm:$0xff]
      %v4153 = vld [vmem:[%s4120 + $0x100] sm:$0xff]
      %v4154 = vld [vmem:[%s4120 + $0x108] sm:$0xff]
      %v4155 = vld [vmem:[%s4120 + $0x110] sm:$0xff]
      %v4156 = vld [vmem:[%s4120 + $0x118] sm:$0xff]
      %v4157 = vld [vmem:[%s4120 + $0x120] sm:$0xff]
      %v4158 = vld [vmem:[%s4120 + $0x128] sm:$0xff]
      %v4159 = vld [vmem:[%s4120 + $0x130] sm:$0xff]
      %v4160 = vld [vmem:[%s4120 + $0x138] sm:$0xff]
      %v4161 = vld [vmem:[%s4120 + $0x140] sm:$0xff]
      %v4162 = vld [vmem:[%s4120 + $0x148] sm:$0xff]
      %v4163 = vld [vmem:[%s4120 + $0x150] sm:$0xff]
      %v4164 = vld [vmem:[%s4120 + $0x158] sm:$0xff]
      %v4165 = vld [vmem:[%s4120 + $0x160] sm:$0xff]
      %v4166 = vld [vmem:[%s4120 + $0x168] sm:$0xff]
      %v4167 = vld [vmem:[%s4120 + $0x170] sm:$0xff]
      %v4168 = vld [vmem:[%s4120 + $0x178] sm:$0xff]
      %v4169 = vld [vmem:[%s4120 + $0x180] sm:$0xff]
      %v4170 = vld [vmem:[%s4120 + $0x188] sm:$0xff]
      %v4171 = vld [vmem:[%s4120 + $0x190] sm:$0xff]
      %v4172 = vld [vmem:[%s4120 + $0x198] sm:$0xff]
      %v4173 = vld [vmem:[%s4120 + $0x1a0] sm:$0xff]
      %v4174 = vld [vmem:[%s4120 + $0x1a8] sm:$0xff]
      %v4175 = vld [vmem:[%s4120 + $0x1b0] sm:$0xff]
      %v4176 = vld [vmem:[%s4120 + $0x1b8] sm:$0xff]
      %v4177 = vld [vmem:[%s4120 + $0x1c0] sm:$0xff]
      %v4178 = vld [vmem:[%s4120 + $0x1c8] sm:$0xff]
      %v4179 = vld [vmem:[%s4120 + $0x1d0] sm:$0xff]
      %v4180 = vld [vmem:[%s4120 + $0x1d8] sm:$0xff]
      %v4181 = vld [vmem:[%s4120 + $0x1e0] sm:$0xff]
      %v4182 = vld [vmem:[%s4120 + $0x1e8] sm:$0xff]
      %v4183 = vld [vmem:[%s4120 + $0x1f0] sm:$0xff]
      %v4184 = vld [vmem:[%s4120 + $0x1f8] sm:$0xff]
      %v4233 = vrot.slane %v4121, 7
      %v4234 = vrot.slane %v4122, 7
      %v4235 = vsel %vm2412, %v4233, %v4234
      %v4236 = vrot.slane %v4123, 7
      %v4237 = vsel %vm2412, %v4234, %v4236
      %v4238 = vrot.slane %v4125, 7
      %v4239 = vrot.slane %v4126, 7
      %v4240 = vsel %vm2412, %v4238, %v4239
      %v4241 = vrot.slane %v4127, 7
      %v4242 = vsel %vm2412, %v4239, %v4241
      %v4243 = vrot.slane %v4129, 7
      %v4244 = vrot.slane %v4130, 7
      %v4245 = vsel %vm2412, %v4243, %v4244
      %v4246 = vrot.slane %v4131, 7
      %v4247 = vsel %vm2412, %v4244, %v4246
      %v4248 = vrot.slane %v4133, 7
      %v4249 = vrot.slane %v4134, 7
      %v4250 = vsel %vm2412, %v4248, %v4249
      %v4251 = vrot.slane %v4135, 7
      %v4252 = vsel %vm2412, %v4249, %v4251
      %v4253 = vrot.slane %v4137, 7
      %v4254 = vrot.slane %v4138, 7
      %v4255 = vsel %vm2412, %v4253, %v4254
      %v4256 = vrot.slane %v4139, 7
      %v4257 = vsel %vm2412, %v4254, %v4256
      %v4258 = vrot.slane %v4141, 7
      %v4259 = vrot.slane %v4142, 7
      %v4260 = vsel %vm2412, %v4258, %v4259
      %v4261 = vrot.slane %v4143, 7
      %v4262 = vsel %vm2412, %v4259, %v4261
      %v4263 = vrot.slane %v4145, 7
      %v4264 = vrot.slane %v4146, 7
      %v4265 = vsel %vm2412, %v4263, %v4264
      %v4266 = vrot.slane %v4147, 7
      %v4267 = vsel %vm2412, %v4264, %v4266
      %v4268 = vrot.slane %v4149, 7
      %v4269 = vrot.slane %v4150, 7
      %v4270 = vsel %vm2412, %v4268, %v4269
      %v4271 = vrot.slane %v4151, 7
      %v4272 = vsel %vm2412, %v4269, %v4271
      %v4273 = vrot.slane %v4153, 7
      %v4274 = vrot.slane %v4154, 7
      %v4275 = vsel %vm2412, %v4273, %v4274
      %v4276 = vrot.slane %v4155, 7
      %v4277 = vsel %vm2412, %v4274, %v4276
      %v4278 = vrot.slane %v4157, 7
      %v4279 = vrot.slane %v4158, 7
      %v4280 = vsel %vm2412, %v4278, %v4279
      %v4281 = vrot.slane %v4159, 7
      %v4282 = vsel %vm2412, %v4279, %v4281
      %v4283 = vrot.slane %v4161, 7
      %v4284 = vrot.slane %v4162, 7
      %v4285 = vsel %vm2412, %v4283, %v4284
      %v4286 = vrot.slane %v4163, 7
      %v4287 = vsel %vm2412, %v4284, %v4286
      %v4288 = vrot.slane %v4165, 7
      %v4289 = vrot.slane %v4166, 7
      %v4290 = vsel %vm2412, %v4288, %v4289
      %v4291 = vrot.slane %v4167, 7
      %v4292 = vsel %vm2412, %v4289, %v4291
      %v4293 = vrot.slane %v4169, 7
      %v4294 = vrot.slane %v4170, 7
      %v4295 = vsel %vm2412, %v4293, %v4294
      %v4296 = vrot.slane %v4171, 7
      %v4297 = vsel %vm2412, %v4294, %v4296
      %v4298 = vrot.slane %v4173, 7
      %v4299 = vrot.slane %v4174, 7
      %v4300 = vsel %vm2412, %v4298, %v4299
      %v4301 = vrot.slane %v4175, 7
      %v4302 = vsel %vm2412, %v4299, %v4301
      %v4303 = vrot.slane %v4177, 7
      %v4304 = vrot.slane %v4178, 7
      %v4305 = vsel %vm2412, %v4303, %v4304
      %v4306 = vrot.slane %v4179, 7
      %v4307 = vsel %vm2412, %v4304, %v4306
      %v4308 = vrot.slane %v4181, 7
      %v4309 = vrot.slane %v4182, 7
      %v4310 = vsel %vm2412, %v4308, %v4309
      %v4311 = vrot.slane %v4183, 7
      %v4312 = vsel %vm2412, %v4309, %v4311
      %s4313 = scalar_lea.vmem %s3, 384
      %v4314 = vld [vmem:[%s4313] sm:$0xff]
      %v4315 = vld [vmem:[%s4313 + $0x8] sm:$0xff]
      %v4316 = vld [vmem:[%s4313 + $0x10] sm:$0xff]
      %v4317 = vld [vmem:[%s4313 + $0x18] sm:$0xff]
      %v4318 = vld [vmem:[%s4313 + $0x20] sm:$0xff]
      %v4319 = vld [vmem:[%s4313 + $0x28] sm:$0xff]
      %v4320 = vld [vmem:[%s4313 + $0x30] sm:$0xff]
      %v4321 = vld [vmem:[%s4313 + $0x38] sm:$0xff]
      %v4322 = vsel %vm2194, %v4235, 0
      %v4324 = vsel %vm2194, %v4237, 0
      %v4326 = vsel %vm2194, %v4240, 0
      %v4328 = vsel %vm2194, %v4242, 0
      %v4330 = vsel %vm2194, %v4245, 0
      %v4332 = vsel %vm2194, %v4247, 0
      %v4334 = vsel %vm2194, %v4250, 0
      %v4336 = vsel %vm2194, %v4252, 0
      %v4338 = vsel %vm2194, %v4255, 0
      %v4340 = vsel %vm2194, %v4257, 0
      %v4342 = vsel %vm2194, %v4260, 0
      %v4344 = vsel %vm2194, %v4262, 0
      %v4346 = vsel %vm2194, %v4265, 0
      %v4348 = vsel %vm2194, %v4267, 0
      %v4350 = vsel %vm2194, %v4270, 0
      %v4352 = vsel %vm2194, %v4272, 0
      %v4354 = vsel %vm2194, %v4275, 0
      %v4356 = vsel %vm2194, %v4277, 0
      %v4358 = vsel %vm2194, %v4280, 0
      %v4360 = vsel %vm2194, %v4282, 0
      %v4362 = vsel %vm2194, %v4285, 0
      %v4364 = vsel %vm2194, %v4287, 0
      %v4366 = vsel %vm2194, %v4290, 0
      %v4368 = vsel %vm2194, %v4292, 0
      %v4370 = vsel %vm2194, %v4295, 0
      %v4372 = vsel %vm2194, %v4297, 0
      %v4374 = vsel %vm2194, %v4300, 0
      %v4376 = vsel %vm2194, %v4302, 0
      %v4378 = vsel %vm2194, %v4305, 0
      %v4380 = vsel %vm2194, %v4307, 0
      %v4382 = vsel %vm2194, %v4310, 0
      %v4384 = vsel %vm2194, %v4312, 0
      %4386 = vmatpush.msra.mxu0 0.0
      %4387 = vmatpush.msra.mxu0 0.0
      %4388 = vmatpush.msra.mxu0 0.0
      %4389 = vmatpush.msra.mxu0 0.0
      %4390 = vmatpush.msra.mxu0 0.0
      %4391 = vmatpush.msra.mxu0 0.0
      %4392 = vmatpush.msra.mxu0 0.0
      %4393 = vmatpush.msra.mxu0 0.0
      %4394 = vmatpush.msra.mxu0 %v4321
      %4395 = vmatpush.msra.mxu0 %v4320
      %4396 = vmatpush.msra.mxu0 %v4319
      %4397 = vmatpush.msra.mxu0 %v4318
      %4398 = vmatpush.msra.mxu0 %v4317
      %4399 = vmatpush.msra.mxu0 %v4316
      %4400 = vmatpush.msra.mxu0 %v4315
      %4401 = vmatpush.msra.mxu0 %v4314
      %4402 = vmatmul.f32.gmra.mxu0 %v4322
      %v4403 = vpop.f32.mrf.mxu0
      %v4404 = vadd.f32 0.0, %v4403
      %4405 = vmatmul.f32.gmra.mxu0 %v4324
      %v4406 = vpop.f32.mrf.mxu0
      %v4407 = vadd.f32 0.0, %v4406
      %4408 = vmatmul.f32.gmra.mxu0 %v4326
      %v4409 = vpop.f32.mrf.mxu0
      %v4410 = vadd.f32 0.0, %v4409
      %4411 = vmatmul.f32.gmra.mxu0 %v4328
      %v4412 = vpop.f32.mrf.mxu0
      %v4413 = vadd.f32 0.0, %v4412
      %4414 = vmatmul.f32.gmra.mxu0 %v4330
      %v4415 = vpop.f32.mrf.mxu0
      %v4416 = vadd.f32 0.0, %v4415
      %4417 = vmatmul.f32.gmra.mxu0 %v4332
      %v4418 = vpop.f32.mrf.mxu0
      %v4419 = vadd.f32 0.0, %v4418
      %4420 = vmatmul.f32.gmra.mxu0 %v4334
      %v4421 = vpop.f32.mrf.mxu0
      %v4422 = vadd.f32 0.0, %v4421
      %4423 = vmatmul.f32.gmra.mxu0 %v4336
      %v4424 = vpop.f32.mrf.mxu0
      %v4425 = vadd.f32 0.0, %v4424
      %4426 = vmatmul.f32.gmra.mxu0 %v4338
      %v4427 = vpop.f32.mrf.mxu0
      %v4428 = vadd.f32 0.0, %v4427
      %4429 = vmatmul.f32.gmra.mxu0 %v4340
      %v4430 = vpop.f32.mrf.mxu0
      %v4431 = vadd.f32 0.0, %v4430
      %4432 = vmatmul.f32.gmra.mxu0 %v4342
      %v4433 = vpop.f32.mrf.mxu0
      %v4434 = vadd.f32 0.0, %v4433
      %4435 = vmatmul.f32.gmra.mxu0 %v4344
      %v4436 = vpop.f32.mrf.mxu0
      %v4437 = vadd.f32 0.0, %v4436
      %4438 = vmatmul.f32.gmra.mxu0 %v4346
      %v4439 = vpop.f32.mrf.mxu0
      %v4440 = vadd.f32 0.0, %v4439
      %4441 = vmatmul.f32.gmra.mxu0 %v4348
      %v4442 = vpop.f32.mrf.mxu0
      %v4443 = vadd.f32 0.0, %v4442
      %4444 = vmatmul.f32.gmra.mxu0 %v4350
      %v4445 = vpop.f32.mrf.mxu0
      %v4446 = vadd.f32 0.0, %v4445
      %4447 = vmatmul.f32.gmra.mxu0 %v4352
      %v4448 = vpop.f32.mrf.mxu0
      %v4449 = vadd.f32 0.0, %v4448
      %4450 = vmatmul.f32.gmra.mxu0 %v4354
      %v4451 = vpop.f32.mrf.mxu0
      %v4452 = vadd.f32 0.0, %v4451
      %4453 = vmatmul.f32.gmra.mxu0 %v4356
      %v4454 = vpop.f32.mrf.mxu0
      %v4455 = vadd.f32 0.0, %v4454
      %4456 = vmatmul.f32.gmra.mxu0 %v4358
      %v4457 = vpop.f32.mrf.mxu0
      %v4458 = vadd.f32 0.0, %v4457
      %4459 = vmatmul.f32.gmra.mxu0 %v4360
      %v4460 = vpop.f32.mrf.mxu0
      %v4461 = vadd.f32 0.0, %v4460
      %4462 = vmatmul.f32.gmra.mxu0 %v4362
      %v4463 = vpop.f32.mrf.mxu0
      %v4464 = vadd.f32 0.0, %v4463
      %4465 = vmatmul.f32.gmra.mxu0 %v4364
      %v4466 = vpop.f32.mrf.mxu0
      %v4467 = vadd.f32 0.0, %v4466
      %4468 = vmatmul.f32.gmra.mxu0 %v4366
      %v4469 = vpop.f32.mrf.mxu0
      %v4470 = vadd.f32 0.0, %v4469
      %4471 = vmatmul.f32.gmra.mxu0 %v4368
      %v4472 = vpop.f32.mrf.mxu0
      %v4473 = vadd.f32 0.0, %v4472
      %4474 = vmatmul.f32.gmra.mxu0 %v4370
      %v4475 = vpop.f32.mrf.mxu0
      %v4476 = vadd.f32 0.0, %v4475
      %4477 = vmatmul.f32.gmra.mxu0 %v4372
      %v4478 = vpop.f32.mrf.mxu0
      %v4479 = vadd.f32 0.0, %v4478
      %4480 = vmatmul.f32.gmra.mxu0 %v4374
      %v4481 = vpop.f32.mrf.mxu0
      %v4482 = vadd.f32 0.0, %v4481
      %4483 = vmatmul.f32.gmra.mxu0 %v4376
      %v4484 = vpop.f32.mrf.mxu0
      %v4485 = vadd.f32 0.0, %v4484
      %4486 = vmatmul.f32.gmra.mxu0 %v4378
      %v4487 = vpop.f32.mrf.mxu0
      %v4488 = vadd.f32 0.0, %v4487
      %4489 = vmatmul.f32.gmra.mxu0 %v4380
      %v4490 = vpop.f32.mrf.mxu0
      %v4491 = vadd.f32 0.0, %v4490
      %4492 = vmatmul.f32.gmra.mxu0 %v4382
      %v4493 = vpop.f32.mrf.mxu0
      %v4494 = vadd.f32 0.0, %v4493
      %4495 = vmatmul.f32.gmra.mxu0 %v4384
      %v4496 = vpop.f32.mrf.mxu0
      %v4497 = vadd.f32 0.0, %v4496
      %4498 = vdwg.mxu0
      %v4499 = vadd.f32 %v4088, %v4404
      %v4500 = vadd.f32 %v4089, %v4407
      %v4501 = vadd.f32 %v4090, %v4410
      %v4502 = vadd.f32 %v4091, %v4413
      %v4503 = vadd.f32 %v4092, %v4416
      %v4504 = vadd.f32 %v4093, %v4419
      %v4505 = vadd.f32 %v4094, %v4422
      %v4506 = vadd.f32 %v4095, %v4425
      %v4507 = vadd.f32 %v4096, %v4428
      %v4508 = vadd.f32 %v4097, %v4431
      %v4509 = vadd.f32 %v4098, %v4434
      %v4510 = vadd.f32 %v4099, %v4437
      %v4511 = vadd.f32 %v4100, %v4440
      %v4512 = vadd.f32 %v4101, %v4443
      %v4513 = vadd.f32 %v4102, %v4446
      %v4514 = vadd.f32 %v4103, %v4449
      %v4515 = vadd.f32 %v4104, %v4452
      %v4516 = vadd.f32 %v4105, %v4455
      %v4517 = vadd.f32 %v4106, %v4458
      %v4518 = vadd.f32 %v4107, %v4461
      %v4519 = vadd.f32 %v4108, %v4464
      %v4520 = vadd.f32 %v4109, %v4467
      %v4521 = vadd.f32 %v4110, %v4470
      %v4522 = vadd.f32 %v4111, %v4473
      %v4523 = vadd.f32 %v4112, %v4476
      %v4524 = vadd.f32 %v4113, %v4479
      %v4525 = vadd.f32 %v4114, %v4482
      %v4526 = vadd.f32 %v4115, %v4485
      %v4527 = vadd.f32 %v4116, %v4488
      %v4528 = vadd.f32 %v4117, %v4491
      %v4529 = vadd.f32 %v4118, %v4494
      %v4530 = vadd.f32 %v4119, %v4497
      %s4531 = scalar_lea.vmem %s3, 448
      %v4532 = vld [vmem:[%s4531] sm:$0xff]
      %v4533 = vld [vmem:[%s4531 + $0x8] sm:$0xff]
      %v4534 = vld [vmem:[%s4531 + $0x10] sm:$0xff]
      %v4535 = vld [vmem:[%s4531 + $0x18] sm:$0xff]
      %v4536 = vld [vmem:[%s4531 + $0x20] sm:$0xff]
      %v4537 = vld [vmem:[%s4531 + $0x28] sm:$0xff]
      %v4538 = vld [vmem:[%s4531 + $0x30] sm:$0xff]
      %v4539 = vld [vmem:[%s4531 + $0x38] sm:$0xff]
      %v4540 = vsel %vm2194, %v4122, 0
      %v4542 = vsel %vm2194, %v4123, 0
      %v4544 = vsel %vm2194, %v4126, 0
      %v4546 = vsel %vm2194, %v4127, 0
      %v4548 = vsel %vm2194, %v4130, 0
      %v4550 = vsel %vm2194, %v4131, 0
      %v4552 = vsel %vm2194, %v4134, 0
      %v4554 = vsel %vm2194, %v4135, 0
      %v4556 = vsel %vm2194, %v4138, 0
      %v4558 = vsel %vm2194, %v4139, 0
      %v4560 = vsel %vm2194, %v4142, 0
      %v4562 = vsel %vm2194, %v4143, 0
      %v4564 = vsel %vm2194, %v4146, 0
      %v4566 = vsel %vm2194, %v4147, 0
      %v4568 = vsel %vm2194, %v4150, 0
      %v4570 = vsel %vm2194, %v4151, 0
      %v4572 = vsel %vm2194, %v4154, 0
      %v4574 = vsel %vm2194, %v4155, 0
      %v4576 = vsel %vm2194, %v4158, 0
      %v4578 = vsel %vm2194, %v4159, 0
      %v4580 = vsel %vm2194, %v4162, 0
      %v4582 = vsel %vm2194, %v4163, 0
      %v4584 = vsel %vm2194, %v4166, 0
      %v4586 = vsel %vm2194, %v4167, 0
      %v4588 = vsel %vm2194, %v4170, 0
      %v4590 = vsel %vm2194, %v4171, 0
      %v4592 = vsel %vm2194, %v4174, 0
      %v4594 = vsel %vm2194, %v4175, 0
      %v4596 = vsel %vm2194, %v4178, 0
      %v4598 = vsel %vm2194, %v4179, 0
      %v4600 = vsel %vm2194, %v4182, 0
      %v4602 = vsel %vm2194, %v4183, 0
      %4604 = vmatpush.msra.mxu0 0.0
      %4605 = vmatpush.msra.mxu0 0.0
      %4606 = vmatpush.msra.mxu0 0.0
      %4607 = vmatpush.msra.mxu0 0.0
      %4608 = vmatpush.msra.mxu0 0.0
      %4609 = vmatpush.msra.mxu0 0.0
      %4610 = vmatpush.msra.mxu0 0.0
      %4611 = vmatpush.msra.mxu0 0.0
      %4612 = vmatpush.msra.mxu0 %v4539
      %4613 = vmatpush.msra.mxu0 %v4538
      %4614 = vmatpush.msra.mxu0 %v4537
      %4615 = vmatpush.msra.mxu0 %v4536
      %4616 = vmatpush.msra.mxu0 %v4535
      %4617 = vmatpush.msra.mxu0 %v4534
      %4618 = vmatpush.msra.mxu0 %v4533
      %4619 = vmatpush.msra.mxu0 %v4532
      %4620 = vmatmul.f32.gmra.mxu0 %v4540
      %v4621 = vpop.f32.mrf.mxu0
      %v4622 = vadd.f32 0.0, %v4621
      %4623 = vmatmul.f32.gmra.mxu0 %v4542
      %v4624 = vpop.f32.mrf.mxu0
      %v4625 = vadd.f32 0.0, %v4624
      %4626 = vmatmul.f32.gmra.mxu0 %v4544
      %v4627 = vpop.f32.mrf.mxu0
      %v4628 = vadd.f32 0.0, %v4627
      %4629 = vmatmul.f32.gmra.mxu0 %v4546
      %v4630 = vpop.f32.mrf.mxu0
      %v4631 = vadd.f32 0.0, %v4630
      %4632 = vmatmul.f32.gmra.mxu0 %v4548
      %v4633 = vpop.f32.mrf.mxu0
      %v4634 = vadd.f32 0.0, %v4633
      %4635 = vmatmul.f32.gmra.mxu0 %v4550
      %v4636 = vpop.f32.mrf.mxu0
      %v4637 = vadd.f32 0.0, %v4636
      %4638 = vmatmul.f32.gmra.mxu0 %v4552
      %v4639 = vpop.f32.mrf.mxu0
      %v4640 = vadd.f32 0.0, %v4639
      %4641 = vmatmul.f32.gmra.mxu0 %v4554
      %v4642 = vpop.f32.mrf.mxu0
      %v4643 = vadd.f32 0.0, %v4642
      %4644 = vmatmul.f32.gmra.mxu0 %v4556
      %v4645 = vpop.f32.mrf.mxu0
      %v4646 = vadd.f32 0.0, %v4645
      %4647 = vmatmul.f32.gmra.mxu0 %v4558
      %v4648 = vpop.f32.mrf.mxu0
      %v4649 = vadd.f32 0.0, %v4648
      %4650 = vmatmul.f32.gmra.mxu0 %v4560
      %v4651 = vpop.f32.mrf.mxu0
      %v4652 = vadd.f32 0.0, %v4651
      %4653 = vmatmul.f32.gmra.mxu0 %v4562
      %v4654 = vpop.f32.mrf.mxu0
      %v4655 = vadd.f32 0.0, %v4654
      %4656 = vmatmul.f32.gmra.mxu0 %v4564
      %v4657 = vpop.f32.mrf.mxu0
      %v4658 = vadd.f32 0.0, %v4657
      %4659 = vmatmul.f32.gmra.mxu0 %v4566
      %v4660 = vpop.f32.mrf.mxu0
      %v4661 = vadd.f32 0.0, %v4660
      %4662 = vmatmul.f32.gmra.mxu0 %v4568
      %v4663 = vpop.f32.mrf.mxu0
      %v4664 = vadd.f32 0.0, %v4663
      %4665 = vmatmul.f32.gmra.mxu0 %v4570
      %v4666 = vpop.f32.mrf.mxu0
      %v4667 = vadd.f32 0.0, %v4666
      %4668 = vmatmul.f32.gmra.mxu0 %v4572
      %v4669 = vpop.f32.mrf.mxu0
      %v4670 = vadd.f32 0.0, %v4669
      %4671 = vmatmul.f32.gmra.mxu0 %v4574
      %v4672 = vpop.f32.mrf.mxu0
      %v4673 = vadd.f32 0.0, %v4672
      %4674 = vmatmul.f32.gmra.mxu0 %v4576
      %v4675 = vpop.f32.mrf.mxu0
      %v4676 = vadd.f32 0.0, %v4675
      %4677 = vmatmul.f32.gmra.mxu0 %v4578
      %v4678 = vpop.f32.mrf.mxu0
      %v4679 = vadd.f32 0.0, %v4678
      %4680 = vmatmul.f32.gmra.mxu0 %v4580
      %v4681 = vpop.f32.mrf.mxu0
      %v4682 = vadd.f32 0.0, %v4681
      %4683 = vmatmul.f32.gmra.mxu0 %v4582
      %v4684 = vpop.f32.mrf.mxu0
      %v4685 = vadd.f32 0.0, %v4684
      %4686 = vmatmul.f32.gmra.mxu0 %v4584
      %v4687 = vpop.f32.mrf.mxu0
      %v4688 = vadd.f32 0.0, %v4687
      %4689 = vmatmul.f32.gmra.mxu0 %v4586
      %v4690 = vpop.f32.mrf.mxu0
      %v4691 = vadd.f32 0.0, %v4690
      %4692 = vmatmul.f32.gmra.mxu0 %v4588
      %v4693 = vpop.f32.mrf.mxu0
      %v4694 = vadd.f32 0.0, %v4693
      %4695 = vmatmul.f32.gmra.mxu0 %v4590
      %v4696 = vpop.f32.mrf.mxu0
      %v4697 = vadd.f32 0.0, %v4696
      %4698 = vmatmul.f32.gmra.mxu0 %v4592
      %v4699 = vpop.f32.mrf.mxu0
      %v4700 = vadd.f32 0.0, %v4699
      %4701 = vmatmul.f32.gmra.mxu0 %v4594
      %v4702 = vpop.f32.mrf.mxu0
      %v4703 = vadd.f32 0.0, %v4702
      %4704 = vmatmul.f32.gmra.mxu0 %v4596
      %v4705 = vpop.f32.mrf.mxu0
      %v4706 = vadd.f32 0.0, %v4705
      %4707 = vmatmul.f32.gmra.mxu0 %v4598
      %v4708 = vpop.f32.mrf.mxu0
      %v4709 = vadd.f32 0.0, %v4708
      %4710 = vmatmul.f32.gmra.mxu0 %v4600
      %v4711 = vpop.f32.mrf.mxu0
      %v4712 = vadd.f32 0.0, %v4711
      %4713 = vmatmul.f32.gmra.mxu0 %v4602
      %v4714 = vpop.f32.mrf.mxu0
      %v4715 = vadd.f32 0.0, %v4714
      %4716 = vdwg.mxu0
      %v4717 = vadd.f32 %v4499, %v4622
      %v4718 = vadd.f32 %v4500, %v4625
      %v4719 = vadd.f32 %v4501, %v4628
      %v4720 = vadd.f32 %v4502, %v4631
      %v4721 = vadd.f32 %v4503, %v4634
      %v4722 = vadd.f32 %v4504, %v4637
      %v4723 = vadd.f32 %v4505, %v4640
      %v4724 = vadd.f32 %v4506, %v4643
      %v4725 = vadd.f32 %v4507, %v4646
      %v4726 = vadd.f32 %v4508, %v4649
      %v4727 = vadd.f32 %v4509, %v4652
      %v4728 = vadd.f32 %v4510, %v4655
      %v4729 = vadd.f32 %v4511, %v4658
      %v4730 = vadd.f32 %v4512, %v4661
      %v4731 = vadd.f32 %v4513, %v4664
      %v4732 = vadd.f32 %v4514, %v4667
      %v4733 = vadd.f32 %v4515, %v4670
      %v4734 = vadd.f32 %v4516, %v4673
      %v4735 = vadd.f32 %v4517, %v4676
      %v4736 = vadd.f32 %v4518, %v4679
      %v4737 = vadd.f32 %v4519, %v4682
      %v4738 = vadd.f32 %v4520, %v4685
      %v4739 = vadd.f32 %v4521, %v4688
      %v4740 = vadd.f32 %v4522, %v4691
      %v4741 = vadd.f32 %v4523, %v4694
      %v4742 = vadd.f32 %v4524, %v4697
      %v4743 = vadd.f32 %v4525, %v4700
      %v4744 = vadd.f32 %v4526, %v4703
      %v4745 = vadd.f32 %v4527, %v4706
      %v4746 = vadd.f32 %v4528, %v4709
      %v4747 = vadd.f32 %v4529, %v4712
      %v4748 = vadd.f32 %v4530, %v4715
      %v4765 = vrot.slane %v4122, 1
      %v4766 = vrot.slane %v4123, 1
      %v4767 = vsel %vm436, %v4765, %v4766
      %v4768 = vrot.slane %v4124, 1
      %v4769 = vsel %vm436, %v4766, %v4768
      %v4770 = vrot.slane %v4126, 1
      %v4771 = vrot.slane %v4127, 1
      %v4772 = vsel %vm436, %v4770, %v4771
      %v4773 = vrot.slane %v4128, 1
      %v4774 = vsel %vm436, %v4771, %v4773
      %v4775 = vrot.slane %v4130, 1
      %v4776 = vrot.slane %v4131, 1
      %v4777 = vsel %vm436, %v4775, %v4776
      %v4778 = vrot.slane %v4132, 1
      %v4779 = vsel %vm436, %v4776, %v4778
      %v4780 = vrot.slane %v4134, 1
      %v4781 = vrot.slane %v4135, 1
      %v4782 = vsel %vm436, %v4780, %v4781
      %v4783 = vrot.slane %v4136, 1
      %v4784 = vsel %vm436, %v4781, %v4783
      %v4785 = vrot.slane %v4138, 1
      %v4786 = vrot.slane %v4139, 1
      %v4787 = vsel %vm436, %v4785, %v4786
      %v4788 = vrot.slane %v4140, 1
      %v4789 = vsel %vm436, %v4786, %v4788
      %v4790 = vrot.slane %v4142, 1
      %v4791 = vrot.slane %v4143, 1
      %v4792 = vsel %vm436, %v4790, %v4791
      %v4793 = vrot.slane %v4144, 1
      %v4794 = vsel %vm436, %v4791, %v4793
      %v4795 = vrot.slane %v4146, 1
      %v4796 = vrot.slane %v4147, 1
      %v4797 = vsel %vm436, %v4795, %v4796
      %v4798 = vrot.slane %v4148, 1
      %v4799 = vsel %vm436, %v4796, %v4798
      %v4800 = vrot.slane %v4150, 1
      %v4801 = vrot.slane %v4151, 1
      %v4802 = vsel %vm436, %v4800, %v4801
      %v4803 = vrot.slane %v4152, 1
      %v4804 = vsel %vm436, %v4801, %v4803
      %v4805 = vrot.slane %v4154, 1
      %v4806 = vrot.slane %v4155, 1
      %v4807 = vsel %vm436, %v4805, %v4806
      %v4808 = vrot.slane %v4156, 1
      %v4809 = vsel %vm436, %v4806, %v4808
      %v4810 = vrot.slane %v4158, 1
      %v4811 = vrot.slane %v4159, 1
      %v4812 = vsel %vm436, %v4810, %v4811
      %v4813 = vrot.slane %v4160, 1
      %v4814 = vsel %vm436, %v4811, %v4813
      %v4815 = vrot.slane %v4162, 1
      %v4816 = vrot.slane %v4163, 1
      %v4817 = vsel %vm436, %v4815, %v4816
      %v4818 = vrot.slane %v4164, 1
      %v4819 = vsel %vm436, %v4816, %v4818
      %v4820 = vrot.slane %v4166, 1
      %v4821 = vrot.slane %v4167, 1
      %v4822 = vsel %vm436, %v4820, %v4821
      %v4823 = vrot.slane %v4168, 1
      %v4824 = vsel %vm436, %v4821, %v4823
      %v4825 = vrot.slane %v4170, 1
      %v4826 = vrot.slane %v4171, 1
      %v4827 = vsel %vm436, %v4825, %v4826
      %v4828 = vrot.slane %v4172, 1
      %v4829 = vsel %vm436, %v4826, %v4828
      %v4830 = vrot.slane %v4174, 1
      %v4831 = vrot.slane %v4175, 1
      %v4832 = vsel %vm436, %v4830, %v4831
      %v4833 = vrot.slane %v4176, 1
      %v4834 = vsel %vm436, %v4831, %v4833
      %v4835 = vrot.slane %v4178, 1
      %v4836 = vrot.slane %v4179, 1
      %v4837 = vsel %vm436, %v4835, %v4836
      %v4838 = vrot.slane %v4180, 1
      %v4839 = vsel %vm436, %v4836, %v4838
      %v4840 = vrot.slane %v4182, 1
      %v4841 = vrot.slane %v4183, 1
      %v4842 = vsel %vm436, %v4840, %v4841
      %v4843 = vrot.slane %v4184, 1
      %v4844 = vsel %vm436, %v4841, %v4843
      %s4845 = scalar_lea.vmem %s3, 512
      %v4846 = vld [vmem:[%s4845] sm:$0xff]
      %v4847 = vld [vmem:[%s4845 + $0x8] sm:$0xff]
      %v4848 = vld [vmem:[%s4845 + $0x10] sm:$0xff]
      %v4849 = vld [vmem:[%s4845 + $0x18] sm:$0xff]
      %v4850 = vld [vmem:[%s4845 + $0x20] sm:$0xff]
      %v4851 = vld [vmem:[%s4845 + $0x28] sm:$0xff]
      %v4852 = vld [vmem:[%s4845 + $0x30] sm:$0xff]
      %v4853 = vld [vmem:[%s4845 + $0x38] sm:$0xff]
      %v4854 = vsel %vm2194, %v4767, 0
      %v4856 = vsel %vm2194, %v4769, 0
      %v4858 = vsel %vm2194, %v4772, 0
      %v4860 = vsel %vm2194, %v4774, 0
      %v4862 = vsel %vm2194, %v4777, 0
      %v4864 = vsel %vm2194, %v4779, 0
      %v4866 = vsel %vm2194, %v4782, 0
      %v4868 = vsel %vm2194, %v4784, 0
      %v4870 = vsel %vm2194, %v4787, 0
      %v4872 = vsel %vm2194, %v4789, 0
      %v4874 = vsel %vm2194, %v4792, 0
      %v4876 = vsel %vm2194, %v4794, 0
      %v4878 = vsel %vm2194, %v4797, 0
      %v4880 = vsel %vm2194, %v4799, 0
      %v4882 = vsel %vm2194, %v4802, 0
      %v4884 = vsel %vm2194, %v4804, 0
      %v4886 = vsel %vm2194, %v4807, 0
      %v4888 = vsel %vm2194, %v4809, 0
      %v4890 = vsel %vm2194, %v4812, 0
      %v4892 = vsel %vm2194, %v4814, 0
      %v4894 = vsel %vm2194, %v4817, 0
      %v4896 = vsel %vm2194, %v4819, 0
      %v4898 = vsel %vm2194, %v4822, 0
      %v4900 = vsel %vm2194, %v4824, 0
      %v4902 = vsel %vm2194, %v4827, 0
      %v4904 = vsel %vm2194, %v4829, 0
      %v4906 = vsel %vm2194, %v4832, 0
      %v4908 = vsel %vm2194, %v4834, 0
      %v4910 = vsel %vm2194, %v4837, 0
      %v4912 = vsel %vm2194, %v4839, 0
      %v4914 = vsel %vm2194, %v4842, 0
      %v4916 = vsel %vm2194, %v4844, 0
      %4918 = vmatpush.msra.mxu0 0.0
      %4919 = vmatpush.msra.mxu0 0.0
      %4920 = vmatpush.msra.mxu0 0.0
      %4921 = vmatpush.msra.mxu0 0.0
      %4922 = vmatpush.msra.mxu0 0.0
      %4923 = vmatpush.msra.mxu0 0.0
      %4924 = vmatpush.msra.mxu0 0.0
      %4925 = vmatpush.msra.mxu0 0.0
      %4926 = vmatpush.msra.mxu0 %v4853
      %4927 = vmatpush.msra.mxu0 %v4852
      %4928 = vmatpush.msra.mxu0 %v4851
      %4929 = vmatpush.msra.mxu0 %v4850
      %4930 = vmatpush.msra.mxu0 %v4849
      %4931 = vmatpush.msra.mxu0 %v4848
      %4932 = vmatpush.msra.mxu0 %v4847
      %4933 = vmatpush.msra.mxu0 %v4846
      %4934 = vmatmul.f32.gmra.mxu0 %v4854
      %v4935 = vpop.f32.mrf.mxu0
      %v4936 = vadd.f32 0.0, %v4935
      %4937 = vmatmul.f32.gmra.mxu0 %v4856
      %v4938 = vpop.f32.mrf.mxu0
      %v4939 = vadd.f32 0.0, %v4938
      %4940 = vmatmul.f32.gmra.mxu0 %v4858
      %v4941 = vpop.f32.mrf.mxu0
      %v4942 = vadd.f32 0.0, %v4941
      %4943 = vmatmul.f32.gmra.mxu0 %v4860
      %v4944 = vpop.f32.mrf.mxu0
      %v4945 = vadd.f32 0.0, %v4944
      %4946 = vmatmul.f32.gmra.mxu0 %v4862
      %v4947 = vpop.f32.mrf.mxu0
      %v4948 = vadd.f32 0.0, %v4947
      %4949 = vmatmul.f32.gmra.mxu0 %v4864
      %v4950 = vpop.f32.mrf.mxu0
      %v4951 = vadd.f32 0.0, %v4950
      %4952 = vmatmul.f32.gmra.mxu0 %v4866
      %v4953 = vpop.f32.mrf.mxu0
      %v4954 = vadd.f32 0.0, %v4953
      %4955 = vmatmul.f32.gmra.mxu0 %v4868
      %v4956 = vpop.f32.mrf.mxu0
      %v4957 = vadd.f32 0.0, %v4956
      %4958 = vmatmul.f32.gmra.mxu0 %v4870
      %v4959 = vpop.f32.mrf.mxu0
      %v4960 = vadd.f32 0.0, %v4959
      %4961 = vmatmul.f32.gmra.mxu0 %v4872
      %v4962 = vpop.f32.mrf.mxu0
      %v4963 = vadd.f32 0.0, %v4962
      %4964 = vmatmul.f32.gmra.mxu0 %v4874
      %v4965 = vpop.f32.mrf.mxu0
      %v4966 = vadd.f32 0.0, %v4965
      %4967 = vmatmul.f32.gmra.mxu0 %v4876
      %v4968 = vpop.f32.mrf.mxu0
      %v4969 = vadd.f32 0.0, %v4968
      %4970 = vmatmul.f32.gmra.mxu0 %v4878
      %v4971 = vpop.f32.mrf.mxu0
      %v4972 = vadd.f32 0.0, %v4971
      %4973 = vmatmul.f32.gmra.mxu0 %v4880
      %v4974 = vpop.f32.mrf.mxu0
      %v4975 = vadd.f32 0.0, %v4974
      %4976 = vmatmul.f32.gmra.mxu0 %v4882
      %v4977 = vpop.f32.mrf.mxu0
      %v4978 = vadd.f32 0.0, %v4977
      %4979 = vmatmul.f32.gmra.mxu0 %v4884
      %v4980 = vpop.f32.mrf.mxu0
      %v4981 = vadd.f32 0.0, %v4980
      %4982 = vmatmul.f32.gmra.mxu0 %v4886
      %v4983 = vpop.f32.mrf.mxu0
      %v4984 = vadd.f32 0.0, %v4983
      %4985 = vmatmul.f32.gmra.mxu0 %v4888
      %v4986 = vpop.f32.mrf.mxu0
      %v4987 = vadd.f32 0.0, %v4986
      %4988 = vmatmul.f32.gmra.mxu0 %v4890
      %v4989 = vpop.f32.mrf.mxu0
      %v4990 = vadd.f32 0.0, %v4989
      %4991 = vmatmul.f32.gmra.mxu0 %v4892
      %v4992 = vpop.f32.mrf.mxu0
      %v4993 = vadd.f32 0.0, %v4992
      %4994 = vmatmul.f32.gmra.mxu0 %v4894
      %v4995 = vpop.f32.mrf.mxu0
      %v4996 = vadd.f32 0.0, %v4995
      %4997 = vmatmul.f32.gmra.mxu0 %v4896
      %v4998 = vpop.f32.mrf.mxu0
      %v4999 = vadd.f32 0.0, %v4998
      %5000 = vmatmul.f32.gmra.mxu0 %v4898
      %v5001 = vpop.f32.mrf.mxu0
      %v5002 = vadd.f32 0.0, %v5001
      %5003 = vmatmul.f32.gmra.mxu0 %v4900
      %v5004 = vpop.f32.mrf.mxu0
      %v5005 = vadd.f32 0.0, %v5004
      %5006 = vmatmul.f32.gmra.mxu0 %v4902
      %v5007 = vpop.f32.mrf.mxu0
      %v5008 = vadd.f32 0.0, %v5007
      %5009 = vmatmul.f32.gmra.mxu0 %v4904
      %v5010 = vpop.f32.mrf.mxu0
      %v5011 = vadd.f32 0.0, %v5010
      %5012 = vmatmul.f32.gmra.mxu0 %v4906
      %v5013 = vpop.f32.mrf.mxu0
      %v5014 = vadd.f32 0.0, %v5013
      %5015 = vmatmul.f32.gmra.mxu0 %v4908
      %v5016 = vpop.f32.mrf.mxu0
      %v5017 = vadd.f32 0.0, %v5016
      %5018 = vmatmul.f32.gmra.mxu0 %v4910
      %v5019 = vpop.f32.mrf.mxu0
      %v5020 = vadd.f32 0.0, %v5019
      %5021 = vmatmul.f32.gmra.mxu0 %v4912
      %v5022 = vpop.f32.mrf.mxu0
      %v5023 = vadd.f32 0.0, %v5022
      %5024 = vmatmul.f32.gmra.mxu0 %v4914
      %v5025 = vpop.f32.mrf.mxu0
      %v5026 = vadd.f32 0.0, %v5025
      %5027 = vmatmul.f32.gmra.mxu0 %v4916
      %v5028 = vpop.f32.mrf.mxu0
      %v5029 = vadd.f32 0.0, %v5028
      %5030 = vdwg.mxu0
      %v5031 = vadd.f32 %v4717, %v4936
      %v5032 = vadd.f32 %v4718, %v4939
      %v5033 = vadd.f32 %v4719, %v4942
      %v5034 = vadd.f32 %v4720, %v4945
      %v5035 = vadd.f32 %v4721, %v4948
      %v5036 = vadd.f32 %v4722, %v4951
      %v5037 = vadd.f32 %v4723, %v4954
      %v5038 = vadd.f32 %v4724, %v4957
      %v5039 = vadd.f32 %v4725, %v4960
      %v5040 = vadd.f32 %v4726, %v4963
      %v5041 = vadd.f32 %v4727, %v4966
      %v5042 = vadd.f32 %v4728, %v4969
      %v5043 = vadd.f32 %v4729, %v4972
      %v5044 = vadd.f32 %v4730, %v4975
      %v5045 = vadd.f32 %v4731, %v4978
      %v5046 = vadd.f32 %v4732, %v4981
      %v5047 = vadd.f32 %v4733, %v4984
      %v5048 = vadd.f32 %v4734, %v4987
      %v5049 = vadd.f32 %v4735, %v4990
      %v5050 = vadd.f32 %v4736, %v4993
      %v5051 = vadd.f32 %v4737, %v4996
      %v5052 = vadd.f32 %v4738, %v4999
      %v5053 = vadd.f32 %v4739, %v5002
      %v5054 = vadd.f32 %v4740, %v5005
      %v5055 = vadd.f32 %v4741, %v5008
      %v5056 = vadd.f32 %v4742, %v5011
      %v5057 = vadd.f32 %v4743, %v5014
      %v5058 = vadd.f32 %v4744, %v5017
      %v5059 = vadd.f32 %v4745, %v5020
      %v5060 = vadd.f32 %v4746, %v5023
      %v5061 = vadd.f32 %v4747, %v5026
      %v5062 = vadd.f32 %v4748, %v5029
      %v5063 = vld [vmem:[%s4] sm:$0x1]
      %v5065 = vperm.slane %v5063, 0
      %v5067 = vadd.f32 %v5031, %v5065
      %v5068 = vadd.f32 %v5032, %v5065
      %v5069 = vadd.f32 %v5033, %v5065
      %v5070 = vadd.f32 %v5034, %v5065
      %v5071 = vadd.f32 %v5035, %v5065
      %v5072 = vadd.f32 %v5036, %v5065
      %v5073 = vadd.f32 %v5037, %v5065
      %v5074 = vadd.f32 %v5038, %v5065
      %v5075 = vadd.f32 %v5039, %v5065
      %v5076 = vadd.f32 %v5040, %v5065
      %v5077 = vadd.f32 %v5041, %v5065
      %v5078 = vadd.f32 %v5042, %v5065
      %v5079 = vadd.f32 %v5043, %v5065
      %v5080 = vadd.f32 %v5044, %v5065
      %v5081 = vadd.f32 %v5045, %v5065
      %v5082 = vadd.f32 %v5046, %v5065
      %v5083 = vadd.f32 %v5047, %v5065
      %v5084 = vadd.f32 %v5048, %v5065
      %v5085 = vadd.f32 %v5049, %v5065
      %v5086 = vadd.f32 %v5050, %v5065
      %v5087 = vadd.f32 %v5051, %v5065
      %v5088 = vadd.f32 %v5052, %v5065
      %v5089 = vadd.f32 %v5053, %v5065
      %v5090 = vadd.f32 %v5054, %v5065
      %v5091 = vadd.f32 %v5055, %v5065
      %v5092 = vadd.f32 %v5056, %v5065
      %v5093 = vadd.f32 %v5057, %v5065
      %v5094 = vadd.f32 %v5058, %v5065
      %v5095 = vadd.f32 %v5059, %v5065
      %v5096 = vadd.f32 %v5060, %v5065
      %v5097 = vadd.f32 %v5061, %v5065
      %v5098 = vadd.f32 %v5062, %v5065
      %v5099 = vmax.f32 %v5067, 0.0
      %v5100 = vmax.f32 %v5068, 0.0
      %v5101 = vmax.f32 %v5069, 0.0
      %v5102 = vmax.f32 %v5070, 0.0
      %v5103 = vmax.f32 %v5071, 0.0
      %v5104 = vmax.f32 %v5072, 0.0
      %v5105 = vmax.f32 %v5073, 0.0
      %v5106 = vmax.f32 %v5074, 0.0
      %v5107 = vmax.f32 %v5075, 0.0
      %v5108 = vmax.f32 %v5076, 0.0
      %v5109 = vmax.f32 %v5077, 0.0
      %v5110 = vmax.f32 %v5078, 0.0
      %v5111 = vmax.f32 %v5079, 0.0
      %v5112 = vmax.f32 %v5080, 0.0
      %v5113 = vmax.f32 %v5081, 0.0
      %v5114 = vmax.f32 %v5082, 0.0
      %v5115 = vmax.f32 %v5083, 0.0
      %v5116 = vmax.f32 %v5084, 0.0
      %v5117 = vmax.f32 %v5085, 0.0
      %v5118 = vmax.f32 %v5086, 0.0
      %v5119 = vmax.f32 %v5087, 0.0
      %v5120 = vmax.f32 %v5088, 0.0
      %v5121 = vmax.f32 %v5089, 0.0
      %v5122 = vmax.f32 %v5090, 0.0
      %v5123 = vmax.f32 %v5091, 0.0
      %v5124 = vmax.f32 %v5092, 0.0
      %v5125 = vmax.f32 %v5093, 0.0
      %v5126 = vmax.f32 %v5094, 0.0
      %v5127 = vmax.f32 %v5095, 0.0
      %v5128 = vmax.f32 %v5096, 0.0
      %v5129 = vmax.f32 %v5097, 0.0
      %v5130 = vmax.f32 %v5098, 0.0
      %5131 = vst.msk [vmem:[%s2267 + $0x8] sm:$0xff] %vm2194, %v5099
      %5132 = vst.msk [vmem:[%s2267 + $0x10] sm:$0xff] %vm2194, %v5100
      %5133 = vst.msk [vmem:[%s2267 + $0x28] sm:$0xff] %vm2194, %v5101
      %5134 = vst.msk [vmem:[%s2267 + $0x30] sm:$0xff] %vm2194, %v5102
      %5135 = vst.msk [vmem:[%s2267 + $0x48] sm:$0xff] %vm2194, %v5103
      %5136 = vst.msk [vmem:[%s2267 + $0x50] sm:$0xff] %vm2194, %v5104
      %5137 = vst.msk [vmem:[%s2267 + $0x68] sm:$0xff] %vm2194, %v5105
      %5138 = vst.msk [vmem:[%s2267 + $0x70] sm:$0xff] %vm2194, %v5106
      %5139 = vst.msk [vmem:[%s2267 + $0x88] sm:$0xff] %vm2194, %v5107
      %5140 = vst.msk [vmem:[%s2267 + $0x90] sm:$0xff] %vm2194, %v5108
      %5141 = vst.msk [vmem:[%s2267 + $0xa8] sm:$0xff] %vm2194, %v5109
      %5142 = vst.msk [vmem:[%s2267 + $0xb0] sm:$0xff] %vm2194, %v5110
      %5143 = vst.msk [vmem:[%s2267 + $0xc8] sm:$0xff] %vm2194, %v5111
      %5144 = vst.msk [vmem:[%s2267 + $0xd0] sm:$0xff] %vm2194, %v5112
      %5145 = vst.msk [vmem:[%s2267 + $0xe8] sm:$0xff] %vm2194, %v5113
      %5146 = vst.msk [vmem:[%s2267 + $0xf0] sm:$0xff] %vm2194, %v5114
      %5147 = vst.msk [vmem:[%s2267 + $0x108] sm:$0xff] %vm2194, %v5115
      %5148 = vst.msk [vmem:[%s2267 + $0x110] sm:$0xff] %vm2194, %v5116
      %5149 = vst.msk [vmem:[%s2267 + $0x128] sm:$0xff] %vm2194, %v5117
      %5150 = vst.msk [vmem:[%s2267 + $0x130] sm:$0xff] %vm2194, %v5118
      %5151 = vst.msk [vmem:[%s2267 + $0x148] sm:$0xff] %vm2194, %v5119
      %5152 = vst.msk [vmem:[%s2267 + $0x150] sm:$0xff] %vm2194, %v5120
      %5153 = vst.msk [vmem:[%s2267 + $0x168] sm:$0xff] %vm2194, %v5121
      %5154 = vst.msk [vmem:[%s2267 + $0x170] sm:$0xff] %vm2194, %v5122
      %5155 = vst.msk [vmem:[%s2267 + $0x188] sm:$0xff] %vm2194, %v5123
      %5156 = vst.msk [vmem:[%s2267 + $0x190] sm:$0xff] %vm2194, %v5124
      %5157 = vst.msk [vmem:[%s2267 + $0x1a8] sm:$0xff] %vm2194, %v5125
      %5158 = vst.msk [vmem:[%s2267 + $0x1b0] sm:$0xff] %vm2194, %v5126
      %5159 = vst.msk [vmem:[%s2267 + $0x1c8] sm:$0xff] %vm2194, %v5127
      %5160 = vst.msk [vmem:[%s2267 + $0x1d0] sm:$0xff] %vm2194, %v5128
      %5161 = vst.msk [vmem:[%s2267 + $0x1e8] sm:$0xff] %vm2194, %v5129
      %5162 = vst.msk [vmem:[%s2267 + $0x1f0] sm:$0xff] %vm2194, %v5130
      %v5163 = vld [vmem:[#allocation2] sm:$0xff]
      %v5164 = vld [vmem:[#allocation2 + $0x8] sm:$0xff]
      %v5165 = vld [vmem:[#allocation2 + $0x10] sm:$0xff]
      %v5166 = vld [vmem:[#allocation2 + $0x18] sm:$0xff]
      %v5167 = vld [vmem:[#allocation2 + $0x20] sm:$0xff]
      %v5168 = vld [vmem:[#allocation2 + $0x28] sm:$0xff]
      %v5169 = vld [vmem:[#allocation2 + $0x30] sm:$0xff]
      %v5170 = vld [vmem:[#allocation2 + $0x38] sm:$0xff]
      %v5171 = vld [vmem:[#allocation2 + $0x40] sm:$0xff]
      %v5172 = vld [vmem:[#allocation2 + $0x48] sm:$0xff]
      %v5173 = vld [vmem:[#allocation2 + $0x50] sm:$0xff]
      %v5174 = vld [vmem:[#allocation2 + $0x58] sm:$0xff]
      %v5175 = vld [vmem:[#allocation2 + $0x60] sm:$0xff]
      %v5176 = vld [vmem:[#allocation2 + $0x68] sm:$0xff]
      %v5177 = vld [vmem:[#allocation2 + $0x70] sm:$0xff]
      %v5178 = vld [vmem:[#allocation2 + $0x78] sm:$0xff]
      %v5179 = vld [vmem:[#allocation2 + $0x80] sm:$0xff]
      %v5180 = vld [vmem:[#allocation2 + $0x88] sm:$0xff]
      %v5181 = vld [vmem:[#allocation2 + $0x90] sm:$0xff]
      %v5182 = vld [vmem:[#allocation2 + $0x98] sm:$0xff]
      %v5183 = vld [vmem:[#allocation2 + $0xa0] sm:$0xff]
      %v5184 = vld [vmem:[#allocation2 + $0xa8] sm:$0xff]
      %v5185 = vld [vmem:[#allocation2 + $0xb0] sm:$0xff]
      %v5186 = vld [vmem:[#allocation2 + $0xb8] sm:$0xff]
      %v5187 = vld [vmem:[#allocation2 + $0xc0] sm:$0xff]
      %v5188 = vld [vmem:[#allocation2 + $0xc8] sm:$0xff]
      %v5189 = vld [vmem:[#allocation2 + $0xd0] sm:$0xff]
      %v5190 = vld [vmem:[#allocation2 + $0xd8] sm:$0xff]
      %v5191 = vld [vmem:[#allocation2 + $0xe0] sm:$0xff]
      %v5192 = vld [vmem:[#allocation2 + $0xe8] sm:$0xff]
      %v5193 = vld [vmem:[#allocation2 + $0xf0] sm:$0xff]
      %v5194 = vld [vmem:[#allocation2 + $0xf8] sm:$0xff]
      %v5195 = vld [vmem:[#allocation2 + $0x100] sm:$0xff]
      %v5196 = vld [vmem:[#allocation2 + $0x108] sm:$0xff]
      %v5197 = vld [vmem:[#allocation2 + $0x110] sm:$0xff]
      %v5198 = vld [vmem:[#allocation2 + $0x118] sm:$0xff]
      %v5199 = vld [vmem:[#allocation2 + $0x120] sm:$0xff]
      %v5200 = vld [vmem:[#allocation2 + $0x128] sm:$0xff]
      %v5201 = vld [vmem:[#allocation2 + $0x130] sm:$0xff]
      %v5202 = vld [vmem:[#allocation2 + $0x138] sm:$0xff]
      %v5203 = vld [vmem:[#allocation2 + $0x140] sm:$0xff]
      %v5204 = vld [vmem:[#allocation2 + $0x148] sm:$0xff]
      %v5205 = vld [vmem:[#allocation2 + $0x150] sm:$0xff]
      %v5206 = vld [vmem:[#allocation2 + $0x158] sm:$0xff]
      %v5207 = vld [vmem:[#allocation2 + $0x160] sm:$0xff]
      %v5208 = vld [vmem:[#allocation2 + $0x168] sm:$0xff]
      %v5209 = vld [vmem:[#allocation2 + $0x170] sm:$0xff]
      %v5210 = vld [vmem:[#allocation2 + $0x178] sm:$0xff]
      %v5211 = vld [vmem:[#allocation2 + $0x180] sm:$0xff]
      %v5212 = vld [vmem:[#allocation2 + $0x188] sm:$0xff]
      %v5213 = vld [vmem:[#allocation2 + $0x190] sm:$0xff]
      %v5214 = vld [vmem:[#allocation2 + $0x198] sm:$0xff]
      %v5215 = vld [vmem:[#allocation2 + $0x1a0] sm:$0xff]
      %v5216 = vld [vmem:[#allocation2 + $0x1a8] sm:$0xff]
      %v5217 = vld [vmem:[#allocation2 + $0x1b0] sm:$0xff]
      %v5218 = vld [vmem:[#allocation2 + $0x1b8] sm:$0xff]
      %v5219 = vld [vmem:[#allocation2 + $0x1c0] sm:$0xff]
      %v5220 = vld [vmem:[#allocation2 + $0x1c8] sm:$0xff]
      %v5221 = vld [vmem:[#allocation2 + $0x1d0] sm:$0xff]
      %v5222 = vld [vmem:[#allocation2 + $0x1d8] sm:$0xff]
      %v5223 = vld [vmem:[#allocation2 + $0x1e0] sm:$0xff]
      %v5224 = vld [vmem:[#allocation2 + $0x1e8] sm:$0xff]
      %v5225 = vld [vmem:[#allocation2 + $0x1f0] sm:$0xff]
      %v5226 = vld [vmem:[#allocation2 + $0x1f8] sm:$0xff]
      %v5275 = vrot.slane %v5163, 7
      %v5276 = vrot.slane %v5164, 7
      %v5277 = vsel %vm2412, %v5275, %v5276
      %v5278 = vrot.slane %v5165, 7
      %v5279 = vsel %vm2412, %v5276, %v5278
      %v5280 = vrot.slane %v5167, 7
      %v5281 = vrot.slane %v5168, 7
      %v5282 = vsel %vm2412, %v5280, %v5281
      %v5283 = vrot.slane %v5169, 7
      %v5284 = vsel %vm2412, %v5281, %v5283
      %v5285 = vrot.slane %v5171, 7
      %v5286 = vrot.slane %v5172, 7
      %v5287 = vsel %vm2412, %v5285, %v5286
      %v5288 = vrot.slane %v5173, 7
      %v5289 = vsel %vm2412, %v5286, %v5288
      %v5290 = vrot.slane %v5175, 7
      %v5291 = vrot.slane %v5176, 7
      %v5292 = vsel %vm2412, %v5290, %v5291
      %v5293 = vrot.slane %v5177, 7
      %v5294 = vsel %vm2412, %v5291, %v5293
      %v5295 = vrot.slane %v5179, 7
      %v5296 = vrot.slane %v5180, 7
      %v5297 = vsel %vm2412, %v5295, %v5296
      %v5298 = vrot.slane %v5181, 7
      %v5299 = vsel %vm2412, %v5296, %v5298
      %v5300 = vrot.slane %v5183, 7
      %v5301 = vrot.slane %v5184, 7
      %v5302 = vsel %vm2412, %v5300, %v5301
      %v5303 = vrot.slane %v5185, 7
      %v5304 = vsel %vm2412, %v5301, %v5303
      %v5305 = vrot.slane %v5187, 7
      %v5306 = vrot.slane %v5188, 7
      %v5307 = vsel %vm2412, %v5305, %v5306
      %v5308 = vrot.slane %v5189, 7
      %v5309 = vsel %vm2412, %v5306, %v5308
      %v5310 = vrot.slane %v5191, 7
      %v5311 = vrot.slane %v5192, 7
      %v5312 = vsel %vm2412, %v5310, %v5311
      %v5313 = vrot.slane %v5193, 7
      %v5314 = vsel %vm2412, %v5311, %v5313
      %v5315 = vrot.slane %v5195, 7
      %v5316 = vrot.slane %v5196, 7
      %v5317 = vsel %vm2412, %v5315, %v5316
      %v5318 = vrot.slane %v5197, 7
      %v5319 = vsel %vm2412, %v5316, %v5318
      %v5320 = vrot.slane %v5199, 7
      %v5321 = vrot.slane %v5200, 7
      %v5322 = vsel %vm2412, %v5320, %v5321
      %v5323 = vrot.slane %v5201, 7
      %v5324 = vsel %vm2412, %v5321, %v5323
      %v5325 = vrot.slane %v5203, 7
      %v5326 = vrot.slane %v5204, 7
      %v5327 = vsel %vm2412, %v5325, %v5326
      %v5328 = vrot.slane %v5205, 7
      %v5329 = vsel %vm2412, %v5326, %v5328
      %v5330 = vrot.slane %v5207, 7
      %v5331 = vrot.slane %v5208, 7
      %v5332 = vsel %vm2412, %v5330, %v5331
      %v5333 = vrot.slane %v5209, 7
      %v5334 = vsel %vm2412, %v5331, %v5333
      %v5335 = vrot.slane %v5211, 7
      %v5336 = vrot.slane %v5212, 7
      %v5337 = vsel %vm2412, %v5335, %v5336
      %v5338 = vrot.slane %v5213, 7
      %v5339 = vsel %vm2412, %v5336, %v5338
      %v5340 = vrot.slane %v5215, 7
      %v5341 = vrot.slane %v5216, 7
      %v5342 = vsel %vm2412, %v5340, %v5341
      %v5343 = vrot.slane %v5217, 7
      %v5344 = vsel %vm2412, %v5341, %v5343
      %v5345 = vrot.slane %v5219, 7
      %v5346 = vrot.slane %v5220, 7
      %v5347 = vsel %vm2412, %v5345, %v5346
      %v5348 = vrot.slane %v5221, 7
      %v5349 = vsel %vm2412, %v5346, %v5348
      %v5350 = vrot.slane %v5223, 7
      %v5351 = vrot.slane %v5224, 7
      %v5352 = vsel %vm2412, %v5350, %v5351
      %v5353 = vrot.slane %v5225, 7
      %v5354 = vsel %vm2412, %v5351, %v5353
      %v5355 = vld [vmem:[%s5] sm:$0xff]
      %v5356 = vld [vmem:[%s5 + $0x8] sm:$0xff]
      %v5357 = vld [vmem:[%s5 + $0x10] sm:$0xff]
      %v5358 = vld [vmem:[%s5 + $0x18] sm:$0xff]
      %v5359 = vld [vmem:[%s5 + $0x20] sm:$0xff]
      %v5360 = vld [vmem:[%s5 + $0x28] sm:$0xff]
      %v5361 = vld [vmem:[%s5 + $0x30] sm:$0xff]
      %v5362 = vld [vmem:[%s5 + $0x38] sm:$0xff]
      %s5363 = scalar_lea.vmem %s5, 64
      %v5364 = vld [vmem:[%s5363] sm:$0xff]
      %v5365 = vld [vmem:[%s5363 + $0x8] sm:$0xff]
      %v5366 = vld [vmem:[%s5363 + $0x10] sm:$0xff]
      %v5367 = vld [vmem:[%s5363 + $0x18] sm:$0xff]
      %v5368 = vld [vmem:[%s5363 + $0x20] sm:$0xff]
      %v5369 = vld [vmem:[%s5363 + $0x28] sm:$0xff]
      %v5370 = vld [vmem:[%s5363 + $0x30] sm:$0xff]
      %v5371 = vld [vmem:[%s5363 + $0x38] sm:$0xff]
      %v5372 = vsel %vm2194, %v5164, 0
      %v5374 = vsel %vm2194, %v5165, 0
      %v5376 = vsel %vm2194, %v5168, 0
      %v5378 = vsel %vm2194, %v5169, 0
      %v5380 = vsel %vm2194, %v5172, 0
      %v5382 = vsel %vm2194, %v5173, 0
      %v5384 = vsel %vm2194, %v5176, 0
      %v5386 = vsel %vm2194, %v5177, 0
      %v5388 = vsel %vm2194, %v5180, 0
      %v5390 = vsel %vm2194, %v5181, 0
      %v5392 = vsel %vm2194, %v5184, 0
      %v5394 = vsel %vm2194, %v5185, 0
      %v5396 = vsel %vm2194, %v5188, 0
      %v5398 = vsel %vm2194, %v5189, 0
      %v5400 = vsel %vm2194, %v5192, 0
      %v5402 = vsel %vm2194, %v5193, 0
      %v5404 = vsel %vm2194, %v5196, 0
      %v5406 = vsel %vm2194, %v5197, 0
      %v5408 = vsel %vm2194, %v5200, 0
      %v5410 = vsel %vm2194, %v5201, 0
      %v5412 = vsel %vm2194, %v5204, 0
      %v5414 = vsel %vm2194, %v5205, 0
      %v5416 = vsel %vm2194, %v5208, 0
      %v5418 = vsel %vm2194, %v5209, 0
      %v5420 = vsel %vm2194, %v5212, 0
      %v5422 = vsel %vm2194, %v5213, 0
      %v5424 = vsel %vm2194, %v5216, 0
      %v5426 = vsel %vm2194, %v5217, 0
      %v5428 = vsel %vm2194, %v5220, 0
      %v5430 = vsel %vm2194, %v5221, 0
      %v5432 = vsel %vm2194, %v5224, 0
      %v5434 = vsel %vm2194, %v5225, 0
      %5436 = vmatpush.msra.mxu0 0.0
      %5437 = vmatpush.msra.mxu0 0.0
      %5438 = vmatpush.msra.mxu0 0.0
      %5439 = vmatpush.msra.mxu0 0.0
      %5440 = vmatpush.msra.mxu0 0.0
      %5441 = vmatpush.msra.mxu0 0.0
      %5442 = vmatpush.msra.mxu0 0.0
      %5443 = vmatpush.msra.mxu0 0.0
      %5444 = vmatpush.msra.mxu0 %v5371
      %5445 = vmatpush.msra.mxu0 %v5370
      %5446 = vmatpush.msra.mxu0 %v5369
      %5447 = vmatpush.msra.mxu0 %v5368
      %5448 = vmatpush.msra.mxu0 %v5367
      %5449 = vmatpush.msra.mxu0 %v5366
      %5450 = vmatpush.msra.mxu0 %v5365
      %5451 = vmatpush.msra.mxu0 %v5364
      %5452 = vmatmul.f32.gmra.mxu0 %v5372
      %v5453 = vpop.f32.mrf.mxu0
      %v5454 = vadd.f32 0.0, %v5453
      %5455 = vmatmul.f32.gmra.mxu0 %v5374
      %v5456 = vpop.f32.mrf.mxu0
      %v5457 = vadd.f32 0.0, %v5456
      %5458 = vmatmul.f32.gmra.mxu0 %v5376
      %v5459 = vpop.f32.mrf.mxu0
      %v5460 = vadd.f32 0.0, %v5459
      %5461 = vmatmul.f32.gmra.mxu0 %v5378
      %v5462 = vpop.f32.mrf.mxu0
      %v5463 = vadd.f32 0.0, %v5462
      %5464 = vmatmul.f32.gmra.mxu0 %v5380
      %v5465 = vpop.f32.mrf.mxu0
      %v5466 = vadd.f32 0.0, %v5465
      %5467 = vmatmul.f32.gmra.mxu0 %v5382
      %v5468 = vpop.f32.mrf.mxu0
      %v5469 = vadd.f32 0.0, %v5468
      %5470 = vmatmul.f32.gmra.mxu0 %v5384
      %v5471 = vpop.f32.mrf.mxu0
      %v5472 = vadd.f32 0.0, %v5471
      %5473 = vmatmul.f32.gmra.mxu0 %v5386
      %v5474 = vpop.f32.mrf.mxu0
      %v5475 = vadd.f32 0.0, %v5474
      %5476 = vmatmul.f32.gmra.mxu0 %v5388
      %v5477 = vpop.f32.mrf.mxu0
      %v5478 = vadd.f32 0.0, %v5477
      %5479 = vmatmul.f32.gmra.mxu0 %v5390
      %v5480 = vpop.f32.mrf.mxu0
      %v5481 = vadd.f32 0.0, %v5480
      %5482 = vmatmul.f32.gmra.mxu0 %v5392
      %v5483 = vpop.f32.mrf.mxu0
      %v5484 = vadd.f32 0.0, %v5483
      %5485 = vmatmul.f32.gmra.mxu0 %v5394
      %v5486 = vpop.f32.mrf.mxu0
      %v5487 = vadd.f32 0.0, %v5486
      %5488 = vmatmul.f32.gmra.mxu0 %v5396
      %v5489 = vpop.f32.mrf.mxu0
      %v5490 = vadd.f32 0.0, %v5489
      %5491 = vmatmul.f32.gmra.mxu0 %v5398
      %v5492 = vpop.f32.mrf.mxu0
      %v5493 = vadd.f32 0.0, %v5492
      %5494 = vmatmul.f32.gmra.mxu0 %v5400
      %v5495 = vpop.f32.mrf.mxu0
      %v5496 = vadd.f32 0.0, %v5495
      %5497 = vmatmul.f32.gmra.mxu0 %v5402
      %v5498 = vpop.f32.mrf.mxu0
      %v5499 = vadd.f32 0.0, %v5498
      %5500 = vmatmul.f32.gmra.mxu0 %v5404
      %v5501 = vpop.f32.mrf.mxu0
      %v5502 = vadd.f32 0.0, %v5501
      %5503 = vmatmul.f32.gmra.mxu0 %v5406
      %v5504 = vpop.f32.mrf.mxu0
      %v5505 = vadd.f32 0.0, %v5504
      %5506 = vmatmul.f32.gmra.mxu0 %v5408
      %v5507 = vpop.f32.mrf.mxu0
      %v5508 = vadd.f32 0.0, %v5507
      %5509 = vmatmul.f32.gmra.mxu0 %v5410
      %v5510 = vpop.f32.mrf.mxu0
      %v5511 = vadd.f32 0.0, %v5510
      %5512 = vmatmul.f32.gmra.mxu0 %v5412
      %v5513 = vpop.f32.mrf.mxu0
      %v5514 = vadd.f32 0.0, %v5513
      %5515 = vmatmul.f32.gmra.mxu0 %v5414
      %v5516 = vpop.f32.mrf.mxu0
      %v5517 = vadd.f32 0.0, %v5516
      %5518 = vmatmul.f32.gmra.mxu0 %v5416
      %v5519 = vpop.f32.mrf.mxu0
      %v5520 = vadd.f32 0.0, %v5519
      %5521 = vmatmul.f32.gmra.mxu0 %v5418
      %v5522 = vpop.f32.mrf.mxu0
      %v5523 = vadd.f32 0.0, %v5522
      %5524 = vmatmul.f32.gmra.mxu0 %v5420
      %v5525 = vpop.f32.mrf.mxu0
      %v5526 = vadd.f32 0.0, %v5525
      %5527 = vmatmul.f32.gmra.mxu0 %v5422
      %v5528 = vpop.f32.mrf.mxu0
      %v5529 = vadd.f32 0.0, %v5528
      %5530 = vmatmul.f32.gmra.mxu0 %v5424
      %v5531 = vpop.f32.mrf.mxu0
      %v5532 = vadd.f32 0.0, %v5531
      %5533 = vmatmul.f32.gmra.mxu0 %v5426
      %v5534 = vpop.f32.mrf.mxu0
      %v5535 = vadd.f32 0.0, %v5534
      %5536 = vmatmul.f32.gmra.mxu0 %v5428
      %v5537 = vpop.f32.mrf.mxu0
      %v5538 = vadd.f32 0.0, %v5537
      %5539 = vmatmul.f32.gmra.mxu0 %v5430
      %v5540 = vpop.f32.mrf.mxu0
      %v5541 = vadd.f32 0.0, %v5540
      %5542 = vmatmul.f32.gmra.mxu0 %v5432
      %v5543 = vpop.f32.mrf.mxu0
      %v5544 = vadd.f32 0.0, %v5543
      %5545 = vmatmul.f32.gmra.mxu0 %v5434
      %v5546 = vpop.f32.mrf.mxu0
      %v5547 = vadd.f32 0.0, %v5546
      %5548 = vdwg.mxu0
      %v5549 = vsel %vm2194, %v5277, 0
      %v5551 = vsel %vm2194, %v5279, 0
      %v5553 = vsel %vm2194, %v5282, 0
      %v5555 = vsel %vm2194, %v5284, 0
      %v5557 = vsel %vm2194, %v5287, 0
      %v5559 = vsel %vm2194, %v5289, 0
      %v5561 = vsel %vm2194, %v5292, 0
      %v5563 = vsel %vm2194, %v5294, 0
      %v5565 = vsel %vm2194, %v5297, 0
      %v5567 = vsel %vm2194, %v5299, 0
      %v5569 = vsel %vm2194, %v5302, 0
      %v5571 = vsel %vm2194, %v5304, 0
      %v5573 = vsel %vm2194, %v5307, 0
      %v5575 = vsel %vm2194, %v5309, 0
      %v5577 = vsel %vm2194, %v5312, 0
      %v5579 = vsel %vm2194, %v5314, 0
      %v5581 = vsel %vm2194, %v5317, 0
      %v5583 = vsel %vm2194, %v5319, 0
      %v5585 = vsel %vm2194, %v5322, 0
      %v5587 = vsel %vm2194, %v5324, 0
      %v5589 = vsel %vm2194, %v5327, 0
      %v5591 = vsel %vm2194, %v5329, 0
      %v5593 = vsel %vm2194, %v5332, 0
      %v5595 = vsel %vm2194, %v5334, 0
      %v5597 = vsel %vm2194, %v5337, 0
      %v5599 = vsel %vm2194, %v5339, 0
      %v5601 = vsel %vm2194, %v5342, 0
      %v5603 = vsel %vm2194, %v5344, 0
      %v5605 = vsel %vm2194, %v5347, 0
      %v5607 = vsel %vm2194, %v5349, 0
      %v5609 = vsel %vm2194, %v5352, 0
      %v5611 = vsel %vm2194, %v5354, 0
      %5613 = vmatpush.msra.mxu0 0.0
      %5614 = vmatpush.msra.mxu0 0.0
      %5615 = vmatpush.msra.mxu0 0.0
      %5616 = vmatpush.msra.mxu0 0.0
      %5617 = vmatpush.msra.mxu0 0.0
      %5618 = vmatpush.msra.mxu0 0.0
      %5619 = vmatpush.msra.mxu0 0.0
      %5620 = vmatpush.msra.mxu0 0.0
      %5621 = vmatpush.msra.mxu0 %v5362
      %5622 = vmatpush.msra.mxu0 %v5361
      %5623 = vmatpush.msra.mxu0 %v5360
      %5624 = vmatpush.msra.mxu0 %v5359
      %5625 = vmatpush.msra.mxu0 %v5358
      %5626 = vmatpush.msra.mxu0 %v5357
      %5627 = vmatpush.msra.mxu0 %v5356
      %5628 = vmatpush.msra.mxu0 %v5355
      %5629 = vmatmul.f32.gmra.mxu0 %v5549
      %v5630 = vpop.f32.mrf.mxu0
      %v5631 = vadd.f32 %v5454, %v5630
      %5632 = vmatmul.f32.gmra.mxu0 %v5551
      %v5633 = vpop.f32.mrf.mxu0
      %v5634 = vadd.f32 %v5457, %v5633
      %5635 = vmatmul.f32.gmra.mxu0 %v5553
      %v5636 = vpop.f32.mrf.mxu0
      %v5637 = vadd.f32 %v5460, %v5636
      %5638 = vmatmul.f32.gmra.mxu0 %v5555
      %v5639 = vpop.f32.mrf.mxu0
      %v5640 = vadd.f32 %v5463, %v5639
      %5641 = vmatmul.f32.gmra.mxu0 %v5557
      %v5642 = vpop.f32.mrf.mxu0
      %v5643 = vadd.f32 %v5466, %v5642
      %5644 = vmatmul.f32.gmra.mxu0 %v5559
      %v5645 = vpop.f32.mrf.mxu0
      %v5646 = vadd.f32 %v5469, %v5645
      %5647 = vmatmul.f32.gmra.mxu0 %v5561
      %v5648 = vpop.f32.mrf.mxu0
      %v5649 = vadd.f32 %v5472, %v5648
      %5650 = vmatmul.f32.gmra.mxu0 %v5563
      %v5651 = vpop.f32.mrf.mxu0
      %v5652 = vadd.f32 %v5475, %v5651
      %5653 = vmatmul.f32.gmra.mxu0 %v5565
      %v5654 = vpop.f32.mrf.mxu0
      %v5655 = vadd.f32 %v5478, %v5654
      %5656 = vmatmul.f32.gmra.mxu0 %v5567
      %v5657 = vpop.f32.mrf.mxu0
      %v5658 = vadd.f32 %v5481, %v5657
      %5659 = vmatmul.f32.gmra.mxu0 %v5569
      %v5660 = vpop.f32.mrf.mxu0
      %v5661 = vadd.f32 %v5484, %v5660
      %5662 = vmatmul.f32.gmra.mxu0 %v5571
      %v5663 = vpop.f32.mrf.mxu0
      %v5664 = vadd.f32 %v5487, %v5663
      %5665 = vmatmul.f32.gmra.mxu0 %v5573
      %v5666 = vpop.f32.mrf.mxu0
      %v5667 = vadd.f32 %v5490, %v5666
      %5668 = vmatmul.f32.gmra.mxu0 %v5575
      %v5669 = vpop.f32.mrf.mxu0
      %v5670 = vadd.f32 %v5493, %v5669
      %5671 = vmatmul.f32.gmra.mxu0 %v5577
      %v5672 = vpop.f32.mrf.mxu0
      %v5673 = vadd.f32 %v5496, %v5672
      %5674 = vmatmul.f32.gmra.mxu0 %v5579
      %v5675 = vpop.f32.mrf.mxu0
      %v5676 = vadd.f32 %v5499, %v5675
      %5677 = vmatmul.f32.gmra.mxu0 %v5581
      %v5678 = vpop.f32.mrf.mxu0
      %v5679 = vadd.f32 %v5502, %v5678
      %5680 = vmatmul.f32.gmra.mxu0 %v5583
      %v5681 = vpop.f32.mrf.mxu0
      %v5682 = vadd.f32 %v5505, %v5681
      %5683 = vmatmul.f32.gmra.mxu0 %v5585
      %v5684 = vpop.f32.mrf.mxu0
      %v5685 = vadd.f32 %v5508, %v5684
      %5686 = vmatmul.f32.gmra.mxu0 %v5587
      %v5687 = vpop.f32.mrf.mxu0
      %v5688 = vadd.f32 %v5511, %v5687
      %5689 = vmatmul.f32.gmra.mxu0 %v5589
      %v5690 = vpop.f32.mrf.mxu0
      %v5691 = vadd.f32 %v5514, %v5690
      %5692 = vmatmul.f32.gmra.mxu0 %v5591
      %v5693 = vpop.f32.mrf.mxu0
      %v5694 = vadd.f32 %v5517, %v5693
      %5695 = vmatmul.f32.gmra.mxu0 %v5593
      %v5696 = vpop.f32.mrf.mxu0
      %v5697 = vadd.f32 %v5520, %v5696
      %5698 = vmatmul.f32.gmra.mxu0 %v5595
      %v5699 = vpop.f32.mrf.mxu0
      %v5700 = vadd.f32 %v5523, %v5699
      %5701 = vmatmul.f32.gmra.mxu0 %v5597
      %v5702 = vpop.f32.mrf.mxu0
      %v5703 = vadd.f32 %v5526, %v5702
      %5704 = vmatmul.f32.gmra.mxu0 %v5599
      %v5705 = vpop.f32.mrf.mxu0
      %v5706 = vadd.f32 %v5529, %v5705
      %5707 = vmatmul.f32.gmra.mxu0 %v5601
      %v5708 = vpop.f32.mrf.mxu0
      %v5709 = vadd.f32 %v5532, %v5708
      %5710 = vmatmul.f32.gmra.mxu0 %v5603
      %v5711 = vpop.f32.mrf.mxu0
      %v5712 = vadd.f32 %v5535, %v5711
      %5713 = vmatmul.f32.gmra.mxu0 %v5605
      %v5714 = vpop.f32.mrf.mxu0
      %v5715 = vadd.f32 %v5538, %v5714
      %5716 = vmatmul.f32.gmra.mxu0 %v5607
      %v5717 = vpop.f32.mrf.mxu0
      %v5718 = vadd.f32 %v5541, %v5717
      %5719 = vmatmul.f32.gmra.mxu0 %v5609
      %v5720 = vpop.f32.mrf.mxu0
      %v5721 = vadd.f32 %v5544, %v5720
      %5722 = vmatmul.f32.gmra.mxu0 %v5611
      %v5723 = vpop.f32.mrf.mxu0
      %v5724 = vadd.f32 %v5547, %v5723
      %5725 = vdwg.mxu0
      %v5742 = vrot.slane %v5164, 1
      %v5743 = vrot.slane %v5165, 1
      %v5744 = vsel %vm436, %v5742, %v5743
      %v5745 = vrot.slane %v5166, 1
      %v5746 = vsel %vm436, %v5743, %v5745
      %v5747 = vrot.slane %v5168, 1
      %v5748 = vrot.slane %v5169, 1
      %v5749 = vsel %vm436, %v5747, %v5748
      %v5750 = vrot.slane %v5170, 1
      %v5751 = vsel %vm436, %v5748, %v5750
      %v5752 = vrot.slane %v5172, 1
      %v5753 = vrot.slane %v5173, 1
      %v5754 = vsel %vm436, %v5752, %v5753
      %v5755 = vrot.slane %v5174, 1
      %v5756 = vsel %vm436, %v5753, %v5755
      %v5757 = vrot.slane %v5176, 1
      %v5758 = vrot.slane %v5177, 1
      %v5759 = vsel %vm436, %v5757, %v5758
      %v5760 = vrot.slane %v5178, 1
      %v5761 = vsel %vm436, %v5758, %v5760
      %v5762 = vrot.slane %v5180, 1
      %v5763 = vrot.slane %v5181, 1
      %v5764 = vsel %vm436, %v5762, %v5763
      %v5765 = vrot.slane %v5182, 1
      %v5766 = vsel %vm436, %v5763, %v5765
      %v5767 = vrot.slane %v5184, 1
      %v5768 = vrot.slane %v5185, 1
      %v5769 = vsel %vm436, %v5767, %v5768
      %v5770 = vrot.slane %v5186, 1
      %v5771 = vsel %vm436, %v5768, %v5770
      %v5772 = vrot.slane %v5188, 1
      %v5773 = vrot.slane %v5189, 1
      %v5774 = vsel %vm436, %v5772, %v5773
      %v5775 = vrot.slane %v5190, 1
      %v5776 = vsel %vm436, %v5773, %v5775
      %v5777 = vrot.slane %v5192, 1
      %v5778 = vrot.slane %v5193, 1
      %v5779 = vsel %vm436, %v5777, %v5778
      %v5780 = vrot.slane %v5194, 1
      %v5781 = vsel %vm436, %v5778, %v5780
      %v5782 = vrot.slane %v5196, 1
      %v5783 = vrot.slane %v5197, 1
      %v5784 = vsel %vm436, %v5782, %v5783
      %v5785 = vrot.slane %v5198, 1
      %v5786 = vsel %vm436, %v5783, %v5785
      %v5787 = vrot.slane %v5200, 1
      %v5788 = vrot.slane %v5201, 1
      %v5789 = vsel %vm436, %v5787, %v5788
      %v5790 = vrot.slane %v5202, 1
      %v5791 = vsel %vm436, %v5788, %v5790
      %v5792 = vrot.slane %v5204, 1
      %v5793 = vrot.slane %v5205, 1
      %v5794 = vsel %vm436, %v5792, %v5793
      %v5795 = vrot.slane %v5206, 1
      %v5796 = vsel %vm436, %v5793, %v5795
      %v5797 = vrot.slane %v5208, 1
      %v5798 = vrot.slane %v5209, 1
      %v5799 = vsel %vm436, %v5797, %v5798
      %v5800 = vrot.slane %v5210, 1
      %v5801 = vsel %vm436, %v5798, %v5800
      %v5802 = vrot.slane %v5212, 1
      %v5803 = vrot.slane %v5213, 1
      %v5804 = vsel %vm436, %v5802, %v5803
      %v5805 = vrot.slane %v5214, 1
      %v5806 = vsel %vm436, %v5803, %v5805
      %v5807 = vrot.slane %v5216, 1
      %v5808 = vrot.slane %v5217, 1
      %v5809 = vsel %vm436, %v5807, %v5808
      %v5810 = vrot.slane %v5218, 1
      %v5811 = vsel %vm436, %v5808, %v5810
      %v5812 = vrot.slane %v5220, 1
      %v5813 = vrot.slane %v5221, 1
      %v5814 = vsel %vm436, %v5812, %v5813
      %v5815 = vrot.slane %v5222, 1
      %v5816 = vsel %vm436, %v5813, %v5815
      %v5817 = vrot.slane %v5224, 1
      %v5818 = vrot.slane %v5225, 1
      %v5819 = vsel %vm436, %v5817, %v5818
      %v5820 = vrot.slane %v5226, 1
      %v5821 = vsel %vm436, %v5818, %v5820
      %s5822 = scalar_lea.vmem %s5, 128
      %v5823 = vld [vmem:[%s5822] sm:$0xff]
      %v5824 = vld [vmem:[%s5822 + $0x8] sm:$0xff]
      %v5825 = vld [vmem:[%s5822 + $0x10] sm:$0xff]
      %v5826 = vld [vmem:[%s5822 + $0x18] sm:$0xff]
      %v5827 = vld [vmem:[%s5822 + $0x20] sm:$0xff]
      %v5828 = vld [vmem:[%s5822 + $0x28] sm:$0xff]
      %v5829 = vld [vmem:[%s5822 + $0x30] sm:$0xff]
      %v5830 = vld [vmem:[%s5822 + $0x38] sm:$0xff]
      %v5831 = vsel %vm2194, %v5744, 0
      %v5833 = vsel %vm2194, %v5746, 0
      %v5835 = vsel %vm2194, %v5749, 0
      %v5837 = vsel %vm2194, %v5751, 0
      %v5839 = vsel %vm2194, %v5754, 0
      %v5841 = vsel %vm2194, %v5756, 0
      %v5843 = vsel %vm2194, %v5759, 0
      %v5845 = vsel %vm2194, %v5761, 0
      %v5847 = vsel %vm2194, %v5764, 0
      %v5849 = vsel %vm2194, %v5766, 0
      %v5851 = vsel %vm2194, %v5769, 0
      %v5853 = vsel %vm2194, %v5771, 0
      %v5855 = vsel %vm2194, %v5774, 0
      %v5857 = vsel %vm2194, %v5776, 0
      %v5859 = vsel %vm2194, %v5779, 0
      %v5861 = vsel %vm2194, %v5781, 0
      %v5863 = vsel %vm2194, %v5784, 0
      %v5865 = vsel %vm2194, %v5786, 0
      %v5867 = vsel %vm2194, %v5789, 0
      %v5869 = vsel %vm2194, %v5791, 0
      %v5871 = vsel %vm2194, %v5794, 0
      %v5873 = vsel %vm2194, %v5796, 0
      %v5875 = vsel %vm2194, %v5799, 0
      %v5877 = vsel %vm2194, %v5801, 0
      %v5879 = vsel %vm2194, %v5804, 0
      %v5881 = vsel %vm2194, %v5806, 0
      %v5883 = vsel %vm2194, %v5809, 0
      %v5885 = vsel %vm2194, %v5811, 0
      %v5887 = vsel %vm2194, %v5814, 0
      %v5889 = vsel %vm2194, %v5816, 0
      %v5891 = vsel %vm2194, %v5819, 0
      %v5893 = vsel %vm2194, %v5821, 0
      %5895 = vmatpush.msra.mxu0 0.0
      %5896 = vmatpush.msra.mxu0 0.0
      %5897 = vmatpush.msra.mxu0 0.0
      %5898 = vmatpush.msra.mxu0 0.0
      %5899 = vmatpush.msra.mxu0 0.0
      %5900 = vmatpush.msra.mxu0 0.0
      %5901 = vmatpush.msra.mxu0 0.0
      %5902 = vmatpush.msra.mxu0 0.0
      %5903 = vmatpush.msra.mxu0 %v5830
      %5904 = vmatpush.msra.mxu0 %v5829
      %5905 = vmatpush.msra.mxu0 %v5828
      %5906 = vmatpush.msra.mxu0 %v5827
      %5907 = vmatpush.msra.mxu0 %v5826
      %5908 = vmatpush.msra.mxu0 %v5825
      %5909 = vmatpush.msra.mxu0 %v5824
      %5910 = vmatpush.msra.mxu0 %v5823
      %5911 = vmatmul.f32.gmra.mxu0 %v5831
      %v5912 = vpop.f32.mrf.mxu0
      %v5913 = vadd.f32 0.0, %v5912
      %5914 = vmatmul.f32.gmra.mxu0 %v5833
      %v5915 = vpop.f32.mrf.mxu0
      %v5916 = vadd.f32 0.0, %v5915
      %5917 = vmatmul.f32.gmra.mxu0 %v5835
      %v5918 = vpop.f32.mrf.mxu0
      %v5919 = vadd.f32 0.0, %v5918
      %5920 = vmatmul.f32.gmra.mxu0 %v5837
      %v5921 = vpop.f32.mrf.mxu0
      %v5922 = vadd.f32 0.0, %v5921
      %5923 = vmatmul.f32.gmra.mxu0 %v5839
      %v5924 = vpop.f32.mrf.mxu0
      %v5925 = vadd.f32 0.0, %v5924
      %5926 = vmatmul.f32.gmra.mxu0 %v5841
      %v5927 = vpop.f32.mrf.mxu0
      %v5928 = vadd.f32 0.0, %v5927
      %5929 = vmatmul.f32.gmra.mxu0 %v5843
      %v5930 = vpop.f32.mrf.mxu0
      %v5931 = vadd.f32 0.0, %v5930
      %5932 = vmatmul.f32.gmra.mxu0 %v5845
      %v5933 = vpop.f32.mrf.mxu0
      %v5934 = vadd.f32 0.0, %v5933
      %5935 = vmatmul.f32.gmra.mxu0 %v5847
      %v5936 = vpop.f32.mrf.mxu0
      %v5937 = vadd.f32 0.0, %v5936
      %5938 = vmatmul.f32.gmra.mxu0 %v5849
      %v5939 = vpop.f32.mrf.mxu0
      %v5940 = vadd.f32 0.0, %v5939
      %5941 = vmatmul.f32.gmra.mxu0 %v5851
      %v5942 = vpop.f32.mrf.mxu0
      %v5943 = vadd.f32 0.0, %v5942
      %5944 = vmatmul.f32.gmra.mxu0 %v5853
      %v5945 = vpop.f32.mrf.mxu0
      %v5946 = vadd.f32 0.0, %v5945
      %5947 = vmatmul.f32.gmra.mxu0 %v5855
      %v5948 = vpop.f32.mrf.mxu0
      %v5949 = vadd.f32 0.0, %v5948
      %5950 = vmatmul.f32.gmra.mxu0 %v5857
      %v5951 = vpop.f32.mrf.mxu0
      %v5952 = vadd.f32 0.0, %v5951
      %5953 = vmatmul.f32.gmra.mxu0 %v5859
      %v5954 = vpop.f32.mrf.mxu0
      %v5955 = vadd.f32 0.0, %v5954
      %5956 = vmatmul.f32.gmra.mxu0 %v5861
      %v5957 = vpop.f32.mrf.mxu0
      %v5958 = vadd.f32 0.0, %v5957
      %5959 = vmatmul.f32.gmra.mxu0 %v5863
      %v5960 = vpop.f32.mrf.mxu0
      %v5961 = vadd.f32 0.0, %v5960
      %5962 = vmatmul.f32.gmra.mxu0 %v5865
      %v5963 = vpop.f32.mrf.mxu0
      %v5964 = vadd.f32 0.0, %v5963
      %5965 = vmatmul.f32.gmra.mxu0 %v5867
      %v5966 = vpop.f32.mrf.mxu0
      %v5967 = vadd.f32 0.0, %v5966
      %5968 = vmatmul.f32.gmra.mxu0 %v5869
      %v5969 = vpop.f32.mrf.mxu0
      %v5970 = vadd.f32 0.0, %v5969
      %5971 = vmatmul.f32.gmra.mxu0 %v5871
      %v5972 = vpop.f32.mrf.mxu0
      %v5973 = vadd.f32 0.0, %v5972
      %5974 = vmatmul.f32.gmra.mxu0 %v5873
      %v5975 = vpop.f32.mrf.mxu0
      %v5976 = vadd.f32 0.0, %v5975
      %5977 = vmatmul.f32.gmra.mxu0 %v5875
      %v5978 = vpop.f32.mrf.mxu0
      %v5979 = vadd.f32 0.0, %v5978
      %5980 = vmatmul.f32.gmra.mxu0 %v5877
      %v5981 = vpop.f32.mrf.mxu0
      %v5982 = vadd.f32 0.0, %v5981
      %5983 = vmatmul.f32.gmra.mxu0 %v5879
      %v5984 = vpop.f32.mrf.mxu0
      %v5985 = vadd.f32 0.0, %v5984
      %5986 = vmatmul.f32.gmra.mxu0 %v5881
      %v5987 = vpop.f32.mrf.mxu0
      %v5988 = vadd.f32 0.0, %v5987
      %5989 = vmatmul.f32.gmra.mxu0 %v5883
      %v5990 = vpop.f32.mrf.mxu0
      %v5991 = vadd.f32 0.0, %v5990
      %5992 = vmatmul.f32.gmra.mxu0 %v5885
      %v5993 = vpop.f32.mrf.mxu0
      %v5994 = vadd.f32 0.0, %v5993
      %5995 = vmatmul.f32.gmra.mxu0 %v5887
      %v5996 = vpop.f32.mrf.mxu0
      %v5997 = vadd.f32 0.0, %v5996
      %5998 = vmatmul.f32.gmra.mxu0 %v5889
      %v5999 = vpop.f32.mrf.mxu0
      %v6000 = vadd.f32 0.0, %v5999
      %6001 = vmatmul.f32.gmra.mxu0 %v5891
      %v6002 = vpop.f32.mrf.mxu0
      %v6003 = vadd.f32 0.0, %v6002
      %6004 = vmatmul.f32.gmra.mxu0 %v5893
      %v6005 = vpop.f32.mrf.mxu0
      %v6006 = vadd.f32 0.0, %v6005
      %6007 = vdwg.mxu0
      %v6008 = vadd.f32 %v5631, %v5913
      %v6009 = vadd.f32 %v5634, %v5916
      %v6010 = vadd.f32 %v5637, %v5919
      %v6011 = vadd.f32 %v5640, %v5922
      %v6012 = vadd.f32 %v5643, %v5925
      %v6013 = vadd.f32 %v5646, %v5928
      %v6014 = vadd.f32 %v5649, %v5931
      %v6015 = vadd.f32 %v5652, %v5934
      %v6016 = vadd.f32 %v5655, %v5937
      %v6017 = vadd.f32 %v5658, %v5940
      %v6018 = vadd.f32 %v5661, %v5943
      %v6019 = vadd.f32 %v5664, %v5946
      %v6020 = vadd.f32 %v5667, %v5949
      %v6021 = vadd.f32 %v5670, %v5952
      %v6022 = vadd.f32 %v5673, %v5955
      %v6023 = vadd.f32 %v5676, %v5958
      %v6024 = vadd.f32 %v5679, %v5961
      %v6025 = vadd.f32 %v5682, %v5964
      %v6026 = vadd.f32 %v5685, %v5967
      %v6027 = vadd.f32 %v5688, %v5970
      %v6028 = vadd.f32 %v5691, %v5973
      %v6029 = vadd.f32 %v5694, %v5976
      %v6030 = vadd.f32 %v5697, %v5979
      %v6031 = vadd.f32 %v5700, %v5982
      %v6032 = vadd.f32 %v5703, %v5985
      %v6033 = vadd.f32 %v5706, %v5988
      %v6034 = vadd.f32 %v5709, %v5991
      %v6035 = vadd.f32 %v5712, %v5994
      %v6036 = vadd.f32 %v5715, %v5997
      %v6037 = vadd.f32 %v5718, %v6000
      %v6038 = vadd.f32 %v5721, %v6003
      %v6039 = vadd.f32 %v5724, %v6006
      %v6040 = vld [vmem:[%s2267] sm:$0xff]
      %v6041 = vld [vmem:[%s2267 + $0x8] sm:$0xff]
      %v6042 = vld [vmem:[%s2267 + $0x10] sm:$0xff]
      %v6043 = vld [vmem:[%s2267 + $0x18] sm:$0xff]
      %v6044 = vld [vmem:[%s2267 + $0x20] sm:$0xff]
      %v6045 = vld [vmem:[%s2267 + $0x28] sm:$0xff]
      %v6046 = vld [vmem:[%s2267 + $0x30] sm:$0xff]
      %v6047 = vld [vmem:[%s2267 + $0x38] sm:$0xff]
      %v6048 = vld [vmem:[%s2267 + $0x40] sm:$0xff]
      %v6049 = vld [vmem:[%s2267 + $0x48] sm:$0xff]
      %v6050 = vld [vmem:[%s2267 + $0x50] sm:$0xff]
      %v6051 = vld [vmem:[%s2267 + $0x58] sm:$0xff]
      %v6052 = vld [vmem:[%s2267 + $0x60] sm:$0xff]
      %v6053 = vld [vmem:[%s2267 + $0x68] sm:$0xff]
      %v6054 = vld [vmem:[%s2267 + $0x70] sm:$0xff]
      %v6055 = vld [vmem:[%s2267 + $0x78] sm:$0xff]
      %v6056 = vld [vmem:[%s2267 + $0x80] sm:$0xff]
      %v6057 = vld [vmem:[%s2267 + $0x88] sm:$0xff]
      %v6058 = vld [vmem:[%s2267 + $0x90] sm:$0xff]
      %v6059 = vld [vmem:[%s2267 + $0x98] sm:$0xff]
      %v6060 = vld [vmem:[%s2267 + $0xa0] sm:$0xff]
      %v6061 = vld [vmem:[%s2267 + $0xa8] sm:$0xff]
      %v6062 = vld [vmem:[%s2267 + $0xb0] sm:$0xff]
      %v6063 = vld [vmem:[%s2267 + $0xb8] sm:$0xff]
      %v6064 = vld [vmem:[%s2267 + $0xc0] sm:$0xff]
      %v6065 = vld [vmem:[%s2267 + $0xc8] sm:$0xff]
      %v6066 = vld [vmem:[%s2267 + $0xd0] sm:$0xff]
      %v6067 = vld [vmem:[%s2267 + $0xd8] sm:$0xff]
      %v6068 = vld [vmem:[%s2267 + $0xe0] sm:$0xff]
      %v6069 = vld [vmem:[%s2267 + $0xe8] sm:$0xff]
      %v6070 = vld [vmem:[%s2267 + $0xf0] sm:$0xff]
      %v6071 = vld [vmem:[%s2267 + $0xf8] sm:$0xff]
      %v6072 = vld [vmem:[%s2267 + $0x100] sm:$0xff]
      %v6073 = vld [vmem:[%s2267 + $0x108] sm:$0xff]
      %v6074 = vld [vmem:[%s2267 + $0x110] sm:$0xff]
      %v6075 = vld [vmem:[%s2267 + $0x118] sm:$0xff]
      %v6076 = vld [vmem:[%s2267 + $0x120] sm:$0xff]
      %v6077 = vld [vmem:[%s2267 + $0x128] sm:$0xff]
      %v6078 = vld [vmem:[%s2267 + $0x130] sm:$0xff]
      %v6079 = vld [vmem:[%s2267 + $0x138] sm:$0xff]
      %v6080 = vld [vmem:[%s2267 + $0x140] sm:$0xff]
      %v6081 = vld [vmem:[%s2267 + $0x148] sm:$0xff]
      %v6082 = vld [vmem:[%s2267 + $0x150] sm:$0xff]
      %v6083 = vld [vmem:[%s2267 + $0x158] sm:$0xff]
      %v6084 = vld [vmem:[%s2267 + $0x160] sm:$0xff]
      %v6085 = vld [vmem:[%s2267 + $0x168] sm:$0xff]
      %v6086 = vld [vmem:[%s2267 + $0x170] sm:$0xff]
      %v6087 = vld [vmem:[%s2267 + $0x178] sm:$0xff]
      %v6088 = vld [vmem:[%s2267 + $0x180] sm:$0xff]
      %v6089 = vld [vmem:[%s2267 + $0x188] sm:$0xff]
      %v6090 = vld [vmem:[%s2267 + $0x190] sm:$0xff]
      %v6091 = vld [vmem:[%s2267 + $0x198] sm:$0xff]
      %v6092 = vld [vmem:[%s2267 + $0x1a0] sm:$0xff]
      %v6093 = vld [vmem:[%s2267 + $0x1a8] sm:$0xff]
      %v6094 = vld [vmem:[%s2267 + $0x1b0] sm:$0xff]
      %v6095 = vld [vmem:[%s2267 + $0x1b8] sm:$0xff]
      %v6096 = vld [vmem:[%s2267 + $0x1c0] sm:$0xff]
      %v6097 = vld [vmem:[%s2267 + $0x1c8] sm:$0xff]
      %v6098 = vld [vmem:[%s2267 + $0x1d0] sm:$0xff]
      %v6099 = vld [vmem:[%s2267 + $0x1d8] sm:$0xff]
      %v6100 = vld [vmem:[%s2267 + $0x1e0] sm:$0xff]
      %v6101 = vld [vmem:[%s2267 + $0x1e8] sm:$0xff]
      %v6102 = vld [vmem:[%s2267 + $0x1f0] sm:$0xff]
      %v6103 = vld [vmem:[%s2267 + $0x1f8] sm:$0xff]
      %v6152 = vrot.slane %v6040, 7
      %v6153 = vrot.slane %v6041, 7
      %v6154 = vsel %vm2412, %v6152, %v6153
      %v6155 = vrot.slane %v6042, 7
      %v6156 = vsel %vm2412, %v6153, %v6155
      %v6157 = vrot.slane %v6044, 7
      %v6158 = vrot.slane %v6045, 7
      %v6159 = vsel %vm2412, %v6157, %v6158
      %v6160 = vrot.slane %v6046, 7
      %v6161 = vsel %vm2412, %v6158, %v6160
      %v6162 = vrot.slane %v6048, 7
      %v6163 = vrot.slane %v6049, 7
      %v6164 = vsel %vm2412, %v6162, %v6163
      %v6165 = vrot.slane %v6050, 7
      %v6166 = vsel %vm2412, %v6163, %v6165
      %v6167 = vrot.slane %v6052, 7
      %v6168 = vrot.slane %v6053, 7
      %v6169 = vsel %vm2412, %v6167, %v6168
      %v6170 = vrot.slane %v6054, 7
      %v6171 = vsel %vm2412, %v6168, %v6170
      %v6172 = vrot.slane %v6056, 7
      %v6173 = vrot.slane %v6057, 7
      %v6174 = vsel %vm2412, %v6172, %v6173
      %v6175 = vrot.slane %v6058, 7
      %v6176 = vsel %vm2412, %v6173, %v6175
      %v6177 = vrot.slane %v6060, 7
      %v6178 = vrot.slane %v6061, 7
      %v6179 = vsel %vm2412, %v6177, %v6178
      %v6180 = vrot.slane %v6062, 7
      %v6181 = vsel %vm2412, %v6178, %v6180
      %v6182 = vrot.slane %v6064, 7
      %v6183 = vrot.slane %v6065, 7
      %v6184 = vsel %vm2412, %v6182, %v6183
      %v6185 = vrot.slane %v6066, 7
      %v6186 = vsel %vm2412, %v6183, %v6185
      %v6187 = vrot.slane %v6068, 7
      %v6188 = vrot.slane %v6069, 7
      %v6189 = vsel %vm2412, %v6187, %v6188
      %v6190 = vrot.slane %v6070, 7
      %v6191 = vsel %vm2412, %v6188, %v6190
      %v6192 = vrot.slane %v6072, 7
      %v6193 = vrot.slane %v6073, 7
      %v6194 = vsel %vm2412, %v6192, %v6193
      %v6195 = vrot.slane %v6074, 7
      %v6196 = vsel %vm2412, %v6193, %v6195
      %v6197 = vrot.slane %v6076, 7
      %v6198 = vrot.slane %v6077, 7
      %v6199 = vsel %vm2412, %v6197, %v6198
      %v6200 = vrot.slane %v6078, 7
      %v6201 = vsel %vm2412, %v6198, %v6200
      %v6202 = vrot.slane %v6080, 7
      %v6203 = vrot.slane %v6081, 7
      %v6204 = vsel %vm2412, %v6202, %v6203
      %v6205 = vrot.slane %v6082, 7
      %v6206 = vsel %vm2412, %v6203, %v6205
      %v6207 = vrot.slane %v6084, 7
      %v6208 = vrot.slane %v6085, 7
      %v6209 = vsel %vm2412, %v6207, %v6208
      %v6210 = vrot.slane %v6086, 7
      %v6211 = vsel %vm2412, %v6208, %v6210
      %v6212 = vrot.slane %v6088, 7
      %v6213 = vrot.slane %v6089, 7
      %v6214 = vsel %vm2412, %v6212, %v6213
      %v6215 = vrot.slane %v6090, 7
      %v6216 = vsel %vm2412, %v6213, %v6215
      %v6217 = vrot.slane %v6092, 7
      %v6218 = vrot.slane %v6093, 7
      %v6219 = vsel %vm2412, %v6217, %v6218
      %v6220 = vrot.slane %v6094, 7
      %v6221 = vsel %vm2412, %v6218, %v6220
      %v6222 = vrot.slane %v6096, 7
      %v6223 = vrot.slane %v6097, 7
      %v6224 = vsel %vm2412, %v6222, %v6223
      %v6225 = vrot.slane %v6098, 7
      %v6226 = vsel %vm2412, %v6223, %v6225
      %v6227 = vrot.slane %v6100, 7
      %v6228 = vrot.slane %v6101, 7
      %v6229 = vsel %vm2412, %v6227, %v6228
      %v6230 = vrot.slane %v6102, 7
      %v6231 = vsel %vm2412, %v6228, %v6230
      %s6232 = scalar_lea.vmem %s5, 192
      %v6233 = vld [vmem:[%s6232] sm:$0xff]
      %v6234 = vld [vmem:[%s6232 + $0x8] sm:$0xff]
      %v6235 = vld [vmem:[%s6232 + $0x10] sm:$0xff]
      %v6236 = vld [vmem:[%s6232 + $0x18] sm:$0xff]
      %v6237 = vld [vmem:[%s6232 + $0x20] sm:$0xff]
      %v6238 = vld [vmem:[%s6232 + $0x28] sm:$0xff]
      %v6239 = vld [vmem:[%s6232 + $0x30] sm:$0xff]
      %v6240 = vld [vmem:[%s6232 + $0x38] sm:$0xff]
      %v6241 = vsel %vm2194, %v6154, 0
      %v6243 = vsel %vm2194, %v6156, 0
      %v6245 = vsel %vm2194, %v6159, 0
      %v6247 = vsel %vm2194, %v6161, 0
      %v6249 = vsel %vm2194, %v6164, 0
      %v6251 = vsel %vm2194, %v6166, 0
      %v6253 = vsel %vm2194, %v6169, 0
      %v6255 = vsel %vm2194, %v6171, 0
      %v6257 = vsel %vm2194, %v6174, 0
      %v6259 = vsel %vm2194, %v6176, 0
      %v6261 = vsel %vm2194, %v6179, 0
      %v6263 = vsel %vm2194, %v6181, 0
      %v6265 = vsel %vm2194, %v6184, 0
      %v6267 = vsel %vm2194, %v6186, 0
      %v6269 = vsel %vm2194, %v6189, 0
      %v6271 = vsel %vm2194, %v6191, 0
      %v6273 = vsel %vm2194, %v6194, 0
      %v6275 = vsel %vm2194, %v6196, 0
      %v6277 = vsel %vm2194, %v6199, 0
      %v6279 = vsel %vm2194, %v6201, 0
      %v6281 = vsel %vm2194, %v6204, 0
      %v6283 = vsel %vm2194, %v6206, 0
      %v6285 = vsel %vm2194, %v6209, 0
      %v6287 = vsel %vm2194, %v6211, 0
      %v6289 = vsel %vm2194, %v6214, 0
      %v6291 = vsel %vm2194, %v6216, 0
      %v6293 = vsel %vm2194, %v6219, 0
      %v6295 = vsel %vm2194, %v6221, 0
      %v6297 = vsel %vm2194, %v6224, 0
      %v6299 = vsel %vm2194, %v6226, 0
      %v6301 = vsel %vm2194, %v6229, 0
      %v6303 = vsel %vm2194, %v6231, 0
      %6305 = vmatpush.msra.mxu0 0.0
      %6306 = vmatpush.msra.mxu0 0.0
      %6307 = vmatpush.msra.mxu0 0.0
      %6308 = vmatpush.msra.mxu0 0.0
      %6309 = vmatpush.msra.mxu0 0.0
      %6310 = vmatpush.msra.mxu0 0.0
      %6311 = vmatpush.msra.mxu0 0.0
      %6312 = vmatpush.msra.mxu0 0.0
      %6313 = vmatpush.msra.mxu0 %v6240
      %6314 = vmatpush.msra.mxu0 %v6239
      %6315 = vmatpush.msra.mxu0 %v6238
      %6316 = vmatpush.msra.mxu0 %v6237
      %6317 = vmatpush.msra.mxu0 %v6236
      %6318 = vmatpush.msra.mxu0 %v6235
      %6319 = vmatpush.msra.mxu0 %v6234
      %6320 = vmatpush.msra.mxu0 %v6233
      %6321 = vmatmul.f32.gmra.mxu0 %v6241
      %v6322 = vpop.f32.mrf.mxu0
      %v6323 = vadd.f32 0.0, %v6322
      %6324 = vmatmul.f32.gmra.mxu0 %v6243
      %v6325 = vpop.f32.mrf.mxu0
      %v6326 = vadd.f32 0.0, %v6325
      %6327 = vmatmul.f32.gmra.mxu0 %v6245
      %v6328 = vpop.f32.mrf.mxu0
      %v6329 = vadd.f32 0.0, %v6328
      %6330 = vmatmul.f32.gmra.mxu0 %v6247
      %v6331 = vpop.f32.mrf.mxu0
      %v6332 = vadd.f32 0.0, %v6331
      %6333 = vmatmul.f32.gmra.mxu0 %v6249
      %v6334 = vpop.f32.mrf.mxu0
      %v6335 = vadd.f32 0.0, %v6334
      %6336 = vmatmul.f32.gmra.mxu0 %v6251
      %v6337 = vpop.f32.mrf.mxu0
      %v6338 = vadd.f32 0.0, %v6337
      %6339 = vmatmul.f32.gmra.mxu0 %v6253
      %v6340 = vpop.f32.mrf.mxu0
      %v6341 = vadd.f32 0.0, %v6340
      %6342 = vmatmul.f32.gmra.mxu0 %v6255
      %v6343 = vpop.f32.mrf.mxu0
      %v6344 = vadd.f32 0.0, %v6343
      %6345 = vmatmul.f32.gmra.mxu0 %v6257
      %v6346 = vpop.f32.mrf.mxu0
      %v6347 = vadd.f32 0.0, %v6346
      %6348 = vmatmul.f32.gmra.mxu0 %v6259
      %v6349 = vpop.f32.mrf.mxu0
      %v6350 = vadd.f32 0.0, %v6349
      %6351 = vmatmul.f32.gmra.mxu0 %v6261
      %v6352 = vpop.f32.mrf.mxu0
      %v6353 = vadd.f32 0.0, %v6352
      %6354 = vmatmul.f32.gmra.mxu0 %v6263
      %v6355 = vpop.f32.mrf.mxu0
      %v6356 = vadd.f32 0.0, %v6355
      %6357 = vmatmul.f32.gmra.mxu0 %v6265
      %v6358 = vpop.f32.mrf.mxu0
      %v6359 = vadd.f32 0.0, %v6358
      %6360 = vmatmul.f32.gmra.mxu0 %v6267
      %v6361 = vpop.f32.mrf.mxu0
      %v6362 = vadd.f32 0.0, %v6361
      %6363 = vmatmul.f32.gmra.mxu0 %v6269
      %v6364 = vpop.f32.mrf.mxu0
      %v6365 = vadd.f32 0.0, %v6364
      %6366 = vmatmul.f32.gmra.mxu0 %v6271
      %v6367 = vpop.f32.mrf.mxu0
      %v6368 = vadd.f32 0.0, %v6367
      %6369 = vmatmul.f32.gmra.mxu0 %v6273
      %v6370 = vpop.f32.mrf.mxu0
      %v6371 = vadd.f32 0.0, %v6370
      %6372 = vmatmul.f32.gmra.mxu0 %v6275
      %v6373 = vpop.f32.mrf.mxu0
      %v6374 = vadd.f32 0.0, %v6373
      %6375 = vmatmul.f32.gmra.mxu0 %v6277
      %v6376 = vpop.f32.mrf.mxu0
      %v6377 = vadd.f32 0.0, %v6376
      %6378 = vmatmul.f32.gmra.mxu0 %v6279
      %v6379 = vpop.f32.mrf.mxu0
      %v6380 = vadd.f32 0.0, %v6379
      %6381 = vmatmul.f32.gmra.mxu0 %v6281
      %v6382 = vpop.f32.mrf.mxu0
      %v6383 = vadd.f32 0.0, %v6382
      %6384 = vmatmul.f32.gmra.mxu0 %v6283
      %v6385 = vpop.f32.mrf.mxu0
      %v6386 = vadd.f32 0.0, %v6385
      %6387 = vmatmul.f32.gmra.mxu0 %v6285
      %v6388 = vpop.f32.mrf.mxu0
      %v6389 = vadd.f32 0.0, %v6388
      %6390 = vmatmul.f32.gmra.mxu0 %v6287
      %v6391 = vpop.f32.mrf.mxu0
      %v6392 = vadd.f32 0.0, %v6391
      %6393 = vmatmul.f32.gmra.mxu0 %v6289
      %v6394 = vpop.f32.mrf.mxu0
      %v6395 = vadd.f32 0.0, %v6394
      %6396 = vmatmul.f32.gmra.mxu0 %v6291
      %v6397 = vpop.f32.mrf.mxu0
      %v6398 = vadd.f32 0.0, %v6397
      %6399 = vmatmul.f32.gmra.mxu0 %v6293
      %v6400 = vpop.f32.mrf.mxu0
      %v6401 = vadd.f32 0.0, %v6400
      %6402 = vmatmul.f32.gmra.mxu0 %v6295
      %v6403 = vpop.f32.mrf.mxu0
      %v6404 = vadd.f32 0.0, %v6403
      %6405 = vmatmul.f32.gmra.mxu0 %v6297
      %v6406 = vpop.f32.mrf.mxu0
      %v6407 = vadd.f32 0.0, %v6406
      %6408 = vmatmul.f32.gmra.mxu0 %v6299
      %v6409 = vpop.f32.mrf.mxu0
      %v6410 = vadd.f32 0.0, %v6409
      %6411 = vmatmul.f32.gmra.mxu0 %v6301
      %v6412 = vpop.f32.mrf.mxu0
      %v6413 = vadd.f32 0.0, %v6412
      %6414 = vmatmul.f32.gmra.mxu0 %v6303
      %v6415 = vpop.f32.mrf.mxu0
      %v6416 = vadd.f32 0.0, %v6415
      %6417 = vdwg.mxu0
      %v6418 = vadd.f32 %v6008, %v6323
      %v6419 = vadd.f32 %v6009, %v6326
      %v6420 = vadd.f32 %v6010, %v6329
      %v6421 = vadd.f32 %v6011, %v6332
      %v6422 = vadd.f32 %v6012, %v6335
      %v6423 = vadd.f32 %v6013, %v6338
      %v6424 = vadd.f32 %v6014, %v6341
      %v6425 = vadd.f32 %v6015, %v6344
      %v6426 = vadd.f32 %v6016, %v6347
      %v6427 = vadd.f32 %v6017, %v6350
      %v6428 = vadd.f32 %v6018, %v6353
      %v6429 = vadd.f32 %v6019, %v6356
      %v6430 = vadd.f32 %v6020, %v6359
      %v6431 = vadd.f32 %v6021, %v6362
      %v6432 = vadd.f32 %v6022, %v6365
      %v6433 = vadd.f32 %v6023, %v6368
      %v6434 = vadd.f32 %v6024, %v6371
      %v6435 = vadd.f32 %v6025, %v6374
      %v6436 = vadd.f32 %v6026, %v6377
      %v6437 = vadd.f32 %v6027, %v6380
      %v6438 = vadd.f32 %v6028, %v6383
      %v6439 = vadd.f32 %v6029, %v6386
      %v6440 = vadd.f32 %v6030, %v6389
      %v6441 = vadd.f32 %v6031, %v6392
      %v6442 = vadd.f32 %v6032, %v6395
      %v6443 = vadd.f32 %v6033, %v6398
      %v6444 = vadd.f32 %v6034, %v6401
      %v6445 = vadd.f32 %v6035, %v6404
      %v6446 = vadd.f32 %v6036, %v6407
      %v6447 = vadd.f32 %v6037, %v6410
      %v6448 = vadd.f32 %v6038, %v6413
      %v6449 = vadd.f32 %v6039, %v6416
      %s6450 = scalar_lea.vmem %s5, 256
      %v6451 = vld [vmem:[%s6450] sm:$0xff]
      %v6452 = vld [vmem:[%s6450 + $0x8] sm:$0xff]
      %v6453 = vld [vmem:[%s6450 + $0x10] sm:$0xff]
      %v6454 = vld [vmem:[%s6450 + $0x18] sm:$0xff]
      %v6455 = vld [vmem:[%s6450 + $0x20] sm:$0xff]
      %v6456 = vld [vmem:[%s6450 + $0x28] sm:$0xff]
      %v6457 = vld [vmem:[%s6450 + $0x30] sm:$0xff]
      %v6458 = vld [vmem:[%s6450 + $0x38] sm:$0xff]
      %v6459 = vsel %vm2194, %v6041, 0
      %v6461 = vsel %vm2194, %v6042, 0
      %v6463 = vsel %vm2194, %v6045, 0
      %v6465 = vsel %vm2194, %v6046, 0
      %v6467 = vsel %vm2194, %v6049, 0
      %v6469 = vsel %vm2194, %v6050, 0
      %v6471 = vsel %vm2194, %v6053, 0
      %v6473 = vsel %vm2194, %v6054, 0
      %v6475 = vsel %vm2194, %v6057, 0
      %v6477 = vsel %vm2194, %v6058, 0
      %v6479 = vsel %vm2194, %v6061, 0
      %v6481 = vsel %vm2194, %v6062, 0
      %v6483 = vsel %vm2194, %v6065, 0
      %v6485 = vsel %vm2194, %v6066, 0
      %v6487 = vsel %vm2194, %v6069, 0
      %v6489 = vsel %vm2194, %v6070, 0
      %v6491 = vsel %vm2194, %v6073, 0
      %v6493 = vsel %vm2194, %v6074, 0
      %v6495 = vsel %vm2194, %v6077, 0
      %v6497 = vsel %vm2194, %v6078, 0
      %v6499 = vsel %vm2194, %v6081, 0
      %v6501 = vsel %vm2194, %v6082, 0
      %v6503 = vsel %vm2194, %v6085, 0
      %v6505 = vsel %vm2194, %v6086, 0
      %v6507 = vsel %vm2194, %v6089, 0
      %v6509 = vsel %vm2194, %v6090, 0
      %v6511 = vsel %vm2194, %v6093, 0
      %v6513 = vsel %vm2194, %v6094, 0
      %v6515 = vsel %vm2194, %v6097, 0
      %v6517 = vsel %vm2194, %v6098, 0
      %v6519 = vsel %vm2194, %v6101, 0
      %v6521 = vsel %vm2194, %v6102, 0
      %6523 = vmatpush.msra.mxu0 0.0
      %6524 = vmatpush.msra.mxu0 0.0
      %6525 = vmatpush.msra.mxu0 0.0
      %6526 = vmatpush.msra.mxu0 0.0
      %6527 = vmatpush.msra.mxu0 0.0
      %6528 = vmatpush.msra.mxu0 0.0
      %6529 = vmatpush.msra.mxu0 0.0
      %6530 = vmatpush.msra.mxu0 0.0
      %6531 = vmatpush.msra.mxu0 %v6458
      %6532 = vmatpush.msra.mxu0 %v6457
      %6533 = vmatpush.msra.mxu0 %v6456
      %6534 = vmatpush.msra.mxu0 %v6455
      %6535 = vmatpush.msra.mxu0 %v6454
      %6536 = vmatpush.msra.mxu0 %v6453
      %6537 = vmatpush.msra.mxu0 %v6452
      %6538 = vmatpush.msra.mxu0 %v6451
      %6539 = vmatmul.f32.gmra.mxu0 %v6459
      %v6540 = vpop.f32.mrf.mxu0
      %v6541 = vadd.f32 0.0, %v6540
      %6542 = vmatmul.f32.gmra.mxu0 %v6461
      %v6543 = vpop.f32.mrf.mxu0
      %v6544 = vadd.f32 0.0, %v6543
      %6545 = vmatmul.f32.gmra.mxu0 %v6463
      %v6546 = vpop.f32.mrf.mxu0
      %v6547 = vadd.f32 0.0, %v6546
      %6548 = vmatmul.f32.gmra.mxu0 %v6465
      %v6549 = vpop.f32.mrf.mxu0
      %v6550 = vadd.f32 0.0, %v6549
      %6551 = vmatmul.f32.gmra.mxu0 %v6467
      %v6552 = vpop.f32.mrf.mxu0
      %v6553 = vadd.f32 0.0, %v6552
      %6554 = vmatmul.f32.gmra.mxu0 %v6469
      %v6555 = vpop.f32.mrf.mxu0
      %v6556 = vadd.f32 0.0, %v6555
      %6557 = vmatmul.f32.gmra.mxu0 %v6471
      %v6558 = vpop.f32.mrf.mxu0
      %v6559 = vadd.f32 0.0, %v6558
      %6560 = vmatmul.f32.gmra.mxu0 %v6473
      %v6561 = vpop.f32.mrf.mxu0
      %v6562 = vadd.f32 0.0, %v6561
      %6563 = vmatmul.f32.gmra.mxu0 %v6475
      %v6564 = vpop.f32.mrf.mxu0
      %v6565 = vadd.f32 0.0, %v6564
      %6566 = vmatmul.f32.gmra.mxu0 %v6477
      %v6567 = vpop.f32.mrf.mxu0
      %v6568 = vadd.f32 0.0, %v6567
      %6569 = vmatmul.f32.gmra.mxu0 %v6479
      %v6570 = vpop.f32.mrf.mxu0
      %v6571 = vadd.f32 0.0, %v6570
      %6572 = vmatmul.f32.gmra.mxu0 %v6481
      %v6573 = vpop.f32.mrf.mxu0
      %v6574 = vadd.f32 0.0, %v6573
      %6575 = vmatmul.f32.gmra.mxu0 %v6483
      %v6576 = vpop.f32.mrf.mxu0
      %v6577 = vadd.f32 0.0, %v6576
      %6578 = vmatmul.f32.gmra.mxu0 %v6485
      %v6579 = vpop.f32.mrf.mxu0
      %v6580 = vadd.f32 0.0, %v6579
      %6581 = vmatmul.f32.gmra.mxu0 %v6487
      %v6582 = vpop.f32.mrf.mxu0
      %v6583 = vadd.f32 0.0, %v6582
      %6584 = vmatmul.f32.gmra.mxu0 %v6489
      %v6585 = vpop.f32.mrf.mxu0
      %v6586 = vadd.f32 0.0, %v6585
      %6587 = vmatmul.f32.gmra.mxu0 %v6491
      %v6588 = vpop.f32.mrf.mxu0
      %v6589 = vadd.f32 0.0, %v6588
      %6590 = vmatmul.f32.gmra.mxu0 %v6493
      %v6591 = vpop.f32.mrf.mxu0
      %v6592 = vadd.f32 0.0, %v6591
      %6593 = vmatmul.f32.gmra.mxu0 %v6495
      %v6594 = vpop.f32.mrf.mxu0
      %v6595 = vadd.f32 0.0, %v6594
      %6596 = vmatmul.f32.gmra.mxu0 %v6497
      %v6597 = vpop.f32.mrf.mxu0
      %v6598 = vadd.f32 0.0, %v6597
      %6599 = vmatmul.f32.gmra.mxu0 %v6499
      %v6600 = vpop.f32.mrf.mxu0
      %v6601 = vadd.f32 0.0, %v6600
      %6602 = vmatmul.f32.gmra.mxu0 %v6501
      %v6603 = vpop.f32.mrf.mxu0
      %v6604 = vadd.f32 0.0, %v6603
      %6605 = vmatmul.f32.gmra.mxu0 %v6503
      %v6606 = vpop.f32.mrf.mxu0
      %v6607 = vadd.f32 0.0, %v6606
      %6608 = vmatmul.f32.gmra.mxu0 %v6505
      %v6609 = vpop.f32.mrf.mxu0
      %v6610 = vadd.f32 0.0, %v6609
      %6611 = vmatmul.f32.gmra.mxu0 %v6507
      %v6612 = vpop.f32.mrf.mxu0
      %v6613 = vadd.f32 0.0, %v6612
      %6614 = vmatmul.f32.gmra.mxu0 %v6509
      %v6615 = vpop.f32.mrf.mxu0
      %v6616 = vadd.f32 0.0, %v6615
      %6617 = vmatmul.f32.gmra.mxu0 %v6511
      %v6618 = vpop.f32.mrf.mxu0
      %v6619 = vadd.f32 0.0, %v6618
      %6620 = vmatmul.f32.gmra.mxu0 %v6513
      %v6621 = vpop.f32.mrf.mxu0
      %v6622 = vadd.f32 0.0, %v6621
      %6623 = vmatmul.f32.gmra.mxu0 %v6515
      %v6624 = vpop.f32.mrf.mxu0
      %v6625 = vadd.f32 0.0, %v6624
      %6626 = vmatmul.f32.gmra.mxu0 %v6517
      %v6627 = vpop.f32.mrf.mxu0
      %v6628 = vadd.f32 0.0, %v6627
      %6629 = vmatmul.f32.gmra.mxu0 %v6519
      %v6630 = vpop.f32.mrf.mxu0
      %v6631 = vadd.f32 0.0, %v6630
      %6632 = vmatmul.f32.gmra.mxu0 %v6521
      %v6633 = vpop.f32.mrf.mxu0
      %v6634 = vadd.f32 0.0, %v6633
      %6635 = vdwg.mxu0
      %v6636 = vadd.f32 %v6418, %v6541
      %v6637 = vadd.f32 %v6419, %v6544
      %v6638 = vadd.f32 %v6420, %v6547
      %v6639 = vadd.f32 %v6421, %v6550
      %v6640 = vadd.f32 %v6422, %v6553
      %v6641 = vadd.f32 %v6423, %v6556
      %v6642 = vadd.f32 %v6424, %v6559
      %v6643 = vadd.f32 %v6425, %v6562
      %v6644 = vadd.f32 %v6426, %v6565
      %v6645 = vadd.f32 %v6427, %v6568
      %v6646 = vadd.f32 %v6428, %v6571
      %v6647 = vadd.f32 %v6429, %v6574
      %v6648 = vadd.f32 %v6430, %v6577
      %v6649 = vadd.f32 %v6431, %v6580
      %v6650 = vadd.f32 %v6432, %v6583
      %v6651 = vadd.f32 %v6433, %v6586
      %v6652 = vadd.f32 %v6434, %v6589
      %v6653 = vadd.f32 %v6435, %v6592
      %v6654 = vadd.f32 %v6436, %v6595
      %v6655 = vadd.f32 %v6437, %v6598
      %v6656 = vadd.f32 %v6438, %v6601
      %v6657 = vadd.f32 %v6439, %v6604
      %v6658 = vadd.f32 %v6440, %v6607
      %v6659 = vadd.f32 %v6441, %v6610
      %v6660 = vadd.f32 %v6442, %v6613
      %v6661 = vadd.f32 %v6443, %v6616
      %v6662 = vadd.f32 %v6444, %v6619
      %v6663 = vadd.f32 %v6445, %v6622
      %v6664 = vadd.f32 %v6446, %v6625
      %v6665 = vadd.f32 %v6447, %v6628
      %v6666 = vadd.f32 %v6448, %v6631
      %v6667 = vadd.f32 %v6449, %v6634
      %v6684 = vrot.slane %v6041, 1
      %v6685 = vrot.slane %v6042, 1
      %v6686 = vsel %vm436, %v6684, %v6685
      %v6687 = vrot.slane %v6043, 1
      %v6688 = vsel %vm436, %v6685, %v6687
      %v6689 = vrot.slane %v6045, 1
      %v6690 = vrot.slane %v6046, 1
      %v6691 = vsel %vm436, %v6689, %v6690
      %v6692 = vrot.slane %v6047, 1
      %v6693 = vsel %vm436, %v6690, %v6692
      %v6694 = vrot.slane %v6049, 1
      %v6695 = vrot.slane %v6050, 1
      %v6696 = vsel %vm436, %v6694, %v6695
      %v6697 = vrot.slane %v6051, 1
      %v6698 = vsel %vm436, %v6695, %v6697
      %v6699 = vrot.slane %v6053, 1
      %v6700 = vrot.slane %v6054, 1
      %v6701 = vsel %vm436, %v6699, %v6700
      %v6702 = vrot.slane %v6055, 1
      %v6703 = vsel %vm436, %v6700, %v6702
      %v6704 = vrot.slane %v6057, 1
      %v6705 = vrot.slane %v6058, 1
      %v6706 = vsel %vm436, %v6704, %v6705
      %v6707 = vrot.slane %v6059, 1
      %v6708 = vsel %vm436, %v6705, %v6707
      %v6709 = vrot.slane %v6061, 1
      %v6710 = vrot.slane %v6062, 1
      %v6711 = vsel %vm436, %v6709, %v6710
      %v6712 = vrot.slane %v6063, 1
      %v6713 = vsel %vm436, %v6710, %v6712
      %v6714 = vrot.slane %v6065, 1
      %v6715 = vrot.slane %v6066, 1
      %v6716 = vsel %vm436, %v6714, %v6715
      %v6717 = vrot.slane %v6067, 1
      %v6718 = vsel %vm436, %v6715, %v6717
      %v6719 = vrot.slane %v6069, 1
      %v6720 = vrot.slane %v6070, 1
      %v6721 = vsel %vm436, %v6719, %v6720
      %v6722 = vrot.slane %v6071, 1
      %v6723 = vsel %vm436, %v6720, %v6722
      %v6724 = vrot.slane %v6073, 1
      %v6725 = vrot.slane %v6074, 1
      %v6726 = vsel %vm436, %v6724, %v6725
      %v6727 = vrot.slane %v6075, 1
      %v6728 = vsel %vm436, %v6725, %v6727
      %v6729 = vrot.slane %v6077, 1
      %v6730 = vrot.slane %v6078, 1
      %v6731 = vsel %vm436, %v6729, %v6730
      %v6732 = vrot.slane %v6079, 1
      %v6733 = vsel %vm436, %v6730, %v6732
      %v6734 = vrot.slane %v6081, 1
      %v6735 = vrot.slane %v6082, 1
      %v6736 = vsel %vm436, %v6734, %v6735
      %v6737 = vrot.slane %v6083, 1
      %v6738 = vsel %vm436, %v6735, %v6737
      %v6739 = vrot.slane %v6085, 1
      %v6740 = vrot.slane %v6086, 1
      %v6741 = vsel %vm436, %v6739, %v6740
      %v6742 = vrot.slane %v6087, 1
      %v6743 = vsel %vm436, %v6740, %v6742
      %v6744 = vrot.slane %v6089, 1
      %v6745 = vrot.slane %v6090, 1
      %v6746 = vsel %vm436, %v6744, %v6745
      %v6747 = vrot.slane %v6091, 1
      %v6748 = vsel %vm436, %v6745, %v6747
      %v6749 = vrot.slane %v6093, 1
      %v6750 = vrot.slane %v6094, 1
      %v6751 = vsel %vm436, %v6749, %v6750
      %v6752 = vrot.slane %v6095, 1
      %v6753 = vsel %vm436, %v6750, %v6752
      %v6754 = vrot.slane %v6097, 1
      %v6755 = vrot.slane %v6098, 1
      %v6756 = vsel %vm436, %v6754, %v6755
      %v6757 = vrot.slane %v6099, 1
      %v6758 = vsel %vm436, %v6755, %v6757
      %v6759 = vrot.slane %v6101, 1
      %v6760 = vrot.slane %v6102, 1
      %v6761 = vsel %vm436, %v6759, %v6760
      %v6762 = vrot.slane %v6103, 1
      %v6763 = vsel %vm436, %v6760, %v6762
      %s6764 = scalar_lea.vmem %s5, 320
      %v6765 = vld [vmem:[%s6764] sm:$0xff]
      %v6766 = vld [vmem:[%s6764 + $0x8] sm:$0xff]
      %v6767 = vld [vmem:[%s6764 + $0x10] sm:$0xff]
      %v6768 = vld [vmem:[%s6764 + $0x18] sm:$0xff]
      %v6769 = vld [vmem:[%s6764 + $0x20] sm:$0xff]
      %v6770 = vld [vmem:[%s6764 + $0x28] sm:$0xff]
      %v6771 = vld [vmem:[%s6764 + $0x30] sm:$0xff]
      %v6772 = vld [vmem:[%s6764 + $0x38] sm:$0xff]
      %v6773 = vsel %vm2194, %v6686, 0
      %v6775 = vsel %vm2194, %v6688, 0
      %v6777 = vsel %vm2194, %v6691, 0
      %v6779 = vsel %vm2194, %v6693, 0
      %v6781 = vsel %vm2194, %v6696, 0
      %v6783 = vsel %vm2194, %v6698, 0
      %v6785 = vsel %vm2194, %v6701, 0
      %v6787 = vsel %vm2194, %v6703, 0
      %v6789 = vsel %vm2194, %v6706, 0
      %v6791 = vsel %vm2194, %v6708, 0
      %v6793 = vsel %vm2194, %v6711, 0
      %v6795 = vsel %vm2194, %v6713, 0
      %v6797 = vsel %vm2194, %v6716, 0
      %v6799 = vsel %vm2194, %v6718, 0
      %v6801 = vsel %vm2194, %v6721, 0
      %v6803 = vsel %vm2194, %v6723, 0
      %v6805 = vsel %vm2194, %v6726, 0
      %v6807 = vsel %vm2194, %v6728, 0
      %v6809 = vsel %vm2194, %v6731, 0
      %v6811 = vsel %vm2194, %v6733, 0
      %v6813 = vsel %vm2194, %v6736, 0
      %v6815 = vsel %vm2194, %v6738, 0
      %v6817 = vsel %vm2194, %v6741, 0
      %v6819 = vsel %vm2194, %v6743, 0
      %v6821 = vsel %vm2194, %v6746, 0
      %v6823 = vsel %vm2194, %v6748, 0
      %v6825 = vsel %vm2194, %v6751, 0
      %v6827 = vsel %vm2194, %v6753, 0
      %v6829 = vsel %vm2194, %v6756, 0
      %v6831 = vsel %vm2194, %v6758, 0
      %v6833 = vsel %vm2194, %v6761, 0
      %v6835 = vsel %vm2194, %v6763, 0
      %6837 = vmatpush.msra.mxu0 0.0
      %6838 = vmatpush.msra.mxu0 0.0
      %6839 = vmatpush.msra.mxu0 0.0
      %6840 = vmatpush.msra.mxu0 0.0
      %6841 = vmatpush.msra.mxu0 0.0
      %6842 = vmatpush.msra.mxu0 0.0
      %6843 = vmatpush.msra.mxu0 0.0
      %6844 = vmatpush.msra.mxu0 0.0
      %6845 = vmatpush.msra.mxu0 %v6772
      %6846 = vmatpush.msra.mxu0 %v6771
      %6847 = vmatpush.msra.mxu0 %v6770
      %6848 = vmatpush.msra.mxu0 %v6769
      %6849 = vmatpush.msra.mxu0 %v6768
      %6850 = vmatpush.msra.mxu0 %v6767
      %6851 = vmatpush.msra.mxu0 %v6766
      %6852 = vmatpush.msra.mxu0 %v6765
      %6853 = vmatmul.f32.gmra.mxu0 %v6773
      %v6854 = vpop.f32.mrf.mxu0
      %v6855 = vadd.f32 0.0, %v6854
      %6856 = vmatmul.f32.gmra.mxu0 %v6775
      %v6857 = vpop.f32.mrf.mxu0
      %v6858 = vadd.f32 0.0, %v6857
      %6859 = vmatmul.f32.gmra.mxu0 %v6777
      %v6860 = vpop.f32.mrf.mxu0
      %v6861 = vadd.f32 0.0, %v6860
      %6862 = vmatmul.f32.gmra.mxu0 %v6779
      %v6863 = vpop.f32.mrf.mxu0
      %v6864 = vadd.f32 0.0, %v6863
      %6865 = vmatmul.f32.gmra.mxu0 %v6781
      %v6866 = vpop.f32.mrf.mxu0
      %v6867 = vadd.f32 0.0, %v6866
      %6868 = vmatmul.f32.gmra.mxu0 %v6783
      %v6869 = vpop.f32.mrf.mxu0
      %v6870 = vadd.f32 0.0, %v6869
      %6871 = vmatmul.f32.gmra.mxu0 %v6785
      %v6872 = vpop.f32.mrf.mxu0
      %v6873 = vadd.f32 0.0, %v6872
      %6874 = vmatmul.f32.gmra.mxu0 %v6787
      %v6875 = vpop.f32.mrf.mxu0
      %v6876 = vadd.f32 0.0, %v6875
      %6877 = vmatmul.f32.gmra.mxu0 %v6789
      %v6878 = vpop.f32.mrf.mxu0
      %v6879 = vadd.f32 0.0, %v6878
      %6880 = vmatmul.f32.gmra.mxu0 %v6791
      %v6881 = vpop.f32.mrf.mxu0
      %v6882 = vadd.f32 0.0, %v6881
      %6883 = vmatmul.f32.gmra.mxu0 %v6793
      %v6884 = vpop.f32.mrf.mxu0
      %v6885 = vadd.f32 0.0, %v6884
      %6886 = vmatmul.f32.gmra.mxu0 %v6795
      %v6887 = vpop.f32.mrf.mxu0
      %v6888 = vadd.f32 0.0, %v6887
      %6889 = vmatmul.f32.gmra.mxu0 %v6797
      %v6890 = vpop.f32.mrf.mxu0
      %v6891 = vadd.f32 0.0, %v6890
      %6892 = vmatmul.f32.gmra.mxu0 %v6799
      %v6893 = vpop.f32.mrf.mxu0
      %v6894 = vadd.f32 0.0, %v6893
      %6895 = vmatmul.f32.gmra.mxu0 %v6801
      %v6896 = vpop.f32.mrf.mxu0
      %v6897 = vadd.f32 0.0, %v6896
      %6898 = vmatmul.f32.gmra.mxu0 %v6803
      %v6899 = vpop.f32.mrf.mxu0
      %v6900 = vadd.f32 0.0, %v6899
      %6901 = vmatmul.f32.gmra.mxu0 %v6805
      %v6902 = vpop.f32.mrf.mxu0
      %v6903 = vadd.f32 0.0, %v6902
      %6904 = vmatmul.f32.gmra.mxu0 %v6807
      %v6905 = vpop.f32.mrf.mxu0
      %v6906 = vadd.f32 0.0, %v6905
      %6907 = vmatmul.f32.gmra.mxu0 %v6809
      %v6908 = vpop.f32.mrf.mxu0
      %v6909 = vadd.f32 0.0, %v6908
      %6910 = vmatmul.f32.gmra.mxu0 %v6811
      %v6911 = vpop.f32.mrf.mxu0
      %v6912 = vadd.f32 0.0, %v6911
      %6913 = vmatmul.f32.gmra.mxu0 %v6813
      %v6914 = vpop.f32.mrf.mxu0
      %v6915 = vadd.f32 0.0, %v6914
      %6916 = vmatmul.f32.gmra.mxu0 %v6815
      %v6917 = vpop.f32.mrf.mxu0
      %v6918 = vadd.f32 0.0, %v6917
      %6919 = vmatmul.f32.gmra.mxu0 %v6817
      %v6920 = vpop.f32.mrf.mxu0
      %v6921 = vadd.f32 0.0, %v6920
      %6922 = vmatmul.f32.gmra.mxu0 %v6819
      %v6923 = vpop.f32.mrf.mxu0
      %v6924 = vadd.f32 0.0, %v6923
      %6925 = vmatmul.f32.gmra.mxu0 %v6821
      %v6926 = vpop.f32.mrf.mxu0
      %v6927 = vadd.f32 0.0, %v6926
      %6928 = vmatmul.f32.gmra.mxu0 %v6823
      %v6929 = vpop.f32.mrf.mxu0
      %v6930 = vadd.f32 0.0, %v6929
      %6931 = vmatmul.f32.gmra.mxu0 %v6825
      %v6932 = vpop.f32.mrf.mxu0
      %v6933 = vadd.f32 0.0, %v6932
      %6934 = vmatmul.f32.gmra.mxu0 %v6827
      %v6935 = vpop.f32.mrf.mxu0
      %v6936 = vadd.f32 0.0, %v6935
      %6937 = vmatmul.f32.gmra.mxu0 %v6829
      %v6938 = vpop.f32.mrf.mxu0
      %v6939 = vadd.f32 0.0, %v6938
      %6940 = vmatmul.f32.gmra.mxu0 %v6831
      %v6941 = vpop.f32.mrf.mxu0
      %v6942 = vadd.f32 0.0, %v6941
      %6943 = vmatmul.f32.gmra.mxu0 %v6833
      %v6944 = vpop.f32.mrf.mxu0
      %v6945 = vadd.f32 0.0, %v6944
      %6946 = vmatmul.f32.gmra.mxu0 %v6835
      %v6947 = vpop.f32.mrf.mxu0
      %v6948 = vadd.f32 0.0, %v6947
      %6949 = vdwg.mxu0
      %v6950 = vadd.f32 %v6636, %v6855
      %v6951 = vadd.f32 %v6637, %v6858
      %v6952 = vadd.f32 %v6638, %v6861
      %v6953 = vadd.f32 %v6639, %v6864
      %v6954 = vadd.f32 %v6640, %v6867
      %v6955 = vadd.f32 %v6641, %v6870
      %v6956 = vadd.f32 %v6642, %v6873
      %v6957 = vadd.f32 %v6643, %v6876
      %v6958 = vadd.f32 %v6644, %v6879
      %v6959 = vadd.f32 %v6645, %v6882
      %v6960 = vadd.f32 %v6646, %v6885
      %v6961 = vadd.f32 %v6647, %v6888
      %v6962 = vadd.f32 %v6648, %v6891
      %v6963 = vadd.f32 %v6649, %v6894
      %v6964 = vadd.f32 %v6650, %v6897
      %v6965 = vadd.f32 %v6651, %v6900
      %v6966 = vadd.f32 %v6652, %v6903
      %v6967 = vadd.f32 %v6653, %v6906
      %v6968 = vadd.f32 %v6654, %v6909
      %v6969 = vadd.f32 %v6655, %v6912
      %v6970 = vadd.f32 %v6656, %v6915
      %v6971 = vadd.f32 %v6657, %v6918
      %v6972 = vadd.f32 %v6658, %v6921
      %v6973 = vadd.f32 %v6659, %v6924
      %v6974 = vadd.f32 %v6660, %v6927
      %v6975 = vadd.f32 %v6661, %v6930
      %v6976 = vadd.f32 %v6662, %v6933
      %v6977 = vadd.f32 %v6663, %v6936
      %v6978 = vadd.f32 %v6664, %v6939
      %v6979 = vadd.f32 %v6665, %v6942
      %v6980 = vadd.f32 %v6666, %v6945
      %v6981 = vadd.f32 %v6667, %v6948
      %v6982 = vld [vmem:[%s4120] sm:$0xff]
      %v6983 = vld [vmem:[%s4120 + $0x8] sm:$0xff]
      %v6984 = vld [vmem:[%s4120 + $0x10] sm:$0xff]
      %v6985 = vld [vmem:[%s4120 + $0x18] sm:$0xff]
      %v6986 = vld [vmem:[%s4120 + $0x20] sm:$0xff]
      %v6987 = vld [vmem:[%s4120 + $0x28] sm:$0xff]
      %v6988 = vld [vmem:[%s4120 + $0x30] sm:$0xff]
      %v6989 = vld [vmem:[%s4120 + $0x38] sm:$0xff]
      %v6990 = vld [vmem:[%s4120 + $0x40] sm:$0xff]
      %v6991 = vld [vmem:[%s4120 + $0x48] sm:$0xff]
      %v6992 = vld [vmem:[%s4120 + $0x50] sm:$0xff]
      %v6993 = vld [vmem:[%s4120 + $0x58] sm:$0xff]
      %v6994 = vld [vmem:[%s4120 + $0x60] sm:$0xff]
      %v6995 = vld [vmem:[%s4120 + $0x68] sm:$0xff]
      %v6996 = vld [vmem:[%s4120 + $0x70] sm:$0xff]
      %v6997 = vld [vmem:[%s4120 + $0x78] sm:$0xff]
      %v6998 = vld [vmem:[%s4120 + $0x80] sm:$0xff]
      %v6999 = vld [vmem:[%s4120 + $0x88] sm:$0xff]
      %v7000 = vld [vmem:[%s4120 + $0x90] sm:$0xff]
      %v7001 = vld [vmem:[%s4120 + $0x98] sm:$0xff]
      %v7002 = vld [vmem:[%s4120 + $0xa0] sm:$0xff]
      %v7003 = vld [vmem:[%s4120 + $0xa8] sm:$0xff]
      %v7004 = vld [vmem:[%s4120 + $0xb0] sm:$0xff]
      %v7005 = vld [vmem:[%s4120 + $0xb8] sm:$0xff]
      %v7006 = vld [vmem:[%s4120 + $0xc0] sm:$0xff]
      %v7007 = vld [vmem:[%s4120 + $0xc8] sm:$0xff]
      %v7008 = vld [vmem:[%s4120 + $0xd0] sm:$0xff]
      %v7009 = vld [vmem:[%s4120 + $0xd8] sm:$0xff]
      %v7010 = vld [vmem:[%s4120 + $0xe0] sm:$0xff]
      %v7011 = vld [vmem:[%s4120 + $0xe8] sm:$0xff]
      %v7012 = vld [vmem:[%s4120 + $0xf0] sm:$0xff]
      %v7013 = vld [vmem:[%s4120 + $0xf8] sm:$0xff]
      %v7014 = vld [vmem:[%s4120 + $0x100] sm:$0xff]
      %v7015 = vld [vmem:[%s4120 + $0x108] sm:$0xff]
      %v7016 = vld [vmem:[%s4120 + $0x110] sm:$0xff]
      %v7017 = vld [vmem:[%s4120 + $0x118] sm:$0xff]
      %v7018 = vld [vmem:[%s4120 + $0x120] sm:$0xff]
      %v7019 = vld [vmem:[%s4120 + $0x128] sm:$0xff]
      %v7020 = vld [vmem:[%s4120 + $0x130] sm:$0xff]
      %v7021 = vld [vmem:[%s4120 + $0x138] sm:$0xff]
      %v7022 = vld [vmem:[%s4120 + $0x140] sm:$0xff]
      %v7023 = vld [vmem:[%s4120 + $0x148] sm:$0xff]
      %v7024 = vld [vmem:[%s4120 + $0x150] sm:$0xff]
      %v7025 = vld [vmem:[%s4120 + $0x158] sm:$0xff]
      %v7026 = vld [vmem:[%s4120 + $0x160] sm:$0xff]
      %v7027 = vld [vmem:[%s4120 + $0x168] sm:$0xff]
      %v7028 = vld [vmem:[%s4120 + $0x170] sm:$0xff]
      %v7029 = vld [vmem:[%s4120 + $0x178] sm:$0xff]
      %v7030 = vld [vmem:[%s4120 + $0x180] sm:$0xff]
      %v7031 = vld [vmem:[%s4120 + $0x188] sm:$0xff]
      %v7032 = vld [vmem:[%s4120 + $0x190] sm:$0xff]
      %v7033 = vld [vmem:[%s4120 + $0x198] sm:$0xff]
      %v7034 = vld [vmem:[%s4120 + $0x1a0] sm:$0xff]
      %v7035 = vld [vmem:[%s4120 + $0x1a8] sm:$0xff]
      %v7036 = vld [vmem:[%s4120 + $0x1b0] sm:$0xff]
      %v7037 = vld [vmem:[%s4120 + $0x1b8] sm:$0xff]
      %v7038 = vld [vmem:[%s4120 + $0x1c0] sm:$0xff]
      %v7039 = vld [vmem:[%s4120 + $0x1c8] sm:$0xff]
      %v7040 = vld [vmem:[%s4120 + $0x1d0] sm:$0xff]
      %v7041 = vld [vmem:[%s4120 + $0x1d8] sm:$0xff]
      %v7042 = vld [vmem:[%s4120 + $0x1e0] sm:$0xff]
      %v7043 = vld [vmem:[%s4120 + $0x1e8] sm:$0xff]
      %v7044 = vld [vmem:[%s4120 + $0x1f0] sm:$0xff]
      %v7045 = vld [vmem:[%s4120 + $0x1f8] sm:$0xff]
      %v7094 = vrot.slane %v6982, 7
      %v7095 = vrot.slane %v6983, 7
      %v7096 = vsel %vm2412, %v7094, %v7095
      %v7097 = vrot.slane %v6984, 7
      %v7098 = vsel %vm2412, %v7095, %v7097
      %v7099 = vrot.slane %v6986, 7
      %v7100 = vrot.slane %v6987, 7
      %v7101 = vsel %vm2412, %v7099, %v7100
      %v7102 = vrot.slane %v6988, 7
      %v7103 = vsel %vm2412, %v7100, %v7102
      %v7104 = vrot.slane %v6990, 7
      %v7105 = vrot.slane %v6991, 7
      %v7106 = vsel %vm2412, %v7104, %v7105
      %v7107 = vrot.slane %v6992, 7
      %v7108 = vsel %vm2412, %v7105, %v7107
      %v7109 = vrot.slane %v6994, 7
      %v7110 = vrot.slane %v6995, 7
      %v7111 = vsel %vm2412, %v7109, %v7110
      %v7112 = vrot.slane %v6996, 7
      %v7113 = vsel %vm2412, %v7110, %v7112
      %v7114 = vrot.slane %v6998, 7
      %v7115 = vrot.slane %v6999, 7
      %v7116 = vsel %vm2412, %v7114, %v7115
      %v7117 = vrot.slane %v7000, 7
      %v7118 = vsel %vm2412, %v7115, %v7117
      %v7119 = vrot.slane %v7002, 7
      %v7120 = vrot.slane %v7003, 7
      %v7121 = vsel %vm2412, %v7119, %v7120
      %v7122 = vrot.slane %v7004, 7
      %v7123 = vsel %vm2412, %v7120, %v7122
      %v7124 = vrot.slane %v7006, 7
      %v7125 = vrot.slane %v7007, 7
      %v7126 = vsel %vm2412, %v7124, %v7125
      %v7127 = vrot.slane %v7008, 7
      %v7128 = vsel %vm2412, %v7125, %v7127
      %v7129 = vrot.slane %v7010, 7
      %v7130 = vrot.slane %v7011, 7
      %v7131 = vsel %vm2412, %v7129, %v7130
      %v7132 = vrot.slane %v7012, 7
      %v7133 = vsel %vm2412, %v7130, %v7132
      %v7134 = vrot.slane %v7014, 7
      %v7135 = vrot.slane %v7015, 7
      %v7136 = vsel %vm2412, %v7134, %v7135
      %v7137 = vrot.slane %v7016, 7
      %v7138 = vsel %vm2412, %v7135, %v7137
      %v7139 = vrot.slane %v7018, 7
      %v7140 = vrot.slane %v7019, 7
      %v7141 = vsel %vm2412, %v7139, %v7140
      %v7142 = vrot.slane %v7020, 7
      %v7143 = vsel %vm2412, %v7140, %v7142
      %v7144 = vrot.slane %v7022, 7
      %v7145 = vrot.slane %v7023, 7
      %v7146 = vsel %vm2412, %v7144, %v7145
      %v7147 = vrot.slane %v7024, 7
      %v7148 = vsel %vm2412, %v7145, %v7147
      %v7149 = vrot.slane %v7026, 7
      %v7150 = vrot.slane %v7027, 7
      %v7151 = vsel %vm2412, %v7149, %v7150
      %v7152 = vrot.slane %v7028, 7
      %v7153 = vsel %vm2412, %v7150, %v7152
      %v7154 = vrot.slane %v7030, 7
      %v7155 = vrot.slane %v7031, 7
      %v7156 = vsel %vm2412, %v7154, %v7155
      %v7157 = vrot.slane %v7032, 7
      %v7158 = vsel %vm2412, %v7155, %v7157
      %v7159 = vrot.slane %v7034, 7
      %v7160 = vrot.slane %v7035, 7
      %v7161 = vsel %vm2412, %v7159, %v7160
      %v7162 = vrot.slane %v7036, 7
      %v7163 = vsel %vm2412, %v7160, %v7162
      %v7164 = vrot.slane %v7038, 7
      %v7165 = vrot.slane %v7039, 7
      %v7166 = vsel %vm2412, %v7164, %v7165
      %v7167 = vrot.slane %v7040, 7
      %v7168 = vsel %vm2412, %v7165, %v7167
      %v7169 = vrot.slane %v7042, 7
      %v7170 = vrot.slane %v7043, 7
      %v7171 = vsel %vm2412, %v7169, %v7170
      %v7172 = vrot.slane %v7044, 7
      %v7173 = vsel %vm2412, %v7170, %v7172
      %s7174 = scalar_lea.vmem %s5, 384
      %v7175 = vld [vmem:[%s7174] sm:$0xff]
      %v7176 = vld [vmem:[%s7174 + $0x8] sm:$0xff]
      %v7177 = vld [vmem:[%s7174 + $0x10] sm:$0xff]
      %v7178 = vld [vmem:[%s7174 + $0x18] sm:$0xff]
      %v7179 = vld [vmem:[%s7174 + $0x20] sm:$0xff]
      %v7180 = vld [vmem:[%s7174 + $0x28] sm:$0xff]
      %v7181 = vld [vmem:[%s7174 + $0x30] sm:$0xff]
      %v7182 = vld [vmem:[%s7174 + $0x38] sm:$0xff]
      %v7183 = vsel %vm2194, %v7096, 0
      %v7185 = vsel %vm2194, %v7098, 0
      %v7187 = vsel %vm2194, %v7101, 0
      %v7189 = vsel %vm2194, %v7103, 0
      %v7191 = vsel %vm2194, %v7106, 0
      %v7193 = vsel %vm2194, %v7108, 0
      %v7195 = vsel %vm2194, %v7111, 0
      %v7197 = vsel %vm2194, %v7113, 0
      %v7199 = vsel %vm2194, %v7116, 0
      %v7201 = vsel %vm2194, %v7118, 0
      %v7203 = vsel %vm2194, %v7121, 0
      %v7205 = vsel %vm2194, %v7123, 0
      %v7207 = vsel %vm2194, %v7126, 0
      %v7209 = vsel %vm2194, %v7128, 0
      %v7211 = vsel %vm2194, %v7131, 0
      %v7213 = vsel %vm2194, %v7133, 0
      %v7215 = vsel %vm2194, %v7136, 0
      %v7217 = vsel %vm2194, %v7138, 0
      %v7219 = vsel %vm2194, %v7141, 0
      %v7221 = vsel %vm2194, %v7143, 0
      %v7223 = vsel %vm2194, %v7146, 0
      %v7225 = vsel %vm2194, %v7148, 0
      %v7227 = vsel %vm2194, %v7151, 0
      %v7229 = vsel %vm2194, %v7153, 0
      %v7231 = vsel %vm2194, %v7156, 0
      %v7233 = vsel %vm2194, %v7158, 0
      %v7235 = vsel %vm2194, %v7161, 0
      %v7237 = vsel %vm2194, %v7163, 0
      %v7239 = vsel %vm2194, %v7166, 0
      %v7241 = vsel %vm2194, %v7168, 0
      %v7243 = vsel %vm2194, %v7171, 0
      %v7245 = vsel %vm2194, %v7173, 0
      %7247 = vmatpush.msra.mxu0 0.0
      %7248 = vmatpush.msra.mxu0 0.0
      %7249 = vmatpush.msra.mxu0 0.0
      %7250 = vmatpush.msra.mxu0 0.0
      %7251 = vmatpush.msra.mxu0 0.0
      %7252 = vmatpush.msra.mxu0 0.0
      %7253 = vmatpush.msra.mxu0 0.0
      %7254 = vmatpush.msra.mxu0 0.0
      %7255 = vmatpush.msra.mxu0 %v7182
      %7256 = vmatpush.msra.mxu0 %v7181
      %7257 = vmatpush.msra.mxu0 %v7180
      %7258 = vmatpush.msra.mxu0 %v7179
      %7259 = vmatpush.msra.mxu0 %v7178
      %7260 = vmatpush.msra.mxu0 %v7177
      %7261 = vmatpush.msra.mxu0 %v7176
      %7262 = vmatpush.msra.mxu0 %v7175
      %7263 = vmatmul.f32.gmra.mxu0 %v7183
      %v7264 = vpop.f32.mrf.mxu0
      %v7265 = vadd.f32 0.0, %v7264
      %7266 = vmatmul.f32.gmra.mxu0 %v7185
      %v7267 = vpop.f32.mrf.mxu0
      %v7268 = vadd.f32 0.0, %v7267
      %7269 = vmatmul.f32.gmra.mxu0 %v7187
      %v7270 = vpop.f32.mrf.mxu0
      %v7271 = vadd.f32 0.0, %v7270
      %7272 = vmatmul.f32.gmra.mxu0 %v7189
      %v7273 = vpop.f32.mrf.mxu0
      %v7274 = vadd.f32 0.0, %v7273
      %7275 = vmatmul.f32.gmra.mxu0 %v7191
      %v7276 = vpop.f32.mrf.mxu0
      %v7277 = vadd.f32 0.0, %v7276
      %7278 = vmatmul.f32.gmra.mxu0 %v7193
      %v7279 = vpop.f32.mrf.mxu0
      %v7280 = vadd.f32 0.0, %v7279
      %7281 = vmatmul.f32.gmra.mxu0 %v7195
      %v7282 = vpop.f32.mrf.mxu0
      %v7283 = vadd.f32 0.0, %v7282
      %7284 = vmatmul.f32.gmra.mxu0 %v7197
      %v7285 = vpop.f32.mrf.mxu0
      %v7286 = vadd.f32 0.0, %v7285
      %7287 = vmatmul.f32.gmra.mxu0 %v7199
      %v7288 = vpop.f32.mrf.mxu0
      %v7289 = vadd.f32 0.0, %v7288
      %7290 = vmatmul.f32.gmra.mxu0 %v7201
      %v7291 = vpop.f32.mrf.mxu0
      %v7292 = vadd.f32 0.0, %v7291
      %7293 = vmatmul.f32.gmra.mxu0 %v7203
      %v7294 = vpop.f32.mrf.mxu0
      %v7295 = vadd.f32 0.0, %v7294
      %7296 = vmatmul.f32.gmra.mxu0 %v7205
      %v7297 = vpop.f32.mrf.mxu0
      %v7298 = vadd.f32 0.0, %v7297
      %7299 = vmatmul.f32.gmra.mxu0 %v7207
      %v7300 = vpop.f32.mrf.mxu0
      %v7301 = vadd.f32 0.0, %v7300
      %7302 = vmatmul.f32.gmra.mxu0 %v7209
      %v7303 = vpop.f32.mrf.mxu0
      %v7304 = vadd.f32 0.0, %v7303
      %7305 = vmatmul.f32.gmra.mxu0 %v7211
      %v7306 = vpop.f32.mrf.mxu0
      %v7307 = vadd.f32 0.0, %v7306
      %7308 = vmatmul.f32.gmra.mxu0 %v7213
      %v7309 = vpop.f32.mrf.mxu0
      %v7310 = vadd.f32 0.0, %v7309
      %7311 = vmatmul.f32.gmra.mxu0 %v7215
      %v7312 = vpop.f32.mrf.mxu0
      %v7313 = vadd.f32 0.0, %v7312
      %7314 = vmatmul.f32.gmra.mxu0 %v7217
      %v7315 = vpop.f32.mrf.mxu0
      %v7316 = vadd.f32 0.0, %v7315
      %7317 = vmatmul.f32.gmra.mxu0 %v7219
      %v7318 = vpop.f32.mrf.mxu0
      %v7319 = vadd.f32 0.0, %v7318
      %7320 = vmatmul.f32.gmra.mxu0 %v7221
      %v7321 = vpop.f32.mrf.mxu0
      %v7322 = vadd.f32 0.0, %v7321
      %7323 = vmatmul.f32.gmra.mxu0 %v7223
      %v7324 = vpop.f32.mrf.mxu0
      %v7325 = vadd.f32 0.0, %v7324
      %7326 = vmatmul.f32.gmra.mxu0 %v7225
      %v7327 = vpop.f32.mrf.mxu0
      %v7328 = vadd.f32 0.0, %v7327
      %7329 = vmatmul.f32.gmra.mxu0 %v7227
      %v7330 = vpop.f32.mrf.mxu0
      %v7331 = vadd.f32 0.0, %v7330
      %7332 = vmatmul.f32.gmra.mxu0 %v7229
      %v7333 = vpop.f32.mrf.mxu0
      %v7334 = vadd.f32 0.0, %v7333
      %7335 = vmatmul.f32.gmra.mxu0 %v7231
      %v7336 = vpop.f32.mrf.mxu0
      %v7337 = vadd.f32 0.0, %v7336
      %7338 = vmatmul.f32.gmra.mxu0 %v7233
      %v7339 = vpop.f32.mrf.mxu0
      %v7340 = vadd.f32 0.0, %v7339
      %7341 = vmatmul.f32.gmra.mxu0 %v7235
      %v7342 = vpop.f32.mrf.mxu0
      %v7343 = vadd.f32 0.0, %v7342
      %7344 = vmatmul.f32.gmra.mxu0 %v7237
      %v7345 = vpop.f32.mrf.mxu0
      %v7346 = vadd.f32 0.0, %v7345
      %7347 = vmatmul.f32.gmra.mxu0 %v7239
      %v7348 = vpop.f32.mrf.mxu0
      %v7349 = vadd.f32 0.0, %v7348
      %7350 = vmatmul.f32.gmra.mxu0 %v7241
      %v7351 = vpop.f32.mrf.mxu0
      %v7352 = vadd.f32 0.0, %v7351
      %7353 = vmatmul.f32.gmra.mxu0 %v7243
      %v7354 = vpop.f32.mrf.mxu0
      %v7355 = vadd.f32 0.0, %v7354
      %7356 = vmatmul.f32.gmra.mxu0 %v7245
      %v7357 = vpop.f32.mrf.mxu0
      %v7358 = vadd.f32 0.0, %v7357
      %7359 = vdwg.mxu0
      %v7360 = vadd.f32 %v6950, %v7265
      %v7361 = vadd.f32 %v6951, %v7268
      %v7362 = vadd.f32 %v6952, %v7271
      %v7363 = vadd.f32 %v6953, %v7274
      %v7364 = vadd.f32 %v6954, %v7277
      %v7365 = vadd.f32 %v6955, %v7280
      %v7366 = vadd.f32 %v6956, %v7283
      %v7367 = vadd.f32 %v6957, %v7286
      %v7368 = vadd.f32 %v6958, %v7289
      %v7369 = vadd.f32 %v6959, %v7292
      %v7370 = vadd.f32 %v6960, %v7295
      %v7371 = vadd.f32 %v6961, %v7298
      %v7372 = vadd.f32 %v6962, %v7301
      %v7373 = vadd.f32 %v6963, %v7304
      %v7374 = vadd.f32 %v6964, %v7307
      %v7375 = vadd.f32 %v6965, %v7310
      %v7376 = vadd.f32 %v6966, %v7313
      %v7377 = vadd.f32 %v6967, %v7316
      %v7378 = vadd.f32 %v6968, %v7319
      %v7379 = vadd.f32 %v6969, %v7322
      %v7380 = vadd.f32 %v6970, %v7325
      %v7381 = vadd.f32 %v6971, %v7328
      %v7382 = vadd.f32 %v6972, %v7331
      %v7383 = vadd.f32 %v6973, %v7334
      %v7384 = vadd.f32 %v6974, %v7337
      %v7385 = vadd.f32 %v6975, %v7340
      %v7386 = vadd.f32 %v6976, %v7343
      %v7387 = vadd.f32 %v6977, %v7346
      %v7388 = vadd.f32 %v6978, %v7349
      %v7389 = vadd.f32 %v6979, %v7352
      %v7390 = vadd.f32 %v6980, %v7355
      %v7391 = vadd.f32 %v6981, %v7358
      %s7392 = scalar_lea.vmem %s5, 448
      %v7393 = vld [vmem:[%s7392] sm:$0xff]
      %v7394 = vld [vmem:[%s7392 + $0x8] sm:$0xff]
      %v7395 = vld [vmem:[%s7392 + $0x10] sm:$0xff]
      %v7396 = vld [vmem:[%s7392 + $0x18] sm:$0xff]
      %v7397 = vld [vmem:[%s7392 + $0x20] sm:$0xff]
      %v7398 = vld [vmem:[%s7392 + $0x28] sm:$0xff]
      %v7399 = vld [vmem:[%s7392 + $0x30] sm:$0xff]
      %v7400 = vld [vmem:[%s7392 + $0x38] sm:$0xff]
      %v7401 = vsel %vm2194, %v6983, 0
      %v7403 = vsel %vm2194, %v6984, 0
      %v7405 = vsel %vm2194, %v6987, 0
      %v7407 = vsel %vm2194, %v6988, 0
      %v7409 = vsel %vm2194, %v6991, 0
      %v7411 = vsel %vm2194, %v6992, 0
      %v7413 = vsel %vm2194, %v6995, 0
      %v7415 = vsel %vm2194, %v6996, 0
      %v7417 = vsel %vm2194, %v6999, 0
      %v7419 = vsel %vm2194, %v7000, 0
      %v7421 = vsel %vm2194, %v7003, 0
      %v7423 = vsel %vm2194, %v7004, 0
      %v7425 = vsel %vm2194, %v7007, 0
      %v7427 = vsel %vm2194, %v7008, 0
      %v7429 = vsel %vm2194, %v7011, 0
      %v7431 = vsel %vm2194, %v7012, 0
      %v7433 = vsel %vm2194, %v7015, 0
      %v7435 = vsel %vm2194, %v7016, 0
      %v7437 = vsel %vm2194, %v7019, 0
      %v7439 = vsel %vm2194, %v7020, 0
      %v7441 = vsel %vm2194, %v7023, 0
      %v7443 = vsel %vm2194, %v7024, 0
      %v7445 = vsel %vm2194, %v7027, 0
      %v7447 = vsel %vm2194, %v7028, 0
      %v7449 = vsel %vm2194, %v7031, 0
      %v7451 = vsel %vm2194, %v7032, 0
      %v7453 = vsel %vm2194, %v7035, 0
      %v7455 = vsel %vm2194, %v7036, 0
      %v7457 = vsel %vm2194, %v7039, 0
      %v7459 = vsel %vm2194, %v7040, 0
      %v7461 = vsel %vm2194, %v7043, 0
      %v7463 = vsel %vm2194, %v7044, 0
      %7465 = vmatpush.msra.mxu0 0.0
      %7466 = vmatpush.msra.mxu0 0.0
      %7467 = vmatpush.msra.mxu0 0.0
      %7468 = vmatpush.msra.mxu0 0.0
      %7469 = vmatpush.msra.mxu0 0.0
      %7470 = vmatpush.msra.mxu0 0.0
      %7471 = vmatpush.msra.mxu0 0.0
      %7472 = vmatpush.msra.mxu0 0.0
      %7473 = vmatpush.msra.mxu0 %v7400
      %7474 = vmatpush.msra.mxu0 %v7399
      %7475 = vmatpush.msra.mxu0 %v7398
      %7476 = vmatpush.msra.mxu0 %v7397
      %7477 = vmatpush.msra.mxu0 %v7396
      %7478 = vmatpush.msra.mxu0 %v7395
      %7479 = vmatpush.msra.mxu0 %v7394
      %7480 = vmatpush.msra.mxu0 %v7393
      %7481 = vmatmul.f32.gmra.mxu0 %v7401
      %v7482 = vpop.f32.mrf.mxu0
      %v7483 = vadd.f32 0.0, %v7482
      %7484 = vmatmul.f32.gmra.mxu0 %v7403
      %v7485 = vpop.f32.mrf.mxu0
      %v7486 = vadd.f32 0.0, %v7485
      %7487 = vmatmul.f32.gmra.mxu0 %v7405
      %v7488 = vpop.f32.mrf.mxu0
      %v7489 = vadd.f32 0.0, %v7488
      %7490 = vmatmul.f32.gmra.mxu0 %v7407
      %v7491 = vpop.f32.mrf.mxu0
      %v7492 = vadd.f32 0.0, %v7491
      %7493 = vmatmul.f32.gmra.mxu0 %v7409
      %v7494 = vpop.f32.mrf.mxu0
      %v7495 = vadd.f32 0.0, %v7494
      %7496 = vmatmul.f32.gmra.mxu0 %v7411
      %v7497 = vpop.f32.mrf.mxu0
      %v7498 = vadd.f32 0.0, %v7497
      %7499 = vmatmul.f32.gmra.mxu0 %v7413
      %v7500 = vpop.f32.mrf.mxu0
      %v7501 = vadd.f32 0.0, %v7500
      %7502 = vmatmul.f32.gmra.mxu0 %v7415
      %v7503 = vpop.f32.mrf.mxu0
      %v7504 = vadd.f32 0.0, %v7503
      %7505 = vmatmul.f32.gmra.mxu0 %v7417
      %v7506 = vpop.f32.mrf.mxu0
      %v7507 = vadd.f32 0.0, %v7506
      %7508 = vmatmul.f32.gmra.mxu0 %v7419
      %v7509 = vpop.f32.mrf.mxu0
      %v7510 = vadd.f32 0.0, %v7509
      %7511 = vmatmul.f32.gmra.mxu0 %v7421
      %v7512 = vpop.f32.mrf.mxu0
      %v7513 = vadd.f32 0.0, %v7512
      %7514 = vmatmul.f32.gmra.mxu0 %v7423
      %v7515 = vpop.f32.mrf.mxu0
      %v7516 = vadd.f32 0.0, %v7515
      %7517 = vmatmul.f32.gmra.mxu0 %v7425
      %v7518 = vpop.f32.mrf.mxu0
      %v7519 = vadd.f32 0.0, %v7518
      %7520 = vmatmul.f32.gmra.mxu0 %v7427
      %v7521 = vpop.f32.mrf.mxu0
      %v7522 = vadd.f32 0.0, %v7521
      %7523 = vmatmul.f32.gmra.mxu0 %v7429
      %v7524 = vpop.f32.mrf.mxu0
      %v7525 = vadd.f32 0.0, %v7524
      %7526 = vmatmul.f32.gmra.mxu0 %v7431
      %v7527 = vpop.f32.mrf.mxu0
      %v7528 = vadd.f32 0.0, %v7527
      %7529 = vmatmul.f32.gmra.mxu0 %v7433
      %v7530 = vpop.f32.mrf.mxu0
      %v7531 = vadd.f32 0.0, %v7530
      %7532 = vmatmul.f32.gmra.mxu0 %v7435
      %v7533 = vpop.f32.mrf.mxu0
      %v7534 = vadd.f32 0.0, %v7533
      %7535 = vmatmul.f32.gmra.mxu0 %v7437
      %v7536 = vpop.f32.mrf.mxu0
      %v7537 = vadd.f32 0.0, %v7536
      %7538 = vmatmul.f32.gmra.mxu0 %v7439
      %v7539 = vpop.f32.mrf.mxu0
      %v7540 = vadd.f32 0.0, %v7539
      %7541 = vmatmul.f32.gmra.mxu0 %v7441
      %v7542 = vpop.f32.mrf.mxu0
      %v7543 = vadd.f32 0.0, %v7542
      %7544 = vmatmul.f32.gmra.mxu0 %v7443
      %v7545 = vpop.f32.mrf.mxu0
      %v7546 = vadd.f32 0.0, %v7545
      %7547 = vmatmul.f32.gmra.mxu0 %v7445
      %v7548 = vpop.f32.mrf.mxu0
      %v7549 = vadd.f32 0.0, %v7548
      %7550 = vmatmul.f32.gmra.mxu0 %v7447
      %v7551 = vpop.f32.mrf.mxu0
      %v7552 = vadd.f32 0.0, %v7551
      %7553 = vmatmul.f32.gmra.mxu0 %v7449
      %v7554 = vpop.f32.mrf.mxu0
      %v7555 = vadd.f32 0.0, %v7554
      %7556 = vmatmul.f32.gmra.mxu0 %v7451
      %v7557 = vpop.f32.mrf.mxu0
      %v7558 = vadd.f32 0.0, %v7557
      %7559 = vmatmul.f32.gmra.mxu0 %v7453
      %v7560 = vpop.f32.mrf.mxu0
      %v7561 = vadd.f32 0.0, %v7560
      %7562 = vmatmul.f32.gmra.mxu0 %v7455
      %v7563 = vpop.f32.mrf.mxu0
      %v7564 = vadd.f32 0.0, %v7563
      %7565 = vmatmul.f32.gmra.mxu0 %v7457
      %v7566 = vpop.f32.mrf.mxu0
      %v7567 = vadd.f32 0.0, %v7566
      %7568 = vmatmul.f32.gmra.mxu0 %v7459
      %v7569 = vpop.f32.mrf.mxu0
      %v7570 = vadd.f32 0.0, %v7569
      %7571 = vmatmul.f32.gmra.mxu0 %v7461
      %v7572 = vpop.f32.mrf.mxu0
      %v7573 = vadd.f32 0.0, %v7572
      %7574 = vmatmul.f32.gmra.mxu0 %v7463
      %v7575 = vpop.f32.mrf.mxu0
      %v7576 = vadd.f32 0.0, %v7575
      %7577 = vdwg.mxu0
      %v7578 = vadd.f32 %v7360, %v7483
      %v7579 = vadd.f32 %v7361, %v7486
      %v7580 = vadd.f32 %v7362, %v7489
      %v7581 = vadd.f32 %v7363, %v7492
      %v7582 = vadd.f32 %v7364, %v7495
      %v7583 = vadd.f32 %v7365, %v7498
      %v7584 = vadd.f32 %v7366, %v7501
      %v7585 = vadd.f32 %v7367, %v7504
      %v7586 = vadd.f32 %v7368, %v7507
      %v7587 = vadd.f32 %v7369, %v7510
      %v7588 = vadd.f32 %v7370, %v7513
      %v7589 = vadd.f32 %v7371, %v7516
      %v7590 = vadd.f32 %v7372, %v7519
      %v7591 = vadd.f32 %v7373, %v7522
      %v7592 = vadd.f32 %v7374, %v7525
      %v7593 = vadd.f32 %v7375, %v7528
      %v7594 = vadd.f32 %v7376, %v7531
      %v7595 = vadd.f32 %v7377, %v7534
      %v7596 = vadd.f32 %v7378, %v7537
      %v7597 = vadd.f32 %v7379, %v7540
      %v7598 = vadd.f32 %v7380, %v7543
      %v7599 = vadd.f32 %v7381, %v7546
      %v7600 = vadd.f32 %v7382, %v7549
      %v7601 = vadd.f32 %v7383, %v7552
      %v7602 = vadd.f32 %v7384, %v7555
      %v7603 = vadd.f32 %v7385, %v7558
      %v7604 = vadd.f32 %v7386, %v7561
      %v7605 = vadd.f32 %v7387, %v7564
      %v7606 = vadd.f32 %v7388, %v7567
      %v7607 = vadd.f32 %v7389, %v7570
      %v7608 = vadd.f32 %v7390, %v7573
      %v7609 = vadd.f32 %v7391, %v7576
      %v7626 = vrot.slane %v6983, 1
      %v7627 = vrot.slane %v6984, 1
      %v7628 = vsel %vm436, %v7626, %v7627
      %v7629 = vrot.slane %v6985, 1
      %v7630 = vsel %vm436, %v7627, %v7629
      %v7631 = vrot.slane %v6987, 1
      %v7632 = vrot.slane %v6988, 1
      %v7633 = vsel %vm436, %v7631, %v7632
      %v7634 = vrot.slane %v6989, 1
      %v7635 = vsel %vm436, %v7632, %v7634
      %v7636 = vrot.slane %v6991, 1
      %v7637 = vrot.slane %v6992, 1
      %v7638 = vsel %vm436, %v7636, %v7637
      %v7639 = vrot.slane %v6993, 1
      %v7640 = vsel %vm436, %v7637, %v7639
      %v7641 = vrot.slane %v6995, 1
      %v7642 = vrot.slane %v6996, 1
      %v7643 = vsel %vm436, %v7641, %v7642
      %v7644 = vrot.slane %v6997, 1
      %v7645 = vsel %vm436, %v7642, %v7644
      %v7646 = vrot.slane %v6999, 1
      %v7647 = vrot.slane %v7000, 1
      %v7648 = vsel %vm436, %v7646, %v7647
      %v7649 = vrot.slane %v7001, 1
      %v7650 = vsel %vm436, %v7647, %v7649
      %v7651 = vrot.slane %v7003, 1
      %v7652 = vrot.slane %v7004, 1
      %v7653 = vsel %vm436, %v7651, %v7652
      %v7654 = vrot.slane %v7005, 1
      %v7655 = vsel %vm436, %v7652, %v7654
      %v7656 = vrot.slane %v7007, 1
      %v7657 = vrot.slane %v7008, 1
      %v7658 = vsel %vm436, %v7656, %v7657
      %v7659 = vrot.slane %v7009, 1
      %v7660 = vsel %vm436, %v7657, %v7659
      %v7661 = vrot.slane %v7011, 1
      %v7662 = vrot.slane %v7012, 1
      %v7663 = vsel %vm436, %v7661, %v7662
      %v7664 = vrot.slane %v7013, 1
      %v7665 = vsel %vm436, %v7662, %v7664
      %v7666 = vrot.slane %v7015, 1
      %v7667 = vrot.slane %v7016, 1
      %v7668 = vsel %vm436, %v7666, %v7667
      %v7669 = vrot.slane %v7017, 1
      %v7670 = vsel %vm436, %v7667, %v7669
      %v7671 = vrot.slane %v7019, 1
      %v7672 = vrot.slane %v7020, 1
      %v7673 = vsel %vm436, %v7671, %v7672
      %v7674 = vrot.slane %v7021, 1
      %v7675 = vsel %vm436, %v7672, %v7674
      %v7676 = vrot.slane %v7023, 1
      %v7677 = vrot.slane %v7024, 1
      %v7678 = vsel %vm436, %v7676, %v7677
      %v7679 = vrot.slane %v7025, 1
      %v7680 = vsel %vm436, %v7677, %v7679
      %v7681 = vrot.slane %v7027, 1
      %v7682 = vrot.slane %v7028, 1
      %v7683 = vsel %vm436, %v7681, %v7682
      %v7684 = vrot.slane %v7029, 1
      %v7685 = vsel %vm436, %v7682, %v7684
      %v7686 = vrot.slane %v7031, 1
      %v7687 = vrot.slane %v7032, 1
      %v7688 = vsel %vm436, %v7686, %v7687
      %v7689 = vrot.slane %v7033, 1
      %v7690 = vsel %vm436, %v7687, %v7689
      %v7691 = vrot.slane %v7035, 1
      %v7692 = vrot.slane %v7036, 1
      %v7693 = vsel %vm436, %v7691, %v7692
      %v7694 = vrot.slane %v7037, 1
      %v7695 = vsel %vm436, %v7692, %v7694
      %v7696 = vrot.slane %v7039, 1
      %v7697 = vrot.slane %v7040, 1
      %v7698 = vsel %vm436, %v7696, %v7697
      %v7699 = vrot.slane %v7041, 1
      %v7700 = vsel %vm436, %v7697, %v7699
      %v7701 = vrot.slane %v7043, 1
      %v7702 = vrot.slane %v7044, 1
      %v7703 = vsel %vm436, %v7701, %v7702
      %v7704 = vrot.slane %v7045, 1
      %v7705 = vsel %vm436, %v7702, %v7704
      %s7706 = scalar_lea.vmem %s5, 512
      %v7707 = vld [vmem:[%s7706] sm:$0xff]
      %v7708 = vld [vmem:[%s7706 + $0x8] sm:$0xff]
      %v7709 = vld [vmem:[%s7706 + $0x10] sm:$0xff]
      %v7710 = vld [vmem:[%s7706 + $0x18] sm:$0xff]
      %v7711 = vld [vmem:[%s7706 + $0x20] sm:$0xff]
      %v7712 = vld [vmem:[%s7706 + $0x28] sm:$0xff]
      %v7713 = vld [vmem:[%s7706 + $0x30] sm:$0xff]
      %v7714 = vld [vmem:[%s7706 + $0x38] sm:$0xff]
      %v7715 = vsel %vm2194, %v7628, 0
      %v7717 = vsel %vm2194, %v7630, 0
      %v7719 = vsel %vm2194, %v7633, 0
      %v7721 = vsel %vm2194, %v7635, 0
      %v7723 = vsel %vm2194, %v7638, 0
      %v7725 = vsel %vm2194, %v7640, 0
      %v7727 = vsel %vm2194, %v7643, 0
      %v7729 = vsel %vm2194, %v7645, 0
      %v7731 = vsel %vm2194, %v7648, 0
      %v7733 = vsel %vm2194, %v7650, 0
      %v7735 = vsel %vm2194, %v7653, 0
      %v7737 = vsel %vm2194, %v7655, 0
      %v7739 = vsel %vm2194, %v7658, 0
      %v7741 = vsel %vm2194, %v7660, 0
      %v7743 = vsel %vm2194, %v7663, 0
      %v7745 = vsel %vm2194, %v7665, 0
      %v7747 = vsel %vm2194, %v7668, 0
      %v7749 = vsel %vm2194, %v7670, 0
      %v7751 = vsel %vm2194, %v7673, 0
      %v7753 = vsel %vm2194, %v7675, 0
      %v7755 = vsel %vm2194, %v7678, 0
      %v7757 = vsel %vm2194, %v7680, 0
      %v7759 = vsel %vm2194, %v7683, 0
      %v7761 = vsel %vm2194, %v7685, 0
      %v7763 = vsel %vm2194, %v7688, 0
      %v7765 = vsel %vm2194, %v7690, 0
      %v7767 = vsel %vm2194, %v7693, 0
      %v7769 = vsel %vm2194, %v7695, 0
      %v7771 = vsel %vm2194, %v7698, 0
      %v7773 = vsel %vm2194, %v7700, 0
      %v7775 = vsel %vm2194, %v7703, 0
      %v7777 = vsel %vm2194, %v7705, 0
      %7779 = vmatpush.msra.mxu0 0.0
      %7780 = vmatpush.msra.mxu0 0.0
      %7781 = vmatpush.msra.mxu0 0.0
      %7782 = vmatpush.msra.mxu0 0.0
      %7783 = vmatpush.msra.mxu0 0.0
      %7784 = vmatpush.msra.mxu0 0.0
      %7785 = vmatpush.msra.mxu0 0.0
      %7786 = vmatpush.msra.mxu0 0.0
      %7787 = vmatpush.msra.mxu0 %v7714
      %7788 = vmatpush.msra.mxu0 %v7713
      %7789 = vmatpush.msra.mxu0 %v7712
      %7790 = vmatpush.msra.mxu0 %v7711
      %7791 = vmatpush.msra.mxu0 %v7710
      %7792 = vmatpush.msra.mxu0 %v7709
      %7793 = vmatpush.msra.mxu0 %v7708
      %7794 = vmatpush.msra.mxu0 %v7707
      %7795 = vmatmul.f32.gmra.mxu0 %v7715
      %v7796 = vpop.f32.mrf.mxu0
      %v7797 = vadd.f32 0.0, %v7796
      %7798 = vmatmul.f32.gmra.mxu0 %v7717
      %v7799 = vpop.f32.mrf.mxu0
      %v7800 = vadd.f32 0.0, %v7799
      %7801 = vmatmul.f32.gmra.mxu0 %v7719
      %v7802 = vpop.f32.mrf.mxu0
      %v7803 = vadd.f32 0.0, %v7802
      %7804 = vmatmul.f32.gmra.mxu0 %v7721
      %v7805 = vpop.f32.mrf.mxu0
      %v7806 = vadd.f32 0.0, %v7805
      %7807 = vmatmul.f32.gmra.mxu0 %v7723
      %v7808 = vpop.f32.mrf.mxu0
      %v7809 = vadd.f32 0.0, %v7808
      %7810 = vmatmul.f32.gmra.mxu0 %v7725
      %v7811 = vpop.f32.mrf.mxu0
      %v7812 = vadd.f32 0.0, %v7811
      %7813 = vmatmul.f32.gmra.mxu0 %v7727
      %v7814 = vpop.f32.mrf.mxu0
      %v7815 = vadd.f32 0.0, %v7814
      %7816 = vmatmul.f32.gmra.mxu0 %v7729
      %v7817 = vpop.f32.mrf.mxu0
      %v7818 = vadd.f32 0.0, %v7817
      %7819 = vmatmul.f32.gmra.mxu0 %v7731
      %v7820 = vpop.f32.mrf.mxu0
      %v7821 = vadd.f32 0.0, %v7820
      %7822 = vmatmul.f32.gmra.mxu0 %v7733
      %v7823 = vpop.f32.mrf.mxu0
      %v7824 = vadd.f32 0.0, %v7823
      %7825 = vmatmul.f32.gmra.mxu0 %v7735
      %v7826 = vpop.f32.mrf.mxu0
      %v7827 = vadd.f32 0.0, %v7826
      %7828 = vmatmul.f32.gmra.mxu0 %v7737
      %v7829 = vpop.f32.mrf.mxu0
      %v7830 = vadd.f32 0.0, %v7829
      %7831 = vmatmul.f32.gmra.mxu0 %v7739
      %v7832 = vpop.f32.mrf.mxu0
      %v7833 = vadd.f32 0.0, %v7832
      %7834 = vmatmul.f32.gmra.mxu0 %v7741
      %v7835 = vpop.f32.mrf.mxu0
      %v7836 = vadd.f32 0.0, %v7835
      %7837 = vmatmul.f32.gmra.mxu0 %v7743
      %v7838 = vpop.f32.mrf.mxu0
      %v7839 = vadd.f32 0.0, %v7838
      %7840 = vmatmul.f32.gmra.mxu0 %v7745
      %v7841 = vpop.f32.mrf.mxu0
      %v7842 = vadd.f32 0.0, %v7841
      %7843 = vmatmul.f32.gmra.mxu0 %v7747
      %v7844 = vpop.f32.mrf.mxu0
      %v7845 = vadd.f32 0.0, %v7844
      %7846 = vmatmul.f32.gmra.mxu0 %v7749
      %v7847 = vpop.f32.mrf.mxu0
      %v7848 = vadd.f32 0.0, %v7847
      %7849 = vmatmul.f32.gmra.mxu0 %v7751
      %v7850 = vpop.f32.mrf.mxu0
      %v7851 = vadd.f32 0.0, %v7850
      %7852 = vmatmul.f32.gmra.mxu0 %v7753
      %v7853 = vpop.f32.mrf.mxu0
      %v7854 = vadd.f32 0.0, %v7853
      %7855 = vmatmul.f32.gmra.mxu0 %v7755
      %v7856 = vpop.f32.mrf.mxu0
      %v7857 = vadd.f32 0.0, %v7856
      %7858 = vmatmul.f32.gmra.mxu0 %v7757
      %v7859 = vpop.f32.mrf.mxu0
      %v7860 = vadd.f32 0.0, %v7859
      %7861 = vmatmul.f32.gmra.mxu0 %v7759
      %v7862 = vpop.f32.mrf.mxu0
      %v7863 = vadd.f32 0.0, %v7862
      %7864 = vmatmul.f32.gmra.mxu0 %v7761
      %v7865 = vpop.f32.mrf.mxu0
      %v7866 = vadd.f32 0.0, %v7865
      %7867 = vmatmul.f32.gmra.mxu0 %v7763
      %v7868 = vpop.f32.mrf.mxu0
      %v7869 = vadd.f32 0.0, %v7868
      %7870 = vmatmul.f32.gmra.mxu0 %v7765
      %v7871 = vpop.f32.mrf.mxu0
      %v7872 = vadd.f32 0.0, %v7871
      %7873 = vmatmul.f32.gmra.mxu0 %v7767
      %v7874 = vpop.f32.mrf.mxu0
      %v7875 = vadd.f32 0.0, %v7874
      %7876 = vmatmul.f32.gmra.mxu0 %v7769
      %v7877 = vpop.f32.mrf.mxu0
      %v7878 = vadd.f32 0.0, %v7877
      %7879 = vmatmul.f32.gmra.mxu0 %v7771
      %v7880 = vpop.f32.mrf.mxu0
      %v7881 = vadd.f32 0.0, %v7880
      %7882 = vmatmul.f32.gmra.mxu0 %v7773
      %v7883 = vpop.f32.mrf.mxu0
      %v7884 = vadd.f32 0.0, %v7883
      %7885 = vmatmul.f32.gmra.mxu0 %v7775
      %v7886 = vpop.f32.mrf.mxu0
      %v7887 = vadd.f32 0.0, %v7886
      %7888 = vmatmul.f32.gmra.mxu0 %v7777
      %v7889 = vpop.f32.mrf.mxu0
      %v7890 = vadd.f32 0.0, %v7889
      %7891 = vdwg.mxu0
      %v7892 = vadd.f32 %v7578, %v7797
      %v7893 = vadd.f32 %v7579, %v7800
      %v7894 = vadd.f32 %v7580, %v7803
      %v7895 = vadd.f32 %v7581, %v7806
      %v7896 = vadd.f32 %v7582, %v7809
      %v7897 = vadd.f32 %v7583, %v7812
      %v7898 = vadd.f32 %v7584, %v7815
      %v7899 = vadd.f32 %v7585, %v7818
      %v7900 = vadd.f32 %v7586, %v7821
      %v7901 = vadd.f32 %v7587, %v7824
      %v7902 = vadd.f32 %v7588, %v7827
      %v7903 = vadd.f32 %v7589, %v7830
      %v7904 = vadd.f32 %v7590, %v7833
      %v7905 = vadd.f32 %v7591, %v7836
      %v7906 = vadd.f32 %v7592, %v7839
      %v7907 = vadd.f32 %v7593, %v7842
      %v7908 = vadd.f32 %v7594, %v7845
      %v7909 = vadd.f32 %v7595, %v7848
      %v7910 = vadd.f32 %v7596, %v7851
      %v7911 = vadd.f32 %v7597, %v7854
      %v7912 = vadd.f32 %v7598, %v7857
      %v7913 = vadd.f32 %v7599, %v7860
      %v7914 = vadd.f32 %v7600, %v7863
      %v7915 = vadd.f32 %v7601, %v7866
      %v7916 = vadd.f32 %v7602, %v7869
      %v7917 = vadd.f32 %v7603, %v7872
      %v7918 = vadd.f32 %v7604, %v7875
      %v7919 = vadd.f32 %v7605, %v7878
      %v7920 = vadd.f32 %v7606, %v7881
      %v7921 = vadd.f32 %v7607, %v7884
      %v7922 = vadd.f32 %v7608, %v7887
      %v7923 = vadd.f32 %v7609, %v7890
      %v7924 = vld [vmem:[%s6] sm:$0x1]
      %v7926 = vperm.slane %v7924, 0
      %v7928 = vadd.f32 %v7892, %v7926
      %v7929 = vadd.f32 %v7893, %v7926
      %v7930 = vadd.f32 %v7894, %v7926
      %v7931 = vadd.f32 %v7895, %v7926
      %v7932 = vadd.f32 %v7896, %v7926
      %v7933 = vadd.f32 %v7897, %v7926
      %v7934 = vadd.f32 %v7898, %v7926
      %v7935 = vadd.f32 %v7899, %v7926
      %v7936 = vadd.f32 %v7900, %v7926
      %v7937 = vadd.f32 %v7901, %v7926
      %v7938 = vadd.f32 %v7902, %v7926
      %v7939 = vadd.f32 %v7903, %v7926
      %v7940 = vadd.f32 %v7904, %v7926
      %v7941 = vadd.f32 %v7905, %v7926
      %v7942 = vadd.f32 %v7906, %v7926
      %v7943 = vadd.f32 %v7907, %v7926
      %v7944 = vadd.f32 %v7908, %v7926
      %v7945 = vadd.f32 %v7909, %v7926
      %v7946 = vadd.f32 %v7910, %v7926
      %v7947 = vadd.f32 %v7911, %v7926
      %v7948 = vadd.f32 %v7912, %v7926
      %v7949 = vadd.f32 %v7913, %v7926
      %v7950 = vadd.f32 %v7914, %v7926
      %v7951 = vadd.f32 %v7915, %v7926
      %v7952 = vadd.f32 %v7916, %v7926
      %v7953 = vadd.f32 %v7917, %v7926
      %v7954 = vadd.f32 %v7918, %v7926
      %v7955 = vadd.f32 %v7919, %v7926
      %v7956 = vadd.f32 %v7920, %v7926
      %v7957 = vadd.f32 %v7921, %v7926
      %v7958 = vadd.f32 %v7922, %v7926
      %v7959 = vadd.f32 %v7923, %v7926
      %v7960 = vadd.f32 %v7928, %v2162
      %v7961 = vadd.f32 %v7929, %v2163
      %v7962 = vadd.f32 %v7930, %v2164
      %v7963 = vadd.f32 %v7931, %v2165
      %v7964 = vadd.f32 %v7932, %v2166
      %v7965 = vadd.f32 %v7933, %v2167
      %v7966 = vadd.f32 %v7934, %v2168
      %v7967 = vadd.f32 %v7935, %v2169
      %v7968 = vadd.f32 %v7936, %v2170
      %v7969 = vadd.f32 %v7937, %v2171
      %v7970 = vadd.f32 %v7938, %v2172
      %v7971 = vadd.f32 %v7939, %v2173
      %v7972 = vadd.f32 %v7940, %v2174
      %v7973 = vadd.f32 %v7941, %v2175
      %v7974 = vadd.f32 %v7942, %v2176
      %v7975 = vadd.f32 %v7943, %v2177
      %v7976 = vadd.f32 %v7944, %v2178
      %v7977 = vadd.f32 %v7945, %v2179
      %v7978 = vadd.f32 %v7946, %v2180
      %v7979 = vadd.f32 %v7947, %v2181
      %v7980 = vadd.f32 %v7948, %v2182
      %v7981 = vadd.f32 %v7949, %v2183
      %v7982 = vadd.f32 %v7950, %v2184
      %v7983 = vadd.f32 %v7951, %v2185
      %v7984 = vadd.f32 %v7952, %v2186
      %v7985 = vadd.f32 %v7953, %v2187
      %v7986 = vadd.f32 %v7954, %v2188
      %v7987 = vadd.f32 %v7955, %v2189
      %v7988 = vadd.f32 %v7956, %v2190
      %v7989 = vadd.f32 %v7957, %v2191
      %v7990 = vadd.f32 %v7958, %v2192
      %v7991 = vadd.f32 %v7959, %v2193
      %v7992 = vmax.f32 %v7960, 0.0
      %v7993 = vmax.f32 %v7961, 0.0
      %v7994 = vmax.f32 %v7962, 0.0
      %v7995 = vmax.f32 %v7963, 0.0
      %v7996 = vmax.f32 %v7964, 0.0
      %v7997 = vmax.f32 %v7965, 0.0
      %v7998 = vmax.f32 %v7966, 0.0
      %v7999 = vmax.f32 %v7967, 0.0
      %v8000 = vmax.f32 %v7968, 0.0
      %v8001 = vmax.f32 %v7969, 0.0
      %v8002 = vmax.f32 %v7970, 0.0
      %v8003 = vmax.f32 %v7971, 0.0
      %v8004 = vmax.f32 %v7972, 0.0
      %v8005 = vmax.f32 %v7973, 0.0
      %v8006 = vmax.f32 %v7974, 0.0
      %v8007 = vmax.f32 %v7975, 0.0
      %v8008 = vmax.f32 %v7976, 0.0
      %v8009 = vmax.f32 %v7977, 0.0
      %v8010 = vmax.f32 %v7978, 0.0
      %v8011 = vmax.f32 %v7979, 0.0
      %v8012 = vmax.f32 %v7980, 0.0
      %v8013 = vmax.f32 %v7981, 0.0
      %v8014 = vmax.f32 %v7982, 0.0
      %v8015 = vmax.f32 %v7983, 0.0
      %v8016 = vmax.f32 %v7984, 0.0
      %v8017 = vmax.f32 %v7985, 0.0
      %v8018 = vmax.f32 %v7986, 0.0
      %v8019 = vmax.f32 %v7987, 0.0
      %v8020 = vmax.f32 %v7988, 0.0
      %v8021 = vmax.f32 %v7989, 0.0
      %v8022 = vmax.f32 %v7990, 0.0
      %v8023 = vmax.f32 %v7991, 0.0
      %8024 = vst.msk [vmem:[%s2267 + $0x8] sm:$0xff] %vm2194, %v7992
      %8025 = vst.msk [vmem:[%s2267 + $0x10] sm:$0xff] %vm2194, %v7993
      %8026 = vst.msk [vmem:[%s2267 + $0x28] sm:$0xff] %vm2194, %v7994
      %8027 = vst.msk [vmem:[%s2267 + $0x30] sm:$0xff] %vm2194, %v7995
      %8028 = vst.msk [vmem:[%s2267 + $0x48] sm:$0xff] %vm2194, %v7996
      %8029 = vst.msk [vmem:[%s2267 + $0x50] sm:$0xff] %vm2194, %v7997
      %8030 = vst.msk [vmem:[%s2267 + $0x68] sm:$0xff] %vm2194, %v7998
      %8031 = vst.msk [vmem:[%s2267 + $0x70] sm:$0xff] %vm2194, %v7999
      %8032 = vst.msk [vmem:[%s2267 + $0x88] sm:$0xff] %vm2194, %v8000
      %8033 = vst.msk [vmem:[%s2267 + $0x90] sm:$0xff] %vm2194, %v8001
      %8034 = vst.msk [vmem:[%s2267 + $0xa8] sm:$0xff] %vm2194, %v8002
      %8035 = vst.msk [vmem:[%s2267 + $0xb0] sm:$0xff] %vm2194, %v8003
      %8036 = vst.msk [vmem:[%s2267 + $0xc8] sm:$0xff] %vm2194, %v8004
      %8037 = vst.msk [vmem:[%s2267 + $0xd0] sm:$0xff] %vm2194, %v8005
      %8038 = vst.msk [vmem:[%s2267 + $0xe8] sm:$0xff] %vm2194, %v8006
      %8039 = vst.msk [vmem:[%s2267 + $0xf0] sm:$0xff] %vm2194, %v8007
      %8040 = vst.msk [vmem:[%s2267 + $0x108] sm:$0xff] %vm2194, %v8008
      %8041 = vst.msk [vmem:[%s2267 + $0x110] sm:$0xff] %vm2194, %v8009
      %8042 = vst.msk [vmem:[%s2267 + $0x128] sm:$0xff] %vm2194, %v8010
      %8043 = vst.msk [vmem:[%s2267 + $0x130] sm:$0xff] %vm2194, %v8011
      %8044 = vst.msk [vmem:[%s2267 + $0x148] sm:$0xff] %vm2194, %v8012
      %8045 = vst.msk [vmem:[%s2267 + $0x150] sm:$0xff] %vm2194, %v8013
      %8046 = vst.msk [vmem:[%s2267 + $0x168] sm:$0xff] %vm2194, %v8014
      %8047 = vst.msk [vmem:[%s2267 + $0x170] sm:$0xff] %vm2194, %v8015
      %8048 = vst.msk [vmem:[%s2267 + $0x188] sm:$0xff] %vm2194, %v8016
      %8049 = vst.msk [vmem:[%s2267 + $0x190] sm:$0xff] %vm2194, %v8017
      %8050 = vst.msk [vmem:[%s2267 + $0x1a8] sm:$0xff] %vm2194, %v8018
      %8051 = vst.msk [vmem:[%s2267 + $0x1b0] sm:$0xff] %vm2194, %v8019
      %8052 = vst.msk [vmem:[%s2267 + $0x1c8] sm:$0xff] %vm2194, %v8020
      %8053 = vst.msk [vmem:[%s2267 + $0x1d0] sm:$0xff] %vm2194, %v8021
      %8054 = vst.msk [vmem:[%s2267 + $0x1e8] sm:$0xff] %vm2194, %v8022
      %8055 = vst.msk [vmem:[%s2267 + $0x1f0] sm:$0xff] %vm2194, %v8023
      %v8056 = vld [vmem:[#allocation2] sm:$0xff]
      %v8057 = vld [vmem:[#allocation2 + $0x8] sm:$0xff]
      %v8058 = vld [vmem:[#allocation2 + $0x10] sm:$0xff]
      %v8059 = vld [vmem:[#allocation2 + $0x18] sm:$0xff]
      %v8060 = vld [vmem:[#allocation2 + $0x20] sm:$0xff]
      %v8061 = vld [vmem:[#allocation2 + $0x28] sm:$0xff]
      %v8062 = vld [vmem:[#allocation2 + $0x30] sm:$0xff]
      %v8063 = vld [vmem:[#allocation2 + $0x38] sm:$0xff]
      %v8064 = vld [vmem:[#allocation2 + $0x40] sm:$0xff]
      %v8065 = vld [vmem:[#allocation2 + $0x48] sm:$0xff]
      %v8066 = vld [vmem:[#allocation2 + $0x50] sm:$0xff]
      %v8067 = vld [vmem:[#allocation2 + $0x58] sm:$0xff]
      %v8068 = vld [vmem:[#allocation2 + $0x60] sm:$0xff]
      %v8069 = vld [vmem:[#allocation2 + $0x68] sm:$0xff]
      %v8070 = vld [vmem:[#allocation2 + $0x70] sm:$0xff]
      %v8071 = vld [vmem:[#allocation2 + $0x78] sm:$0xff]
      %v8072 = vld [vmem:[#allocation2 + $0x80] sm:$0xff]
      %v8073 = vld [vmem:[#allocation2 + $0x88] sm:$0xff]
      %v8074 = vld [vmem:[#allocation2 + $0x90] sm:$0xff]
      %v8075 = vld [vmem:[#allocation2 + $0x98] sm:$0xff]
      %v8076 = vld [vmem:[#allocation2 + $0xa0] sm:$0xff]
      %v8077 = vld [vmem:[#allocation2 + $0xa8] sm:$0xff]
      %v8078 = vld [vmem:[#allocation2 + $0xb0] sm:$0xff]
      %v8079 = vld [vmem:[#allocation2 + $0xb8] sm:$0xff]
      %v8080 = vld [vmem:[#allocation2 + $0xc0] sm:$0xff]
      %v8081 = vld [vmem:[#allocation2 + $0xc8] sm:$0xff]
      %v8082 = vld [vmem:[#allocation2 + $0xd0] sm:$0xff]
      %v8083 = vld [vmem:[#allocation2 + $0xd8] sm:$0xff]
      %v8084 = vld [vmem:[#allocation2 + $0xe0] sm:$0xff]
      %v8085 = vld [vmem:[#allocation2 + $0xe8] sm:$0xff]
      %v8086 = vld [vmem:[#allocation2 + $0xf0] sm:$0xff]
      %v8087 = vld [vmem:[#allocation2 + $0xf8] sm:$0xff]
      %v8088 = vld [vmem:[#allocation2 + $0x100] sm:$0xff]
      %v8089 = vld [vmem:[#allocation2 + $0x108] sm:$0xff]
      %v8090 = vld [vmem:[#allocation2 + $0x110] sm:$0xff]
      %v8091 = vld [vmem:[#allocation2 + $0x118] sm:$0xff]
      %v8092 = vld [vmem:[#allocation2 + $0x120] sm:$0xff]
      %v8093 = vld [vmem:[#allocation2 + $0x128] sm:$0xff]
      %v8094 = vld [vmem:[#allocation2 + $0x130] sm:$0xff]
      %v8095 = vld [vmem:[#allocation2 + $0x138] sm:$0xff]
      %v8096 = vld [vmem:[#allocation2 + $0x140] sm:$0xff]
      %v8097 = vld [vmem:[#allocation2 + $0x148] sm:$0xff]
      %v8098 = vld [vmem:[#allocation2 + $0x150] sm:$0xff]
      %v8099 = vld [vmem:[#allocation2 + $0x158] sm:$0xff]
      %v8100 = vld [vmem:[#allocation2 + $0x160] sm:$0xff]
      %v8101 = vld [vmem:[#allocation2 + $0x168] sm:$0xff]
      %v8102 = vld [vmem:[#allocation2 + $0x170] sm:$0xff]
      %v8103 = vld [vmem:[#allocation2 + $0x178] sm:$0xff]
      %v8104 = vld [vmem:[#allocation2 + $0x180] sm:$0xff]
      %v8105 = vld [vmem:[#allocation2 + $0x188] sm:$0xff]
      %v8106 = vld [vmem:[#allocation2 + $0x190] sm:$0xff]
      %v8107 = vld [vmem:[#allocation2 + $0x198] sm:$0xff]
      %v8108 = vld [vmem:[#allocation2 + $0x1a0] sm:$0xff]
      %v8109 = vld [vmem:[#allocation2 + $0x1a8] sm:$0xff]
      %v8110 = vld [vmem:[#allocation2 + $0x1b0] sm:$0xff]
      %v8111 = vld [vmem:[#allocation2 + $0x1b8] sm:$0xff]
      %v8112 = vld [vmem:[#allocation2 + $0x1c0] sm:$0xff]
      %v8113 = vld [vmem:[#allocation2 + $0x1c8] sm:$0xff]
      %v8114 = vld [vmem:[#allocation2 + $0x1d0] sm:$0xff]
      %v8115 = vld [vmem:[#allocation2 + $0x1d8] sm:$0xff]
      %v8116 = vld [vmem:[#allocation2 + $0x1e0] sm:$0xff]
      %v8117 = vld [vmem:[#allocation2 + $0x1e8] sm:$0xff]
      %v8118 = vld [vmem:[#allocation2 + $0x1f0] sm:$0xff]
      %v8119 = vld [vmem:[#allocation2 + $0x1f8] sm:$0xff]
      %v8168 = vrot.slane %v8056, 7
      %v8169 = vrot.slane %v8057, 7
      %v8170 = vsel %vm2412, %v8168, %v8169
      %v8171 = vrot.slane %v8058, 7
      %v8172 = vsel %vm2412, %v8169, %v8171
      %v8173 = vrot.slane %v8060, 7
      %v8174 = vrot.slane %v8061, 7
      %v8175 = vsel %vm2412, %v8173, %v8174
      %v8176 = vrot.slane %v8062, 7
      %v8177 = vsel %vm2412, %v8174, %v8176
      %v8178 = vrot.slane %v8064, 7
      %v8179 = vrot.slane %v8065, 7
      %v8180 = vsel %vm2412, %v8178, %v8179
      %v8181 = vrot.slane %v8066, 7
      %v8182 = vsel %vm2412, %v8179, %v8181
      %v8183 = vrot.slane %v8068, 7
      %v8184 = vrot.slane %v8069, 7
      %v8185 = vsel %vm2412, %v8183, %v8184
      %v8186 = vrot.slane %v8070, 7
      %v8187 = vsel %vm2412, %v8184, %v8186
      %v8188 = vrot.slane %v8072, 7
      %v8189 = vrot.slane %v8073, 7
      %v8190 = vsel %vm2412, %v8188, %v8189
      %v8191 = vrot.slane %v8074, 7
      %v8192 = vsel %vm2412, %v8189, %v8191
      %v8193 = vrot.slane %v8076, 7
      %v8194 = vrot.slane %v8077, 7
      %v8195 = vsel %vm2412, %v8193, %v8194
      %v8196 = vrot.slane %v8078, 7
      %v8197 = vsel %vm2412, %v8194, %v8196
      %v8198 = vrot.slane %v8080, 7
      %v8199 = vrot.slane %v8081, 7
      %v8200 = vsel %vm2412, %v8198, %v8199
      %v8201 = vrot.slane %v8082, 7
      %v8202 = vsel %vm2412, %v8199, %v8201
      %v8203 = vrot.slane %v8084, 7
      %v8204 = vrot.slane %v8085, 7
      %v8205 = vsel %vm2412, %v8203, %v8204
      %v8206 = vrot.slane %v8086, 7
      %v8207 = vsel %vm2412, %v8204, %v8206
      %v8208 = vrot.slane %v8088, 7
      %v8209 = vrot.slane %v8089, 7
      %v8210 = vsel %vm2412, %v8208, %v8209
      %v8211 = vrot.slane %v8090, 7
      %v8212 = vsel %vm2412, %v8209, %v8211
      %v8213 = vrot.slane %v8092, 7
      %v8214 = vrot.slane %v8093, 7
      %v8215 = vsel %vm2412, %v8213, %v8214
      %v8216 = vrot.slane %v8094, 7
      %v8217 = vsel %vm2412, %v8214, %v8216
      %v8218 = vrot.slane %v8096, 7
      %v8219 = vrot.slane %v8097, 7
      %v8220 = vsel %vm2412, %v8218, %v8219
      %v8221 = vrot.slane %v8098, 7
      %v8222 = vsel %vm2412, %v8219, %v8221
      %v8223 = vrot.slane %v8100, 7
      %v8224 = vrot.slane %v8101, 7
      %v8225 = vsel %vm2412, %v8223, %v8224
      %v8226 = vrot.slane %v8102, 7
      %v8227 = vsel %vm2412, %v8224, %v8226
      %v8228 = vrot.slane %v8104, 7
      %v8229 = vrot.slane %v8105, 7
      %v8230 = vsel %vm2412, %v8228, %v8229
      %v8231 = vrot.slane %v8106, 7
      %v8232 = vsel %vm2412, %v8229, %v8231
      %v8233 = vrot.slane %v8108, 7
      %v8234 = vrot.slane %v8109, 7
      %v8235 = vsel %vm2412, %v8233, %v8234
      %v8236 = vrot.slane %v8110, 7
      %v8237 = vsel %vm2412, %v8234, %v8236
      %v8238 = vrot.slane %v8112, 7
      %v8239 = vrot.slane %v8113, 7
      %v8240 = vsel %vm2412, %v8238, %v8239
      %v8241 = vrot.slane %v8114, 7
      %v8242 = vsel %vm2412, %v8239, %v8241
      %v8243 = vrot.slane %v8116, 7
      %v8244 = vrot.slane %v8117, 7
      %v8245 = vsel %vm2412, %v8243, %v8244
      %v8246 = vrot.slane %v8118, 7
      %v8247 = vsel %vm2412, %v8244, %v8246
      %v8248 = vld [vmem:[%s7] sm:$0xff]
      %v8249 = vld [vmem:[%s7 + $0x8] sm:$0xff]
      %v8250 = vld [vmem:[%s7 + $0x10] sm:$0xff]
      %v8251 = vld [vmem:[%s7 + $0x18] sm:$0xff]
      %v8252 = vld [vmem:[%s7 + $0x20] sm:$0xff]
      %v8253 = vld [vmem:[%s7 + $0x28] sm:$0xff]
      %v8254 = vld [vmem:[%s7 + $0x30] sm:$0xff]
      %v8255 = vld [vmem:[%s7 + $0x38] sm:$0xff]
      %s8256 = scalar_lea.vmem %s7, 64
      %v8257 = vld [vmem:[%s8256] sm:$0xff]
      %v8258 = vld [vmem:[%s8256 + $0x8] sm:$0xff]
      %v8259 = vld [vmem:[%s8256 + $0x10] sm:$0xff]
      %v8260 = vld [vmem:[%s8256 + $0x18] sm:$0xff]
      %v8261 = vld [vmem:[%s8256 + $0x20] sm:$0xff]
      %v8262 = vld [vmem:[%s8256 + $0x28] sm:$0xff]
      %v8263 = vld [vmem:[%s8256 + $0x30] sm:$0xff]
      %v8264 = vld [vmem:[%s8256 + $0x38] sm:$0xff]
      %v8265 = vsel %vm2194, %v8057, 0
      %v8267 = vsel %vm2194, %v8058, 0
      %v8269 = vsel %vm2194, %v8061, 0
      %v8271 = vsel %vm2194, %v8062, 0
      %v8273 = vsel %vm2194, %v8065, 0
      %v8275 = vsel %vm2194, %v8066, 0
      %v8277 = vsel %vm2194, %v8069, 0
      %v8279 = vsel %vm2194, %v8070, 0
      %v8281 = vsel %vm2194, %v8073, 0
      %v8283 = vsel %vm2194, %v8074, 0
      %v8285 = vsel %vm2194, %v8077, 0
      %v8287 = vsel %vm2194, %v8078, 0
      %v8289 = vsel %vm2194, %v8081, 0
      %v8291 = vsel %vm2194, %v8082, 0
      %v8293 = vsel %vm2194, %v8085, 0
      %v8295 = vsel %vm2194, %v8086, 0
      %v8297 = vsel %vm2194, %v8089, 0
      %v8299 = vsel %vm2194, %v8090, 0
      %v8301 = vsel %vm2194, %v8093, 0
      %v8303 = vsel %vm2194, %v8094, 0
      %v8305 = vsel %vm2194, %v8097, 0
      %v8307 = vsel %vm2194, %v8098, 0
      %v8309 = vsel %vm2194, %v8101, 0
      %v8311 = vsel %vm2194, %v8102, 0
      %v8313 = vsel %vm2194, %v8105, 0
      %v8315 = vsel %vm2194, %v8106, 0
      %v8317 = vsel %vm2194, %v8109, 0
      %v8319 = vsel %vm2194, %v8110, 0
      %v8321 = vsel %vm2194, %v8113, 0
      %v8323 = vsel %vm2194, %v8114, 0
      %v8325 = vsel %vm2194, %v8117, 0
      %v8327 = vsel %vm2194, %v8118, 0
      %8329 = vmatpush.msra.mxu0 0.0
      %8330 = vmatpush.msra.mxu0 0.0
      %8331 = vmatpush.msra.mxu0 0.0
      %8332 = vmatpush.msra.mxu0 0.0
      %8333 = vmatpush.msra.mxu0 0.0
      %8334 = vmatpush.msra.mxu0 0.0
      %8335 = vmatpush.msra.mxu0 0.0
      %8336 = vmatpush.msra.mxu0 0.0
      %8337 = vmatpush.msra.mxu0 %v8264
      %8338 = vmatpush.msra.mxu0 %v8263
      %8339 = vmatpush.msra.mxu0 %v8262
      %8340 = vmatpush.msra.mxu0 %v8261
      %8341 = vmatpush.msra.mxu0 %v8260
      %8342 = vmatpush.msra.mxu0 %v8259
      %8343 = vmatpush.msra.mxu0 %v8258
      %8344 = vmatpush.msra.mxu0 %v8257
      %8345 = vmatmul.f32.gmra.mxu0 %v8265
      %v8346 = vpop.f32.mrf.mxu0
      %v8347 = vadd.f32 0.0, %v8346
      %8348 = vmatmul.f32.gmra.mxu0 %v8267
      %v8349 = vpop.f32.mrf.mxu0
      %v8350 = vadd.f32 0.0, %v8349
      %8351 = vmatmul.f32.gmra.mxu0 %v8269
      %v8352 = vpop.f32.mrf.mxu0
      %v8353 = vadd.f32 0.0, %v8352
      %8354 = vmatmul.f32.gmra.mxu0 %v8271
      %v8355 = vpop.f32.mrf.mxu0
      %v8356 = vadd.f32 0.0, %v8355
      %8357 = vmatmul.f32.gmra.mxu0 %v8273
      %v8358 = vpop.f32.mrf.mxu0
      %v8359 = vadd.f32 0.0, %v8358
      %8360 = vmatmul.f32.gmra.mxu0 %v8275
      %v8361 = vpop.f32.mrf.mxu0
      %v8362 = vadd.f32 0.0, %v8361
      %8363 = vmatmul.f32.gmra.mxu0 %v8277
      %v8364 = vpop.f32.mrf.mxu0
      %v8365 = vadd.f32 0.0, %v8364
      %8366 = vmatmul.f32.gmra.mxu0 %v8279
      %v8367 = vpop.f32.mrf.mxu0
      %v8368 = vadd.f32 0.0, %v8367
      %8369 = vmatmul.f32.gmra.mxu0 %v8281
      %v8370 = vpop.f32.mrf.mxu0
      %v8371 = vadd.f32 0.0, %v8370
      %8372 = vmatmul.f32.gmra.mxu0 %v8283
      %v8373 = vpop.f32.mrf.mxu0
      %v8374 = vadd.f32 0.0, %v8373
      %8375 = vmatmul.f32.gmra.mxu0 %v8285
      %v8376 = vpop.f32.mrf.mxu0
      %v8377 = vadd.f32 0.0, %v8376
      %8378 = vmatmul.f32.gmra.mxu0 %v8287
      %v8379 = vpop.f32.mrf.mxu0
      %v8380 = vadd.f32 0.0, %v8379
      %8381 = vmatmul.f32.gmra.mxu0 %v8289
      %v8382 = vpop.f32.mrf.mxu0
      %v8383 = vadd.f32 0.0, %v8382
      %8384 = vmatmul.f32.gmra.mxu0 %v8291
      %v8385 = vpop.f32.mrf.mxu0
      %v8386 = vadd.f32 0.0, %v8385
      %8387 = vmatmul.f32.gmra.mxu0 %v8293
      %v8388 = vpop.f32.mrf.mxu0
      %v8389 = vadd.f32 0.0, %v8388
      %8390 = vmatmul.f32.gmra.mxu0 %v8295
      %v8391 = vpop.f32.mrf.mxu0
      %v8392 = vadd.f32 0.0, %v8391
      %8393 = vmatmul.f32.gmra.mxu0 %v8297
      %v8394 = vpop.f32.mrf.mxu0
      %v8395 = vadd.f32 0.0, %v8394
      %8396 = vmatmul.f32.gmra.mxu0 %v8299
      %v8397 = vpop.f32.mrf.mxu0
      %v8398 = vadd.f32 0.0, %v8397
      %8399 = vmatmul.f32.gmra.mxu0 %v8301
      %v8400 = vpop.f32.mrf.mxu0
      %v8401 = vadd.f32 0.0, %v8400
      %8402 = vmatmul.f32.gmra.mxu0 %v8303
      %v8403 = vpop.f32.mrf.mxu0
      %v8404 = vadd.f32 0.0, %v8403
      %8405 = vmatmul.f32.gmra.mxu0 %v8305
      %v8406 = vpop.f32.mrf.mxu0
      %v8407 = vadd.f32 0.0, %v8406
      %8408 = vmatmul.f32.gmra.mxu0 %v8307
      %v8409 = vpop.f32.mrf.mxu0
      %v8410 = vadd.f32 0.0, %v8409
      %8411 = vmatmul.f32.gmra.mxu0 %v8309
      %v8412 = vpop.f32.mrf.mxu0
      %v8413 = vadd.f32 0.0, %v8412
      %8414 = vmatmul.f32.gmra.mxu0 %v8311
      %v8415 = vpop.f32.mrf.mxu0
      %v8416 = vadd.f32 0.0, %v8415
      %8417 = vmatmul.f32.gmra.mxu0 %v8313
      %v8418 = vpop.f32.mrf.mxu0
      %v8419 = vadd.f32 0.0, %v8418
      %8420 = vmatmul.f32.gmra.mxu0 %v8315
      %v8421 = vpop.f32.mrf.mxu0
      %v8422 = vadd.f32 0.0, %v8421
      %8423 = vmatmul.f32.gmra.mxu0 %v8317
      %v8424 = vpop.f32.mrf.mxu0
      %v8425 = vadd.f32 0.0, %v8424
      %8426 = vmatmul.f32.gmra.mxu0 %v8319
      %v8427 = vpop.f32.mrf.mxu0
      %v8428 = vadd.f32 0.0, %v8427
      %8429 = vmatmul.f32.gmra.mxu0 %v8321
      %v8430 = vpop.f32.mrf.mxu0
      %v8431 = vadd.f32 0.0, %v8430
      %8432 = vmatmul.f32.gmra.mxu0 %v8323
      %v8433 = vpop.f32.mrf.mxu0
      %v8434 = vadd.f32 0.0, %v8433
      %8435 = vmatmul.f32.gmra.mxu0 %v8325
      %v8436 = vpop.f32.mrf.mxu0
      %v8437 = vadd.f32 0.0, %v8436
      %8438 = vmatmul.f32.gmra.mxu0 %v8327
      %v8439 = vpop.f32.mrf.mxu0
      %v8440 = vadd.f32 0.0, %v8439
      %8441 = vdwg.mxu0
      %v8442 = vsel %vm2194, %v8170, 0
      %v8444 = vsel %vm2194, %v8172, 0
      %v8446 = vsel %vm2194, %v8175, 0
      %v8448 = vsel %vm2194, %v8177, 0
      %v8450 = vsel %vm2194, %v8180, 0
      %v8452 = vsel %vm2194, %v8182, 0
      %v8454 = vsel %vm2194, %v8185, 0
      %v8456 = vsel %vm2194, %v8187, 0
      %v8458 = vsel %vm2194, %v8190, 0
      %v8460 = vsel %vm2194, %v8192, 0
      %v8462 = vsel %vm2194, %v8195, 0
      %v8464 = vsel %vm2194, %v8197, 0
      %v8466 = vsel %vm2194, %v8200, 0
      %v8468 = vsel %vm2194, %v8202, 0
      %v8470 = vsel %vm2194, %v8205, 0
      %v8472 = vsel %vm2194, %v8207, 0
      %v8474 = vsel %vm2194, %v8210, 0
      %v8476 = vsel %vm2194, %v8212, 0
      %v8478 = vsel %vm2194, %v8215, 0
      %v8480 = vsel %vm2194, %v8217, 0
      %v8482 = vsel %vm2194, %v8220, 0
      %v8484 = vsel %vm2194, %v8222, 0
      %v8486 = vsel %vm2194, %v8225, 0
      %v8488 = vsel %vm2194, %v8227, 0
      %v8490 = vsel %vm2194, %v8230, 0
      %v8492 = vsel %vm2194, %v8232, 0
      %v8494 = vsel %vm2194, %v8235, 0
      %v8496 = vsel %vm2194, %v8237, 0
      %v8498 = vsel %vm2194, %v8240, 0
      %v8500 = vsel %vm2194, %v8242, 0
      %v8502 = vsel %vm2194, %v8245, 0
      %v8504 = vsel %vm2194, %v8247, 0
      %8506 = vmatpush.msra.mxu0 0.0
      %8507 = vmatpush.msra.mxu0 0.0
      %8508 = vmatpush.msra.mxu0 0.0
      %8509 = vmatpush.msra.mxu0 0.0
      %8510 = vmatpush.msra.mxu0 0.0
      %8511 = vmatpush.msra.mxu0 0.0
      %8512 = vmatpush.msra.mxu0 0.0
      %8513 = vmatpush.msra.mxu0 0.0
      %8514 = vmatpush.msra.mxu0 %v8255
      %8515 = vmatpush.msra.mxu0 %v8254
      %8516 = vmatpush.msra.mxu0 %v8253
      %8517 = vmatpush.msra.mxu0 %v8252
      %8518 = vmatpush.msra.mxu0 %v8251
      %8519 = vmatpush.msra.mxu0 %v8250
      %8520 = vmatpush.msra.mxu0 %v8249
      %8521 = vmatpush.msra.mxu0 %v8248
      %8522 = vmatmul.f32.gmra.mxu0 %v8442
      %v8523 = vpop.f32.mrf.mxu0
      %v8524 = vadd.f32 %v8347, %v8523
      %8525 = vmatmul.f32.gmra.mxu0 %v8444
      %v8526 = vpop.f32.mrf.mxu0
      %v8527 = vadd.f32 %v8350, %v8526
      %8528 = vmatmul.f32.gmra.mxu0 %v8446
      %v8529 = vpop.f32.mrf.mxu0
      %v8530 = vadd.f32 %v8353, %v8529
      %8531 = vmatmul.f32.gmra.mxu0 %v8448
      %v8532 = vpop.f32.mrf.mxu0
      %v8533 = vadd.f32 %v8356, %v8532
      %8534 = vmatmul.f32.gmra.mxu0 %v8450
      %v8535 = vpop.f32.mrf.mxu0
      %v8536 = vadd.f32 %v8359, %v8535
      %8537 = vmatmul.f32.gmra.mxu0 %v8452
      %v8538 = vpop.f32.mrf.mxu0
      %v8539 = vadd.f32 %v8362, %v8538
      %8540 = vmatmul.f32.gmra.mxu0 %v8454
      %v8541 = vpop.f32.mrf.mxu0
      %v8542 = vadd.f32 %v8365, %v8541
      %8543 = vmatmul.f32.gmra.mxu0 %v8456
      %v8544 = vpop.f32.mrf.mxu0
      %v8545 = vadd.f32 %v8368, %v8544
      %8546 = vmatmul.f32.gmra.mxu0 %v8458
      %v8547 = vpop.f32.mrf.mxu0
      %v8548 = vadd.f32 %v8371, %v8547
      %8549 = vmatmul.f32.gmra.mxu0 %v8460
      %v8550 = vpop.f32.mrf.mxu0
      %v8551 = vadd.f32 %v8374, %v8550
      %8552 = vmatmul.f32.gmra.mxu0 %v8462
      %v8553 = vpop.f32.mrf.mxu0
      %v8554 = vadd.f32 %v8377, %v8553
      %8555 = vmatmul.f32.gmra.mxu0 %v8464
      %v8556 = vpop.f32.mrf.mxu0
      %v8557 = vadd.f32 %v8380, %v8556
      %8558 = vmatmul.f32.gmra.mxu0 %v8466
      %v8559 = vpop.f32.mrf.mxu0
      %v8560 = vadd.f32 %v8383, %v8559
      %8561 = vmatmul.f32.gmra.mxu0 %v8468
      %v8562 = vpop.f32.mrf.mxu0
      %v8563 = vadd.f32 %v8386, %v8562
      %8564 = vmatmul.f32.gmra.mxu0 %v8470
      %v8565 = vpop.f32.mrf.mxu0
      %v8566 = vadd.f32 %v8389, %v8565
      %8567 = vmatmul.f32.gmra.mxu0 %v8472
      %v8568 = vpop.f32.mrf.mxu0
      %v8569 = vadd.f32 %v8392, %v8568
      %8570 = vmatmul.f32.gmra.mxu0 %v8474
      %v8571 = vpop.f32.mrf.mxu0
      %v8572 = vadd.f32 %v8395, %v8571
      %8573 = vmatmul.f32.gmra.mxu0 %v8476
      %v8574 = vpop.f32.mrf.mxu0
      %v8575 = vadd.f32 %v8398, %v8574
      %8576 = vmatmul.f32.gmra.mxu0 %v8478
      %v8577 = vpop.f32.mrf.mxu0
      %v8578 = vadd.f32 %v8401, %v8577
      %8579 = vmatmul.f32.gmra.mxu0 %v8480
      %v8580 = vpop.f32.mrf.mxu0
      %v8581 = vadd.f32 %v8404, %v8580
      %8582 = vmatmul.f32.gmra.mxu0 %v8482
      %v8583 = vpop.f32.mrf.mxu0
      %v8584 = vadd.f32 %v8407, %v8583
      %8585 = vmatmul.f32.gmra.mxu0 %v8484
      %v8586 = vpop.f32.mrf.mxu0
      %v8587 = vadd.f32 %v8410, %v8586
      %8588 = vmatmul.f32.gmra.mxu0 %v8486
      %v8589 = vpop.f32.mrf.mxu0
      %v8590 = vadd.f32 %v8413, %v8589
      %8591 = vmatmul.f32.gmra.mxu0 %v8488
      %v8592 = vpop.f32.mrf.mxu0
      %v8593 = vadd.f32 %v8416, %v8592
      %8594 = vmatmul.f32.gmra.mxu0 %v8490
      %v8595 = vpop.f32.mrf.mxu0
      %v8596 = vadd.f32 %v8419, %v8595
      %8597 = vmatmul.f32.gmra.mxu0 %v8492
      %v8598 = vpop.f32.mrf.mxu0
      %v8599 = vadd.f32 %v8422, %v8598
      %8600 = vmatmul.f32.gmra.mxu0 %v8494
      %v8601 = vpop.f32.mrf.mxu0
      %v8602 = vadd.f32 %v8425, %v8601
      %8603 = vmatmul.f32.gmra.mxu0 %v8496
      %v8604 = vpop.f32.mrf.mxu0
      %v8605 = vadd.f32 %v8428, %v8604
      %8606 = vmatmul.f32.gmra.mxu0 %v8498
      %v8607 = vpop.f32.mrf.mxu0
      %v8608 = vadd.f32 %v8431, %v8607
      %8609 = vmatmul.f32.gmra.mxu0 %v8500
      %v8610 = vpop.f32.mrf.mxu0
      %v8611 = vadd.f32 %v8434, %v8610
      %8612 = vmatmul.f32.gmra.mxu0 %v8502
      %v8613 = vpop.f32.mrf.mxu0
      %v8614 = vadd.f32 %v8437, %v8613
      %8615 = vmatmul.f32.gmra.mxu0 %v8504
      %v8616 = vpop.f32.mrf.mxu0
      %v8617 = vadd.f32 %v8440, %v8616
      %8618 = vdwg.mxu0
      %v8635 = vrot.slane %v8057, 1
      %v8636 = vrot.slane %v8058, 1
      %v8637 = vsel %vm436, %v8635, %v8636
      %v8638 = vrot.slane %v8059, 1
      %v8639 = vsel %vm436, %v8636, %v8638
      %v8640 = vrot.slane %v8061, 1
      %v8641 = vrot.slane %v8062, 1
      %v8642 = vsel %vm436, %v8640, %v8641
      %v8643 = vrot.slane %v8063, 1
      %v8644 = vsel %vm436, %v8641, %v8643
      %v8645 = vrot.slane %v8065, 1
      %v8646 = vrot.slane %v8066, 1
      %v8647 = vsel %vm436, %v8645, %v8646
      %v8648 = vrot.slane %v8067, 1
      %v8649 = vsel %vm436, %v8646, %v8648
      %v8650 = vrot.slane %v8069, 1
      %v8651 = vrot.slane %v8070, 1
      %v8652 = vsel %vm436, %v8650, %v8651
      %v8653 = vrot.slane %v8071, 1
      %v8654 = vsel %vm436, %v8651, %v8653
      %v8655 = vrot.slane %v8073, 1
      %v8656 = vrot.slane %v8074, 1
      %v8657 = vsel %vm436, %v8655, %v8656
      %v8658 = vrot.slane %v8075, 1
      %v8659 = vsel %vm436, %v8656, %v8658
      %v8660 = vrot.slane %v8077, 1
      %v8661 = vrot.slane %v8078, 1
      %v8662 = vsel %vm436, %v8660, %v8661
      %v8663 = vrot.slane %v8079, 1
      %v8664 = vsel %vm436, %v8661, %v8663
      %v8665 = vrot.slane %v8081, 1
      %v8666 = vrot.slane %v8082, 1
      %v8667 = vsel %vm436, %v8665, %v8666
      %v8668 = vrot.slane %v8083, 1
      %v8669 = vsel %vm436, %v8666, %v8668
      %v8670 = vrot.slane %v8085, 1
      %v8671 = vrot.slane %v8086, 1
      %v8672 = vsel %vm436, %v8670, %v8671
      %v8673 = vrot.slane %v8087, 1
      %v8674 = vsel %vm436, %v8671, %v8673
      %v8675 = vrot.slane %v8089, 1
      %v8676 = vrot.slane %v8090, 1
      %v8677 = vsel %vm436, %v8675, %v8676
      %v8678 = vrot.slane %v8091, 1
      %v8679 = vsel %vm436, %v8676, %v8678
      %v8680 = vrot.slane %v8093, 1
      %v8681 = vrot.slane %v8094, 1
      %v8682 = vsel %vm436, %v8680, %v8681
      %v8683 = vrot.slane %v8095, 1
      %v8684 = vsel %vm436, %v8681, %v8683
      %v8685 = vrot.slane %v8097, 1
      %v8686 = vrot.slane %v8098, 1
      %v8687 = vsel %vm436, %v8685, %v8686
      %v8688 = vrot.slane %v8099, 1
      %v8689 = vsel %vm436, %v8686, %v8688
      %v8690 = vrot.slane %v8101, 1
      %v8691 = vrot.slane %v8102, 1
      %v8692 = vsel %vm436, %v8690, %v8691
      %v8693 = vrot.slane %v8103, 1
      %v8694 = vsel %vm436, %v8691, %v8693
      %v8695 = vrot.slane %v8105, 1
      %v8696 = vrot.slane %v8106, 1
      %v8697 = vsel %vm436, %v8695, %v8696
      %v8698 = vrot.slane %v8107, 1
      %v8699 = vsel %vm436, %v8696, %v8698
      %v8700 = vrot.slane %v8109, 1
      %v8701 = vrot.slane %v8110, 1
      %v8702 = vsel %vm436, %v8700, %v8701
      %v8703 = vrot.slane %v8111, 1
      %v8704 = vsel %vm436, %v8701, %v8703
      %v8705 = vrot.slane %v8113, 1
      %v8706 = vrot.slane %v8114, 1
      %v8707 = vsel %vm436, %v8705, %v8706
      %v8708 = vrot.slane %v8115, 1
      %v8709 = vsel %vm436, %v8706, %v8708
      %v8710 = vrot.slane %v8117, 1
      %v8711 = vrot.slane %v8118, 1
      %v8712 = vsel %vm436, %v8710, %v8711
      %v8713 = vrot.slane %v8119, 1
      %v8714 = vsel %vm436, %v8711, %v8713
      %s8715 = scalar_lea.vmem %s7, 128
      %v8716 = vld [vmem:[%s8715] sm:$0xff]
      %v8717 = vld [vmem:[%s8715 + $0x8] sm:$0xff]
      %v8718 = vld [vmem:[%s8715 + $0x10] sm:$0xff]
      %v8719 = vld [vmem:[%s8715 + $0x18] sm:$0xff]
      %v8720 = vld [vmem:[%s8715 + $0x20] sm:$0xff]
      %v8721 = vld [vmem:[%s8715 + $0x28] sm:$0xff]
      %v8722 = vld [vmem:[%s8715 + $0x30] sm:$0xff]
      %v8723 = vld [vmem:[%s8715 + $0x38] sm:$0xff]
      %v8724 = vsel %vm2194, %v8637, 0
      %v8726 = vsel %vm2194, %v8639, 0
      %v8728 = vsel %vm2194, %v8642, 0
      %v8730 = vsel %vm2194, %v8644, 0
      %v8732 = vsel %vm2194, %v8647, 0
      %v8734 = vsel %vm2194, %v8649, 0
      %v8736 = vsel %vm2194, %v8652, 0
      %v8738 = vsel %vm2194, %v8654, 0
      %v8740 = vsel %vm2194, %v8657, 0
      %v8742 = vsel %vm2194, %v8659, 0
      %v8744 = vsel %vm2194, %v8662, 0
      %v8746 = vsel %vm2194, %v8664, 0
      %v8748 = vsel %vm2194, %v8667, 0
      %v8750 = vsel %vm2194, %v8669, 0
      %v8752 = vsel %vm2194, %v8672, 0
      %v8754 = vsel %vm2194, %v8674, 0
      %v8756 = vsel %vm2194, %v8677, 0
      %v8758 = vsel %vm2194, %v8679, 0
      %v8760 = vsel %vm2194, %v8682, 0
      %v8762 = vsel %vm2194, %v8684, 0
      %v8764 = vsel %vm2194, %v8687, 0
      %v8766 = vsel %vm2194, %v8689, 0
      %v8768 = vsel %vm2194, %v8692, 0
      %v8770 = vsel %vm2194, %v8694, 0
      %v8772 = vsel %vm2194, %v8697, 0
      %v8774 = vsel %vm2194, %v8699, 0
      %v8776 = vsel %vm2194, %v8702, 0
      %v8778 = vsel %vm2194, %v8704, 0
      %v8780 = vsel %vm2194, %v8707, 0
      %v8782 = vsel %vm2194, %v8709, 0
      %v8784 = vsel %vm2194, %v8712, 0
      %v8786 = vsel %vm2194, %v8714, 0
      %8788 = vmatpush.msra.mxu0 0.0
      %8789 = vmatpush.msra.mxu0 0.0
      %8790 = vmatpush.msra.mxu0 0.0
      %8791 = vmatpush.msra.mxu0 0.0
      %8792 = vmatpush.msra.mxu0 0.0
      %8793 = vmatpush.msra.mxu0 0.0
      %8794 = vmatpush.msra.mxu0 0.0
      %8795 = vmatpush.msra.mxu0 0.0
      %8796 = vmatpush.msra.mxu0 %v8723
      %8797 = vmatpush.msra.mxu0 %v8722
      %8798 = vmatpush.msra.mxu0 %v8721
      %8799 = vmatpush.msra.mxu0 %v8720
      %8800 = vmatpush.msra.mxu0 %v8719
      %8801 = vmatpush.msra.mxu0 %v8718
      %8802 = vmatpush.msra.mxu0 %v8717
      %8803 = vmatpush.msra.mxu0 %v8716
      %8804 = vmatmul.f32.gmra.mxu0 %v8724
      %v8805 = vpop.f32.mrf.mxu0
      %v8806 = vadd.f32 0.0, %v8805
      %8807 = vmatmul.f32.gmra.mxu0 %v8726
      %v8808 = vpop.f32.mrf.mxu0
      %v8809 = vadd.f32 0.0, %v8808
      %8810 = vmatmul.f32.gmra.mxu0 %v8728
      %v8811 = vpop.f32.mrf.mxu0
      %v8812 = vadd.f32 0.0, %v8811
      %8813 = vmatmul.f32.gmra.mxu0 %v8730
      %v8814 = vpop.f32.mrf.mxu0
      %v8815 = vadd.f32 0.0, %v8814
      %8816 = vmatmul.f32.gmra.mxu0 %v8732
      %v8817 = vpop.f32.mrf.mxu0
      %v8818 = vadd.f32 0.0, %v8817
      %8819 = vmatmul.f32.gmra.mxu0 %v8734
      %v8820 = vpop.f32.mrf.mxu0
      %v8821 = vadd.f32 0.0, %v8820
      %8822 = vmatmul.f32.gmra.mxu0 %v8736
      %v8823 = vpop.f32.mrf.mxu0
      %v8824 = vadd.f32 0.0, %v8823
      %8825 = vmatmul.f32.gmra.mxu0 %v8738
      %v8826 = vpop.f32.mrf.mxu0
      %v8827 = vadd.f32 0.0, %v8826
      %8828 = vmatmul.f32.gmra.mxu0 %v8740
      %v8829 = vpop.f32.mrf.mxu0
      %v8830 = vadd.f32 0.0, %v8829
      %8831 = vmatmul.f32.gmra.mxu0 %v8742
      %v8832 = vpop.f32.mrf.mxu0
      %v8833 = vadd.f32 0.0, %v8832
      %8834 = vmatmul.f32.gmra.mxu0 %v8744
      %v8835 = vpop.f32.mrf.mxu0
      %v8836 = vadd.f32 0.0, %v8835
      %8837 = vmatmul.f32.gmra.mxu0 %v8746
      %v8838 = vpop.f32.mrf.mxu0
      %v8839 = vadd.f32 0.0, %v8838
      %8840 = vmatmul.f32.gmra.mxu0 %v8748
      %v8841 = vpop.f32.mrf.mxu0
      %v8842 = vadd.f32 0.0, %v8841
      %8843 = vmatmul.f32.gmra.mxu0 %v8750
      %v8844 = vpop.f32.mrf.mxu0
      %v8845 = vadd.f32 0.0, %v8844
      %8846 = vmatmul.f32.gmra.mxu0 %v8752
      %v8847 = vpop.f32.mrf.mxu0
      %v8848 = vadd.f32 0.0, %v8847
      %8849 = vmatmul.f32.gmra.mxu0 %v8754
      %v8850 = vpop.f32.mrf.mxu0
      %v8851 = vadd.f32 0.0, %v8850
      %8852 = vmatmul.f32.gmra.mxu0 %v8756
      %v8853 = vpop.f32.mrf.mxu0
      %v8854 = vadd.f32 0.0, %v8853
      %8855 = vmatmul.f32.gmra.mxu0 %v8758
      %v8856 = vpop.f32.mrf.mxu0
      %v8857 = vadd.f32 0.0, %v8856
      %8858 = vmatmul.f32.gmra.mxu0 %v8760
      %v8859 = vpop.f32.mrf.mxu0
      %v8860 = vadd.f32 0.0, %v8859
      %8861 = vmatmul.f32.gmra.mxu0 %v8762
      %v8862 = vpop.f32.mrf.mxu0
      %v8863 = vadd.f32 0.0, %v8862
      %8864 = vmatmul.f32.gmra.mxu0 %v8764
      %v8865 = vpop.f32.mrf.mxu0
      %v8866 = vadd.f32 0.0, %v8865
      %8867 = vmatmul.f32.gmra.mxu0 %v8766
      %v8868 = vpop.f32.mrf.mxu0
      %v8869 = vadd.f32 0.0, %v8868
      %8870 = vmatmul.f32.gmra.mxu0 %v8768
      %v8871 = vpop.f32.mrf.mxu0
      %v8872 = vadd.f32 0.0, %v8871
      %8873 = vmatmul.f32.gmra.mxu0 %v8770
      %v8874 = vpop.f32.mrf.mxu0
      %v8875 = vadd.f32 0.0, %v8874
      %8876 = vmatmul.f32.gmra.mxu0 %v8772
      %v8877 = vpop.f32.mrf.mxu0
      %v8878 = vadd.f32 0.0, %v8877
      %8879 = vmatmul.f32.gmra.mxu0 %v8774
      %v8880 = vpop.f32.mrf.mxu0
      %v8881 = vadd.f32 0.0, %v8880
      %8882 = vmatmul.f32.gmra.mxu0 %v8776
      %v8883 = vpop.f32.mrf.mxu0
      %v8884 = vadd.f32 0.0, %v8883
      %8885 = vmatmul.f32.gmra.mxu0 %v8778
      %v8886 = vpop.f32.mrf.mxu0
      %v8887 = vadd.f32 0.0, %v8886
      %8888 = vmatmul.f32.gmra.mxu0 %v8780
      %v8889 = vpop.f32.mrf.mxu0
      %v8890 = vadd.f32 0.0, %v8889
      %8891 = vmatmul.f32.gmra.mxu0 %v8782
      %v8892 = vpop.f32.mrf.mxu0
      %v8893 = vadd.f32 0.0, %v8892
      %8894 = vmatmul.f32.gmra.mxu0 %v8784
      %v8895 = vpop.f32.mrf.mxu0
      %v8896 = vadd.f32 0.0, %v8895
      %8897 = vmatmul.f32.gmra.mxu0 %v8786
      %v8898 = vpop.f32.mrf.mxu0
      %v8899 = vadd.f32 0.0, %v8898
      %8900 = vdwg.mxu0
      %v8901 = vadd.f32 %v8524, %v8806
      %v8902 = vadd.f32 %v8527, %v8809
      %v8903 = vadd.f32 %v8530, %v8812
      %v8904 = vadd.f32 %v8533, %v8815
      %v8905 = vadd.f32 %v8536, %v8818
      %v8906 = vadd.f32 %v8539, %v8821
      %v8907 = vadd.f32 %v8542, %v8824
      %v8908 = vadd.f32 %v8545, %v8827
      %v8909 = vadd.f32 %v8548, %v8830
      %v8910 = vadd.f32 %v8551, %v8833
      %v8911 = vadd.f32 %v8554, %v8836
      %v8912 = vadd.f32 %v8557, %v8839
      %v8913 = vadd.f32 %v8560, %v8842
      %v8914 = vadd.f32 %v8563, %v8845
      %v8915 = vadd.f32 %v8566, %v8848
      %v8916 = vadd.f32 %v8569, %v8851
      %v8917 = vadd.f32 %v8572, %v8854
      %v8918 = vadd.f32 %v8575, %v8857
      %v8919 = vadd.f32 %v8578, %v8860
      %v8920 = vadd.f32 %v8581, %v8863
      %v8921 = vadd.f32 %v8584, %v8866
      %v8922 = vadd.f32 %v8587, %v8869
      %v8923 = vadd.f32 %v8590, %v8872
      %v8924 = vadd.f32 %v8593, %v8875
      %v8925 = vadd.f32 %v8596, %v8878
      %v8926 = vadd.f32 %v8599, %v8881
      %v8927 = vadd.f32 %v8602, %v8884
      %v8928 = vadd.f32 %v8605, %v8887
      %v8929 = vadd.f32 %v8608, %v8890
      %v8930 = vadd.f32 %v8611, %v8893
      %v8931 = vadd.f32 %v8614, %v8896
      %v8932 = vadd.f32 %v8617, %v8899
      %v8933 = vld [vmem:[%s2267] sm:$0xff]
      %v8934 = vld [vmem:[%s2267 + $0x8] sm:$0xff]
      %v8935 = vld [vmem:[%s2267 + $0x10] sm:$0xff]
      %v8936 = vld [vmem:[%s2267 + $0x18] sm:$0xff]
      %v8937 = vld [vmem:[%s2267 + $0x20] sm:$0xff]
      %v8938 = vld [vmem:[%s2267 + $0x28] sm:$0xff]
      %v8939 = vld [vmem:[%s2267 + $0x30] sm:$0xff]
      %v8940 = vld [vmem:[%s2267 + $0x38] sm:$0xff]
      %v8941 = vld [vmem:[%s2267 + $0x40] sm:$0xff]
      %v8942 = vld [vmem:[%s2267 + $0x48] sm:$0xff]
      %v8943 = vld [vmem:[%s2267 + $0x50] sm:$0xff]
      %v8944 = vld [vmem:[%s2267 + $0x58] sm:$0xff]
      %v8945 = vld [vmem:[%s2267 + $0x60] sm:$0xff]
      %v8946 = vld [vmem:[%s2267 + $0x68] sm:$0xff]
      %v8947 = vld [vmem:[%s2267 + $0x70] sm:$0xff]
      %v8948 = vld [vmem:[%s2267 + $0x78] sm:$0xff]
      %v8949 = vld [vmem:[%s2267 + $0x80] sm:$0xff]
      %v8950 = vld [vmem:[%s2267 + $0x88] sm:$0xff]
      %v8951 = vld [vmem:[%s2267 + $0x90] sm:$0xff]
      %v8952 = vld [vmem:[%s2267 + $0x98] sm:$0xff]
      %v8953 = vld [vmem:[%s2267 + $0xa0] sm:$0xff]
      %v8954 = vld [vmem:[%s2267 + $0xa8] sm:$0xff]
      %v8955 = vld [vmem:[%s2267 + $0xb0] sm:$0xff]
      %v8956 = vld [vmem:[%s2267 + $0xb8] sm:$0xff]
      %v8957 = vld [vmem:[%s2267 + $0xc0] sm:$0xff]
      %v8958 = vld [vmem:[%s2267 + $0xc8] sm:$0xff]
      %v8959 = vld [vmem:[%s2267 + $0xd0] sm:$0xff]
      %v8960 = vld [vmem:[%s2267 + $0xd8] sm:$0xff]
      %v8961 = vld [vmem:[%s2267 + $0xe0] sm:$0xff]
      %v8962 = vld [vmem:[%s2267 + $0xe8] sm:$0xff]
      %v8963 = vld [vmem:[%s2267 + $0xf0] sm:$0xff]
      %v8964 = vld [vmem:[%s2267 + $0xf8] sm:$0xff]
      %v8965 = vld [vmem:[%s2267 + $0x100] sm:$0xff]
      %v8966 = vld [vmem:[%s2267 + $0x108] sm:$0xff]
      %v8967 = vld [vmem:[%s2267 + $0x110] sm:$0xff]
      %v8968 = vld [vmem:[%s2267 + $0x118] sm:$0xff]
      %v8969 = vld [vmem:[%s2267 + $0x120] sm:$0xff]
      %v8970 = vld [vmem:[%s2267 + $0x128] sm:$0xff]
      %v8971 = vld [vmem:[%s2267 + $0x130] sm:$0xff]
      %v8972 = vld [vmem:[%s2267 + $0x138] sm:$0xff]
      %v8973 = vld [vmem:[%s2267 + $0x140] sm:$0xff]
      %v8974 = vld [vmem:[%s2267 + $0x148] sm:$0xff]
      %v8975 = vld [vmem:[%s2267 + $0x150] sm:$0xff]
      %v8976 = vld [vmem:[%s2267 + $0x158] sm:$0xff]
      %v8977 = vld [vmem:[%s2267 + $0x160] sm:$0xff]
      %v8978 = vld [vmem:[%s2267 + $0x168] sm:$0xff]
      %v8979 = vld [vmem:[%s2267 + $0x170] sm:$0xff]
      %v8980 = vld [vmem:[%s2267 + $0x178] sm:$0xff]
      %v8981 = vld [vmem:[%s2267 + $0x180] sm:$0xff]
      %v8982 = vld [vmem:[%s2267 + $0x188] sm:$0xff]
      %v8983 = vld [vmem:[%s2267 + $0x190] sm:$0xff]
      %v8984 = vld [vmem:[%s2267 + $0x198] sm:$0xff]
      %v8985 = vld [vmem:[%s2267 + $0x1a0] sm:$0xff]
      %v8986 = vld [vmem:[%s2267 + $0x1a8] sm:$0xff]
      %v8987 = vld [vmem:[%s2267 + $0x1b0] sm:$0xff]
      %v8988 = vld [vmem:[%s2267 + $0x1b8] sm:$0xff]
      %v8989 = vld [vmem:[%s2267 + $0x1c0] sm:$0xff]
      %v8990 = vld [vmem:[%s2267 + $0x1c8] sm:$0xff]
      %v8991 = vld [vmem:[%s2267 + $0x1d0] sm:$0xff]
      %v8992 = vld [vmem:[%s2267 + $0x1d8] sm:$0xff]
      %v8993 = vld [vmem:[%s2267 + $0x1e0] sm:$0xff]
      %v8994 = vld [vmem:[%s2267 + $0x1e8] sm:$0xff]
      %v8995 = vld [vmem:[%s2267 + $0x1f0] sm:$0xff]
      %v8996 = vld [vmem:[%s2267 + $0x1f8] sm:$0xff]
      %v9045 = vrot.slane %v8933, 7
      %v9046 = vrot.slane %v8934, 7
      %v9047 = vsel %vm2412, %v9045, %v9046
      %v9048 = vrot.slane %v8935, 7
      %v9049 = vsel %vm2412, %v9046, %v9048
      %v9050 = vrot.slane %v8937, 7
      %v9051 = vrot.slane %v8938, 7
      %v9052 = vsel %vm2412, %v9050, %v9051
      %v9053 = vrot.slane %v8939, 7
      %v9054 = vsel %vm2412, %v9051, %v9053
      %v9055 = vrot.slane %v8941, 7
      %v9056 = vrot.slane %v8942, 7
      %v9057 = vsel %vm2412, %v9055, %v9056
      %v9058 = vrot.slane %v8943, 7
      %v9059 = vsel %vm2412, %v9056, %v9058
      %v9060 = vrot.slane %v8945, 7
      %v9061 = vrot.slane %v8946, 7
      %v9062 = vsel %vm2412, %v9060, %v9061
      %v9063 = vrot.slane %v8947, 7
      %v9064 = vsel %vm2412, %v9061, %v9063
      %v9065 = vrot.slane %v8949, 7
      %v9066 = vrot.slane %v8950, 7
      %v9067 = vsel %vm2412, %v9065, %v9066
      %v9068 = vrot.slane %v8951, 7
      %v9069 = vsel %vm2412, %v9066, %v9068
      %v9070 = vrot.slane %v8953, 7
      %v9071 = vrot.slane %v8954, 7
      %v9072 = vsel %vm2412, %v9070, %v9071
      %v9073 = vrot.slane %v8955, 7
      %v9074 = vsel %vm2412, %v9071, %v9073
      %v9075 = vrot.slane %v8957, 7
      %v9076 = vrot.slane %v8958, 7
      %v9077 = vsel %vm2412, %v9075, %v9076
      %v9078 = vrot.slane %v8959, 7
      %v9079 = vsel %vm2412, %v9076, %v9078
      %v9080 = vrot.slane %v8961, 7
      %v9081 = vrot.slane %v8962, 7
      %v9082 = vsel %vm2412, %v9080, %v9081
      %v9083 = vrot.slane %v8963, 7
      %v9084 = vsel %vm2412, %v9081, %v9083
      %v9085 = vrot.slane %v8965, 7
      %v9086 = vrot.slane %v8966, 7
      %v9087 = vsel %vm2412, %v9085, %v9086
      %v9088 = vrot.slane %v8967, 7
      %v9089 = vsel %vm2412, %v9086, %v9088
      %v9090 = vrot.slane %v8969, 7
      %v9091 = vrot.slane %v8970, 7
      %v9092 = vsel %vm2412, %v9090, %v9091
      %v9093 = vrot.slane %v8971, 7
      %v9094 = vsel %vm2412, %v9091, %v9093
      %v9095 = vrot.slane %v8973, 7
      %v9096 = vrot.slane %v8974, 7
      %v9097 = vsel %vm2412, %v9095, %v9096
      %v9098 = vrot.slane %v8975, 7
      %v9099 = vsel %vm2412, %v9096, %v9098
      %v9100 = vrot.slane %v8977, 7
      %v9101 = vrot.slane %v8978, 7
      %v9102 = vsel %vm2412, %v9100, %v9101
      %v9103 = vrot.slane %v8979, 7
      %v9104 = vsel %vm2412, %v9101, %v9103
      %v9105 = vrot.slane %v8981, 7
      %v9106 = vrot.slane %v8982, 7
      %v9107 = vsel %vm2412, %v9105, %v9106
      %v9108 = vrot.slane %v8983, 7
      %v9109 = vsel %vm2412, %v9106, %v9108
      %v9110 = vrot.slane %v8985, 7
      %v9111 = vrot.slane %v8986, 7
      %v9112 = vsel %vm2412, %v9110, %v9111
      %v9113 = vrot.slane %v8987, 7
      %v9114 = vsel %vm2412, %v9111, %v9113
      %v9115 = vrot.slane %v8989, 7
      %v9116 = vrot.slane %v8990, 7
      %v9117 = vsel %vm2412, %v9115, %v9116
      %v9118 = vrot.slane %v8991, 7
      %v9119 = vsel %vm2412, %v9116, %v9118
      %v9120 = vrot.slane %v8993, 7
      %v9121 = vrot.slane %v8994, 7
      %v9122 = vsel %vm2412, %v9120, %v9121
      %v9123 = vrot.slane %v8995, 7
      %v9124 = vsel %vm2412, %v9121, %v9123
      %s9125 = scalar_lea.vmem %s7, 192
      %v9126 = vld [vmem:[%s9125] sm:$0xff]
      %v9127 = vld [vmem:[%s9125 + $0x8] sm:$0xff]
      %v9128 = vld [vmem:[%s9125 + $0x10] sm:$0xff]
      %v9129 = vld [vmem:[%s9125 + $0x18] sm:$0xff]
      %v9130 = vld [vmem:[%s9125 + $0x20] sm:$0xff]
      %v9131 = vld [vmem:[%s9125 + $0x28] sm:$0xff]
      %v9132 = vld [vmem:[%s9125 + $0x30] sm:$0xff]
      %v9133 = vld [vmem:[%s9125 + $0x38] sm:$0xff]
      %v9134 = vsel %vm2194, %v9047, 0
      %v9136 = vsel %vm2194, %v9049, 0
      %v9138 = vsel %vm2194, %v9052, 0
      %v9140 = vsel %vm2194, %v9054, 0
      %v9142 = vsel %vm2194, %v9057, 0
      %v9144 = vsel %vm2194, %v9059, 0
      %v9146 = vsel %vm2194, %v9062, 0
      %v9148 = vsel %vm2194, %v9064, 0
      %v9150 = vsel %vm2194, %v9067, 0
      %v9152 = vsel %vm2194, %v9069, 0
      %v9154 = vsel %vm2194, %v9072, 0
      %v9156 = vsel %vm2194, %v9074, 0
      %v9158 = vsel %vm2194, %v9077, 0
      %v9160 = vsel %vm2194, %v9079, 0
      %v9162 = vsel %vm2194, %v9082, 0
      %v9164 = vsel %vm2194, %v9084, 0
      %v9166 = vsel %vm2194, %v9087, 0
      %v9168 = vsel %vm2194, %v9089, 0
      %v9170 = vsel %vm2194, %v9092, 0
      %v9172 = vsel %vm2194, %v9094, 0
      %v9174 = vsel %vm2194, %v9097, 0
      %v9176 = vsel %vm2194, %v9099, 0
      %v9178 = vsel %vm2194, %v9102, 0
      %v9180 = vsel %vm2194, %v9104, 0
      %v9182 = vsel %vm2194, %v9107, 0
      %v9184 = vsel %vm2194, %v9109, 0
      %v9186 = vsel %vm2194, %v9112, 0
      %v9188 = vsel %vm2194, %v9114, 0
      %v9190 = vsel %vm2194, %v9117, 0
      %v9192 = vsel %vm2194, %v9119, 0
      %v9194 = vsel %vm2194, %v9122, 0
      %v9196 = vsel %vm2194, %v9124, 0
      %9198 = vmatpush.msra.mxu0 0.0
      %9199 = vmatpush.msra.mxu0 0.0
      %9200 = vmatpush.msra.mxu0 0.0
      %9201 = vmatpush.msra.mxu0 0.0
      %9202 = vmatpush.msra.mxu0 0.0
      %9203 = vmatpush.msra.mxu0 0.0
      %9204 = vmatpush.msra.mxu0 0.0
      %9205 = vmatpush.msra.mxu0 0.0
      %9206 = vmatpush.msra.mxu0 %v9133
      %9207 = vmatpush.msra.mxu0 %v9132
      %9208 = vmatpush.msra.mxu0 %v9131
      %9209 = vmatpush.msra.mxu0 %v9130
      %9210 = vmatpush.msra.mxu0 %v9129
      %9211 = vmatpush.msra.mxu0 %v9128
      %9212 = vmatpush.msra.mxu0 %v9127
      %9213 = vmatpush.msra.mxu0 %v9126
      %9214 = vmatmul.f32.gmra.mxu0 %v9134
      %v9215 = vpop.f32.mrf.mxu0
      %v9216 = vadd.f32 0.0, %v9215
      %9217 = vmatmul.f32.gmra.mxu0 %v9136
      %v9218 = vpop.f32.mrf.mxu0
      %v9219 = vadd.f32 0.0, %v9218
      %9220 = vmatmul.f32.gmra.mxu0 %v9138
      %v9221 = vpop.f32.mrf.mxu0
      %v9222 = vadd.f32 0.0, %v9221
      %9223 = vmatmul.f32.gmra.mxu0 %v9140
      %v9224 = vpop.f32.mrf.mxu0
      %v9225 = vadd.f32 0.0, %v9224
      %9226 = vmatmul.f32.gmra.mxu0 %v9142
      %v9227 = vpop.f32.mrf.mxu0
      %v9228 = vadd.f32 0.0, %v9227
      %9229 = vmatmul.f32.gmra.mxu0 %v9144
      %v9230 = vpop.f32.mrf.mxu0
      %v9231 = vadd.f32 0.0, %v9230
      %9232 = vmatmul.f32.gmra.mxu0 %v9146
      %v9233 = vpop.f32.mrf.mxu0
      %v9234 = vadd.f32 0.0, %v9233
      %9235 = vmatmul.f32.gmra.mxu0 %v9148
      %v9236 = vpop.f32.mrf.mxu0
      %v9237 = vadd.f32 0.0, %v9236
      %9238 = vmatmul.f32.gmra.mxu0 %v9150
      %v9239 = vpop.f32.mrf.mxu0
      %v9240 = vadd.f32 0.0, %v9239
      %9241 = vmatmul.f32.gmra.mxu0 %v9152
      %v9242 = vpop.f32.mrf.mxu0
      %v9243 = vadd.f32 0.0, %v9242
      %9244 = vmatmul.f32.gmra.mxu0 %v9154
      %v9245 = vpop.f32.mrf.mxu0
      %v9246 = vadd.f32 0.0, %v9245
      %9247 = vmatmul.f32.gmra.mxu0 %v9156
      %v9248 = vpop.f32.mrf.mxu0
      %v9249 = vadd.f32 0.0, %v9248
      %9250 = vmatmul.f32.gmra.mxu0 %v9158
      %v9251 = vpop.f32.mrf.mxu0
      %v9252 = vadd.f32 0.0, %v9251
      %9253 = vmatmul.f32.gmra.mxu0 %v9160
      %v9254 = vpop.f32.mrf.mxu0
      %v9255 = vadd.f32 0.0, %v9254
      %9256 = vmatmul.f32.gmra.mxu0 %v9162
      %v9257 = vpop.f32.mrf.mxu0
      %v9258 = vadd.f32 0.0, %v9257
      %9259 = vmatmul.f32.gmra.mxu0 %v9164
      %v9260 = vpop.f32.mrf.mxu0
      %v9261 = vadd.f32 0.0, %v9260
      %9262 = vmatmul.f32.gmra.mxu0 %v9166
      %v9263 = vpop.f32.mrf.mxu0
      %v9264 = vadd.f32 0.0, %v9263
      %9265 = vmatmul.f32.gmra.mxu0 %v9168
      %v9266 = vpop.f32.mrf.mxu0
      %v9267 = vadd.f32 0.0, %v9266
      %9268 = vmatmul.f32.gmra.mxu0 %v9170
      %v9269 = vpop.f32.mrf.mxu0
      %v9270 = vadd.f32 0.0, %v9269
      %9271 = vmatmul.f32.gmra.mxu0 %v9172
      %v9272 = vpop.f32.mrf.mxu0
      %v9273 = vadd.f32 0.0, %v9272
      %9274 = vmatmul.f32.gmra.mxu0 %v9174
      %v9275 = vpop.f32.mrf.mxu0
      %v9276 = vadd.f32 0.0, %v9275
      %9277 = vmatmul.f32.gmra.mxu0 %v9176
      %v9278 = vpop.f32.mrf.mxu0
      %v9279 = vadd.f32 0.0, %v9278
      %9280 = vmatmul.f32.gmra.mxu0 %v9178
      %v9281 = vpop.f32.mrf.mxu0
      %v9282 = vadd.f32 0.0, %v9281
      %9283 = vmatmul.f32.gmra.mxu0 %v9180
      %v9284 = vpop.f32.mrf.mxu0
      %v9285 = vadd.f32 0.0, %v9284
      %9286 = vmatmul.f32.gmra.mxu0 %v9182
      %v9287 = vpop.f32.mrf.mxu0
      %v9288 = vadd.f32 0.0, %v9287
      %9289 = vmatmul.f32.gmra.mxu0 %v9184
      %v9290 = vpop.f32.mrf.mxu0
      %v9291 = vadd.f32 0.0, %v9290
      %9292 = vmatmul.f32.gmra.mxu0 %v9186
      %v9293 = vpop.f32.mrf.mxu0
      %v9294 = vadd.f32 0.0, %v9293
      %9295 = vmatmul.f32.gmra.mxu0 %v9188
      %v9296 = vpop.f32.mrf.mxu0
      %v9297 = vadd.f32 0.0, %v9296
      %9298 = vmatmul.f32.gmra.mxu0 %v9190
      %v9299 = vpop.f32.mrf.mxu0
      %v9300 = vadd.f32 0.0, %v9299
      %9301 = vmatmul.f32.gmra.mxu0 %v9192
      %v9302 = vpop.f32.mrf.mxu0
      %v9303 = vadd.f32 0.0, %v9302
      %9304 = vmatmul.f32.gmra.mxu0 %v9194
      %v9305 = vpop.f32.mrf.mxu0
      %v9306 = vadd.f32 0.0, %v9305
      %9307 = vmatmul.f32.gmra.mxu0 %v9196
      %v9308 = vpop.f32.mrf.mxu0
      %v9309 = vadd.f32 0.0, %v9308
      %9310 = vdwg.mxu0
      %v9311 = vadd.f32 %v8901, %v9216
      %v9312 = vadd.f32 %v8902, %v9219
      %v9313 = vadd.f32 %v8903, %v9222
      %v9314 = vadd.f32 %v8904, %v9225
      %v9315 = vadd.f32 %v8905, %v9228
      %v9316 = vadd.f32 %v8906, %v9231
      %v9317 = vadd.f32 %v8907, %v9234
      %v9318 = vadd.f32 %v8908, %v9237
      %v9319 = vadd.f32 %v8909, %v9240
      %v9320 = vadd.f32 %v8910, %v9243
      %v9321 = vadd.f32 %v8911, %v9246
      %v9322 = vadd.f32 %v8912, %v9249
      %v9323 = vadd.f32 %v8913, %v9252
      %v9324 = vadd.f32 %v8914, %v9255
      %v9325 = vadd.f32 %v8915, %v9258
      %v9326 = vadd.f32 %v8916, %v9261
      %v9327 = vadd.f32 %v8917, %v9264
      %v9328 = vadd.f32 %v8918, %v9267
      %v9329 = vadd.f32 %v8919, %v9270
      %v9330 = vadd.f32 %v8920, %v9273
      %v9331 = vadd.f32 %v8921, %v9276
      %v9332 = vadd.f32 %v8922, %v9279
      %v9333 = vadd.f32 %v8923, %v9282
      %v9334 = vadd.f32 %v8924, %v9285
      %v9335 = vadd.f32 %v8925, %v9288
      %v9336 = vadd.f32 %v8926, %v9291
      %v9337 = vadd.f32 %v8927, %v9294
      %v9338 = vadd.f32 %v8928, %v9297
      %v9339 = vadd.f32 %v8929, %v9300
      %v9340 = vadd.f32 %v8930, %v9303
      %v9341 = vadd.f32 %v8931, %v9306
      %v9342 = vadd.f32 %v8932, %v9309
      %s9343 = scalar_lea.vmem %s7, 256
      %v9344 = vld [vmem:[%s9343] sm:$0xff]
      %v9345 = vld [vmem:[%s9343 + $0x8] sm:$0xff]
      %v9346 = vld [vmem:[%s9343 + $0x10] sm:$0xff]
      %v9347 = vld [vmem:[%s9343 + $0x18] sm:$0xff]
      %v9348 = vld [vmem:[%s9343 + $0x20] sm:$0xff]
      %v9349 = vld [vmem:[%s9343 + $0x28] sm:$0xff]
      %v9350 = vld [vmem:[%s9343 + $0x30] sm:$0xff]
      %v9351 = vld [vmem:[%s9343 + $0x38] sm:$0xff]
      %v9352 = vsel %vm2194, %v8934, 0
      %v9354 = vsel %vm2194, %v8935, 0
      %v9356 = vsel %vm2194, %v8938, 0
      %v9358 = vsel %vm2194, %v8939, 0
      %v9360 = vsel %vm2194, %v8942, 0
      %v9362 = vsel %vm2194, %v8943, 0
      %v9364 = vsel %vm2194, %v8946, 0
      %v9366 = vsel %vm2194, %v8947, 0
      %v9368 = vsel %vm2194, %v8950, 0
      %v9370 = vsel %vm2194, %v8951, 0
      %v9372 = vsel %vm2194, %v8954, 0
      %v9374 = vsel %vm2194, %v8955, 0
      %v9376 = vsel %vm2194, %v8958, 0
      %v9378 = vsel %vm2194, %v8959, 0
      %v9380 = vsel %vm2194, %v8962, 0
      %v9382 = vsel %vm2194, %v8963, 0
      %v9384 = vsel %vm2194, %v8966, 0
      %v9386 = vsel %vm2194, %v8967, 0
      %v9388 = vsel %vm2194, %v8970, 0
      %v9390 = vsel %vm2194, %v8971, 0
      %v9392 = vsel %vm2194, %v8974, 0
      %v9394 = vsel %vm2194, %v8975, 0
      %v9396 = vsel %vm2194, %v8978, 0
      %v9398 = vsel %vm2194, %v8979, 0
      %v9400 = vsel %vm2194, %v8982, 0
      %v9402 = vsel %vm2194, %v8983, 0
      %v9404 = vsel %vm2194, %v8986, 0
      %v9406 = vsel %vm2194, %v8987, 0
      %v9408 = vsel %vm2194, %v8990, 0
      %v9410 = vsel %vm2194, %v8991, 0
      %v9412 = vsel %vm2194, %v8994, 0
      %v9414 = vsel %vm2194, %v8995, 0
      %9416 = vmatpush.msra.mxu0 0.0
      %9417 = vmatpush.msra.mxu0 0.0
      %9418 = vmatpush.msra.mxu0 0.0
      %9419 = vmatpush.msra.mxu0 0.0
      %9420 = vmatpush.msra.mxu0 0.0
      %9421 = vmatpush.msra.mxu0 0.0
      %9422 = vmatpush.msra.mxu0 0.0
      %9423 = vmatpush.msra.mxu0 0.0
      %9424 = vmatpush.msra.mxu0 %v9351
      %9425 = vmatpush.msra.mxu0 %v9350
      %9426 = vmatpush.msra.mxu0 %v9349
      %9427 = vmatpush.msra.mxu0 %v9348
      %9428 = vmatpush.msra.mxu0 %v9347
      %9429 = vmatpush.msra.mxu0 %v9346
      %9430 = vmatpush.msra.mxu0 %v9345
      %9431 = vmatpush.msra.mxu0 %v9344
      %9432 = vmatmul.f32.gmra.mxu0 %v9352
      %v9433 = vpop.f32.mrf.mxu0
      %v9434 = vadd.f32 0.0, %v9433
      %9435 = vmatmul.f32.gmra.mxu0 %v9354
      %v9436 = vpop.f32.mrf.mxu0
      %v9437 = vadd.f32 0.0, %v9436
      %9438 = vmatmul.f32.gmra.mxu0 %v9356
      %v9439 = vpop.f32.mrf.mxu0
      %v9440 = vadd.f32 0.0, %v9439
      %9441 = vmatmul.f32.gmra.mxu0 %v9358
      %v9442 = vpop.f32.mrf.mxu0
      %v9443 = vadd.f32 0.0, %v9442
      %9444 = vmatmul.f32.gmra.mxu0 %v9360
      %v9445 = vpop.f32.mrf.mxu0
      %v9446 = vadd.f32 0.0, %v9445
      %9447 = vmatmul.f32.gmra.mxu0 %v9362
      %v9448 = vpop.f32.mrf.mxu0
      %v9449 = vadd.f32 0.0, %v9448
      %9450 = vmatmul.f32.gmra.mxu0 %v9364
      %v9451 = vpop.f32.mrf.mxu0
      %v9452 = vadd.f32 0.0, %v9451
      %9453 = vmatmul.f32.gmra.mxu0 %v9366
      %v9454 = vpop.f32.mrf.mxu0
      %v9455 = vadd.f32 0.0, %v9454
      %9456 = vmatmul.f32.gmra.mxu0 %v9368
      %v9457 = vpop.f32.mrf.mxu0
      %v9458 = vadd.f32 0.0, %v9457
      %9459 = vmatmul.f32.gmra.mxu0 %v9370
      %v9460 = vpop.f32.mrf.mxu0
      %v9461 = vadd.f32 0.0, %v9460
      %9462 = vmatmul.f32.gmra.mxu0 %v9372
      %v9463 = vpop.f32.mrf.mxu0
      %v9464 = vadd.f32 0.0, %v9463
      %9465 = vmatmul.f32.gmra.mxu0 %v9374
      %v9466 = vpop.f32.mrf.mxu0
      %v9467 = vadd.f32 0.0, %v9466
      %9468 = vmatmul.f32.gmra.mxu0 %v9376
      %v9469 = vpop.f32.mrf.mxu0
      %v9470 = vadd.f32 0.0, %v9469
      %9471 = vmatmul.f32.gmra.mxu0 %v9378
      %v9472 = vpop.f32.mrf.mxu0
      %v9473 = vadd.f32 0.0, %v9472
      %9474 = vmatmul.f32.gmra.mxu0 %v9380
      %v9475 = vpop.f32.mrf.mxu0
      %v9476 = vadd.f32 0.0, %v9475
      %9477 = vmatmul.f32.gmra.mxu0 %v9382
      %v9478 = vpop.f32.mrf.mxu0
      %v9479 = vadd.f32 0.0, %v9478
      %9480 = vmatmul.f32.gmra.mxu0 %v9384
      %v9481 = vpop.f32.mrf.mxu0
      %v9482 = vadd.f32 0.0, %v9481
      %9483 = vmatmul.f32.gmra.mxu0 %v9386
      %v9484 = vpop.f32.mrf.mxu0
      %v9485 = vadd.f32 0.0, %v9484
      %9486 = vmatmul.f32.gmra.mxu0 %v9388
      %v9487 = vpop.f32.mrf.mxu0
      %v9488 = vadd.f32 0.0, %v9487
      %9489 = vmatmul.f32.gmra.mxu0 %v9390
      %v9490 = vpop.f32.mrf.mxu0
      %v9491 = vadd.f32 0.0, %v9490
      %9492 = vmatmul.f32.gmra.mxu0 %v9392
      %v9493 = vpop.f32.mrf.mxu0
      %v9494 = vadd.f32 0.0, %v9493
      %9495 = vmatmul.f32.gmra.mxu0 %v9394
      %v9496 = vpop.f32.mrf.mxu0
      %v9497 = vadd.f32 0.0, %v9496
      %9498 = vmatmul.f32.gmra.mxu0 %v9396
      %v9499 = vpop.f32.mrf.mxu0
      %v9500 = vadd.f32 0.0, %v9499
      %9501 = vmatmul.f32.gmra.mxu0 %v9398
      %v9502 = vpop.f32.mrf.mxu0
      %v9503 = vadd.f32 0.0, %v9502
      %9504 = vmatmul.f32.gmra.mxu0 %v9400
      %v9505 = vpop.f32.mrf.mxu0
      %v9506 = vadd.f32 0.0, %v9505
      %9507 = vmatmul.f32.gmra.mxu0 %v9402
      %v9508 = vpop.f32.mrf.mxu0
      %v9509 = vadd.f32 0.0, %v9508
      %9510 = vmatmul.f32.gmra.mxu0 %v9404
      %v9511 = vpop.f32.mrf.mxu0
      %v9512 = vadd.f32 0.0, %v9511
      %9513 = vmatmul.f32.gmra.mxu0 %v9406
      %v9514 = vpop.f32.mrf.mxu0
      %v9515 = vadd.f32 0.0, %v9514
      %9516 = vmatmul.f32.gmra.mxu0 %v9408
      %v9517 = vpop.f32.mrf.mxu0
      %v9518 = vadd.f32 0.0, %v9517
      %9519 = vmatmul.f32.gmra.mxu0 %v9410
      %v9520 = vpop.f32.mrf.mxu0
      %v9521 = vadd.f32 0.0, %v9520
      %9522 = vmatmul.f32.gmra.mxu0 %v9412
      %v9523 = vpop.f32.mrf.mxu0
      %v9524 = vadd.f32 0.0, %v9523
      %9525 = vmatmul.f32.gmra.mxu0 %v9414
      %v9526 = vpop.f32.mrf.mxu0
      %v9527 = vadd.f32 0.0, %v9526
      %9528 = vdwg.mxu0
      %v9529 = vadd.f32 %v9311, %v9434
      %v9530 = vadd.f32 %v9312, %v9437
      %v9531 = vadd.f32 %v9313, %v9440
      %v9532 = vadd.f32 %v9314, %v9443
      %v9533 = vadd.f32 %v9315, %v9446
      %v9534 = vadd.f32 %v9316, %v9449
      %v9535 = vadd.f32 %v9317, %v9452
      %v9536 = vadd.f32 %v9318, %v9455
      %v9537 = vadd.f32 %v9319, %v9458
      %v9538 = vadd.f32 %v9320, %v9461
      %v9539 = vadd.f32 %v9321, %v9464
      %v9540 = vadd.f32 %v9322, %v9467
      %v9541 = vadd.f32 %v9323, %v9470
      %v9542 = vadd.f32 %v9324, %v9473
      %v9543 = vadd.f32 %v9325, %v9476
      %v9544 = vadd.f32 %v9326, %v9479
      %v9545 = vadd.f32 %v9327, %v9482
      %v9546 = vadd.f32 %v9328, %v9485
      %v9547 = vadd.f32 %v9329, %v9488
      %v9548 = vadd.f32 %v9330, %v9491
      %v9549 = vadd.f32 %v9331, %v9494
      %v9550 = vadd.f32 %v9332, %v9497
      %v9551 = vadd.f32 %v9333, %v9500
      %v9552 = vadd.f32 %v9334, %v9503
      %v9553 = vadd.f32 %v9335, %v9506
      %v9554 = vadd.f32 %v9336, %v9509
      %v9555 = vadd.f32 %v9337, %v9512
      %v9556 = vadd.f32 %v9338, %v9515
      %v9557 = vadd.f32 %v9339, %v9518
      %v9558 = vadd.f32 %v9340, %v9521
      %v9559 = vadd.f32 %v9341, %v9524
      %v9560 = vadd.f32 %v9342, %v9527
      %v9577 = vrot.slane %v8934, 1
      %v9578 = vrot.slane %v8935, 1
      %v9579 = vsel %vm436, %v9577, %v9578
      %v9580 = vrot.slane %v8936, 1
      %v9581 = vsel %vm436, %v9578, %v9580
      %v9582 = vrot.slane %v8938, 1
      %v9583 = vrot.slane %v8939, 1
      %v9584 = vsel %vm436, %v9582, %v9583
      %v9585 = vrot.slane %v8940, 1
      %v9586 = vsel %vm436, %v9583, %v9585
      %v9587 = vrot.slane %v8942, 1
      %v9588 = vrot.slane %v8943, 1
      %v9589 = vsel %vm436, %v9587, %v9588
      %v9590 = vrot.slane %v8944, 1
      %v9591 = vsel %vm436, %v9588, %v9590
      %v9592 = vrot.slane %v8946, 1
      %v9593 = vrot.slane %v8947, 1
      %v9594 = vsel %vm436, %v9592, %v9593
      %v9595 = vrot.slane %v8948, 1
      %v9596 = vsel %vm436, %v9593, %v9595
      %v9597 = vrot.slane %v8950, 1
      %v9598 = vrot.slane %v8951, 1
      %v9599 = vsel %vm436, %v9597, %v9598
      %v9600 = vrot.slane %v8952, 1
      %v9601 = vsel %vm436, %v9598, %v9600
      %v9602 = vrot.slane %v8954, 1
      %v9603 = vrot.slane %v8955, 1
      %v9604 = vsel %vm436, %v9602, %v9603
      %v9605 = vrot.slane %v8956, 1
      %v9606 = vsel %vm436, %v9603, %v9605
      %v9607 = vrot.slane %v8958, 1
      %v9608 = vrot.slane %v8959, 1
      %v9609 = vsel %vm436, %v9607, %v9608
      %v9610 = vrot.slane %v8960, 1
      %v9611 = vsel %vm436, %v9608, %v9610
      %v9612 = vrot.slane %v8962, 1
      %v9613 = vrot.slane %v8963, 1
      %v9614 = vsel %vm436, %v9612, %v9613
      %v9615 = vrot.slane %v8964, 1
      %v9616 = vsel %vm436, %v9613, %v9615
      %v9617 = vrot.slane %v8966, 1
      %v9618 = vrot.slane %v8967, 1
      %v9619 = vsel %vm436, %v9617, %v9618
      %v9620 = vrot.slane %v8968, 1
      %v9621 = vsel %vm436, %v9618, %v9620
      %v9622 = vrot.slane %v8970, 1
      %v9623 = vrot.slane %v8971, 1
      %v9624 = vsel %vm436, %v9622, %v9623
      %v9625 = vrot.slane %v8972, 1
      %v9626 = vsel %vm436, %v9623, %v9625
      %v9627 = vrot.slane %v8974, 1
      %v9628 = vrot.slane %v8975, 1
      %v9629 = vsel %vm436, %v9627, %v9628
      %v9630 = vrot.slane %v8976, 1
      %v9631 = vsel %vm436, %v9628, %v9630
      %v9632 = vrot.slane %v8978, 1
      %v9633 = vrot.slane %v8979, 1
      %v9634 = vsel %vm436, %v9632, %v9633
      %v9635 = vrot.slane %v8980, 1
      %v9636 = vsel %vm436, %v9633, %v9635
      %v9637 = vrot.slane %v8982, 1
      %v9638 = vrot.slane %v8983, 1
      %v9639 = vsel %vm436, %v9637, %v9638
      %v9640 = vrot.slane %v8984, 1
      %v9641 = vsel %vm436, %v9638, %v9640
      %v9642 = vrot.slane %v8986, 1
      %v9643 = vrot.slane %v8987, 1
      %v9644 = vsel %vm436, %v9642, %v9643
      %v9645 = vrot.slane %v8988, 1
      %v9646 = vsel %vm436, %v9643, %v9645
      %v9647 = vrot.slane %v8990, 1
      %v9648 = vrot.slane %v8991, 1
      %v9649 = vsel %vm436, %v9647, %v9648
      %v9650 = vrot.slane %v8992, 1
      %v9651 = vsel %vm436, %v9648, %v9650
      %v9652 = vrot.slane %v8994, 1
      %v9653 = vrot.slane %v8995, 1
      %v9654 = vsel %vm436, %v9652, %v9653
      %v9655 = vrot.slane %v8996, 1
      %v9656 = vsel %vm436, %v9653, %v9655
      %s9657 = scalar_lea.vmem %s7, 320
      %v9658 = vld [vmem:[%s9657] sm:$0xff]
      %v9659 = vld [vmem:[%s9657 + $0x8] sm:$0xff]
      %v9660 = vld [vmem:[%s9657 + $0x10] sm:$0xff]
      %v9661 = vld [vmem:[%s9657 + $0x18] sm:$0xff]
      %v9662 = vld [vmem:[%s9657 + $0x20] sm:$0xff]
      %v9663 = vld [vmem:[%s9657 + $0x28] sm:$0xff]
      %v9664 = vld [vmem:[%s9657 + $0x30] sm:$0xff]
      %v9665 = vld [vmem:[%s9657 + $0x38] sm:$0xff]
      %v9666 = vsel %vm2194, %v9579, 0
      %v9668 = vsel %vm2194, %v9581, 0
      %v9670 = vsel %vm2194, %v9584, 0
      %v9672 = vsel %vm2194, %v9586, 0
      %v9674 = vsel %vm2194, %v9589, 0
      %v9676 = vsel %vm2194, %v9591, 0
      %v9678 = vsel %vm2194, %v9594, 0
      %v9680 = vsel %vm2194, %v9596, 0
      %v9682 = vsel %vm2194, %v9599, 0
      %v9684 = vsel %vm2194, %v9601, 0
      %v9686 = vsel %vm2194, %v9604, 0
      %v9688 = vsel %vm2194, %v9606, 0
      %v9690 = vsel %vm2194, %v9609, 0
      %v9692 = vsel %vm2194, %v9611, 0
      %v9694 = vsel %vm2194, %v9614, 0
      %v9696 = vsel %vm2194, %v9616, 0
      %v9698 = vsel %vm2194, %v9619, 0
      %v9700 = vsel %vm2194, %v9621, 0
      %v9702 = vsel %vm2194, %v9624, 0
      %v9704 = vsel %vm2194, %v9626, 0
      %v9706 = vsel %vm2194, %v9629, 0
      %v9708 = vsel %vm2194, %v9631, 0
      %v9710 = vsel %vm2194, %v9634, 0
      %v9712 = vsel %vm2194, %v9636, 0
      %v9714 = vsel %vm2194, %v9639, 0
      %v9716 = vsel %vm2194, %v9641, 0
      %v9718 = vsel %vm2194, %v9644, 0
      %v9720 = vsel %vm2194, %v9646, 0
      %v9722 = vsel %vm2194, %v9649, 0
      %v9724 = vsel %vm2194, %v9651, 0
      %v9726 = vsel %vm2194, %v9654, 0
      %v9728 = vsel %vm2194, %v9656, 0
      %9730 = vmatpush.msra.mxu0 0.0
      %9731 = vmatpush.msra.mxu0 0.0
      %9732 = vmatpush.msra.mxu0 0.0
      %9733 = vmatpush.msra.mxu0 0.0
      %9734 = vmatpush.msra.mxu0 0.0
      %9735 = vmatpush.msra.mxu0 0.0
      %9736 = vmatpush.msra.mxu0 0.0
      %9737 = vmatpush.msra.mxu0 0.0
      %9738 = vmatpush.msra.mxu0 %v9665
      %9739 = vmatpush.msra.mxu0 %v9664
      %9740 = vmatpush.msra.mxu0 %v9663
      %9741 = vmatpush.msra.mxu0 %v9662
      %9742 = vmatpush.msra.mxu0 %v9661
      %9743 = vmatpush.msra.mxu0 %v9660
      %9744 = vmatpush.msra.mxu0 %v9659
      %9745 = vmatpush.msra.mxu0 %v9658
      %9746 = vmatmul.f32.gmra.mxu0 %v9666
      %v9747 = vpop.f32.mrf.mxu0
      %v9748 = vadd.f32 0.0, %v9747
      %9749 = vmatmul.f32.gmra.mxu0 %v9668
      %v9750 = vpop.f32.mrf.mxu0
      %v9751 = vadd.f32 0.0, %v9750
      %9752 = vmatmul.f32.gmra.mxu0 %v9670
      %v9753 = vpop.f32.mrf.mxu0
      %v9754 = vadd.f32 0.0, %v9753
      %9755 = vmatmul.f32.gmra.mxu0 %v9672
      %v9756 = vpop.f32.mrf.mxu0
      %v9757 = vadd.f32 0.0, %v9756
      %9758 = vmatmul.f32.gmra.mxu0 %v9674
      %v9759 = vpop.f32.mrf.mxu0
      %v9760 = vadd.f32 0.0, %v9759
      %9761 = vmatmul.f32.gmra.mxu0 %v9676
      %v9762 = vpop.f32.mrf.mxu0
      %v9763 = vadd.f32 0.0, %v9762
      %9764 = vmatmul.f32.gmra.mxu0 %v9678
      %v9765 = vpop.f32.mrf.mxu0
      %v9766 = vadd.f32 0.0, %v9765
      %9767 = vmatmul.f32.gmra.mxu0 %v9680
      %v9768 = vpop.f32.mrf.mxu0
      %v9769 = vadd.f32 0.0, %v9768
      %9770 = vmatmul.f32.gmra.mxu0 %v9682
      %v9771 = vpop.f32.mrf.mxu0
      %v9772 = vadd.f32 0.0, %v9771
      %9773 = vmatmul.f32.gmra.mxu0 %v9684
      %v9774 = vpop.f32.mrf.mxu0
      %v9775 = vadd.f32 0.0, %v9774
      %9776 = vmatmul.f32.gmra.mxu0 %v9686
      %v9777 = vpop.f32.mrf.mxu0
      %v9778 = vadd.f32 0.0, %v9777
      %9779 = vmatmul.f32.gmra.mxu0 %v9688
      %v9780 = vpop.f32.mrf.mxu0
      %v9781 = vadd.f32 0.0, %v9780
      %9782 = vmatmul.f32.gmra.mxu0 %v9690
      %v9783 = vpop.f32.mrf.mxu0
      %v9784 = vadd.f32 0.0, %v9783
      %9785 = vmatmul.f32.gmra.mxu0 %v9692
      %v9786 = vpop.f32.mrf.mxu0
      %v9787 = vadd.f32 0.0, %v9786
      %9788 = vmatmul.f32.gmra.mxu0 %v9694
      %v9789 = vpop.f32.mrf.mxu0
      %v9790 = vadd.f32 0.0, %v9789
      %9791 = vmatmul.f32.gmra.mxu0 %v9696
      %v9792 = vpop.f32.mrf.mxu0
      %v9793 = vadd.f32 0.0, %v9792
      %9794 = vmatmul.f32.gmra.mxu0 %v9698
      %v9795 = vpop.f32.mrf.mxu0
      %v9796 = vadd.f32 0.0, %v9795
      %9797 = vmatmul.f32.gmra.mxu0 %v9700
      %v9798 = vpop.f32.mrf.mxu0
      %v9799 = vadd.f32 0.0, %v9798
      %9800 = vmatmul.f32.gmra.mxu0 %v9702
      %v9801 = vpop.f32.mrf.mxu0
      %v9802 = vadd.f32 0.0, %v9801
      %9803 = vmatmul.f32.gmra.mxu0 %v9704
      %v9804 = vpop.f32.mrf.mxu0
      %v9805 = vadd.f32 0.0, %v9804
      %9806 = vmatmul.f32.gmra.mxu0 %v9706
      %v9807 = vpop.f32.mrf.mxu0
      %v9808 = vadd.f32 0.0, %v9807
      %9809 = vmatmul.f32.gmra.mxu0 %v9708
      %v9810 = vpop.f32.mrf.mxu0
      %v9811 = vadd.f32 0.0, %v9810
      %9812 = vmatmul.f32.gmra.mxu0 %v9710
      %v9813 = vpop.f32.mrf.mxu0
      %v9814 = vadd.f32 0.0, %v9813
      %9815 = vmatmul.f32.gmra.mxu0 %v9712
      %v9816 = vpop.f32.mrf.mxu0
      %v9817 = vadd.f32 0.0, %v9816
      %9818 = vmatmul.f32.gmra.mxu0 %v9714
      %v9819 = vpop.f32.mrf.mxu0
      %v9820 = vadd.f32 0.0, %v9819
      %9821 = vmatmul.f32.gmra.mxu0 %v9716
      %v9822 = vpop.f32.mrf.mxu0
      %v9823 = vadd.f32 0.0, %v9822
      %9824 = vmatmul.f32.gmra.mxu0 %v9718
      %v9825 = vpop.f32.mrf.mxu0
      %v9826 = vadd.f32 0.0, %v9825
      %9827 = vmatmul.f32.gmra.mxu0 %v9720
      %v9828 = vpop.f32.mrf.mxu0
      %v9829 = vadd.f32 0.0, %v9828
      %9830 = vmatmul.f32.gmra.mxu0 %v9722
      %v9831 = vpop.f32.mrf.mxu0
      %v9832 = vadd.f32 0.0, %v9831
      %9833 = vmatmul.f32.gmra.mxu0 %v9724
      %v9834 = vpop.f32.mrf.mxu0
      %v9835 = vadd.f32 0.0, %v9834
      %9836 = vmatmul.f32.gmra.mxu0 %v9726
      %v9837 = vpop.f32.mrf.mxu0
      %v9838 = vadd.f32 0.0, %v9837
      %9839 = vmatmul.f32.gmra.mxu0 %v9728
      %v9840 = vpop.f32.mrf.mxu0
      %v9841 = vadd.f32 0.0, %v9840
      %9842 = vdwg.mxu0
      %v9843 = vadd.f32 %v9529, %v9748
      %v9844 = vadd.f32 %v9530, %v9751
      %v9845 = vadd.f32 %v9531, %v9754
      %v9846 = vadd.f32 %v9532, %v9757
      %v9847 = vadd.f32 %v9533, %v9760
      %v9848 = vadd.f32 %v9534, %v9763
      %v9849 = vadd.f32 %v9535, %v9766
      %v9850 = vadd.f32 %v9536, %v9769
      %v9851 = vadd.f32 %v9537, %v9772
      %v9852 = vadd.f32 %v9538, %v9775
      %v9853 = vadd.f32 %v9539, %v9778
      %v9854 = vadd.f32 %v9540, %v9781
      %v9855 = vadd.f32 %v9541, %v9784
      %v9856 = vadd.f32 %v9542, %v9787
      %v9857 = vadd.f32 %v9543, %v9790
      %v9858 = vadd.f32 %v9544, %v9793
      %v9859 = vadd.f32 %v9545, %v9796
      %v9860 = vadd.f32 %v9546, %v9799
      %v9861 = vadd.f32 %v9547, %v9802
      %v9862 = vadd.f32 %v9548, %v9805
      %v9863 = vadd.f32 %v9549, %v9808
      %v9864 = vadd.f32 %v9550, %v9811
      %v9865 = vadd.f32 %v9551, %v9814
      %v9866 = vadd.f32 %v9552, %v9817
      %v9867 = vadd.f32 %v9553, %v9820
      %v9868 = vadd.f32 %v9554, %v9823
      %v9869 = vadd.f32 %v9555, %v9826
      %v9870 = vadd.f32 %v9556, %v9829
      %v9871 = vadd.f32 %v9557, %v9832
      %v9872 = vadd.f32 %v9558, %v9835
      %v9873 = vadd.f32 %v9559, %v9838
      %v9874 = vadd.f32 %v9560, %v9841
      %v9875 = vld [vmem:[%s4120] sm:$0xff]
      %v9876 = vld [vmem:[%s4120 + $0x8] sm:$0xff]
      %v9877 = vld [vmem:[%s4120 + $0x10] sm:$0xff]
      %v9878 = vld [vmem:[%s4120 + $0x18] sm:$0xff]
      %v9879 = vld [vmem:[%s4120 + $0x20] sm:$0xff]
      %v9880 = vld [vmem:[%s4120 + $0x28] sm:$0xff]
      %v9881 = vld [vmem:[%s4120 + $0x30] sm:$0xff]
      %v9882 = vld [vmem:[%s4120 + $0x38] sm:$0xff]
      %v9883 = vld [vmem:[%s4120 + $0x40] sm:$0xff]
      %v9884 = vld [vmem:[%s4120 + $0x48] sm:$0xff]
      %v9885 = vld [vmem:[%s4120 + $0x50] sm:$0xff]
      %v9886 = vld [vmem:[%s4120 + $0x58] sm:$0xff]
      %v9887 = vld [vmem:[%s4120 + $0x60] sm:$0xff]
      %v9888 = vld [vmem:[%s4120 + $0x68] sm:$0xff]
      %v9889 = vld [vmem:[%s4120 + $0x70] sm:$0xff]
      %v9890 = vld [vmem:[%s4120 + $0x78] sm:$0xff]
      %v9891 = vld [vmem:[%s4120 + $0x80] sm:$0xff]
      %v9892 = vld [vmem:[%s4120 + $0x88] sm:$0xff]
      %v9893 = vld [vmem:[%s4120 + $0x90] sm:$0xff]
      %v9894 = vld [vmem:[%s4120 + $0x98] sm:$0xff]
      %v9895 = vld [vmem:[%s4120 + $0xa0] sm:$0xff]
      %v9896 = vld [vmem:[%s4120 + $0xa8] sm:$0xff]
      %v9897 = vld [vmem:[%s4120 + $0xb0] sm:$0xff]
      %v9898 = vld [vmem:[%s4120 + $0xb8] sm:$0xff]
      %v9899 = vld [vmem:[%s4120 + $0xc0] sm:$0xff]
      %v9900 = vld [vmem:[%s4120 + $0xc8] sm:$0xff]
      %v9901 = vld [vmem:[%s4120 + $0xd0] sm:$0xff]
      %v9902 = vld [vmem:[%s4120 + $0xd8] sm:$0xff]
      %v9903 = vld [vmem:[%s4120 + $0xe0] sm:$0xff]
      %v9904 = vld [vmem:[%s4120 + $0xe8] sm:$0xff]
      %v9905 = vld [vmem:[%s4120 + $0xf0] sm:$0xff]
      %v9906 = vld [vmem:[%s4120 + $0xf8] sm:$0xff]
      %v9907 = vld [vmem:[%s4120 + $0x100] sm:$0xff]
      %v9908 = vld [vmem:[%s4120 + $0x108] sm:$0xff]
      %v9909 = vld [vmem:[%s4120 + $0x110] sm:$0xff]
      %v9910 = vld [vmem:[%s4120 + $0x118] sm:$0xff]
      %v9911 = vld [vmem:[%s4120 + $0x120] sm:$0xff]
      %v9912 = vld [vmem:[%s4120 + $0x128] sm:$0xff]
      %v9913 = vld [vmem:[%s4120 + $0x130] sm:$0xff]
      %v9914 = vld [vmem:[%s4120 + $0x138] sm:$0xff]
      %v9915 = vld [vmem:[%s4120 + $0x140] sm:$0xff]
      %v9916 = vld [vmem:[%s4120 + $0x148] sm:$0xff]
      %v9917 = vld [vmem:[%s4120 + $0x150] sm:$0xff]
      %v9918 = vld [vmem:[%s4120 + $0x158] sm:$0xff]
      %v9919 = vld [vmem:[%s4120 + $0x160] sm:$0xff]
      %v9920 = vld [vmem:[%s4120 + $0x168] sm:$0xff]
      %v9921 = vld [vmem:[%s4120 + $0x170] sm:$0xff]
      %v9922 = vld [vmem:[%s4120 + $0x178] sm:$0xff]
      %v9923 = vld [vmem:[%s4120 + $0x180] sm:$0xff]
      %v9924 = vld [vmem:[%s4120 + $0x188] sm:$0xff]
      %v9925 = vld [vmem:[%s4120 + $0x190] sm:$0xff]
      %v9926 = vld [vmem:[%s4120 + $0x198] sm:$0xff]
      %v9927 = vld [vmem:[%s4120 + $0x1a0] sm:$0xff]
      %v9928 = vld [vmem:[%s4120 + $0x1a8] sm:$0xff]
      %v9929 = vld [vmem:[%s4120 + $0x1b0] sm:$0xff]
      %v9930 = vld [vmem:[%s4120 + $0x1b8] sm:$0xff]
      %v9931 = vld [vmem:[%s4120 + $0x1c0] sm:$0xff]
      %v9932 = vld [vmem:[%s4120 + $0x1c8] sm:$0xff]
      %v9933 = vld [vmem:[%s4120 + $0x1d0] sm:$0xff]
      %v9934 = vld [vmem:[%s4120 + $0x1d8] sm:$0xff]
      %v9935 = vld [vmem:[%s4120 + $0x1e0] sm:$0xff]
      %v9936 = vld [vmem:[%s4120 + $0x1e8] sm:$0xff]
      %v9937 = vld [vmem:[%s4120 + $0x1f0] sm:$0xff]
      %v9938 = vld [vmem:[%s4120 + $0x1f8] sm:$0xff]
      %v9987 = vrot.slane %v9875, 7
      %v9988 = vrot.slane %v9876, 7
      %v9989 = vsel %vm2412, %v9987, %v9988
      %v9990 = vrot.slane %v9877, 7
      %v9991 = vsel %vm2412, %v9988, %v9990
      %v9992 = vrot.slane %v9879, 7
      %v9993 = vrot.slane %v9880, 7
      %v9994 = vsel %vm2412, %v9992, %v9993
      %v9995 = vrot.slane %v9881, 7
      %v9996 = vsel %vm2412, %v9993, %v9995
      %v9997 = vrot.slane %v9883, 7
      %v9998 = vrot.slane %v9884, 7
      %v9999 = vsel %vm2412, %v9997, %v9998
      %v10000 = vrot.slane %v9885, 7
      %v10001 = vsel %vm2412, %v9998, %v10000
      %v10002 = vrot.slane %v9887, 7
      %v10003 = vrot.slane %v9888, 7
      %v10004 = vsel %vm2412, %v10002, %v10003
      %v10005 = vrot.slane %v9889, 7
      %v10006 = vsel %vm2412, %v10003, %v10005
      %v10007 = vrot.slane %v9891, 7
      %v10008 = vrot.slane %v9892, 7
      %v10009 = vsel %vm2412, %v10007, %v10008
      %v10010 = vrot.slane %v9893, 7
      %v10011 = vsel %vm2412, %v10008, %v10010
      %v10012 = vrot.slane %v9895, 7
      %v10013 = vrot.slane %v9896, 7
      %v10014 = vsel %vm2412, %v10012, %v10013
      %v10015 = vrot.slane %v9897, 7
      %v10016 = vsel %vm2412, %v10013, %v10015
      %v10017 = vrot.slane %v9899, 7
      %v10018 = vrot.slane %v9900, 7
      %v10019 = vsel %vm2412, %v10017, %v10018
      %v10020 = vrot.slane %v9901, 7
      %v10021 = vsel %vm2412, %v10018, %v10020
      %v10022 = vrot.slane %v9903, 7
      %v10023 = vrot.slane %v9904, 7
      %v10024 = vsel %vm2412, %v10022, %v10023
      %v10025 = vrot.slane %v9905, 7
      %v10026 = vsel %vm2412, %v10023, %v10025
      %v10027 = vrot.slane %v9907, 7
      %v10028 = vrot.slane %v9908, 7
      %v10029 = vsel %vm2412, %v10027, %v10028
      %v10030 = vrot.slane %v9909, 7
      %v10031 = vsel %vm2412, %v10028, %v10030
      %v10032 = vrot.slane %v9911, 7
      %v10033 = vrot.slane %v9912, 7
      %v10034 = vsel %vm2412, %v10032, %v10033
      %v10035 = vrot.slane %v9913, 7
      %v10036 = vsel %vm2412, %v10033, %v10035
      %v10037 = vrot.slane %v9915, 7
      %v10038 = vrot.slane %v9916, 7
      %v10039 = vsel %vm2412, %v10037, %v10038
      %v10040 = vrot.slane %v9917, 7
      %v10041 = vsel %vm2412, %v10038, %v10040
      %v10042 = vrot.slane %v9919, 7
      %v10043 = vrot.slane %v9920, 7
      %v10044 = vsel %vm2412, %v10042, %v10043
      %v10045 = vrot.slane %v9921, 7
      %v10046 = vsel %vm2412, %v10043, %v10045
      %v10047 = vrot.slane %v9923, 7
      %v10048 = vrot.slane %v9924, 7
      %v10049 = vsel %vm2412, %v10047, %v10048
      %v10050 = vrot.slane %v9925, 7
      %v10051 = vsel %vm2412, %v10048, %v10050
      %v10052 = vrot.slane %v9927, 7
      %v10053 = vrot.slane %v9928, 7
      %v10054 = vsel %vm2412, %v10052, %v10053
      %v10055 = vrot.slane %v9929, 7
      %v10056 = vsel %vm2412, %v10053, %v10055
      %v10057 = vrot.slane %v9931, 7
      %v10058 = vrot.slane %v9932, 7
      %v10059 = vsel %vm2412, %v10057, %v10058
      %v10060 = vrot.slane %v9933, 7
      %v10061 = vsel %vm2412, %v10058, %v10060
      %v10062 = vrot.slane %v9935, 7
      %v10063 = vrot.slane %v9936, 7
      %v10064 = vsel %vm2412, %v10062, %v10063
      %v10065 = vrot.slane %v9937, 7
      %v10066 = vsel %vm2412, %v10063, %v10065
      %s10067 = scalar_lea.vmem %s7, 384
      %v10068 = vld [vmem:[%s10067] sm:$0xff]
      %v10069 = vld [vmem:[%s10067 + $0x8] sm:$0xff]
      %v10070 = vld [vmem:[%s10067 + $0x10] sm:$0xff]
      %v10071 = vld [vmem:[%s10067 + $0x18] sm:$0xff]
      %v10072 = vld [vmem:[%s10067 + $0x20] sm:$0xff]
      %v10073 = vld [vmem:[%s10067 + $0x28] sm:$0xff]
      %v10074 = vld [vmem:[%s10067 + $0x30] sm:$0xff]
      %v10075 = vld [vmem:[%s10067 + $0x38] sm:$0xff]
      %v10076 = vsel %vm2194, %v9989, 0
      %v10078 = vsel %vm2194, %v9991, 0
      %v10080 = vsel %vm2194, %v9994, 0
      %v10082 = vsel %vm2194, %v9996, 0
      %v10084 = vsel %vm2194, %v9999, 0
      %v10086 = vsel %vm2194, %v10001, 0
      %v10088 = vsel %vm2194, %v10004, 0
      %v10090 = vsel %vm2194, %v10006, 0
      %v10092 = vsel %vm2194, %v10009, 0
      %v10094 = vsel %vm2194, %v10011, 0
      %v10096 = vsel %vm2194, %v10014, 0
      %v10098 = vsel %vm2194, %v10016, 0
      %v10100 = vsel %vm2194, %v10019, 0
      %v10102 = vsel %vm2194, %v10021, 0
      %v10104 = vsel %vm2194, %v10024, 0
      %v10106 = vsel %vm2194, %v10026, 0
      %v10108 = vsel %vm2194, %v10029, 0
      %v10110 = vsel %vm2194, %v10031, 0
      %v10112 = vsel %vm2194, %v10034, 0
      %v10114 = vsel %vm2194, %v10036, 0
      %v10116 = vsel %vm2194, %v10039, 0
      %v10118 = vsel %vm2194, %v10041, 0
      %v10120 = vsel %vm2194, %v10044, 0
      %v10122 = vsel %vm2194, %v10046, 0
      %v10124 = vsel %vm2194, %v10049, 0
      %v10126 = vsel %vm2194, %v10051, 0
      %v10128 = vsel %vm2194, %v10054, 0
      %v10130 = vsel %vm2194, %v10056, 0
      %v10132 = vsel %vm2194, %v10059, 0
      %v10134 = vsel %vm2194, %v10061, 0
      %v10136 = vsel %vm2194, %v10064, 0
      %v10138 = vsel %vm2194, %v10066, 0
      %10140 = vmatpush.msra.mxu0 0.0
      %10141 = vmatpush.msra.mxu0 0.0
      %10142 = vmatpush.msra.mxu0 0.0
      %10143 = vmatpush.msra.mxu0 0.0
      %10144 = vmatpush.msra.mxu0 0.0
      %10145 = vmatpush.msra.mxu0 0.0
      %10146 = vmatpush.msra.mxu0 0.0
      %10147 = vmatpush.msra.mxu0 0.0
      %10148 = vmatpush.msra.mxu0 %v10075
      %10149 = vmatpush.msra.mxu0 %v10074
      %10150 = vmatpush.msra.mxu0 %v10073
      %10151 = vmatpush.msra.mxu0 %v10072
      %10152 = vmatpush.msra.mxu0 %v10071
      %10153 = vmatpush.msra.mxu0 %v10070
      %10154 = vmatpush.msra.mxu0 %v10069
      %10155 = vmatpush.msra.mxu0 %v10068
      %10156 = vmatmul.f32.gmra.mxu0 %v10076
      %v10157 = vpop.f32.mrf.mxu0
      %v10158 = vadd.f32 0.0, %v10157
      %10159 = vmatmul.f32.gmra.mxu0 %v10078
      %v10160 = vpop.f32.mrf.mxu0
      %v10161 = vadd.f32 0.0, %v10160
      %10162 = vmatmul.f32.gmra.mxu0 %v10080
      %v10163 = vpop.f32.mrf.mxu0
      %v10164 = vadd.f32 0.0, %v10163
      %10165 = vmatmul.f32.gmra.mxu0 %v10082
      %v10166 = vpop.f32.mrf.mxu0
      %v10167 = vadd.f32 0.0, %v10166
      %10168 = vmatmul.f32.gmra.mxu0 %v10084
      %v10169 = vpop.f32.mrf.mxu0
      %v10170 = vadd.f32 0.0, %v10169
      %10171 = vmatmul.f32.gmra.mxu0 %v10086
      %v10172 = vpop.f32.mrf.mxu0
      %v10173 = vadd.f32 0.0, %v10172
      %10174 = vmatmul.f32.gmra.mxu0 %v10088
      %v10175 = vpop.f32.mrf.mxu0
      %v10176 = vadd.f32 0.0, %v10175
      %10177 = vmatmul.f32.gmra.mxu0 %v10090
      %v10178 = vpop.f32.mrf.mxu0
      %v10179 = vadd.f32 0.0, %v10178
      %10180 = vmatmul.f32.gmra.mxu0 %v10092
      %v10181 = vpop.f32.mrf.mxu0
      %v10182 = vadd.f32 0.0, %v10181
      %10183 = vmatmul.f32.gmra.mxu0 %v10094
      %v10184 = vpop.f32.mrf.mxu0
      %v10185 = vadd.f32 0.0, %v10184
      %10186 = vmatmul.f32.gmra.mxu0 %v10096
      %v10187 = vpop.f32.mrf.mxu0
      %v10188 = vadd.f32 0.0, %v10187
      %10189 = vmatmul.f32.gmra.mxu0 %v10098
      %v10190 = vpop.f32.mrf.mxu0
      %v10191 = vadd.f32 0.0, %v10190
      %10192 = vmatmul.f32.gmra.mxu0 %v10100
      %v10193 = vpop.f32.mrf.mxu0
      %v10194 = vadd.f32 0.0, %v10193
      %10195 = vmatmul.f32.gmra.mxu0 %v10102
      %v10196 = vpop.f32.mrf.mxu0
      %v10197 = vadd.f32 0.0, %v10196
      %10198 = vmatmul.f32.gmra.mxu0 %v10104
      %v10199 = vpop.f32.mrf.mxu0
      %v10200 = vadd.f32 0.0, %v10199
      %10201 = vmatmul.f32.gmra.mxu0 %v10106
      %v10202 = vpop.f32.mrf.mxu0
      %v10203 = vadd.f32 0.0, %v10202
      %10204 = vmatmul.f32.gmra.mxu0 %v10108
      %v10205 = vpop.f32.mrf.mxu0
      %v10206 = vadd.f32 0.0, %v10205
      %10207 = vmatmul.f32.gmra.mxu0 %v10110
      %v10208 = vpop.f32.mrf.mxu0
      %v10209 = vadd.f32 0.0, %v10208
      %10210 = vmatmul.f32.gmra.mxu0 %v10112
      %v10211 = vpop.f32.mrf.mxu0
      %v10212 = vadd.f32 0.0, %v10211
      %10213 = vmatmul.f32.gmra.mxu0 %v10114
      %v10214 = vpop.f32.mrf.mxu0
      %v10215 = vadd.f32 0.0, %v10214
      %10216 = vmatmul.f32.gmra.mxu0 %v10116
      %v10217 = vpop.f32.mrf.mxu0
      %v10218 = vadd.f32 0.0, %v10217
      %10219 = vmatmul.f32.gmra.mxu0 %v10118
      %v10220 = vpop.f32.mrf.mxu0
      %v10221 = vadd.f32 0.0, %v10220
      %10222 = vmatmul.f32.gmra.mxu0 %v10120
      %v10223 = vpop.f32.mrf.mxu0
      %v10224 = vadd.f32 0.0, %v10223
      %10225 = vmatmul.f32.gmra.mxu0 %v10122
      %v10226 = vpop.f32.mrf.mxu0
      %v10227 = vadd.f32 0.0, %v10226
      %10228 = vmatmul.f32.gmra.mxu0 %v10124
      %v10229 = vpop.f32.mrf.mxu0
      %v10230 = vadd.f32 0.0, %v10229
      %10231 = vmatmul.f32.gmra.mxu0 %v10126
      %v10232 = vpop.f32.mrf.mxu0
      %v10233 = vadd.f32 0.0, %v10232
      %10234 = vmatmul.f32.gmra.mxu0 %v10128
      %v10235 = vpop.f32.mrf.mxu0
      %v10236 = vadd.f32 0.0, %v10235
      %10237 = vmatmul.f32.gmra.mxu0 %v10130
      %v10238 = vpop.f32.mrf.mxu0
      %v10239 = vadd.f32 0.0, %v10238
      %10240 = vmatmul.f32.gmra.mxu0 %v10132
      %v10241 = vpop.f32.mrf.mxu0
      %v10242 = vadd.f32 0.0, %v10241
      %10243 = vmatmul.f32.gmra.mxu0 %v10134
      %v10244 = vpop.f32.mrf.mxu0
      %v10245 = vadd.f32 0.0, %v10244
      %10246 = vmatmul.f32.gmra.mxu0 %v10136
      %v10247 = vpop.f32.mrf.mxu0
      %v10248 = vadd.f32 0.0, %v10247
      %10249 = vmatmul.f32.gmra.mxu0 %v10138
      %v10250 = vpop.f32.mrf.mxu0
      %v10251 = vadd.f32 0.0, %v10250
      %10252 = vdwg.mxu0
      %v10253 = vadd.f32 %v9843, %v10158
      %v10254 = vadd.f32 %v9844, %v10161
      %v10255 = vadd.f32 %v9845, %v10164
      %v10256 = vadd.f32 %v9846, %v10167
      %v10257 = vadd.f32 %v9847, %v10170
      %v10258 = vadd.f32 %v9848, %v10173
      %v10259 = vadd.f32 %v9849, %v10176
      %v10260 = vadd.f32 %v9850, %v10179
      %v10261 = vadd.f32 %v9851, %v10182
      %v10262 = vadd.f32 %v9852, %v10185
      %v10263 = vadd.f32 %v9853, %v10188
      %v10264 = vadd.f32 %v9854, %v10191
      %v10265 = vadd.f32 %v9855, %v10194
      %v10266 = vadd.f32 %v9856, %v10197
      %v10267 = vadd.f32 %v9857, %v10200
      %v10268 = vadd.f32 %v9858, %v10203
      %v10269 = vadd.f32 %v9859, %v10206
      %v10270 = vadd.f32 %v9860, %v10209
      %v10271 = vadd.f32 %v9861, %v10212
      %v10272 = vadd.f32 %v9862, %v10215
      %v10273 = vadd.f32 %v9863, %v10218
      %v10274 = vadd.f32 %v9864, %v10221
      %v10275 = vadd.f32 %v9865, %v10224
      %v10276 = vadd.f32 %v9866, %v10227
      %v10277 = vadd.f32 %v9867, %v10230
      %v10278 = vadd.f32 %v9868, %v10233
      %v10279 = vadd.f32 %v9869, %v10236
      %v10280 = vadd.f32 %v9870, %v10239
      %v10281 = vadd.f32 %v9871, %v10242
      %v10282 = vadd.f32 %v9872, %v10245
      %v10283 = vadd.f32 %v9873, %v10248
      %v10284 = vadd.f32 %v9874, %v10251
      %s10285 = scalar_lea.vmem %s7, 448
      %v10286 = vld [vmem:[%s10285] sm:$0xff]
      %v10287 = vld [vmem:[%s10285 + $0x8] sm:$0xff]
      %v10288 = vld [vmem:[%s10285 + $0x10] sm:$0xff]
      %v10289 = vld [vmem:[%s10285 + $0x18] sm:$0xff]
      %v10290 = vld [vmem:[%s10285 + $0x20] sm:$0xff]
      %v10291 = vld [vmem:[%s10285 + $0x28] sm:$0xff]
      %v10292 = vld [vmem:[%s10285 + $0x30] sm:$0xff]
      %v10293 = vld [vmem:[%s10285 + $0x38] sm:$0xff]
      %v10294 = vsel %vm2194, %v9876, 0
      %v10296 = vsel %vm2194, %v9877, 0
      %v10298 = vsel %vm2194, %v9880, 0
      %v10300 = vsel %vm2194, %v9881, 0
      %v10302 = vsel %vm2194, %v9884, 0
      %v10304 = vsel %vm2194, %v9885, 0
      %v10306 = vsel %vm2194, %v9888, 0
      %v10308 = vsel %vm2194, %v9889, 0
      %v10310 = vsel %vm2194, %v9892, 0
      %v10312 = vsel %vm2194, %v9893, 0
      %v10314 = vsel %vm2194, %v9896, 0
      %v10316 = vsel %vm2194, %v9897, 0
      %v10318 = vsel %vm2194, %v9900, 0
      %v10320 = vsel %vm2194, %v9901, 0
      %v10322 = vsel %vm2194, %v9904, 0
      %v10324 = vsel %vm2194, %v9905, 0
      %v10326 = vsel %vm2194, %v9908, 0
      %v10328 = vsel %vm2194, %v9909, 0
      %v10330 = vsel %vm2194, %v9912, 0
      %v10332 = vsel %vm2194, %v9913, 0
      %v10334 = vsel %vm2194, %v9916, 0
      %v10336 = vsel %vm2194, %v9917, 0
      %v10338 = vsel %vm2194, %v9920, 0
      %v10340 = vsel %vm2194, %v9921, 0
      %v10342 = vsel %vm2194, %v9924, 0
      %v10344 = vsel %vm2194, %v9925, 0
      %v10346 = vsel %vm2194, %v9928, 0
      %v10348 = vsel %vm2194, %v9929, 0
      %v10350 = vsel %vm2194, %v9932, 0
      %v10352 = vsel %vm2194, %v9933, 0
      %v10354 = vsel %vm2194, %v9936, 0
      %v10356 = vsel %vm2194, %v9937, 0
      %10358 = vmatpush.msra.mxu0 0.0
      %10359 = vmatpush.msra.mxu0 0.0
      %10360 = vmatpush.msra.mxu0 0.0
      %10361 = vmatpush.msra.mxu0 0.0
      %10362 = vmatpush.msra.mxu0 0.0
      %10363 = vmatpush.msra.mxu0 0.0
      %10364 = vmatpush.msra.mxu0 0.0
      %10365 = vmatpush.msra.mxu0 0.0
      %10366 = vmatpush.msra.mxu0 %v10293
      %10367 = vmatpush.msra.mxu0 %v10292
      %10368 = vmatpush.msra.mxu0 %v10291
      %10369 = vmatpush.msra.mxu0 %v10290
      %10370 = vmatpush.msra.mxu0 %v10289
      %10371 = vmatpush.msra.mxu0 %v10288
      %10372 = vmatpush.msra.mxu0 %v10287
      %10373 = vmatpush.msra.mxu0 %v10286
      %10374 = vmatmul.f32.gmra.mxu0 %v10294
      %v10375 = vpop.f32.mrf.mxu0
      %v10376 = vadd.f32 0.0, %v10375
      %10377 = vmatmul.f32.gmra.mxu0 %v10296
      %v10378 = vpop.f32.mrf.mxu0
      %v10379 = vadd.f32 0.0, %v10378
      %10380 = vmatmul.f32.gmra.mxu0 %v10298
      %v10381 = vpop.f32.mrf.mxu0
      %v10382 = vadd.f32 0.0, %v10381
      %10383 = vmatmul.f32.gmra.mxu0 %v10300
      %v10384 = vpop.f32.mrf.mxu0
      %v10385 = vadd.f32 0.0, %v10384
      %10386 = vmatmul.f32.gmra.mxu0 %v10302
      %v10387 = vpop.f32.mrf.mxu0
      %v10388 = vadd.f32 0.0, %v10387
      %10389 = vmatmul.f32.gmra.mxu0 %v10304
      %v10390 = vpop.f32.mrf.mxu0
      %v10391 = vadd.f32 0.0, %v10390
      %10392 = vmatmul.f32.gmra.mxu0 %v10306
      %v10393 = vpop.f32.mrf.mxu0
      %v10394 = vadd.f32 0.0, %v10393
      %10395 = vmatmul.f32.gmra.mxu0 %v10308
      %v10396 = vpop.f32.mrf.mxu0
      %v10397 = vadd.f32 0.0, %v10396
      %10398 = vmatmul.f32.gmra.mxu0 %v10310
      %v10399 = vpop.f32.mrf.mxu0
      %v10400 = vadd.f32 0.0, %v10399
      %10401 = vmatmul.f32.gmra.mxu0 %v10312
      %v10402 = vpop.f32.mrf.mxu0
      %v10403 = vadd.f32 0.0, %v10402
      %10404 = vmatmul.f32.gmra.mxu0 %v10314
      %v10405 = vpop.f32.mrf.mxu0
      %v10406 = vadd.f32 0.0, %v10405
      %10407 = vmatmul.f32.gmra.mxu0 %v10316
      %v10408 = vpop.f32.mrf.mxu0
      %v10409 = vadd.f32 0.0, %v10408
      %10410 = vmatmul.f32.gmra.mxu0 %v10318
      %v10411 = vpop.f32.mrf.mxu0
      %v10412 = vadd.f32 0.0, %v10411
      %10413 = vmatmul.f32.gmra.mxu0 %v10320
      %v10414 = vpop.f32.mrf.mxu0
      %v10415 = vadd.f32 0.0, %v10414
      %10416 = vmatmul.f32.gmra.mxu0 %v10322
      %v10417 = vpop.f32.mrf.mxu0
      %v10418 = vadd.f32 0.0, %v10417
      %10419 = vmatmul.f32.gmra.mxu0 %v10324
      %v10420 = vpop.f32.mrf.mxu0
      %v10421 = vadd.f32 0.0, %v10420
      %10422 = vmatmul.f32.gmra.mxu0 %v10326
      %v10423 = vpop.f32.mrf.mxu0
      %v10424 = vadd.f32 0.0, %v10423
      %10425 = vmatmul.f32.gmra.mxu0 %v10328
      %v10426 = vpop.f32.mrf.mxu0
      %v10427 = vadd.f32 0.0, %v10426
      %10428 = vmatmul.f32.gmra.mxu0 %v10330
      %v10429 = vpop.f32.mrf.mxu0
      %v10430 = vadd.f32 0.0, %v10429
      %10431 = vmatmul.f32.gmra.mxu0 %v10332
      %v10432 = vpop.f32.mrf.mxu0
      %v10433 = vadd.f32 0.0, %v10432
      %10434 = vmatmul.f32.gmra.mxu0 %v10334
      %v10435 = vpop.f32.mrf.mxu0
      %v10436 = vadd.f32 0.0, %v10435
      %10437 = vmatmul.f32.gmra.mxu0 %v10336
      %v10438 = vpop.f32.mrf.mxu0
      %v10439 = vadd.f32 0.0, %v10438
      %10440 = vmatmul.f32.gmra.mxu0 %v10338
      %v10441 = vpop.f32.mrf.mxu0
      %v10442 = vadd.f32 0.0, %v10441
      %10443 = vmatmul.f32.gmra.mxu0 %v10340
      %v10444 = vpop.f32.mrf.mxu0
      %v10445 = vadd.f32 0.0, %v10444
      %10446 = vmatmul.f32.gmra.mxu0 %v10342
      %v10447 = vpop.f32.mrf.mxu0
      %v10448 = vadd.f32 0.0, %v10447
      %10449 = vmatmul.f32.gmra.mxu0 %v10344
      %v10450 = vpop.f32.mrf.mxu0
      %v10451 = vadd.f32 0.0, %v10450
      %10452 = vmatmul.f32.gmra.mxu0 %v10346
      %v10453 = vpop.f32.mrf.mxu0
      %v10454 = vadd.f32 0.0, %v10453
      %10455 = vmatmul.f32.gmra.mxu0 %v10348
      %v10456 = vpop.f32.mrf.mxu0
      %v10457 = vadd.f32 0.0, %v10456
      %10458 = vmatmul.f32.gmra.mxu0 %v10350
      %v10459 = vpop.f32.mrf.mxu0
      %v10460 = vadd.f32 0.0, %v10459
      %10461 = vmatmul.f32.gmra.mxu0 %v10352
      %v10462 = vpop.f32.mrf.mxu0
      %v10463 = vadd.f32 0.0, %v10462
      %10464 = vmatmul.f32.gmra.mxu0 %v10354
      %v10465 = vpop.f32.mrf.mxu0
      %v10466 = vadd.f32 0.0, %v10465
      %10467 = vmatmul.f32.gmra.mxu0 %v10356
      %v10468 = vpop.f32.mrf.mxu0
      %v10469 = vadd.f32 0.0, %v10468
      %10470 = vdwg.mxu0
      %v10471 = vadd.f32 %v10253, %v10376
      %v10472 = vadd.f32 %v10254, %v10379
      %v10473 = vadd.f32 %v10255, %v10382
      %v10474 = vadd.f32 %v10256, %v10385
      %v10475 = vadd.f32 %v10257, %v10388
      %v10476 = vadd.f32 %v10258, %v10391
      %v10477 = vadd.f32 %v10259, %v10394
      %v10478 = vadd.f32 %v10260, %v10397
      %v10479 = vadd.f32 %v10261, %v10400
      %v10480 = vadd.f32 %v10262, %v10403
      %v10481 = vadd.f32 %v10263, %v10406
      %v10482 = vadd.f32 %v10264, %v10409
      %v10483 = vadd.f32 %v10265, %v10412
      %v10484 = vadd.f32 %v10266, %v10415
      %v10485 = vadd.f32 %v10267, %v10418
      %v10486 = vadd.f32 %v10268, %v10421
      %v10487 = vadd.f32 %v10269, %v10424
      %v10488 = vadd.f32 %v10270, %v10427
      %v10489 = vadd.f32 %v10271, %v10430
      %v10490 = vadd.f32 %v10272, %v10433
      %v10491 = vadd.f32 %v10273, %v10436
      %v10492 = vadd.f32 %v10274, %v10439
      %v10493 = vadd.f32 %v10275, %v10442
      %v10494 = vadd.f32 %v10276, %v10445
      %v10495 = vadd.f32 %v10277, %v10448
      %v10496 = vadd.f32 %v10278, %v10451
      %v10497 = vadd.f32 %v10279, %v10454
      %v10498 = vadd.f32 %v10280, %v10457
      %v10499 = vadd.f32 %v10281, %v10460
      %v10500 = vadd.f32 %v10282, %v10463
      %v10501 = vadd.f32 %v10283, %v10466
      %v10502 = vadd.f32 %v10284, %v10469
      %v10519 = vrot.slane %v9876, 1
      %v10520 = vrot.slane %v9877, 1
      %v10521 = vsel %vm436, %v10519, %v10520
      %v10522 = vrot.slane %v9878, 1
      %v10523 = vsel %vm436, %v10520, %v10522
      %v10524 = vrot.slane %v9880, 1
      %v10525 = vrot.slane %v9881, 1
      %v10526 = vsel %vm436, %v10524, %v10525
      %v10527 = vrot.slane %v9882, 1
      %v10528 = vsel %vm436, %v10525, %v10527
      %v10529 = vrot.slane %v9884, 1
      %v10530 = vrot.slane %v9885, 1
      %v10531 = vsel %vm436, %v10529, %v10530
      %v10532 = vrot.slane %v9886, 1
      %v10533 = vsel %vm436, %v10530, %v10532
      %v10534 = vrot.slane %v9888, 1
      %v10535 = vrot.slane %v9889, 1
      %v10536 = vsel %vm436, %v10534, %v10535
      %v10537 = vrot.slane %v9890, 1
      %v10538 = vsel %vm436, %v10535, %v10537
      %v10539 = vrot.slane %v9892, 1
      %v10540 = vrot.slane %v9893, 1
      %v10541 = vsel %vm436, %v10539, %v10540
      %v10542 = vrot.slane %v9894, 1
      %v10543 = vsel %vm436, %v10540, %v10542
      %v10544 = vrot.slane %v9896, 1
      %v10545 = vrot.slane %v9897, 1
      %v10546 = vsel %vm436, %v10544, %v10545
      %v10547 = vrot.slane %v9898, 1
      %v10548 = vsel %vm436, %v10545, %v10547
      %v10549 = vrot.slane %v9900, 1
      %v10550 = vrot.slane %v9901, 1
      %v10551 = vsel %vm436, %v10549, %v10550
      %v10552 = vrot.slane %v9902, 1
      %v10553 = vsel %vm436, %v10550, %v10552
      %v10554 = vrot.slane %v9904, 1
      %v10555 = vrot.slane %v9905, 1
      %v10556 = vsel %vm436, %v10554, %v10555
      %v10557 = vrot.slane %v9906, 1
      %v10558 = vsel %vm436, %v10555, %v10557
      %v10559 = vrot.slane %v9908, 1
      %v10560 = vrot.slane %v9909, 1
      %v10561 = vsel %vm436, %v10559, %v10560
      %v10562 = vrot.slane %v9910, 1
      %v10563 = vsel %vm436, %v10560, %v10562
      %v10564 = vrot.slane %v9912, 1
      %v10565 = vrot.slane %v9913, 1
      %v10566 = vsel %vm436, %v10564, %v10565
      %v10567 = vrot.slane %v9914, 1
      %v10568 = vsel %vm436, %v10565, %v10567
      %v10569 = vrot.slane %v9916, 1
      %v10570 = vrot.slane %v9917, 1
      %v10571 = vsel %vm436, %v10569, %v10570
      %v10572 = vrot.slane %v9918, 1
      %v10573 = vsel %vm436, %v10570, %v10572
      %v10574 = vrot.slane %v9920, 1
      %v10575 = vrot.slane %v9921, 1
      %v10576 = vsel %vm436, %v10574, %v10575
      %v10577 = vrot.slane %v9922, 1
      %v10578 = vsel %vm436, %v10575, %v10577
      %v10579 = vrot.slane %v9924, 1
      %v10580 = vrot.slane %v9925, 1
      %v10581 = vsel %vm436, %v10579, %v10580
      %v10582 = vrot.slane %v9926, 1
      %v10583 = vsel %vm436, %v10580, %v10582
      %v10584 = vrot.slane %v9928, 1
      %v10585 = vrot.slane %v9929, 1
      %v10586 = vsel %vm436, %v10584, %v10585
      %v10587 = vrot.slane %v9930, 1
      %v10588 = vsel %vm436, %v10585, %v10587
      %v10589 = vrot.slane %v9932, 1
      %v10590 = vrot.slane %v9933, 1
      %v10591 = vsel %vm436, %v10589, %v10590
      %v10592 = vrot.slane %v9934, 1
      %v10593 = vsel %vm436, %v10590, %v10592
      %v10594 = vrot.slane %v9936, 1
      %v10595 = vrot.slane %v9937, 1
      %v10596 = vsel %vm436, %v10594, %v10595
      %v10597 = vrot.slane %v9938, 1
      %v10598 = vsel %vm436, %v10595, %v10597
      %s10599 = scalar_lea.vmem %s7, 512
      %v10600 = vld [vmem:[%s10599] sm:$0xff]
      %v10601 = vld [vmem:[%s10599 + $0x8] sm:$0xff]
      %v10602 = vld [vmem:[%s10599 + $0x10] sm:$0xff]
      %v10603 = vld [vmem:[%s10599 + $0x18] sm:$0xff]
      %v10604 = vld [vmem:[%s10599 + $0x20] sm:$0xff]
      %v10605 = vld [vmem:[%s10599 + $0x28] sm:$0xff]
      %v10606 = vld [vmem:[%s10599 + $0x30] sm:$0xff]
      %v10607 = vld [vmem:[%s10599 + $0x38] sm:$0xff]
      %v10608 = vsel %vm2194, %v10521, 0
      %v10610 = vsel %vm2194, %v10523, 0
      %v10612 = vsel %vm2194, %v10526, 0
      %v10614 = vsel %vm2194, %v10528, 0
      %v10616 = vsel %vm2194, %v10531, 0
      %v10618 = vsel %vm2194, %v10533, 0
      %v10620 = vsel %vm2194, %v10536, 0
      %v10622 = vsel %vm2194, %v10538, 0
      %v10624 = vsel %vm2194, %v10541, 0
      %v10626 = vsel %vm2194, %v10543, 0
      %v10628 = vsel %vm2194, %v10546, 0
      %v10630 = vsel %vm2194, %v10548, 0
      %v10632 = vsel %vm2194, %v10551, 0
      %v10634 = vsel %vm2194, %v10553, 0
      %v10636 = vsel %vm2194, %v10556, 0
      %v10638 = vsel %vm2194, %v10558, 0
      %v10640 = vsel %vm2194, %v10561, 0
      %v10642 = vsel %vm2194, %v10563, 0
      %v10644 = vsel %vm2194, %v10566, 0
      %v10646 = vsel %vm2194, %v10568, 0
      %v10648 = vsel %vm2194, %v10571, 0
      %v10650 = vsel %vm2194, %v10573, 0
      %v10652 = vsel %vm2194, %v10576, 0
      %v10654 = vsel %vm2194, %v10578, 0
      %v10656 = vsel %vm2194, %v10581, 0
      %v10658 = vsel %vm2194, %v10583, 0
      %v10660 = vsel %vm2194, %v10586, 0
      %v10662 = vsel %vm2194, %v10588, 0
      %v10664 = vsel %vm2194, %v10591, 0
      %v10666 = vsel %vm2194, %v10593, 0
      %v10668 = vsel %vm2194, %v10596, 0
      %v10670 = vsel %vm2194, %v10598, 0
      %10672 = vmatpush.msra.mxu0 0.0
      %10673 = vmatpush.msra.mxu0 0.0
      %10674 = vmatpush.msra.mxu0 0.0
      %10675 = vmatpush.msra.mxu0 0.0
      %10676 = vmatpush.msra.mxu0 0.0
      %10677 = vmatpush.msra.mxu0 0.0
      %10678 = vmatpush.msra.mxu0 0.0
      %10679 = vmatpush.msra.mxu0 0.0
      %10680 = vmatpush.msra.mxu0 %v10607
      %10681 = vmatpush.msra.mxu0 %v10606
      %10682 = vmatpush.msra.mxu0 %v10605
      %10683 = vmatpush.msra.mxu0 %v10604
      %10684 = vmatpush.msra.mxu0 %v10603
      %10685 = vmatpush.msra.mxu0 %v10602
      %10686 = vmatpush.msra.mxu0 %v10601
      %10687 = vmatpush.msra.mxu0 %v10600
      %10688 = vmatmul.f32.gmra.mxu0 %v10608
      %v10689 = vpop.f32.mrf.mxu0
      %v10690 = vadd.f32 0.0, %v10689
      %10691 = vmatmul.f32.gmra.mxu0 %v10610
      %v10692 = vpop.f32.mrf.mxu0
      %v10693 = vadd.f32 0.0, %v10692
      %10694 = vmatmul.f32.gmra.mxu0 %v10612
      %v10695 = vpop.f32.mrf.mxu0
      %v10696 = vadd.f32 0.0, %v10695
      %10697 = vmatmul.f32.gmra.mxu0 %v10614
      %v10698 = vpop.f32.mrf.mxu0
      %v10699 = vadd.f32 0.0, %v10698
      %10700 = vmatmul.f32.gmra.mxu0 %v10616
      %v10701 = vpop.f32.mrf.mxu0
      %v10702 = vadd.f32 0.0, %v10701
      %10703 = vmatmul.f32.gmra.mxu0 %v10618
      %v10704 = vpop.f32.mrf.mxu0
      %v10705 = vadd.f32 0.0, %v10704
      %10706 = vmatmul.f32.gmra.mxu0 %v10620
      %v10707 = vpop.f32.mrf.mxu0
      %v10708 = vadd.f32 0.0, %v10707
      %10709 = vmatmul.f32.gmra.mxu0 %v10622
      %v10710 = vpop.f32.mrf.mxu0
      %v10711 = vadd.f32 0.0, %v10710
      %10712 = vmatmul.f32.gmra.mxu0 %v10624
      %v10713 = vpop.f32.mrf.mxu0
      %v10714 = vadd.f32 0.0, %v10713
      %10715 = vmatmul.f32.gmra.mxu0 %v10626
      %v10716 = vpop.f32.mrf.mxu0
      %v10717 = vadd.f32 0.0, %v10716
      %10718 = vmatmul.f32.gmra.mxu0 %v10628
      %v10719 = vpop.f32.mrf.mxu0
      %v10720 = vadd.f32 0.0, %v10719
      %10721 = vmatmul.f32.gmra.mxu0 %v10630
      %v10722 = vpop.f32.mrf.mxu0
      %v10723 = vadd.f32 0.0, %v10722
      %10724 = vmatmul.f32.gmra.mxu0 %v10632
      %v10725 = vpop.f32.mrf.mxu0
      %v10726 = vadd.f32 0.0, %v10725
      %10727 = vmatmul.f32.gmra.mxu0 %v10634
      %v10728 = vpop.f32.mrf.mxu0
      %v10729 = vadd.f32 0.0, %v10728
      %10730 = vmatmul.f32.gmra.mxu0 %v10636
      %v10731 = vpop.f32.mrf.mxu0
      %v10732 = vadd.f32 0.0, %v10731
      %10733 = vmatmul.f32.gmra.mxu0 %v10638
      %v10734 = vpop.f32.mrf.mxu0
      %v10735 = vadd.f32 0.0, %v10734
      %10736 = vmatmul.f32.gmra.mxu0 %v10640
      %v10737 = vpop.f32.mrf.mxu0
      %v10738 = vadd.f32 0.0, %v10737
      %10739 = vmatmul.f32.gmra.mxu0 %v10642
      %v10740 = vpop.f32.mrf.mxu0
      %v10741 = vadd.f32 0.0, %v10740
      %10742 = vmatmul.f32.gmra.mxu0 %v10644
      %v10743 = vpop.f32.mrf.mxu0
      %v10744 = vadd.f32 0.0, %v10743
      %10745 = vmatmul.f32.gmra.mxu0 %v10646
      %v10746 = vpop.f32.mrf.mxu0
      %v10747 = vadd.f32 0.0, %v10746
      %10748 = vmatmul.f32.gmra.mxu0 %v10648
      %v10749 = vpop.f32.mrf.mxu0
      %v10750 = vadd.f32 0.0, %v10749
      %10751 = vmatmul.f32.gmra.mxu0 %v10650
      %v10752 = vpop.f32.mrf.mxu0
      %v10753 = vadd.f32 0.0, %v10752
      %10754 = vmatmul.f32.gmra.mxu0 %v10652
      %v10755 = vpop.f32.mrf.mxu0
      %v10756 = vadd.f32 0.0, %v10755
      %10757 = vmatmul.f32.gmra.mxu0 %v10654
      %v10758 = vpop.f32.mrf.mxu0
      %v10759 = vadd.f32 0.0, %v10758
      %10760 = vmatmul.f32.gmra.mxu0 %v10656
      %v10761 = vpop.f32.mrf.mxu0
      %v10762 = vadd.f32 0.0, %v10761
      %10763 = vmatmul.f32.gmra.mxu0 %v10658
      %v10764 = vpop.f32.mrf.mxu0
      %v10765 = vadd.f32 0.0, %v10764
      %10766 = vmatmul.f32.gmra.mxu0 %v10660
      %v10767 = vpop.f32.mrf.mxu0
      %v10768 = vadd.f32 0.0, %v10767
      %10769 = vmatmul.f32.gmra.mxu0 %v10662
      %v10770 = vpop.f32.mrf.mxu0
      %v10771 = vadd.f32 0.0, %v10770
      %10772 = vmatmul.f32.gmra.mxu0 %v10664
      %v10773 = vpop.f32.mrf.mxu0
      %v10774 = vadd.f32 0.0, %v10773
      %10775 = vmatmul.f32.gmra.mxu0 %v10666
      %v10776 = vpop.f32.mrf.mxu0
      %v10777 = vadd.f32 0.0, %v10776
      %10778 = vmatmul.f32.gmra.mxu0 %v10668
      %v10779 = vpop.f32.mrf.mxu0
      %v10780 = vadd.f32 0.0, %v10779
      %10781 = vmatmul.f32.gmra.mxu0 %v10670
      %v10782 = vpop.f32.mrf.mxu0
      %v10783 = vadd.f32 0.0, %v10782
      %10784 = vdwg.mxu0
      %v10785 = vadd.f32 %v10471, %v10690
      %v10786 = vadd.f32 %v10472, %v10693
      %v10787 = vadd.f32 %v10473, %v10696
      %v10788 = vadd.f32 %v10474, %v10699
      %v10789 = vadd.f32 %v10475, %v10702
      %v10790 = vadd.f32 %v10476, %v10705
      %v10791 = vadd.f32 %v10477, %v10708
      %v10792 = vadd.f32 %v10478, %v10711
      %v10793 = vadd.f32 %v10479, %v10714
      %v10794 = vadd.f32 %v10480, %v10717
      %v10795 = vadd.f32 %v10481, %v10720
      %v10796 = vadd.f32 %v10482, %v10723
      %v10797 = vadd.f32 %v10483, %v10726
      %v10798 = vadd.f32 %v10484, %v10729
      %v10799 = vadd.f32 %v10485, %v10732
      %v10800 = vadd.f32 %v10486, %v10735
      %v10801 = vadd.f32 %v10487, %v10738
      %v10802 = vadd.f32 %v10488, %v10741
      %v10803 = vadd.f32 %v10489, %v10744
      %v10804 = vadd.f32 %v10490, %v10747
      %v10805 = vadd.f32 %v10491, %v10750
      %v10806 = vadd.f32 %v10492, %v10753
      %v10807 = vadd.f32 %v10493, %v10756
      %v10808 = vadd.f32 %v10494, %v10759
      %v10809 = vadd.f32 %v10495, %v10762
      %v10810 = vadd.f32 %v10496, %v10765
      %v10811 = vadd.f32 %v10497, %v10768
      %v10812 = vadd.f32 %v10498, %v10771
      %v10813 = vadd.f32 %v10499, %v10774
      %v10814 = vadd.f32 %v10500, %v10777
      %v10815 = vadd.f32 %v10501, %v10780
      %v10816 = vadd.f32 %v10502, %v10783
      %v10817 = vld [vmem:[%s8] sm:$0x1]
      %v10819 = vperm.slane %v10817, 0
      %v10821 = vadd.f32 %v10785, %v10819
      %v10822 = vadd.f32 %v10786, %v10819
      %v10823 = vadd.f32 %v10787, %v10819
      %v10824 = vadd.f32 %v10788, %v10819
      %v10825 = vadd.f32 %v10789, %v10819
      %v10826 = vadd.f32 %v10790, %v10819
      %v10827 = vadd.f32 %v10791, %v10819
      %v10828 = vadd.f32 %v10792, %v10819
      %v10829 = vadd.f32 %v10793, %v10819
      %v10830 = vadd.f32 %v10794, %v10819
      %v10831 = vadd.f32 %v10795, %v10819
      %v10832 = vadd.f32 %v10796, %v10819
      %v10833 = vadd.f32 %v10797, %v10819
      %v10834 = vadd.f32 %v10798, %v10819
      %v10835 = vadd.f32 %v10799, %v10819
      %v10836 = vadd.f32 %v10800, %v10819
      %v10837 = vadd.f32 %v10801, %v10819
      %v10838 = vadd.f32 %v10802, %v10819
      %v10839 = vadd.f32 %v10803, %v10819
      %v10840 = vadd.f32 %v10804, %v10819
      %v10841 = vadd.f32 %v10805, %v10819
      %v10842 = vadd.f32 %v10806, %v10819
      %v10843 = vadd.f32 %v10807, %v10819
      %v10844 = vadd.f32 %v10808, %v10819
      %v10845 = vadd.f32 %v10809, %v10819
      %v10846 = vadd.f32 %v10810, %v10819
      %v10847 = vadd.f32 %v10811, %v10819
      %v10848 = vadd.f32 %v10812, %v10819
      %v10849 = vadd.f32 %v10813, %v10819
      %v10850 = vadd.f32 %v10814, %v10819
      %v10851 = vadd.f32 %v10815, %v10819
      %v10852 = vadd.f32 %v10816, %v10819
      %vm10853 = vcmask 48128
      %10854 = vst.msk [vmem:[%s332] sm:$0xff] %vm10853, %v10821
      %10855 = vst.msk [vmem:[%s332 + $0x8] sm:$0xff] %vm10853, %v10822
      %10856 = vst.msk [vmem:[%s332 + $0x10] sm:$0xff] %vm10853, %v10823
      %10857 = vst.msk [vmem:[%s332 + $0x18] sm:$0xff] %vm10853, %v10824
      %10858 = vst.msk [vmem:[%s332 + $0x20] sm:$0xff] %vm10853, %v10825
      %10859 = vst.msk [vmem:[%s332 + $0x28] sm:$0xff] %vm10853, %v10826
      %10860 = vst.msk [vmem:[%s332 + $0x30] sm:$0xff] %vm10853, %v10827
      %10861 = vst.msk [vmem:[%s332 + $0x38] sm:$0xff] %vm10853, %v10828
      %10862 = vst.msk [vmem:[%s332 + $0x40] sm:$0xff] %vm10853, %v10829
      %10863 = vst.msk [vmem:[%s332 + $0x48] sm:$0xff] %vm10853, %v10830
      %10864 = vst.msk [vmem:[%s332 + $0x50] sm:$0xff] %vm10853, %v10831
      %10865 = vst.msk [vmem:[%s332 + $0x58] sm:$0xff] %vm10853, %v10832
      %10866 = vst.msk [vmem:[%s332 + $0x60] sm:$0xff] %vm10853, %v10833
      %10867 = vst.msk [vmem:[%s332 + $0x68] sm:$0xff] %vm10853, %v10834
      %10868 = vst.msk [vmem:[%s332 + $0x70] sm:$0xff] %vm10853, %v10835
      %10869 = vst.msk [vmem:[%s332 + $0x78] sm:$0xff] %vm10853, %v10836
      %10870 = vst.msk [vmem:[%s332 + $0x80] sm:$0xff] %vm10853, %v10837
      %10871 = vst.msk [vmem:[%s332 + $0x88] sm:$0xff] %vm10853, %v10838
      %10872 = vst.msk [vmem:[%s332 + $0x90] sm:$0xff] %vm10853, %v10839
      %10873 = vst.msk [vmem:[%s332 + $0x98] sm:$0xff] %vm10853, %v10840
      %10874 = vst.msk [vmem:[%s332 + $0xa0] sm:$0xff] %vm10853, %v10841
      %10875 = vst.msk [vmem:[%s332 + $0xa8] sm:$0xff] %vm10853, %v10842
      %10876 = vst.msk [vmem:[%s332 + $0xb0] sm:$0xff] %vm10853, %v10843
      %10877 = vst.msk [vmem:[%s332 + $0xb8] sm:$0xff] %vm10853, %v10844
      %10878 = vst.msk [vmem:[%s332 + $0xc0] sm:$0xff] %vm10853, %v10845
      %10879 = vst.msk [vmem:[%s332 + $0xc8] sm:$0xff] %vm10853, %v10846
      %10880 = vst.msk [vmem:[%s332 + $0xd0] sm:$0xff] %vm10853, %v10847
      %10881 = vst.msk [vmem:[%s332 + $0xd8] sm:$0xff] %vm10853, %v10848
      %10882 = vst.msk [vmem:[%s332 + $0xe0] sm:$0xff] %vm10853, %v10849
      %10883 = vst.msk [vmem:[%s332 + $0xe8] sm:$0xff] %vm10853, %v10850
      %10884 = vst.msk [vmem:[%s332 + $0xf0] sm:$0xff] %vm10853, %v10851
      %10885 = vst.msk [vmem:[%s332 + $0xf8] sm:$0xff] %vm10853, %v10852
      %p10886 = scmp.lt.s32.totalorder %s20, 1
      %s10887 = scalar_select %p10886, %s20, 1
      %s10888 = smul.addr %s10887, 32
      %s10889 = smul.addr %s10888, 8
      %s10890 = scalar_lea.vmem %s9, %s10889
      // Predicated region
      $region57: #{fwd.1} parent=55 // pred_check
        %p10891 = pneg %p232
      $region58: #{fwd.1} parent=55 // pred_check_branch
        %10893 = sbr.rel (%p10891) target = $region60
      $region59: #{fwd.1} parent=55 // pred_region
        _
      $region60: #{fwd.1} parent=55 // pred_fallthru
        _
    $region56: #{fwd.1} parent=5 // pred_fallthru
      _
    %p10894 = scmp.le.s32.totalorder 2, %s15
    // Predicated region
    $region61: #{fwd.1} parent=5 // pred_check
      %p10895 = pneg %p10894
    $region62: #{fwd.1} parent=5 // pred_check_branch
      %10897 = sbr.rel (%p10895) target = $region64
    $region63: #{fwd.1} parent=5 // pred_region
      %s10898 = ssub.s32 %s15, 2
      // Predicated region
      $region65: #{fwd.1} parent=63 // pred_check
        %p10899 = pneg %p238
      $region66: #{fwd.1} parent=63 // pred_check_branch
        %10901 = sbr.rel (%p10899) target = $region68
      $region67: #{fwd.1} parent=63 // pred_region
        %p10902 = scmp.lt.s32.totalorder %s21, 1
        %s10903 = scalar_select %p10902, %s21, 1
        %s10904 = smul.addr %s10903, 32
        %s10905 = smul.addr %s10904, 8
        %s10906 = scalar_lea.vmem %s9, %s10905
      $region68: #{fwd.1} parent=63 // pred_fallthru
        _
    $region64: #{fwd.1} parent=5 // pred_fallthru
      _
  $region6: #{fwd.1} parent=0 // loop_footer
    %s19 = sadd.s32 1, %s15
  $region7: #{fwd.1} parent=0 // loop_footer_branch
    %14 = sbr.rel target = $region3
  $region8: #{fwd.1} parent=0 // loop_exit
    _

</llo_original>
